<compile_context>
chip_gen: v6e
topology: v6e:2x2x1
jax: 0.10.0
libtpu: 0.0.40
codegen_flags: <defaults>
</compile_context>

<pallas_src>
import jax
import jax.numpy as jnp
from jax.experimental import pallas as pl
from jax.experimental.pallas import tpu as pltpu

# ---------------- synthetic config (small shapes) ----------------
BATCH = 2
CHANNELS = 3
FRAME_H = FRAME_W = 16
COND_FRAMES = 2
PRED_FRAMES = 2
NUM_FRAMES = COND_FRAMES + PRED_FRAMES
FLOW_H = FLOW_W = 8            # region_predictor scale_factor = 0.5
HW = FLOW_H * FLOW_W
ENC_CH = 16
BOTTLE_CH = 32                 # stands in for the 256-ch bottleneck feature
UNET_HIDDEN = 64
LANES = 128
TIMESTEPS = 1000

VMEM_SPEC = pl.BlockSpec(memory_space=pltpu.MemorySpace.VMEM)
SMEM_SPEC = pl.BlockSpec(memory_space=pltpu.MemorySpace.SMEM)


# ============================ Pallas kernels ============================

def encoder_bottleneck(xwin, p):
    """Fused encoder + 2x2 mean-pool + bottleneck.

    xwin rows hold the 2x2 pool window (4*C values); the encoder weight is replicated
    block-diagonally over the window and the mean-pool matrix is folded into the
    bottleneck weight, so the whole thing is two MXU matmuls with ReLU epilogues and
    the 64-wide encoder activation stays in VMEM."""
    m = xwin.shape[0]

    def kernel(x_ref, we_ref, be_ref, wb_ref, bb_ref, o_ref):
        h = jnp.dot(x_ref[...].astype(jnp.bfloat16), we_ref[...],
                    preferred_element_type=jnp.float32) + be_ref[...]
        h = jnp.maximum(h, 0.0)
        o = jnp.dot(h.astype(jnp.bfloat16), wb_ref[...],
                    preferred_element_type=jnp.float32) + bb_ref[...]
        o_ref[...] = jnp.maximum(o, 0.0)

    return pl.pallas_call(
        kernel,
        out_shape=jax.ShapeDtypeStruct((m, BOTTLE_CH), jnp.float32),
        in_specs=[VMEM_SPEC] * 5,
        out_specs=VMEM_SPEC,
    )(xwin, p["enc_blk_w"], p["enc_blk_b"], p["pool_bottle_w"], p["bottle_b"])


def flow_conf_head(bottle_rows, ref_rows, p):
    """Fused flow/conf head, 128-lane-dense output.

    Output lanes: [flow_x(+grid), flow_y(+grid), 2*conf-1, conf, 0...].  The
    reference-feature half of the matmul is computed once per batch element and
    broadcast-added over the NUM_FRAMES driving frames in-kernel (no HBM
    broadcast/concat); a single tanh pass produces both the tanh and sigmoid lanes."""
    m = bottle_rows.shape[0]

    def kernel(drv_ref, refb_ref, wd_ref, wr_ref, b_ref, idg_ref, o_ref):
        drv = jnp.dot(drv_ref[...].astype(jnp.bfloat16), wd_ref[...],
                      preferred_element_type=jnp.float32)          # (m, 128)
        refc = jnp.dot(refb_ref[...].astype(jnp.bfloat16), wr_ref[...],
                       preferred_element_type=jnp.float32)         # (B*HW, 128)
        lane = jax.lax.broadcasted_iota(jnp.int32, (HW, LANES), 1)
        idg = idg_ref[...]
        bias = b_ref[...]
        for b in range(BATCH):
            rc = refc[b * HW:(b + 1) * HW, :]
            for f in range(NUM_FRAMES):
                r0 = (b * NUM_FRAMES + f) * HW
                acc = drv[r0:r0 + HW, :] + rc + bias
                # one EUP pass: tanh(acc) for flow lanes, tanh(acc/2) for conf lanes
                t = jnp.tanh(jnp.where(lane < 2, acc, 0.5 * acc))
                o_ref[r0:r0 + HW, :] = idg + jnp.where(
                    lane < 2, 0.1 * t,
                    jnp.where(lane == 2, t,
                              jnp.where(lane == 3, 0.5 + 0.5 * t, 0.0)))

    return pl.pallas_call(
        kernel,
        out_shape=jax.ShapeDtypeStruct((m, LANES), jnp.float32),
        in_specs=[VMEM_SPEC] * 6,
        out_specs=VMEM_SPEC,
    )(bottle_rows, ref_rows, p["head_w_drv"], p["head_w_ref"], p["head_b"],
      p["id_grid_pad"])


def decode_with_conf(deformed_rows, conf_rows, p):
    """Decoder 1x1 conv + sigmoid + occlusion-confidence multiply; 128-lane-dense
    output (slice [:, :3] outside)."""
    m = deformed_rows.shape[0]

    def kernel(x_ref, c_ref, w_ref, b_ref, o_ref):
        acc = jnp.dot(x_ref[...].astype(jnp.bfloat16), w_ref[...],
                      preferred_element_type=jnp.float32) + b_ref[...]
        o_ref[...] = jax.nn.sigmoid(acc) * c_ref[...]

    return pl.pallas_call(
        kernel,
        out_shape=jax.ShapeDtypeStruct((m, LANES), jnp.float32),
        in_specs=[VMEM_SPEC] * 4,
        out_specs=VMEM_SPEC,
    )(deformed_rows, conf_rows, p["dec_w"], p["dec_b"])


def diffusion_step(scalars, xp_pad, nz_pad, cm_pad, fea, p):
    """Fused GaussianDiffusion training step.

    One kernel does: q_sample affine (scalars from SMEM), the 38-channel concat of
    [x_t, cond_mean, fea] (via group-split matmuls), the 2-layer denoiser, the MSE
    reduction, and the pred_x0 affine + clamp.  x_t / hidden / eps never leave VMEM.
    Padded lanes of the inputs / weights are zero so the MSE over the full 128-lane
    tile equals the MSE over the 3 real channels."""
    m = xp_pad.shape[0]
    mse_inv = 1.0 / float(m * CHANNELS)

    def kernel(s_ref, xp_ref, nz_ref, cm_ref, fea_ref,
               w1x_ref, w1c_ref, w1f_ref, b1_ref, w2_ref, b2_ref,
               pred_ref, loss_ref):
        sac = s_ref[0]
        som = s_ref[1]
        inv_sac = s_ref[2]
        nz = nz_ref[...]
        x_t = sac * xp_ref[...] + som * nz                         # q_sample
        h1 = (jnp.dot(x_t.astype(jnp.bfloat16), w1x_ref[...],
                      preferred_element_type=jnp.float32)
              + jnp.dot(cm_ref[...].astype(jnp.bfloat16), w1c_ref[...],
                        preferred_element_type=jnp.float32)
              + jnp.dot(fea_ref[...].astype(jnp.bfloat16), w1f_ref[...],
                        preferred_element_type=jnp.float32)
              + b1_ref[...])
        h1 = jnp.maximum(h1, 0.0).astype(jnp.bfloat16)             # no HBM round-trip
        eps = jnp.dot(h1, w2_ref[...],
                      preferred_element_type=jnp.float32) + b2_ref[...]
        d = eps - nz                                               # padded lanes == 0
        loss_ref[...] = jnp.reshape(jnp.sum(d * d) * mse_inv, (1, 1))
        # pred_x0 = (x_t - sqrt(1-acp)*eps)/sqrt(acp), clamped.
        # TODO(synk): GaussianDiffusion dynamic thresholding simplified to fixed clamp.
        pred_ref[...] = jnp.clip((x_t - som * eps) * inv_sac, -1.0, 1.0)

    pred, loss = pl.pallas_call(
        kernel,
        out_shape=(jax.ShapeDtypeStruct((m, LANES), jnp.float32),
                   jax.ShapeDtypeStruct((1, 1), jnp.float32)),
        in_specs=[SMEM_SPEC] + [VMEM_SPEC] * 10,
        out_specs=(VMEM_SPEC, VMEM_SPEC),
    )(scalars, xp_pad, nz_pad, cm_pad, fea,
      p["unet_w1x"], p["unet_w1c"], p["unet_w1f"], p["unet_b1"],
      p["unet_w2"], p["unet_b2"])
    return loss[0, 0], pred


def l1_pair(gt, pred_a, pred_b):
    """rec_loss and rec_warp_loss in one kernel sharing the ground-truth load; inputs
    arrive as lane-dense (rows, 128) flattenings of identically-shaped tensors."""
    inv_n = 1.0 / float(gt.size)

    def kernel(gt_ref, a_ref, b_ref, oa_ref, ob_ref):
        g = gt_ref[...]
        oa_ref[...] = jnp.reshape(jnp.sum(jnp.abs(g - a_ref[...])) * inv_n, (1, 1))
        ob_ref[...] = jnp.reshape(jnp.sum(jnp.abs(g - b_ref[...])) * inv_n, (1, 1))

    la, lb = pl.pallas_call(
        kernel,
        out_shape=(jax.ShapeDtypeStruct((1, 1), jnp.float32),
                   jax.ShapeDtypeStruct((1, 1), jnp.float32)),
        in_specs=[VMEM_SPEC] * 3,
        out_specs=(VMEM_SPEC, VMEM_SPEC),
    )(gt, pred_a, pred_b)
    return la[0, 0], lb[0, 0]


# ============================ JAX glue (channels-last) ============================

def identity_grid(h, w):
    ys, xs = jnp.meshgrid(jnp.linspace(-1.0, 1.0, h),
                          jnp.linspace(-1.0, 1.0, w), indexing="ij")
    return jnp.stack([xs, ys], axis=-1)           # (h, w, 2), (x, y) ordering


def grid_sample_bilinear(img, grid):
    # TODO(synk): F.grid_sample is a data-dependent gather with no clean Pallas TPU
    # equivalent without a manual DMA-gather kernel; the bilinear warp stays in XLA.
    B, H, W, C = img.shape
    x = (grid[..., 0] + 1.0) * 0.5 * (W - 1)
    y = (grid[..., 1] + 1.0) * 0.5 * (H - 1)
    x0 = jnp.floor(x)
    y0 = jnp.floor(y)
    wx = (x - x0)[..., None]
    wy = (y - y0)[..., None]
    x0c = jnp.clip(x0, 0, W - 1).astype(jnp.int32)
    x1c = jnp.clip(x0 + 1, 0, W - 1).astype(jnp.int32)
    y0c = jnp.clip(y0, 0, H - 1).astype(jnp.int32)
    y1c = jnp.clip(y0 + 1, 0, H - 1).astype(jnp.int32)
    gather = jax.vmap(lambda im, yy, xx: im[yy, xx])               # over batch
    v00 = gather(img, y0c, x0c)
    v01 = gather(img, y0c, x1c)
    v10 = gather(img, y1c, x0c)
    v11 = gather(img, y1c, x1c)
    return ((1 - wy) * ((1 - wx) * v00 + wx * v01)
            + wy * ((1 - wx) * v10 + wx * v11))


def warp_and_decode(ref_img, flow, conf, params):
    """Warp the reference frame with all F flows at once, then fused decode."""
    B, H, W, C = ref_img.shape
    F_ = flow.shape[1]
    flow_up = jax.image.resize(flow, (B, F_, H, W, 2), method="bilinear")
    conf_up = jax.image.resize(conf, (B, F_, H, W, 1), method="bilinear")
    deformed = grid_sample_bilinear(ref_img, flow_up)              # (B, F, H, W, C)
    pred_pad = decode_with_conf(deformed.reshape(B * F_ * H * W, C),
                                conf_up.reshape(B * F_ * H * W, 1), params)
    prediction = pred_pad[:, :C].reshape(B, F_, H, W, C)
    return deformed, prediction


# ------------- FlowDiffusion.forward -------------

def flow_diffusion_forward(real_vid, params, key):
    B, C, nf, H, W = real_vid.shape
    Tc, Tp = COND_FRAMES, PRED_FRAMES
    h, w = FLOW_H, FLOW_W
    ret = {}

    # channels-last internal layout; NCHW only at the module boundary
    vid = jnp.transpose(real_vid, (0, 2, 3, 4, 1))                 # (B, nf, H, W, C)
    ref_img = vid[:, Tc - 1]                                       # (B, H, W, C)

    # ---- fused encoder + 2x2 mean-pool + bottleneck (all frames, one kernel) ----
    xwin = vid.reshape(B, nf, h, 2, w, 2, C).transpose(0, 1, 2, 4, 3, 5, 6)
    xwin = xwin.reshape(B * nf * h * w, 4 * C)
    bottle_rows = encoder_bottleneck(xwin, params)                 # (B*nf*h*w, 32)
    bottle = bottle_rows.reshape(B, nf, h, w, BOTTLE_CH)
    ref_rows = bottle[:, Tc - 1].reshape(B * h * w, BOTTLE_CH)     # source bottleneck

    # ---- fused flow/conf head (ref/driving concat fused, lane-dense output) ----
    head_out = flow_conf_head(bottle_rows, ref_rows, params)       # (B*nf*h*w, 128)
    head_out = head_out.reshape(B, nf, h, w, LANES)
    flow = head_out[..., 0:2]                                      # id_grid + 0.1*tanh
    conf = head_out[..., 3:4]                                      # sigmoid

    # ---- warp the reference frame with every real flow (batched) ----
    deformed, prediction = warp_and_decode(ref_img, flow, conf, params)

    ret["real_vid_grid"] = jnp.transpose(flow, (0, 4, 1, 2, 3))        # (B,2,nf,h,w)
    ret["real_vid_conf"] = jnp.transpose(conf, (0, 4, 1, 2, 3))        # (B,1,nf,h,w)
    ret["real_out_vid"] = jnp.transpose(prediction, (0, 4, 1, 2, 3))   # (B,3,nf,H,W)
    ret["real_warped_vid"] = jnp.transpose(deformed, (0, 4, 1, 2, 3))

    pred_frames = vid[:, Tc:Tc + Tp]                               # (B, Tp, H, W, 3)

    # conditioning features used by the denoiser: ref_img_fea[:, -Tp:] equals the
    # bottleneck feature of the last driving frame repeated over the pred frames.
    fea_pred = jnp.broadcast_to(
        bottle[:, nf - 1:nf], (B, Tp, h, w, BOTTLE_CH)).reshape(B * Tp * h * w,
                                                                BOTTLE_CH)

    # ---- fused diffusion training step (use_residual_flow = False path) ----
    # head_out lanes 0..2 already hold [flow_x, flow_y, 2*conf-1] with zero padding
    # beyond lane 3, so x_pred / x_cond need no concat or extra padding.
    key_t, key_n = jax.random.split(key)
    t = jax.random.randint(key_t, (), 0, TIMESTEPS)
    sac = params["sqrt_acp"][t]
    som = params["sqrt_om_acp"][t]
    scalars = jnp.stack([sac, som, 1.0 / sac])

    xp_pad = head_out[:, Tc:Tc + Tp].reshape(B * Tp * h * w, LANES)
    cm = jnp.mean(head_out[:, :Tc], axis=1, keepdims=True)
    cm_pad = jnp.broadcast_to(cm, (B, Tp, h, w, LANES)).reshape(B * Tp * h * w, LANES)
    noise = jax.random.normal(key_n, (B * Tp * h * w, CHANNELS), jnp.float32)
    nz_pad = jnp.pad(noise, ((0, 0), (0, LANES - CHANNELS)))

    loss, pred_rows = diffusion_step(scalars, xp_pad, nz_pad, cm_pad, fea_pred, params)
    ret["loss"] = loss

    pred = pred_rows.reshape(B, Tp, h, w, LANES)
    fake_flow = pred[..., 0:2]                                     # (B,Tp,h,w,2)
    fake_conf = (pred[..., 2:3] + 1.0) * 0.5
    fake_deformed, fake_prediction = warp_and_decode(ref_img, fake_flow, fake_conf,
                                                     params)

    ret["fake_vid_grid"] = jnp.transpose(fake_flow, (0, 4, 1, 2, 3))
    ret["fake_vid_conf"] = jnp.transpose(fake_conf, (0, 4, 1, 2, 3))
    ret["fake_out_vid"] = jnp.transpose(fake_prediction, (0, 4, 1, 2, 3))
    ret["fake_warped_vid"] = jnp.transpose(fake_deformed, (0, 4, 1, 2, 3))

    # ---- both L1 reconstruction losses in one kernel (shared ground-truth load) ----
    rec_loss, rec_warp_loss = l1_pair(pred_frames.reshape(-1, LANES),
                                      fake_prediction.reshape(-1, LANES),
                                      fake_deformed.reshape(-1, LANES))
    ret["rec_loss"] = rec_loss
    ret["rec_warp_loss"] = rec_warp_loss
    return ret


# ------------- deterministic parameter init (weights pre-cast / pre-padded here) ----

def init_params(key):
    ks = jax.random.split(key, 7)

    def dense(k, cin, cout, scale=0.2):
        return (scale * jax.random.normal(k, (cin, cout), jnp.float32),
                jnp.zeros((cout,), jnp.float32))

    enc_w, enc_b = dense(ks[0], CHANNELS, ENC_CH)
    bottle_w, bottle_b = dense(ks[1], ENC_CH, BOTTLE_CH)
    flow_w, flow_b = dense(ks[2], 2 * BOTTLE_CH, 2)
    conf_w, conf_b = dense(ks[3], 2 * BOTTLE_CH, 1)
    dec_w, dec_b = dense(ks[4], CHANNELS, CHANNELS)
    u1_w, u1_b = dense(ks[5], CHANNELS + CHANNELS + BOTTLE_CH, UNET_HIDDEN)
    u2_w, u2_b = dense(ks[6], UNET_HIDDEN, CHANNELS)

    p = {}
    # encoder replicated block-diagonally over the 2x2 pool window; the (linear)
    # mean-pool matrix is folded into the bottleneck weight (0.25 * tile).
    enc_blk_w = jnp.zeros((4 * CHANNELS, 4 * ENC_CH), jnp.float32)
    for pw in range(4):
        enc_blk_w = enc_blk_w.at[CHANNELS * pw:CHANNELS * (pw + 1),
                                 ENC_CH * pw:ENC_CH * (pw + 1)].set(enc_w)
    p["enc_blk_w"] = enc_blk_w.astype(jnp.bfloat16)
    p["enc_blk_b"] = jnp.tile(enc_b, 4).reshape(1, 4 * ENC_CH)
    p["pool_bottle_w"] = (0.25 * jnp.tile(bottle_w, (4, 1))).astype(jnp.bfloat16)
    p["bottle_b"] = bottle_b.reshape(1, BOTTLE_CH)

    # fused flow/conf head, 128-lane output; cols [flow_x, flow_y, conf, conf];
    # rows split into the reference half and the driving half of the channel concat.
    head_w = jnp.zeros((2 * BOTTLE_CH, LANES), jnp.float32)
    head_w = head_w.at[:, 0:2].set(flow_w)
    head_w = head_w.at[:, 2].set(conf_w[:, 0]).at[:, 3].set(conf_w[:, 0])
    head_b = jnp.zeros((LANES,), jnp.float32)
    head_b = head_b.at[0:2].set(flow_b).at[2].set(conf_b[0]).at[3].set(conf_b[0])
    p["head_w_ref"] = head_w[:BOTTLE_CH].astype(jnp.bfloat16)
    p["head_w_drv"] = head_w[BOTTLE_CH:].astype(jnp.bfloat16)
    p["head_b"] = head_b.reshape(1, LANES)
    idg = identity_grid(FLOW_H, FLOW_W).reshape(HW, 2)
    p["id_grid_pad"] = jnp.pad(idg, ((0, 0), (0, LANES - 2)))

    # decoder, lane-dense 128-wide output (zero-padded columns are free on the MXU)
    p["dec_w"] = jnp.pad(dec_w, ((0, 0), (0, LANES - CHANNELS))).astype(jnp.bfloat16)
    p["dec_b"] = jnp.pad(dec_b, (0, LANES - CHANNELS)).reshape(1, LANES)

    # denoiser: first layer split into x_t / cond-mean / feature groups (fused concat);
    # second layer zero-padded to 128 lane-dense output columns.
    w1x = jnp.zeros((LANES, UNET_HIDDEN), jnp.float32).at[0:CHANNELS].set(
        u1_w[0:CHANNELS])
    w1c = jnp.zeros((LANES, UNET_HIDDEN), jnp.float32).at[0:CHANNELS].set(
        u1_w[CHANNELS:2 * CHANNELS])
    p["unet_w1x"] = w1x.astype(jnp.bfloat16)
    p["unet_w1c"] = w1c.astype(jnp.bfloat16)
    p["unet_w1f"] = u1_w[2 * CHANNELS:].astype(jnp.bfloat16)
    p["unet_b1"] = u1_b.reshape(1, UNET_HIDDEN)
    p["unet_w2"] = jnp.pad(u2_w, ((0, 0), (0, LANES - CHANNELS))).astype(jnp.bfloat16)
    p["unet_b2"] = jnp.pad(u2_b, (0, LANES - CHANNELS)).reshape(1, LANES)

    # hoisted diffusion noise-schedule tables
    betas = jnp.linspace(1e-4, 0.02, TIMESTEPS, dtype=jnp.float32)
    acp = jnp.cumprod(1.0 - betas)
    p["sqrt_acp"] = jnp.sqrt(acp)
    p["sqrt_om_acp"] = jnp.sqrt(1.0 - acp)
    return p


if __name__ == "__main__":
    key = jax.random.PRNGKey(0)
    k_vid, k_par, k_diff = jax.random.split(key, 3)
    real_vid = jax.random.uniform(
        k_vid, (BATCH, CHANNELS, NUM_FRAMES, FRAME_H, FRAME_W), jnp.float32)
    params = init_params(k_par)

    forward = jax.jit(flow_diffusion_forward)
    ret = forward(real_vid, params, k_diff)
    jax.block_until_ready(ret)
    print("KERNEL_OK")
</pallas_src>

<mosaic_0001>
module attributes {stable_mosaic.version = 11 : i64} {
  func.func @kernel(%arg0: memref<512x12xf32, #tpu.memory_space<vmem>>, %arg1: memref<12x64xbf16, #tpu.memory_space<vmem>>, %arg2: memref<1x64xf32, #tpu.memory_space<vmem>>, %arg3: memref<64x32xbf16, #tpu.memory_space<vmem>>, %arg4: memref<1x32xf32, #tpu.memory_space<vmem>>, %arg5: memref<512x32xf32, #tpu.memory_space<vmem>>) attributes {dimension_semantics = [], scalar_prefetch = 0 : i64, scratch_operands = 0 : i64, tpu.core_type = #tpu.core_type<tc>} {
    %c0 = arith.constant 0 : index
    %c0_0 = arith.constant 0 : index
    %0 = vector.load %arg0[%c0, %c0_0] : memref<512x12xf32, #tpu.memory_space<vmem>>, vector<512x12xf32>
    %1 = arith.truncf %0 : vector<512x12xf32> to vector<512x12xbf16>
    %c0_1 = arith.constant 0 : index
    %c0_2 = arith.constant 0 : index
    %2 = vector.load %arg1[%c0_1, %c0_2] : memref<12x64xbf16, #tpu.memory_space<vmem>>, vector<12x64xbf16>
    %cst = arith.constant dense<0.000000e+00> : vector<512x64xf32>
    %3 = tpu.matmul %1, %2, %cst {dimension_numbers = #tpu.dot_dimension_numbers<[1], [0], [0], [1], [0, 0, 1, 1], [], []>} : vector<512x12xbf16>, vector<12x64xbf16>, vector<512x64xf32> -> vector<512x64xf32>
    %c0_3 = arith.constant 0 : index
    %c0_4 = arith.constant 0 : index
    %4 = vector.load %arg2[%c0_3, %c0_4] : memref<1x64xf32, #tpu.memory_space<vmem>>, vector<1x64xf32>
    %5 = vector.broadcast %4 : vector<1x64xf32> to vector<512x64xf32>
    %6 = arith.addf %3, %5 : vector<512x64xf32>
    %cst_5 = arith.constant 0.000000e+00 : f32
    %7 = vector.broadcast %cst_5 : f32 to vector<512x64xf32>
    %8 = arith.maximumf %6, %7 : vector<512x64xf32>
    %9 = arith.truncf %8 : vector<512x64xf32> to vector<512x64xbf16>
    %c0_6 = arith.constant 0 : index
    %c0_7 = arith.constant 0 : index
    %10 = vector.load %arg3[%c0_6, %c0_7] : memref<64x32xbf16, #tpu.memory_space<vmem>>, vector<64x32xbf16>
    %cst_8 = arith.constant dense<0.000000e+00> : vector<512x32xf32>
    %11 = tpu.matmul %9, %10, %cst_8 {dimension_numbers = #tpu.dot_dimension_numbers<[1], [0], [0], [1], [0, 0, 1, 1], [], []>} : vector<512x64xbf16>, vector<64x32xbf16>, vector<512x32xf32> -> vector<512x32xf32>
    %c0_9 = arith.constant 0 : index
    %c0_10 = arith.constant 0 : index
    %12 = vector.load %arg4[%c0_9, %c0_10] : memref<1x32xf32, #tpu.memory_space<vmem>>, vector<1x32xf32>
    %13 = vector.broadcast %12 : vector<1x32xf32> to vector<512x32xf32>
    %14 = arith.addf %11, %13 : vector<512x32xf32>
    %cst_11 = arith.constant 0.000000e+00 : f32
    %15 = vector.broadcast %cst_11 : f32 to vector<512x32xf32>
    %16 = arith.maximumf %14, %15 : vector<512x32xf32>
    %c0_12 = arith.constant 0 : index
    %c0_13 = arith.constant 0 : index
    %17 = vector.load %arg5[%c0_12, %c0_13] : memref<512x32xf32, #tpu.memory_space<vmem>>, vector<512x32xf32>
    tpu.vector_store %arg5[%c0_12, %c0_13], %16 {strides = array<i32>} : memref<512x32xf32, #tpu.memory_space<vmem>>, vector<512x32xf32>,
    return
  }
}

module attributes {stable_mosaic.version = 11 : i64} {
  func.func @kernel(%arg0: memref<512x32xf32, #tpu.memory_space<vmem>>, %arg1: memref<128x32xf32, #tpu.memory_space<vmem>>, %arg2: memref<32x128xbf16, #tpu.memory_space<vmem>>, %arg3: memref<32x128xbf16, #tpu.memory_space<vmem>>, %arg4: memref<1x128xf32, #tpu.memory_space<vmem>>, %arg5: memref<64x128xf32, #tpu.memory_space<vmem>>, %arg6: memref<512x128xf32, #tpu.memory_space<vmem>>) attributes {dimension_semantics = [], scalar_prefetch = 0 : i64, scratch_operands = 0 : i64, tpu.core_type = #tpu.core_type<tc>} {
    %c0 = arith.constant 0 : index
    %c0_0 = arith.constant 0 : index
    %0 = vector.load %arg0[%c0, %c0_0] : memref<512x32xf32, #tpu.memory_space<vmem>>, vector<512x32xf32>
    %1 = arith.truncf %0 : vector<512x32xf32> to vector<512x32xbf16>
    %c0_1 = arith.constant 0 : index
    %c0_2 = arith.constant 0 : index
    %2 = vector.load %arg2[%c0_1, %c0_2] : memref<32x128xbf16, #tpu.memory_space<vmem>>, vector<32x128xbf16>
    %cst = arith.constant dense<0.000000e+00> : vector<512x128xf32>
    %3 = tpu.matmul %1, %2, %cst {dimension_numbers = #tpu.dot_dimension_numbers<[1], [0], [0], [1], [0, 0, 1, 1], [], []>} : vector<512x32xbf16>, vector<32x128xbf16>, vector<512x128xf32> -> vector<512x128xf32>
    %c0_3 = arith.constant 0 : index
    %c0_4 = arith.constant 0 : index
    %4 = vector.load %arg1[%c0_3, %c0_4] : memref<128x32xf32, #tpu.memory_space<vmem>>, vector<128x32xf32>
    %5 = arith.truncf %4 : vector<128x32xf32> to vector<128x32xbf16>
    %c0_5 = arith.constant 0 : index
    %c0_6 = arith.constant 0 : index
    %6 = vector.load %arg3[%c0_5, %c0_6] : memref<32x128xbf16, #tpu.memory_space<vmem>>, vector<32x128xbf16>
    %cst_7 = arith.constant dense<0.000000e+00> : vector<128x128xf32>
    %7 = tpu.matmul %5, %6, %cst_7 {dimension_numbers = #tpu.dot_dimension_numbers<[1], [0], [0], [1], [0, 0, 1, 1], [], []>} : vector<128x32xbf16>, vector<32x128xbf16>, vector<128x128xf32> -> vector<128x128xf32>
    %8 = tpu.iota {dimensions = array<i32: 1>} : vector<64x128xi32>
    %c0_8 = arith.constant 0 : index
    %c0_9 = arith.constant 0 : index
    %9 = vector.load %arg5[%c0_8, %c0_9] : memref<64x128xf32, #tpu.memory_space<vmem>>, vector<64x128xf32>
    %c0_10 = arith.constant 0 : index
    %c0_11 = arith.constant 0 : index
    %10 = vector.load %arg4[%c0_10, %c0_11] : memref<1x128xf32, #tpu.memory_space<vmem>>, vector<1x128xf32>
    %11 = vector.extract_strided_slice %7 {offsets = [0, 0], sizes = [64, 128], strides = [1, 1]} : vector<128x128xf32> to vector<64x128xf32>
    %12 = vector.extract_strided_slice %3 {offsets = [0, 0], sizes = [64, 128], strides = [1, 1]} : vector<512x128xf32> to vector<64x128xf32>
    %13 = arith.addf %12, %11 : vector<64x128xf32>
    %14 = vector.broadcast %10 : vector<1x128xf32> to vector<64x128xf32>
    %15 = arith.addf %13, %14 : vector<64x128xf32>
    %c2_i32 = arith.constant 2 : i32
    %16 = vector.broadcast %c2_i32 : i32 to vector<64x128xi32>
    %17 = arith.cmpi slt, %8, %16 : vector<64x128xi32>
    %cst_12 = arith.constant 5.000000e-01 : f32
    %18 = vector.broadcast %cst_12 : f32 to vector<64x128xf32>
    %19 = arith.mulf %18, %15 : vector<64x128xf32>
    %20 = arith.select %17, %15, %19 : vector<64x128xi1>, vector<64x128xf32>
    %21 = math.tanh %20 : vector<64x128xf32>
    %c2_i32_13 = arith.constant 2 : i32
    %22 = vector.broadcast %c2_i32_13 : i32 to vector<64x128xi32>
    %23 = arith.cmpi slt, %8, %22 : vector<64x128xi32>
    %cst_14 = arith.constant 1.000000e-01 : f32
    %24 = vector.broadcast %cst_14 : f32 to vector<64x128xf32>
    %25 = arith.mulf %24, %21 : vector<64x128xf32>
    %c2_i32_15 = arith.constant 2 : i32
    %26 = vector.broadcast %c2_i32_15 : i32 to vector<64x128xi32>
    %27 = arith.cmpi eq, %8, %26 : vector<64x128xi32>
    %c3_i32 = arith.constant 3 : i32
    %28 = vector.broadcast %c3_i32 : i32 to vector<64x128xi32>
    %29 = arith.cmpi eq, %8, %28 : vector<64x128xi32>
    %cst_16 = arith.constant 5.000000e-01 : f32
    %30 = vector.broadcast %cst_16 : f32 to vector<64x128xf32>
    %31 = arith.mulf %30, %21 : vector<64x128xf32>
    %cst_17 = arith.constant 5.000000e-01 : f32
    %32 = vector.broadcast %cst_17 : f32 to vector<64x128xf32>
    %33 = arith.addf %32, %31 : vector<64x128xf32>
    %cst_18 = arith.constant 0.000000e+00 : f32
    %34 = vector.broadcast %cst_18 : f32 to vector<64x128xf32>
    %35 = arith.select %29, %33, %34 : vector<64x128xi1>, vector<64x128xf32>
    %36 = arith.select %27, %21, %35 : vector<64x128xi1>, vector<64x128xf32>
    %37 = arith.select %23, %25, %36 : vector<64x128xi1>, vector<64x128xf32>
    %38 = arith.addf %9, %37 : vector<64x128xf32>
    %c0_19 = arith.constant 0 : index
    %c0_20 = arith.constant 0 : index
    %39 = vector.load %arg6[%c0_19, %c0_20] : memref<512x128xf32, #tpu.memory_space<vmem>>, vector<64x128xf32>
    tpu.vector_store %arg6[%c0_19, %c0_20], %38 {strides = array<i32>} : memref<512x128xf32, #tpu.memory_space<vmem>>, vector<64x128xf32>,
    %40 = vector.extract_strided_slice %3 {offsets = [64, 0], sizes = [64, 128], strides = [1, 1]} : vector<512x128xf32> to vector<64x128xf32>
    %41 = arith.addf %40, %11 : vector<64x128xf32>
    %42 = vector.broadcast %10 : vector<1x128xf32> to vector<64x128xf32>
    %43 = arith.addf %41, %42 : vector<64x128xf32>
    %c2_i32_21 = arith.constant 2 : i32
    %44 = vector.broadcast %c2_i32_21 : i32 to vector<64x128xi32>
    %45 = arith.cmpi slt, %8, %44 : vector<64x128xi32>
    %cst_22 = arith.constant 5.000000e-01 : f32
    %46 = vector.broadcast %cst_22 : f32 to vector<64x128xf32>
    %47 = arith.mulf %46, %43 : vector<64x128xf32>
    %48 = arith.select %45, %43, %47 : vector<64x128xi1>, vector<64x128xf32>
    %49 = math.tanh %48 : vector<64x128xf32>
    %c2_i32_23 = arith.constant 2 : i32
    %50 = vector.broadcast %c2_i32_23 : i32 to vector<64x128xi32>
    %51 = arith.cmpi slt, %8, %50 : vector<64x128xi32>
    %cst_24 = arith.constant 1.000000e-01 : f32
    %52 = vector.broadcast %cst_24 : f32 to vector<64x128xf32>
    %53 = arith.mulf %52, %49 : vector<64x128xf32>
    %c2_i32_25 = arith.constant 2 : i32
    %54 = vector.broadcast %c2_i32_25 : i32 to vector<64x128xi32>
    %55 = arith.cmpi eq, %8, %54 : vector<64x128xi32>
    %c3_i32_26 = arith.constant 3 : i32
    %56 = vector.broadcast %c3_i32_26 : i32 to vector<64x128xi32>
    %57 = arith.cmpi eq, %8, %56 : vector<64x128xi32>
    %cst_27 = arith.constant 5.000000e-01 : f32
    %58 = vector.broadcast %cst_27 : f32 to vector<64x128xf32>
    %59 = arith.mulf %58, %49 : vector<64x128xf32>
    %cst_28 = arith.constant 5.000000e-01 : f32
    %60 = vector.broadcast %cst_28 : f32 to vector<64x128xf32>
    %61 = arith.addf %60, %59 : vector<64x128xf32>
    %cst_29 = arith.constant 0.000000e+00 : f32
    %62 = vector.broadcast %cst_29 : f32 to vector<64x128xf32>
    %63 = arith.select %57, %61, %62 : vector<64x128xi1>, vector<64x128xf32>
    %64 = arith.select %55, %49, %63 : vector<64x128xi1>, vector<64x128xf32>
    %65 = arith.select %51, %53, %64 : vector<64x128xi1>, vector<64x128xf32>
    %66 = arith.addf %9, %65 : vector<64x128xf32>
    %c64 = arith.constant 64 : index
    %c0_30 = arith.constant 0 : index
    %67 = vector.load %arg6[%c64, %c0_30] : memref<512x128xf32, #tpu.memory_space<vmem>>, vector<64x128xf32>
    tpu.vector_store %arg6[%c64, %c0_30], %66 {strides = array<i32>} : memref<512x128xf32, #tpu.memory_space<vmem>>, vector<64x128xf32>,
    %68 = vector.extract_strided_slice %3 {offsets = [128, 0], sizes = [64, 128], strides = [1, 1]} : vector<512x128xf32> to vector<64x128xf32>
    %69 = arith.addf %68, %11 : vector<64x128xf32>
    %70 = vector.broadcast %10 : vector<1x128xf32> to vector<64x128xf32>
    %71 = arith.addf %69, %70 : vector<64x128xf32>
    %c2_i32_31 = arith.constant 2 : i32
    %72 = vector.broadcast %c2_i32_31 : i32 to vector<64x128xi32>
    %73 = arith.cmpi slt, %8, %72 : vector<64x128xi32>
    %cst_32 = arith.constant 5.000000e-01 : f32
    %74 = vector.broadcast %cst_32 : f32 to vector<64x128xf32>
    %75 = arith.mulf %74, %71 : vector<64x128xf32>
    %76 = arith.select %73, %71, %75 : vector<64x128xi1>, vector<64x128xf32>
    %77 = math.tanh %76 : vector<64x128xf32>
    %c2_i32_33 = arith.constant 2 : i32
    %78 = vector.broadcast %c2_i32_33 : i32 to vector<64x128xi32>
    %79 = arith.cmpi slt, %8, %78 : vector<64x128xi32>
    %cst_34 = arith.constant 1.000000e-01 : f32
    %80 = vector.broadcast %cst_34 : f32 to vector<64x128xf32>
    %81 = arith.mulf %80, %77 : vector<64x128xf32>
    %c2_i32_35 = arith.constant 2 : i32
    %82 = vector.broadcast %c2_i32_35 : i32 to vector<64x128xi32>
    %83 = arith.cmpi eq, %8, %82 : vector<64x128xi32>
    %c3_i32_36 = arith.constant 3 : i32
    %84 = vector.broadcast %c3_i32_36 : i32 to vector<64x128xi32>
    %85 = arith.cmpi eq, %8, %84 : vector<64x128xi32>
    %cst_37 = arith.constant 5.000000e-01 : f32
    %86 = vector.broadcast %cst_37 : f32 to vector<64x128xf32>
    %87 = arith.mulf %86, %77 : vector<64x128xf32>
    %cst_38 = arith.constant 5.000000e-01 : f32
    %88 = vector.broadcast %cst_38 : f32 to vector<64x128xf32>
    %89 = arith.addf %88, %87 : vector<64x128xf32>
    %cst_39 = arith.constant 0.000000e+00 : f32
    %90 = vector.broadcast %cst_39 : f32 to vector<64x128xf32>
    %91 = arith.select %85, %89, %90 : vector<64x128xi1>, vector<64x128xf32>
    %92 = arith.select %83, %77, %91 : vector<64x128xi1>, vector<64x128xf32>
    %93 = arith.select %79, %81, %92 : vector<64x128xi1>, vector<64x128xf32>
    %94 = arith.addf %9, %93 : vector<64x128xf32>
    %c128 = arith.constant 128 : index
    %c0_40 = arith.constant 0 : index
    %95 = vector.load %arg6[%c128, %c0_40] : memref<512x128xf32, #tpu.memory_space<vmem>>, vector<64x128xf32>
    tpu.vector_store %arg6[%c128, %c0_40], %94 {strides = array<i32>} : memref<512x128xf32, #tpu.memory_space<vmem>>, vector<64x128xf32>,
    %96 = vector.extract_strided_slice %3 {offsets = [192, 0], sizes = [64, 128], strides = [1, 1]} : vector<512x128xf32> to vector<64x128xf32>
    %97 = arith.addf %96, %11 : vector<64x128xf32>
    %98 = vector.broadcast %10 : vector<1x128xf32> to vector<64x128xf32>
    %99 = arith.addf %97, %98 : vector<64x128xf32>
    %c2_i32_41 = arith.constant 2 : i32
    %100 = vector.broadcast %c2_i32_41 : i32 to vector<64x128xi32>
    %101 = arith.cmpi slt, %8, %100 : vector<64x128xi32>
    %cst_42 = arith.constant 5.000000e-01 : f32
    %102 = vector.broadcast %cst_42 : f32 to vector<64x128xf32>
    %103 = arith.mulf %102, %99 : vector<64x128xf32>
    %104 = arith.select %101, %99, %103 : vector<64x128xi1>, vector<64x128xf32>
    %105 = math.tanh %104 : vector<64x128xf32>
    %c2_i32_43 = arith.constant 2 : i32
    %106 = vector.broadcast %c2_i32_43 : i32 to vector<64x128xi32>
    %107 = arith.cmpi slt, %8, %106 : vector<64x128xi32>
    %cst_44 = arith.constant 1.000000e-01 : f32
    %108 = vector.broadcast %cst_44 : f32 to vector<64x128xf32>
    %109 = arith.mulf %108, %105 : vector<64x128xf32>
    %c2_i32_45 = arith.constant 2 : i32
    %110 = vector.broadcast %c2_i32_45 : i32 to vector<64x128xi32>
    %111 = arith.cmpi eq, %8, %110 : vector<64x128xi32>
    %c3_i32_46 = arith.constant 3 : i32
    %112 = vector.broadcast %c3_i32_46 : i32 to vector<64x128xi32>
    %113 = arith.cmpi eq, %8, %112 : vector<64x128xi32>
    %cst_47 = arith.constant 5.000000e-01 : f32
    %114 = vector.broadcast %cst_47 : f32 to vector<64x128xf32>
    %115 = arith.mulf %114, %105 : vector<64x128xf32>
    %cst_48 = arith.constant 5.000000e-01 : f32
    %116 = vector.broadcast %cst_48 : f32 to vector<64x128xf32>
    %117 = arith.addf %116, %115 : vector<64x128xf32>
    %cst_49 = arith.constant 0.000000e+00 : f32
    %118 = vector.broadcast %cst_49 : f32 to vector<64x128xf32>
    %119 = arith.select %113, %117, %118 : vector<64x128xi1>, vector<64x128xf32>
    %120 = arith.select %111, %105, %119 : vector<64x128xi1>, vector<64x128xf32>
    %121 = arith.select %107, %109, %120 : vector<64x128xi1>, vector<64x128xf32>
    %122 = arith.addf %9, %121 : vector<64x128xf32>
    %c192 = arith.constant 192 : index
    %c0_50 = arith.constant 0 : index
    %123 = vector.load %arg6[%c192, %c0_50] : memref<512x128xf32, #tpu.memory_space<vmem>>, vector<64x128xf32>
    tpu.vector_store %arg6[%c192, %c0_50], %122 {strides = array<i32>} : memref<512x128xf32, #tpu.memory_space<vmem>>, vector<64x128xf32>,
    %124 = vector.extract_strided_slice %7 {offsets = [64, 0], sizes = [64, 128], strides = [1, 1]} : vector<128x128xf32> to vector<64x128xf32>
    %125 = vector.extract_strided_slice %3 {offsets = [256, 0], sizes = [64, 128], strides = [1, 1]} : vector<512x128xf32> to vector<64x128xf32>
    %126 = arith.addf %125, %124 : vector<64x128xf32>
    %127 = vector.broadcast %10 : vector<1x128xf32> to vector<64x128xf32>
    %128 = arith.addf %126, %127 : vector<64x128xf32>
    %c2_i32_51 = arith.constant 2 : i32
    %129 = vector.broadcast %c2_i32_51 : i32 to vector<64x128xi32>
    %130 = arith.cmpi slt, %8, %129 : vector<64x128xi32>
    %cst_52 = arith.constant 5.000000e-01 : f32
    %131 = vector.broadcast %cst_52 : f32 to vector<64x128xf32>
    %132 = arith.mulf %131, %128 : vector<64x128xf32>
    %133 = arith.select %130, %128, %132 : vector<64x128xi1>, vector<64x128xf32>
    %134 = math.tanh %133 : vector<64x128xf32>
    %c2_i32_53 = arith.constant 2 : i32
    %135 = vector.broadcast %c2_i32_53 : i32 to vector<64x128xi32>
    %136 = arith.cmpi slt, %8, %135 : vector<64x128xi32>
    %cst_54 = arith.constant 1.000000e-01 : f32
    %137 = vector.broadcast %cst_54 : f32 to vector<64x128xf32>
    %138 = arith.mulf %137, %134 : vector<64x128xf32>
    %c2_i32_55 = arith.constant 2 : i32
    %139 = vector.broadcast %c2_i32_55 : i32 to vector<64x128xi32>
    %140 = arith.cmpi eq, %8, %139 : vector<64x128xi32>
    %c3_i32_56 = arith.constant 3 : i32
    %141 = vector.broadcast %c3_i32_56 : i32 to vector<64x128xi32>
    %142 = arith.cmpi eq, %8, %141 : vector<64x128xi32>
    %cst_57 = arith.constant 5.000000e-01 : f32
    %143 = vector.broadcast %cst_57 : f32 to vector<64x128xf32>
    %144 = arith.mulf %143, %134 : vector<64x128xf32>
    %cst_58 = arith.constant 5.000000e-01 : f32
    %145 = vector.broadcast %cst_58 : f32 to vector<64x128xf32>
    %146 = arith.addf %145, %144 : vector<64x128xf32>
    %cst_59 = arith.constant 0.000000e+00 : f32
    %147 = vector.broadcast %cst_59 : f32 to vector<64x128xf32>
    %148 = arith.select %142, %146, %147 : vector<64x128xi1>, vector<64x128xf32>
    %149 = arith.select %140, %134, %148 : vector<64x128xi1>, vector<64x128xf32>
    %150 = arith.select %136, %138, %149 : vector<64x128xi1>, vector<64x128xf32>
    %151 = arith.addf %9, %150 : vector<64x128xf32>
    %c256 = arith.constant 256 : index
    %c0_60 = arith.constant 0 : index
    %152 = vector.load %arg6[%c256, %c0_60] : memref<512x128xf32, #tpu.memory_space<vmem>>, vector<64x128xf32>
    tpu.vector_store %arg6[%c256, %c0_60], %151 {strides = array<i32>} : memref<512x128xf32, #tpu.memory_space<vmem>>, vector<64x128xf32>,
    %153 = vector.extract_strided_slice %3 {offsets = [320, 0], sizes = [64, 128], strides = [1, 1]} : vector<512x128xf32> to vector<64x128xf32>
    %154 = arith.addf %153, %124 : vector<64x128xf32>
    %155 = vector.broadcast %10 : vector<1x128xf32> to vector<64x128xf32>
    %156 = arith.addf %154, %155 : vector<64x128xf32>
    %c2_i32_61 = arith.constant 2 : i32
    %157 = vector.broadcast %c2_i32_61 : i32 to vector<64x128xi32>
    %158 = arith.cmpi slt, %8, %157 : vector<64x128xi32>
    %cst_62 = arith.constant 5.000000e-01 : f32
    %159 = vector.broadcast %cst_62 : f32 to vector<64x128xf32>
    %160 = arith.mulf %159, %156 : vector<64x128xf32>
    %161 = arith.select %158, %156, %160 : vector<64x128xi1>, vector<64x128xf32>
    %162 = math.tanh %161 : vector<64x128xf32>
    %c2_i32_63 = arith.constant 2 : i32
    %163 = vector.broadcast %c2_i32_63 : i32 to vector<64x128xi32>
    %164 = arith.cmpi slt, %8, %163 : vector<64x128xi32>
    %cst_64 = arith.constant 1.000000e-01 : f32
    %165 = vector.broadcast %cst_64 : f32 to vector<64x128xf32>
    %166 = arith.mulf %165, %162 : vector<64x128xf32>
    %c2_i32_65 = arith.constant 2 : i32
    %167 = vector.broadcast %c2_i32_65 : i32 to vector<64x128xi32>
    %168 = arith.cmpi eq, %8, %167 : vector<64x128xi32>
    %c3_i32_66 = arith.constant 3 : i32
    %169 = vector.broadcast %c3_i32_66 : i32 to vector<64x128xi32>
    %170 = arith.cmpi eq, %8, %169 : vector<64x128xi32>
    %cst_67 = arith.constant 5.000000e-01 : f32
    %171 = vector.broadcast %cst_67 : f32 to vector<64x128xf32>
    %172 = arith.mulf %171, %162 : vector<64x128xf32>
    %cst_68 = arith.constant 5.000000e-01 : f32
    %173 = vector.broadcast %cst_68 : f32 to vector<64x128xf32>
    %174 = arith.addf %173, %172 : vector<64x128xf32>
    %cst_69 = arith.constant 0.000000e+00 : f32
    %175 = vector.broadcast %cst_69 : f32 to vector<64x128xf32>
    %176 = arith.select %170, %174, %175 : vector<64x128xi1>, vector<64x128xf32>
    %177 = arith.select %168, %162, %176 : vector<64x128xi1>, vector<64x128xf32>
    %178 = arith.select %164, %166, %177 : vector<64x128xi1>, vector<64x128xf32>
    %179 = arith.addf %9, %178 : vector<64x128xf32>
    %c320 = arith.constant 320 : index
    %c0_70 = arith.constant 0 : index
    %180 = vector.load %arg6[%c320, %c0_70] : memref<512x128xf32, #tpu.memory_space<vmem>>, vector<64x128xf32>
    tpu.vector_store %arg6[%c320, %c0_70], %179 {strides = array<i32>} : memref<512x128xf32, #tpu.memory_space<vmem>>, vector<64x128xf32>,
    %181 = vector.extract_strided_slice %3 {offsets = [384, 0], sizes = [64, 128], strides = [1, 1]} : vector<512x128xf32> to vector<64x128xf32>
    %182 = arith.addf %181, %124 : vector<64x128xf32>
    %183 = vector.broadcast %10 : vector<1x128xf32> to vector<64x128xf32>
    %184 = arith.addf %182, %183 : vector<64x128xf32>
    %c2_i32_71 = arith.constant 2 : i32
    %185 = vector.broadcast %c2_i32_71 : i32 to vector<64x128xi32>
    %186 = arith.cmpi slt, %8, %185 : vector<64x128xi32>
    %cst_72 = arith.constant 5.000000e-01 : f32
    %187 = vector.broadcast %cst_72 : f32 to vector<64x128xf32>
    %188 = arith.mulf %187, %184 : vector<64x128xf32>
    %189 = arith.select %186, %184, %188 : vector<64x128xi1>, vector<64x128xf32>
    %190 = math.tanh %189 : vector<64x128xf32>
    %c2_i32_73 = arith.constant 2 : i32
    %191 = vector.broadcast %c2_i32_73 : i32 to vector<64x128xi32>
    %192 = arith.cmpi slt, %8, %191 : vector<64x128xi32>
    %cst_74 = arith.constant 1.000000e-01 : f32
    %193 = vector.broadcast %cst_74 : f32 to vector<64x128xf32>
    %194 = arith.mulf %193, %190 : vector<64x128xf32>
    %c2_i32_75 = arith.constant 2 : i32
    %195 = vector.broadcast %c2_i32_75 : i32 to vector<64x128xi32>
    %196 = arith.cmpi eq, %8, %195 : vector<64x128xi32>
    %c3_i32_76 = arith.constant 3 : i32
    %197 = vector.broadcast %c3_i32_76 : i32 to vector<64x128xi32>
    %198 = arith.cmpi eq, %8, %197 : vector<64x128xi32>
    %cst_77 = arith.constant 5.000000e-01 : f32
    %199 = vector.broadcast %cst_77 : f32 to vector<64x128xf32>
    %200 = arith.mulf %199, %190 : vector<64x128xf32>
    %cst_78 = arith.constant 5.000000e-01 : f32
    %201 = vector.broadcast %cst_78 : f32 to vector<64x128xf32>
    %202 = arith.addf %201, %200 : vector<64x128xf32>
    %cst_79 = arith.constant 0.000000e+00 : f32
    %203 = vector.broadcast %cst_79 : f32 to vector<64x128xf32>
    %204 = arith.select %198, %202, %203 : vector<64x128xi1>, vector<64x128xf32>
    %205 = arith.select %196, %190, %204 : vector<64x128xi1>, vector<64x128xf32>
    %206 = arith.select %192, %194, %205 : vector<64x128xi1>, vector<64x128xf32>
    %207 = arith.addf %9, %206 : vector<64x128xf32>
    %c384 = arith.constant 384 : index
    %c0_80 = arith.constant 0 : index
    %208 = vector.load %arg6[%c384, %c0_80] : memref<512x128xf32, #tpu.memory_space<vmem>>, vector<64x128xf32>
    tpu.vector_store %arg6[%c384, %c0_80], %207 {strides = array<i32>} : memref<512x128xf32, #tpu.memory_space<vmem>>, vector<64x128xf32>,
    %209 = vector.extract_strided_slice %3 {offsets = [448, 0], sizes = [64, 128], strides = [1, 1]} : vector<512x128xf32> to vector<64x128xf32>
    %210 = arith.addf %209, %124 : vector<64x128xf32>
    %211 = vector.broadcast %10 : vector<1x128xf32> to vector<64x128xf32>
    %212 = arith.addf %210, %211 : vector<64x128xf32>
    %c2_i32_81 = arith.constant 2 : i32
    %213 = vector.broadcast %c2_i32_81 : i32 to vector<64x128xi32>
    %214 = arith.cmpi slt, %8, %213 : vector<64x128xi32>
    %cst_82 = arith.constant 5.000000e-01 : f32
    %215 = vector.broadcast %cst_82 : f32 to vector<64x128xf32>
    %216 = arith.mulf %215, %212 : vector<64x128xf32>
    %217 = arith.select %214, %212, %216 : vector<64x128xi1>, vector<64x128xf32>
    %218 = math.tanh %217 : vector<64x128xf32>
    %c2_i32_83 = arith.constant 2 : i32
    %219 = vector.broadcast %c2_i32_83 : i32 to vector<64x128xi32>
    %220 = arith.cmpi slt, %8, %219 : vector<64x128xi32>
    %cst_84 = arith.constant 1.000000e-01 : f32
    %221 = vector.broadcast %cst_84 : f32 to vector<64x128xf32>
    %222 = arith.mulf %221, %218 : vector<64x128xf32>
    %c2_i32_85 = arith.constant 2 : i32
    %223 = vector.broadcast %c2_i32_85 : i32 to vector<64x128xi32>
    %224 = arith.cmpi eq, %8, %223 : vector<64x128xi32>
    %c3_i32_86 = arith.constant 3 : i32
    %225 = vector.broadcast %c3_i32_86 : i32 to vector<64x128xi32>
    %226 = arith.cmpi eq, %8, %225 : vector<64x128xi32>
    %cst_87 = arith.constant 5.000000e-01 : f32
    %227 = vector.broadcast %cst_87 : f32 to vector<64x128xf32>
    %228 = arith.mulf %227, %218 : vector<64x128xf32>
    %cst_88 = arith.constant 5.000000e-01 : f32
    %229 = vector.broadcast %cst_88 : f32 to vector<64x128xf32>
    %230 = arith.addf %229, %228 : vector<64x128xf32>
    %cst_89 = arith.constant 0.000000e+00 : f32
    %231 = vector.broadcast %cst_89 : f32 to vector<64x128xf32>
    %232 = arith.select %226, %230, %231 : vector<64x128xi1>, vector<64x128xf32>
    %233 = arith.select %224, %218, %232 : vector<64x128xi1>, vector<64x128xf32>
    %234 = arith.select %220, %222, %233 : vector<64x128xi1>, vector<64x128xf32>
    %235 = arith.addf %9, %234 : vector<64x128xf32>
    %c448 = arith.constant 448 : index
    %c0_90 = arith.constant 0 : index
    %236 = vector.load %arg6[%c448, %c0_90] : memref<512x128xf32, #tpu.memory_space<vmem>>, vector<64x128xf32>
    tpu.vector_store %arg6[%c448, %c0_90], %235 {strides = array<i32>} : memref<512x128xf32, #tpu.memory_space<vmem>>, vector<64x128xf32>,
    return
  }
}

module attributes {stable_mosaic.version = 11 : i64} {
  func.func @kernel(%arg0: memref<3xf32, #tpu.memory_space<smem>>, %arg1: memref<256x128xf32, #tpu.memory_space<vmem>>, %arg2: memref<256x128xf32, #tpu.memory_space<vmem>>, %arg3: memref<256x128xf32, #tpu.memory_space<vmem>>, %arg4: memref<256x32xf32, #tpu.memory_space<vmem>>, %arg5: memref<128x64xbf16, #tpu.memory_space<vmem>>, %arg6: memref<128x64xbf16, #tpu.memory_space<vmem>>, %arg7: memref<32x64xbf16, #tpu.memory_space<vmem>>, %arg8: memref<1x64xf32, #tpu.memory_space<vmem>>, %arg9: memref<64x128xbf16, #tpu.memory_space<vmem>>, %arg10: memref<1x128xf32, #tpu.memory_space<vmem>>, %arg11: memref<256x128xf32, #tpu.memory_space<vmem>>, %arg12: memref<1x1xf32, #tpu.memory_space<vmem>>) attributes {dimension_semantics = [], scalar_prefetch = 0 : i64, scratch_operands = 0 : i64, tpu.core_type = #tpu.core_type<tc>} {
    %c0 = arith.constant 0 : index
    %0 = memref.load %arg0[%c0] : memref<3xf32, #tpu.memory_space<smem>>
    %c1 = arith.constant 1 : index
    %1 = memref.load %arg0[%c1] : memref<3xf32, #tpu.memory_space<smem>>
    %c2 = arith.constant 2 : index
    %2 = memref.load %arg0[%c2] : memref<3xf32, #tpu.memory_space<smem>>
    %c0_0 = arith.constant 0 : index
    %c0_1 = arith.constant 0 : index
    %3 = vector.load %arg2[%c0_0, %c0_1] : memref<256x128xf32, #tpu.memory_space<vmem>>, vector<256x128xf32>
    %c0_2 = arith.constant 0 : index
    %c0_3 = arith.constant 0 : index
    %4 = vector.load %arg1[%c0_2, %c0_3] : memref<256x128xf32, #tpu.memory_space<vmem>>, vector<256x128xf32>
    %5 = vector.broadcast %0 : f32 to vector<256x128xf32>
    %6 = arith.mulf %5, %4 : vector<256x128xf32>
    %7 = vector.broadcast %1 : f32 to vector<256x128xf32>
    %8 = arith.mulf %7, %3 : vector<256x128xf32>
    %9 = arith.addf %6, %8 : vector<256x128xf32>
    %10 = arith.truncf %9 : vector<256x128xf32> to vector<256x128xbf16>
    %c0_4 = arith.constant 0 : index
    %c0_5 = arith.constant 0 : index
    %11 = vector.load %arg5[%c0_4, %c0_5] : memref<128x64xbf16, #tpu.memory_space<vmem>>, vector<128x64xbf16>
    %cst = arith.constant dense<0.000000e+00> : vector<256x64xf32>
    %12 = tpu.matmul %10, %11, %cst {dimension_numbers = #tpu.dot_dimension_numbers<[1], [0], [0], [1], [0, 0, 1, 1], [], []>} : vector<256x128xbf16>, vector<128x64xbf16>, vector<256x64xf32> -> vector<256x64xf32>
    %c0_6 = arith.constant 0 : index
    %c0_7 = arith.constant 0 : index
    %13 = vector.load %arg3[%c0_6, %c0_7] : memref<256x128xf32, #tpu.memory_space<vmem>>, vector<256x128xf32>
    %14 = arith.truncf %13 : vector<256x128xf32> to vector<256x128xbf16>
    %c0_8 = arith.constant 0 : index
    %c0_9 = arith.constant 0 : index
    %15 = vector.load %arg6[%c0_8, %c0_9] : memref<128x64xbf16, #tpu.memory_space<vmem>>, vector<128x64xbf16>
    %cst_10 = arith.constant dense<0.000000e+00> : vector<256x64xf32>
    %16 = tpu.matmul %14, %15, %cst_10 {dimension_numbers = #tpu.dot_dimension_numbers<[1], [0], [0], [1], [0, 0, 1, 1], [], []>} : vector<256x128xbf16>, vector<128x64xbf16>, vector<256x64xf32> -> vector<256x64xf32>
    %17 = arith.addf %12, %16 : vector<256x64xf32>
    %c0_11 = arith.constant 0 : index
    %c0_12 = arith.constant 0 : index
    %18 = vector.load %arg4[%c0_11, %c0_12] : memref<256x32xf32, #tpu.memory_space<vmem>>, vector<256x32xf32>
    %19 = arith.truncf %18 : vector<256x32xf32> to vector<256x32xbf16>
    %c0_13 = arith.constant 0 : index
    %c0_14 = arith.constant 0 : index
    %20 = vector.load %arg7[%c0_13, %c0_14] : memref<32x64xbf16, #tpu.memory_space<vmem>>, vector<32x64xbf16>
    %cst_15 = arith.constant dense<0.000000e+00> : vector<256x64xf32>
    %21 = tpu.matmul %19, %20, %cst_15 {dimension_numbers = #tpu.dot_dimension_numbers<[1], [0], [0], [1], [0, 0, 1, 1], [], []>} : vector<256x32xbf16>, vector<32x64xbf16>, vector<256x64xf32> -> vector<256x64xf32>
    %22 = arith.addf %17, %21 : vector<256x64xf32>
    %c0_16 = arith.constant 0 : index
    %c0_17 = arith.constant 0 : index
    %23 = vector.load %arg8[%c0_16, %c0_17] : memref<1x64xf32, #tpu.memory_space<vmem>>, vector<1x64xf32>
    %24 = vector.broadcast %23 : vector<1x64xf32> to vector<256x64xf32>
    %25 = arith.addf %22, %24 : vector<256x64xf32>
    %cst_18 = arith.constant 0.000000e+00 : f32
    %26 = vector.broadcast %cst_18 : f32 to vector<256x64xf32>
    %27 = arith.maximumf %25, %26 : vector<256x64xf32>
    %28 = arith.truncf %27 : vector<256x64xf32> to vector<256x64xbf16>
    %c0_19 = arith.constant 0 : index
    %c0_20 = arith.constant 0 : index
    %29 = vector.load %arg9[%c0_19, %c0_20] : memref<64x128xbf16, #tpu.memory_space<vmem>>, vector<64x128xbf16>
    %cst_21 = arith.constant dense<0.000000e+00> : vector<256x128xf32>
    %30 = tpu.matmul %28, %29, %cst_21 {dimension_numbers = #tpu.dot_dimension_numbers<[1], [0], [0], [1], [0, 0, 1, 1], [], []>} : vector<256x64xbf16>, vector<64x128xbf16>, vector<256x128xf32> -> vector<256x128xf32>
    %c0_22 = arith.constant 0 : index
    %c0_23 = arith.constant 0 : index
    %31 = vector.load %arg10[%c0_22, %c0_23] : memref<1x128xf32, #tpu.memory_space<vmem>>, vector<1x128xf32>
    %32 = vector.broadcast %31 : vector<1x128xf32> to vector<256x128xf32>
    %33 = arith.addf %30, %32 : vector<256x128xf32>
    %34 = arith.subf %33, %3 : vector<256x128xf32>
    %35 = arith.mulf %34, %34 : vector<256x128xf32>
    %36 = vector.shape_cast %35 : vector<256x128xf32> to vector<1x256x128xf32>
    %cst_24 = arith.constant dense<0.000000e+00> : vector<1xf32>
    %37 = vector.multi_reduction <add>, %36, %cst_24 [1, 2] : vector<1x256x128xf32> to vector<1xf32>
    %38 = vector.shape_cast %37 : vector<1xf32> to vector<1x1x1xf32>
    %39 = vector.extract %38[0, 0, 0] : f32 from vector<1x1x1xf32>
    %cst_25 = arith.constant 0.00130208337 : f32
    %40 = arith.mulf %39, %cst_25 : f32
    %41 = vector.broadcast %40 : f32 to vector<1x1xf32>
    %c0_26 = arith.constant 0 : index
    %c0_27 = arith.constant 0 : index
    %42 = vector.load %arg12[%c0_26, %c0_27] : memref<1x1xf32, #tpu.memory_space<vmem>>, vector<1x1xf32>
    tpu.vector_store %arg12[%c0_26, %c0_27], %41 {strides = array<i32>} : memref<1x1xf32, #tpu.memory_space<vmem>>, vector<1x1xf32>,
    %43 = vector.broadcast %1 : f32 to vector<256x128xf32>
    %44 = arith.mulf %43, %33 : vector<256x128xf32>
    %45 = arith.subf %9, %44 : vector<256x128xf32>
    %46 = vector.broadcast %2 : f32 to vector<256x128xf32>
    %47 = arith.mulf %45, %46 : vector<256x128xf32>
    %cst_28 = arith.constant -1.000000e+00 : f32
    %cst_29 = arith.constant 1.000000e+00 : f32
    %48 = vector.broadcast %cst_28 : f32 to vector<256x128xf32>
    %49 = arith.maximumf %48, %47 : vector<256x128xf32>
    %50 = vector.broadcast %cst_29 : f32 to vector<256x128xf32>
    %51 = arith.minimumf %50, %49 : vector<256x128xf32>
    %c0_30 = arith.constant 0 : index
    %c0_31 = arith.constant 0 : index
    %52 = vector.load %arg11[%c0_30, %c0_31] : memref<256x128xf32, #tpu.memory_space<vmem>>, vector<256x128xf32>
    tpu.vector_store %arg11[%c0_30, %c0_31], %51 {strides = array<i32>} : memref<256x128xf32, #tpu.memory_space<vmem>>, vector<256x128xf32>,
    return
  }
}

module attributes {stable_mosaic.version = 11 : i64} {
  func.func @kernel(%arg0: memref<1024x3xf32, #tpu.memory_space<vmem>>, %arg1: memref<1024x1xf32, #tpu.memory_space<vmem>>, %arg2: memref<3x128xbf16, #tpu.memory_space<vmem>>, %arg3: memref<1x128xf32, #tpu.memory_space<vmem>>, %arg4: memref<1024x128xf32, #tpu.memory_space<vmem>>) attributes {dimension_semantics = [], scalar_prefetch = 0 : i64, scratch_operands = 0 : i64, tpu.core_type = #tpu.core_type<tc>} {
    %c0 = arith.constant 0 : index
    %c0_0 = arith.constant 0 : index
    %0 = vector.load %arg0[%c0, %c0_0] : memref<1024x3xf32, #tpu.memory_space<vmem>>, vector<1024x3xf32>
    %1 = arith.truncf %0 : vector<1024x3xf32> to vector<1024x3xbf16>
    %c0_1 = arith.constant 0 : index
    %c0_2 = arith.constant 0 : index
    %2 = vector.load %arg2[%c0_1, %c0_2] : memref<3x128xbf16, #tpu.memory_space<vmem>>, vector<3x128xbf16>
    %cst = arith.constant dense<0.000000e+00> : vector<1024x128xf32>
    %3 = tpu.matmul %1, %2, %cst {dimension_numbers = #tpu.dot_dimension_numbers<[1], [0], [0], [1], [0, 0, 1, 1], [], []>} : vector<1024x3xbf16>, vector<3x128xbf16>, vector<1024x128xf32> -> vector<1024x128xf32>
    %c0_3 = arith.constant 0 : index
    %c0_4 = arith.constant 0 : index
    %4 = vector.load %arg3[%c0_3, %c0_4] : memref<1x128xf32, #tpu.memory_space<vmem>>, vector<1x128xf32>
    %5 = vector.broadcast %4 : vector<1x128xf32> to vector<1024x128xf32>
    %6 = arith.addf %3, %5 : vector<1024x128xf32>
    %7 = arith.negf %6 : vector<1024x128xf32>
    %8 = math.exp %7 : vector<1024x128xf32>
    %cst_5 = arith.constant 1.000000e+00 : f32
    %9 = vector.broadcast %cst_5 : f32 to vector<1024x128xf32>
    %10 = arith.addf %9, %8 : vector<1024x128xf32>
    %11 = arith.divf %9, %10 : vector<1024x128xf32>
    %c0_6 = arith.constant 0 : index
    %c0_7 = arith.constant 0 : index
    %12 = vector.load %arg1[%c0_6, %c0_7] : memref<1024x1xf32, #tpu.memory_space<vmem>>, vector<1024x1xf32>
    %13 = vector.broadcast %12 : vector<1024x1xf32> to vector<1024x128xf32>
    %14 = arith.mulf %11, %13 : vector<1024x128xf32>
    %c0_8 = arith.constant 0 : index
    %c0_9 = arith.constant 0 : index
    %15 = vector.load %arg4[%c0_8, %c0_9] : memref<1024x128xf32, #tpu.memory_space<vmem>>, vector<1024x128xf32>
    tpu.vector_store %arg4[%c0_8, %c0_9], %14 {strides = array<i32>} : memref<1024x128xf32, #tpu.memory_space<vmem>>, vector<1024x128xf32>,
    return
  }
}

module attributes {stable_mosaic.version = 11 : i64} {
  func.func @kernel(%arg0: memref<24x128xf32, #tpu.memory_space<vmem>>, %arg1: memref<24x128xf32, #tpu.memory_space<vmem>>, %arg2: memref<24x128xf32, #tpu.memory_space<vmem>>, %arg3: memref<1x1xf32, #tpu.memory_space<vmem>>, %arg4: memref<1x1xf32, #tpu.memory_space<vmem>>) attributes {dimension_semantics = [], scalar_prefetch = 0 : i64, scratch_operands = 0 : i64, tpu.core_type = #tpu.core_type<tc>} {
    %c0 = arith.constant 0 : index
    %c0_0 = arith.constant 0 : index
    %0 = vector.load %arg0[%c0, %c0_0] : memref<24x128xf32, #tpu.memory_space<vmem>>, vector<24x128xf32>
    %c0_1 = arith.constant 0 : index
    %c0_2 = arith.constant 0 : index
    %1 = vector.load %arg1[%c0_1, %c0_2] : memref<24x128xf32, #tpu.memory_space<vmem>>, vector<24x128xf32>
    %2 = arith.subf %0, %1 : vector<24x128xf32>
    %3 = math.absf %2 : vector<24x128xf32>
    %4 = vector.shape_cast %3 : vector<24x128xf32> to vector<1x24x128xf32>
    %cst = arith.constant dense<0.000000e+00> : vector<1xf32>
    %5 = vector.multi_reduction <add>, %4, %cst [1, 2] : vector<1x24x128xf32> to vector<1xf32>
    %6 = vector.shape_cast %5 : vector<1xf32> to vector<1x1x1xf32>
    %7 = vector.extract %6[0, 0, 0] : f32 from vector<1x1x1xf32>
    %cst_3 = arith.constant 3.25520843E-4 : f32
    %8 = arith.mulf %7, %cst_3 : f32
    %9 = vector.broadcast %8 : f32 to vector<1x1xf32>
    %c0_4 = arith.constant 0 : index
    %c0_5 = arith.constant 0 : index
    %10 = vector.load %arg3[%c0_4, %c0_5] : memref<1x1xf32, #tpu.memory_space<vmem>>, vector<1x1xf32>
    tpu.vector_store %arg3[%c0_4, %c0_5], %9 {strides = array<i32>} : memref<1x1xf32, #tpu.memory_space<vmem>>, vector<1x1xf32>,
    %c0_6 = arith.constant 0 : index
    %c0_7 = arith.constant 0 : index
    %11 = vector.load %arg2[%c0_6, %c0_7] : memref<24x128xf32, #tpu.memory_space<vmem>>, vector<24x128xf32>
    %12 = arith.subf %0, %11 : vector<24x128xf32>
    %13 = math.absf %12 : vector<24x128xf32>
    %14 = vector.shape_cast %13 : vector<24x128xf32> to vector<1x24x128xf32>
    %cst_8 = arith.constant dense<0.000000e+00> : vector<1xf32>
    %15 = vector.multi_reduction <add>, %14, %cst_8 [1, 2] : vector<1x24x128xf32> to vector<1xf32>
    %16 = vector.shape_cast %15 : vector<1xf32> to vector<1x1x1xf32>
    %17 = vector.extract %16[0, 0, 0] : f32 from vector<1x1x1xf32>
    %cst_9 = arith.constant 3.25520843E-4 : f32
    %18 = arith.mulf %17, %cst_9 : f32
    %19 = vector.broadcast %18 : f32 to vector<1x1xf32>
    %c0_10 = arith.constant 0 : index
    %c0_11 = arith.constant 0 : index
    %20 = vector.load %arg4[%c0_10, %c0_11] : memref<1x1xf32, #tpu.memory_space<vmem>>, vector<1x1xf32>
    tpu.vector_store %arg4[%c0_10, %c0_11], %19 {strides = array<i32>} : memref<1x1xf32, #tpu.memory_space<vmem>>, vector<1x1xf32>,
    return
  }
}

module attributes {stable_mosaic.version = 11 : i64} {
  func.func @kernel(%arg0: memref<2048x3xf32, #tpu.memory_space<vmem>>, %arg1: memref<2048x1xf32, #tpu.memory_space<vmem>>, %arg2: memref<3x128xbf16, #tpu.memory_space<vmem>>, %arg3: memref<1x128xf32, #tpu.memory_space<vmem>>, %arg4: memref<2048x128xf32, #tpu.memory_space<vmem>>) attributes {dimension_semantics = [], scalar_prefetch = 0 : i64, scratch_operands = 0 : i64, tpu.core_type = #tpu.core_type<tc>} {
    %c0 = arith.constant 0 : index
    %c0_0 = arith.constant 0 : index
    %0 = vector.load %arg0[%c0, %c0_0] : memref<2048x3xf32, #tpu.memory_space<vmem>>, vector<2048x3xf32>
    %1 = arith.truncf %0 : vector<2048x3xf32> to vector<2048x3xbf16>
    %c0_1 = arith.constant 0 : index
    %c0_2 = arith.constant 0 : index
    %2 = vector.load %arg2[%c0_1, %c0_2] : memref<3x128xbf16, #tpu.memory_space<vmem>>, vector<3x128xbf16>
    %cst = arith.constant dense<0.000000e+00> : vector<2048x128xf32>
    %3 = tpu.matmul %1, %2, %cst {dimension_numbers = #tpu.dot_dimension_numbers<[1], [0], [0], [1], [0, 0, 1, 1], [], []>} : vector<2048x3xbf16>, vector<3x128xbf16>, vector<2048x128xf32> -> vector<2048x128xf32>
    %c0_3 = arith.constant 0 : index
    %c0_4 = arith.constant 0 : index
    %4 = vector.load %arg3[%c0_3, %c0_4] : memref<1x128xf32, #tpu.memory_space<vmem>>, vector<1x128xf32>
    %5 = vector.broadcast %4 : vector<1x128xf32> to vector<2048x128xf32>
    %6 = arith.addf %3, %5 : vector<2048x128xf32>
    %7 = arith.negf %6 : vector<2048x128xf32>
    %8 = math.exp %7 : vector<2048x128xf32>
    %cst_5 = arith.constant 1.000000e+00 : f32
    %9 = vector.broadcast %cst_5 : f32 to vector<2048x128xf32>
    %10 = arith.addf %9, %8 : vector<2048x128xf32>
    %11 = arith.divf %9, %10 : vector<2048x128xf32>
    %c0_6 = arith.constant 0 : index
    %c0_7 = arith.constant 0 : index
    %12 = vector.load %arg1[%c0_6, %c0_7] : memref<2048x1xf32, #tpu.memory_space<vmem>>, vector<2048x1xf32>
    %13 = vector.broadcast %12 : vector<2048x1xf32> to vector<2048x128xf32>
    %14 = arith.mulf %11, %13 : vector<2048x128xf32>
    %c0_8 = arith.constant 0 : index
    %c0_9 = arith.constant 0 : index
    %15 = vector.load %arg4[%c0_8, %c0_9] : memref<2048x128xf32, #tpu.memory_space<vmem>>, vector<2048x128xf32>
    tpu.vector_store %arg4[%c0_8, %c0_9], %14 {strides = array<i32>} : memref<2048x128xf32, #tpu.memory_space<vmem>>, vector<2048x128xf32>,
    return
  }
}

</mosaic_0001>

<llo_original>
// kernel: flow_diffusion_forward.6
$region0: #{flow_diffusion_forward.6}
  #allocation0 [shape = 'u32[]', space=smem, size = 0x4, offset = 0x4, fixed_abs, tag = 'smem constant byte address 0x4 - core index']
  #allocation1 [shape = 'u32[144,128]{1,0:T(1,128)}', space=vmem, size = 0x12000, scoped, tag = 'internal scratch']
  %s0 = inlined_call_operand.vmem [shape: f32[512,12], index: 0, kind: input, shape index: {}]
  %s1 = inlined_call_operand.vmem [shape: bf16[12,64], index: 1, kind: input, shape index: {}]
  %s2 = inlined_call_operand.vmem [shape: f32[1,64], index: 2, kind: input, shape index: {}]
  %s3 = inlined_call_operand.vmem [shape: bf16[64,32], index: 3, kind: input, shape index: {}]
  %s4 = inlined_call_operand.vmem [shape: f32[1,32], index: 4, kind: input, shape index: {}]
  %s5 = inlined_call_operand.vmem [shape: f32[512,32], index: 5, kind: output, shape index: {}]
  %s6 = sld [smem:[#allocation0]]
  $region30: #{flow_diffusion_forward.6} parent=0
    _
  %s8 = ssub.s32 1, %s6
  %s9 = scalar_select 0, %s8, %s6
  // Predicated region
  $region2: #{flow_diffusion_forward.6} parent=0 // pred_check
    _
  $region3: #{flow_diffusion_forward.6} parent=0 // pred_check_branch
    %11 = sbr.rel (0) target = $region5
  $region4: #{flow_diffusion_forward.6} parent=0 // pred_region
    _
  $region5: #{flow_diffusion_forward.6} parent=0 // pred_fallthru
    _
  // Predicated region
  $region6: #{flow_diffusion_forward.6} parent=0 // pred_check
    _
  $region7: #{flow_diffusion_forward.6} parent=0 // pred_check_branch
    %13 = sbr.rel (0) target = $region9
  $region8: #{flow_diffusion_forward.6} parent=0 // pred_region
    _
  $region9: #{flow_diffusion_forward.6} parent=0 // pred_fallthru
    _
  // Predicated region
  $region10: #{flow_diffusion_forward.6} parent=0 // pred_check
    _
  $region11: #{flow_diffusion_forward.6} parent=0 // pred_check_branch
    %15 = sbr.rel (0) target = $region13
  $region12: #{flow_diffusion_forward.6} parent=0 // pred_region
    _
  $region13: #{flow_diffusion_forward.6} parent=0 // pred_fallthru
    _
  // Predicated region
  $region14: #{flow_diffusion_forward.6} parent=0 // pred_check
    _
  $region15: #{flow_diffusion_forward.6} parent=0 // pred_check_branch
    %17 = sbr.rel (0) target = $region17
  $region16: #{flow_diffusion_forward.6} parent=0 // pred_region
    _
  $region17: #{flow_diffusion_forward.6} parent=0 // pred_fallthru
    _
  // Predicated region
  $region18: #{flow_diffusion_forward.6} parent=0 // pred_check
    _
  $region19: #{flow_diffusion_forward.6} parent=0 // pred_check_branch
    %19 = sbr.rel (0) target = $region21
  $region20: #{flow_diffusion_forward.6} parent=0 // pred_region
    _
  $region21: #{flow_diffusion_forward.6} parent=0 // pred_fallthru
    _
  %v21 = vld [vmem:[%s0] sm:$0xff]
  %v22 = vld [vmem:[%s0 + $0x8] sm:$0xff]
  %v23 = vld [vmem:[%s0 + $0x10] sm:$0xff]
  %v24 = vld [vmem:[%s0 + $0x18] sm:$0xff]
  %v25 = vld [vmem:[%s0 + $0x20] sm:$0xff]
  %v26 = vld [vmem:[%s0 + $0x28] sm:$0xff]
  %v27 = vld [vmem:[%s0 + $0x30] sm:$0xff]
  %v28 = vld [vmem:[%s0 + $0x38] sm:$0xff]
  %v29 = vld [vmem:[%s0 + $0x40] sm:$0xff]
  %v30 = vld [vmem:[%s0 + $0x48] sm:$0xff]
  %v31 = vld [vmem:[%s0 + $0x50] sm:$0xff]
  %v32 = vld [vmem:[%s0 + $0x58] sm:$0xff]
  %v33 = vld [vmem:[%s0 + $0x60] sm:$0xff]
  %v34 = vld [vmem:[%s0 + $0x68] sm:$0xff]
  %v35 = vld [vmem:[%s0 + $0x70] sm:$0xff]
  %v36 = vld [vmem:[%s0 + $0x78] sm:$0xff]
  %v37 = vld [vmem:[%s0 + $0x80] sm:$0xff]
  %v38 = vld [vmem:[%s0 + $0x88] sm:$0xff]
  %v39 = vld [vmem:[%s0 + $0x90] sm:$0xff]
  %v40 = vld [vmem:[%s0 + $0x98] sm:$0xff]
  %v41 = vld [vmem:[%s0 + $0xa0] sm:$0xff]
  %v42 = vld [vmem:[%s0 + $0xa8] sm:$0xff]
  %v43 = vld [vmem:[%s0 + $0xb0] sm:$0xff]
  %v44 = vld [vmem:[%s0 + $0xb8] sm:$0xff]
  %v45 = vld [vmem:[%s0 + $0xc0] sm:$0xff]
  %v46 = vld [vmem:[%s0 + $0xc8] sm:$0xff]
  %v47 = vld [vmem:[%s0 + $0xd0] sm:$0xff]
  %v48 = vld [vmem:[%s0 + $0xd8] sm:$0xff]
  %v49 = vld [vmem:[%s0 + $0xe0] sm:$0xff]
  %v50 = vld [vmem:[%s0 + $0xe8] sm:$0xff]
  %v51 = vld [vmem:[%s0 + $0xf0] sm:$0xff]
  %v52 = vld [vmem:[%s0 + $0xf8] sm:$0xff]
  %v53 = vld [vmem:[%s0 + $0x100] sm:$0xff]
  %v54 = vld [vmem:[%s0 + $0x108] sm:$0xff]
  %v55 = vld [vmem:[%s0 + $0x110] sm:$0xff]
  %v56 = vld [vmem:[%s0 + $0x118] sm:$0xff]
  %v57 = vld [vmem:[%s0 + $0x120] sm:$0xff]
  %v58 = vld [vmem:[%s0 + $0x128] sm:$0xff]
  %v59 = vld [vmem:[%s0 + $0x130] sm:$0xff]
  %v60 = vld [vmem:[%s0 + $0x138] sm:$0xff]
  %v61 = vld [vmem:[%s0 + $0x140] sm:$0xff]
  %v62 = vld [vmem:[%s0 + $0x148] sm:$0xff]
  %v63 = vld [vmem:[%s0 + $0x150] sm:$0xff]
  %v64 = vld [vmem:[%s0 + $0x158] sm:$0xff]
  %v65 = vld [vmem:[%s0 + $0x160] sm:$0xff]
  %v66 = vld [vmem:[%s0 + $0x168] sm:$0xff]
  %v67 = vld [vmem:[%s0 + $0x170] sm:$0xff]
  %v68 = vld [vmem:[%s0 + $0x178] sm:$0xff]
  %v69 = vld [vmem:[%s0 + $0x180] sm:$0xff]
  %v70 = vld [vmem:[%s0 + $0x188] sm:$0xff]
  %v71 = vld [vmem:[%s0 + $0x190] sm:$0xff]
  %v72 = vld [vmem:[%s0 + $0x198] sm:$0xff]
  %v73 = vld [vmem:[%s0 + $0x1a0] sm:$0xff]
  %v74 = vld [vmem:[%s0 + $0x1a8] sm:$0xff]
  %v75 = vld [vmem:[%s0 + $0x1b0] sm:$0xff]
  %v76 = vld [vmem:[%s0 + $0x1b8] sm:$0xff]
  %v77 = vld [vmem:[%s0 + $0x1c0] sm:$0xff]
  %v78 = vld [vmem:[%s0 + $0x1c8] sm:$0xff]
  %v79 = vld [vmem:[%s0 + $0x1d0] sm:$0xff]
  %v80 = vld [vmem:[%s0 + $0x1d8] sm:$0xff]
  %v81 = vld [vmem:[%s0 + $0x1e0] sm:$0xff]
  %v82 = vld [vmem:[%s0 + $0x1e8] sm:$0xff]
  %v83 = vld [vmem:[%s0 + $0x1f0] sm:$0xff]
  %v84 = vld [vmem:[%s0 + $0x1f8] sm:$0xff]
  %v85 = vpack.c.bf16 %v22, %v21
  %v86 = vpack.c.bf16 %v24, %v23
  %v87 = vpack.c.bf16 %v26, %v25
  %v88 = vpack.c.bf16 %v28, %v27
  %v89 = vpack.c.bf16 %v30, %v29
  %v90 = vpack.c.bf16 %v32, %v31
  %v91 = vpack.c.bf16 %v34, %v33
  %v92 = vpack.c.bf16 %v36, %v35
  %v93 = vpack.c.bf16 %v38, %v37
  %v94 = vpack.c.bf16 %v40, %v39
  %v95 = vpack.c.bf16 %v42, %v41
  %v96 = vpack.c.bf16 %v44, %v43
  %v97 = vpack.c.bf16 %v46, %v45
  %v98 = vpack.c.bf16 %v48, %v47
  %v99 = vpack.c.bf16 %v50, %v49
  %v100 = vpack.c.bf16 %v52, %v51
  %v101 = vpack.c.bf16 %v54, %v53
  %v102 = vpack.c.bf16 %v56, %v55
  %v103 = vpack.c.bf16 %v58, %v57
  %v104 = vpack.c.bf16 %v60, %v59
  %v105 = vpack.c.bf16 %v62, %v61
  %v106 = vpack.c.bf16 %v64, %v63
  %v107 = vpack.c.bf16 %v66, %v65
  %v108 = vpack.c.bf16 %v68, %v67
  %v109 = vpack.c.bf16 %v70, %v69
  %v110 = vpack.c.bf16 %v72, %v71
  %v111 = vpack.c.bf16 %v74, %v73
  %v112 = vpack.c.bf16 %v76, %v75
  %v113 = vpack.c.bf16 %v78, %v77
  %v114 = vpack.c.bf16 %v80, %v79
  %v115 = vpack.c.bf16 %v82, %v81
  %v116 = vpack.c.bf16 %v84, %v83
  %v117 = vld [vmem:[%s1] sm:$0xf]
  %v118 = vld [vmem:[%s1 + $0x4] sm:$0x3]
  %v119 = vld [vmem:[%s2] sm:$0x1]
  %v121 = vlaneseq
  %v122 = vshrl.u32 %v121, 7
  %v123 = vsub.s32 0, %v122
  %v124 = vrot.slane %v119, %v123
  %v128 = vunpack.c.l.b16 %v117
  %v129 = vunpack.c.l.b16 %v118
  %v130 = vpack.c.b16 %v129, %v128
  %vm131 = vcmask 97280
  %v133 = vsel %vm131, %v85, 0
  %v136 = vsel %vm131, %v86, 0
  %v139 = vsel %vm131, %v87, 0
  %v142 = vsel %vm131, %v88, 0
  %v145 = vsel %vm131, %v89, 0
  %v148 = vsel %vm131, %v90, 0
  %v151 = vsel %vm131, %v91, 0
  %v154 = vsel %vm131, %v92, 0
  %v157 = vsel %vm131, %v93, 0
  %v160 = vsel %vm131, %v94, 0
  %v163 = vsel %vm131, %v95, 0
  %v166 = vsel %vm131, %v96, 0
  %v169 = vsel %vm131, %v97, 0
  %v172 = vsel %vm131, %v98, 0
  %v175 = vsel %vm131, %v99, 0
  %v178 = vsel %vm131, %v100, 0
  %v181 = vsel %vm131, %v101, 0
  %v184 = vsel %vm131, %v102, 0
  %v187 = vsel %vm131, %v103, 0
  %v190 = vsel %vm131, %v104, 0
  %v193 = vsel %vm131, %v105, 0
  %v196 = vsel %vm131, %v106, 0
  %v199 = vsel %vm131, %v107, 0
  %v202 = vsel %vm131, %v108, 0
  %v205 = vsel %vm131, %v109, 0
  %v208 = vsel %vm131, %v110, 0
  %v211 = vsel %vm131, %v111, 0
  %v214 = vsel %vm131, %v112, 0
  %v217 = vsel %vm131, %v113, 0
  %v220 = vsel %vm131, %v114, 0
  %v223 = vsel %vm131, %v115, 0
  %v226 = vsel %vm131, %v116, 0
  %vm228 = vcmask 1045504
  %v230 = vsel %vm228, %v130, 0
  %232 = vmatprep.subr.bf16.mxu0 0
  %233 = vmatpush1.bf16.msra.mxu0 0
  %234 = vmatprep.subr.bf16.mxu0 0
  %235 = vmatpush1.bf16.msra.mxu0 0
  %236 = vmatprep.subr.bf16.mxu0 0
  %237 = vmatpush1.bf16.msra.mxu0 0
  %238 = vmatprep.subr.bf16.mxu0 0
  %239 = vmatpush1.bf16.msra.mxu0 0
  %240 = vmatprep.subr.bf16.mxu0 0
  %241 = vmatpush1.bf16.msra.mxu0 0
  %242 = vmatprep.subr.bf16.mxu0 0
  %243 = vmatpush1.bf16.msra.mxu0 0
  %244 = vmatprep.subr.bf16.mxu0 0
  %245 = vmatpush1.bf16.msra.mxu0 0
  %246 = vmatprep.subr.bf16.mxu0 0
  %247 = vmatpush1.bf16.msra.mxu0 %v230
  %248 = vmatprep.subr.bf16.mxu0 0
  %249 = vmatpush2.bf16.msra.mxu0 0
  %250 = vmatprep.subr.bf16.mxu0 0
  %251 = vmatpush2.bf16.msra.mxu0 0
  %252 = vmatprep.subr.bf16.mxu0 0
  %253 = vmatpush2.bf16.msra.mxu0 0
  %254 = vmatprep.subr.bf16.mxu0 0
  %255 = vmatpush2.bf16.msra.mxu0 0
  %256 = vmatprep.subr.bf16.mxu0 0
  %257 = vmatpush2.bf16.msra.mxu0 0
  %258 = vmatprep.subr.bf16.mxu0 0
  %259 = vmatpush2.bf16.msra.mxu0 0
  %260 = vmatprep.subr.bf16.mxu0 0
  %261 = vmatpush2.bf16.msra.mxu0 0
  %262 = vmatprep.subr.bf16.mxu0 0
  %263 = vmatpush2.bf16.msra.mxu0 0
  %264 = vmatprep.mubr.bf16.mxu0 0
  %265 = vmatmul.mubr.bf16.gmra.mxu0 %v133
  %v266 = vpop.f32.mrf.mxu0
  %v267 = vadd.f32 %v124, %v266
  %v268 = vpop.f32.mrf.mxu0
  %v269 = vpop.f32.mrf.mxu0
  %v270 = vadd.f32 %v124, %v269
  %v271 = vpop.f32.mrf.mxu0
  %272 = vmatprep.mubr.bf16.mxu0 0
  %273 = vmatmul.mubr.bf16.gmra.mxu0 %v136
  %v274 = vpop.f32.mrf.mxu0
  %v275 = vadd.f32 %v124, %v274
  %v276 = vpop.f32.mrf.mxu0
  %v277 = vpop.f32.mrf.mxu0
  %v278 = vadd.f32 %v124, %v277
  %v279 = vpop.f32.mrf.mxu0
  %280 = vmatprep.mubr.bf16.mxu0 0
  %281 = vmatmul.mubr.bf16.gmra.mxu0 %v139
  %v282 = vpop.f32.mrf.mxu0
  %v283 = vadd.f32 %v124, %v282
  %v284 = vpop.f32.mrf.mxu0
  %v285 = vpop.f32.mrf.mxu0
  %v286 = vadd.f32 %v124, %v285
  %v287 = vpop.f32.mrf.mxu0
  %288 = vmatprep.mubr.bf16.mxu0 0
  %289 = vmatmul.mubr.bf16.gmra.mxu0 %v142
  %v290 = vpop.f32.mrf.mxu0
  %v291 = vadd.f32 %v124, %v290
  %v292 = vpop.f32.mrf.mxu0
  %v293 = vpop.f32.mrf.mxu0
  %v294 = vadd.f32 %v124, %v293
  %v295 = vpop.f32.mrf.mxu0
  %296 = vmatprep.mubr.bf16.mxu0 0
  %297 = vmatmul.mubr.bf16.gmra.mxu0 %v145
  %v298 = vpop.f32.mrf.mxu0
  %v299 = vadd.f32 %v124, %v298
  %v300 = vpop.f32.mrf.mxu0
  %v301 = vpop.f32.mrf.mxu0
  %v302 = vadd.f32 %v124, %v301
  %v303 = vpop.f32.mrf.mxu0
  %304 = vmatprep.mubr.bf16.mxu0 0
  %305 = vmatmul.mubr.bf16.gmra.mxu0 %v148
  %v306 = vpop.f32.mrf.mxu0
  %v307 = vadd.f32 %v124, %v306
  %v308 = vpop.f32.mrf.mxu0
  %v309 = vpop.f32.mrf.mxu0
  %v310 = vadd.f32 %v124, %v309
  %v311 = vpop.f32.mrf.mxu0
  %312 = vmatprep.mubr.bf16.mxu0 0
  %313 = vmatmul.mubr.bf16.gmra.mxu0 %v151
  %v314 = vpop.f32.mrf.mxu0
  %v315 = vadd.f32 %v124, %v314
  %v316 = vpop.f32.mrf.mxu0
  %v317 = vpop.f32.mrf.mxu0
  %v318 = vadd.f32 %v124, %v317
  %v319 = vpop.f32.mrf.mxu0
  %320 = vmatprep.mubr.bf16.mxu0 0
  %321 = vmatmul.mubr.bf16.gmra.mxu0 %v154
  %v322 = vpop.f32.mrf.mxu0
  %v323 = vadd.f32 %v124, %v322
  %v324 = vpop.f32.mrf.mxu0
  %v325 = vpop.f32.mrf.mxu0
  %v326 = vadd.f32 %v124, %v325
  %v327 = vpop.f32.mrf.mxu0
  %328 = vmatprep.mubr.bf16.mxu0 0
  %329 = vmatmul.mubr.bf16.gmra.mxu0 %v157
  %v330 = vpop.f32.mrf.mxu0
  %v331 = vadd.f32 %v124, %v330
  %v332 = vpop.f32.mrf.mxu0
  %v333 = vpop.f32.mrf.mxu0
  %v334 = vadd.f32 %v124, %v333
  %v335 = vpop.f32.mrf.mxu0
  %336 = vmatprep.mubr.bf16.mxu0 0
  %337 = vmatmul.mubr.bf16.gmra.mxu0 %v160
  %v338 = vpop.f32.mrf.mxu0
  %v339 = vadd.f32 %v124, %v338
  %v340 = vpop.f32.mrf.mxu0
  %v341 = vpop.f32.mrf.mxu0
  %v342 = vadd.f32 %v124, %v341
  %v343 = vpop.f32.mrf.mxu0
  %344 = vmatprep.mubr.bf16.mxu0 0
  %345 = vmatmul.mubr.bf16.gmra.mxu0 %v163
  %v346 = vpop.f32.mrf.mxu0
  %v347 = vadd.f32 %v124, %v346
  %v348 = vpop.f32.mrf.mxu0
  %v349 = vpop.f32.mrf.mxu0
  %v350 = vadd.f32 %v124, %v349
  %v351 = vpop.f32.mrf.mxu0
  %352 = vmatprep.mubr.bf16.mxu0 0
  %353 = vmatmul.mubr.bf16.gmra.mxu0 %v166
  %v354 = vpop.f32.mrf.mxu0
  %v355 = vadd.f32 %v124, %v354
  %v356 = vpop.f32.mrf.mxu0
  %v357 = vpop.f32.mrf.mxu0
  %v358 = vadd.f32 %v124, %v357
  %v359 = vpop.f32.mrf.mxu0
  %360 = vmatprep.mubr.bf16.mxu0 0
  %361 = vmatmul.mubr.bf16.gmra.mxu0 %v169
  %v362 = vpop.f32.mrf.mxu0
  %v363 = vadd.f32 %v124, %v362
  %v364 = vpop.f32.mrf.mxu0
  %v365 = vpop.f32.mrf.mxu0
  %v366 = vadd.f32 %v124, %v365
  %v367 = vpop.f32.mrf.mxu0
  %368 = vmatprep.mubr.bf16.mxu0 0
  %369 = vmatmul.mubr.bf16.gmra.mxu0 %v172
  %v370 = vpop.f32.mrf.mxu0
  %v371 = vadd.f32 %v124, %v370
  %v372 = vpop.f32.mrf.mxu0
  %v373 = vpop.f32.mrf.mxu0
  %v374 = vadd.f32 %v124, %v373
  %v375 = vpop.f32.mrf.mxu0
  %376 = vmatprep.mubr.bf16.mxu0 0
  %377 = vmatmul.mubr.bf16.gmra.mxu0 %v175
  %v378 = vpop.f32.mrf.mxu0
  %v379 = vadd.f32 %v124, %v378
  %v380 = vpop.f32.mrf.mxu0
  %v381 = vpop.f32.mrf.mxu0
  %v382 = vadd.f32 %v124, %v381
  %v383 = vpop.f32.mrf.mxu0
  %384 = vmatprep.mubr.bf16.mxu0 0
  %385 = vmatmul.mubr.bf16.gmra.mxu0 %v178
  %v386 = vpop.f32.mrf.mxu0
  %v387 = vadd.f32 %v124, %v386
  %v388 = vpop.f32.mrf.mxu0
  %v389 = vpop.f32.mrf.mxu0
  %v390 = vadd.f32 %v124, %v389
  %v391 = vpop.f32.mrf.mxu0
  %392 = vmatprep.mubr.bf16.mxu0 0
  %393 = vmatmul.mubr.bf16.gmra.mxu0 %v181
  %v394 = vpop.f32.mrf.mxu0
  %v395 = vadd.f32 %v124, %v394
  %v396 = vpop.f32.mrf.mxu0
  %v397 = vpop.f32.mrf.mxu0
  %v398 = vadd.f32 %v124, %v397
  %v399 = vpop.f32.mrf.mxu0
  %400 = vmatprep.mubr.bf16.mxu0 0
  %401 = vmatmul.mubr.bf16.gmra.mxu0 %v184
  %v402 = vpop.f32.mrf.mxu0
  %v403 = vadd.f32 %v124, %v402
  %v404 = vpop.f32.mrf.mxu0
  %v405 = vpop.f32.mrf.mxu0
  %v406 = vadd.f32 %v124, %v405
  %v407 = vpop.f32.mrf.mxu0
  %408 = vmatprep.mubr.bf16.mxu0 0
  %409 = vmatmul.mubr.bf16.gmra.mxu0 %v187
  %v410 = vpop.f32.mrf.mxu0
  %v411 = vadd.f32 %v124, %v410
  %v412 = vpop.f32.mrf.mxu0
  %v413 = vpop.f32.mrf.mxu0
  %v414 = vadd.f32 %v124, %v413
  %v415 = vpop.f32.mrf.mxu0
  %416 = vmatprep.mubr.bf16.mxu0 0
  %417 = vmatmul.mubr.bf16.gmra.mxu0 %v190
  %v418 = vpop.f32.mrf.mxu0
  %v419 = vadd.f32 %v124, %v418
  %v420 = vpop.f32.mrf.mxu0
  %v421 = vpop.f32.mrf.mxu0
  %v422 = vadd.f32 %v124, %v421
  %v423 = vpop.f32.mrf.mxu0
  %424 = vmatprep.mubr.bf16.mxu0 0
  %425 = vmatmul.mubr.bf16.gmra.mxu0 %v193
  %v426 = vpop.f32.mrf.mxu0
  %v427 = vadd.f32 %v124, %v426
  %v428 = vpop.f32.mrf.mxu0
  %v429 = vpop.f32.mrf.mxu0
  %v430 = vadd.f32 %v124, %v429
  %v431 = vpop.f32.mrf.mxu0
  %432 = vmatprep.mubr.bf16.mxu0 0
  %433 = vmatmul.mubr.bf16.gmra.mxu0 %v196
  %v434 = vpop.f32.mrf.mxu0
  %v435 = vadd.f32 %v124, %v434
  %v436 = vpop.f32.mrf.mxu0
  %v437 = vpop.f32.mrf.mxu0
  %v438 = vadd.f32 %v124, %v437
  %v439 = vpop.f32.mrf.mxu0
  %440 = vmatprep.mubr.bf16.mxu0 0
  %441 = vmatmul.mubr.bf16.gmra.mxu0 %v199
  %v442 = vpop.f32.mrf.mxu0
  %v443 = vadd.f32 %v124, %v442
  %v444 = vpop.f32.mrf.mxu0
  %v445 = vpop.f32.mrf.mxu0
  %v446 = vadd.f32 %v124, %v445
  %v447 = vpop.f32.mrf.mxu0
  %448 = vmatprep.mubr.bf16.mxu0 0
  %449 = vmatmul.mubr.bf16.gmra.mxu0 %v202
  %v450 = vpop.f32.mrf.mxu0
  %v451 = vadd.f32 %v124, %v450
  %v452 = vpop.f32.mrf.mxu0
  %v453 = vpop.f32.mrf.mxu0
  %v454 = vadd.f32 %v124, %v453
  %v455 = vpop.f32.mrf.mxu0
  %456 = vmatprep.mubr.bf16.mxu0 0
  %457 = vmatmul.mubr.bf16.gmra.mxu0 %v205
  %v458 = vpop.f32.mrf.mxu0
  %v459 = vadd.f32 %v124, %v458
  %v460 = vpop.f32.mrf.mxu0
  %v461 = vpop.f32.mrf.mxu0
  %v462 = vadd.f32 %v124, %v461
  %v463 = vpop.f32.mrf.mxu0
  %464 = vmatprep.mubr.bf16.mxu0 0
  %465 = vmatmul.mubr.bf16.gmra.mxu0 %v208
  %v466 = vpop.f32.mrf.mxu0
  %v467 = vadd.f32 %v124, %v466
  %v468 = vpop.f32.mrf.mxu0
  %v469 = vpop.f32.mrf.mxu0
  %v470 = vadd.f32 %v124, %v469
  %v471 = vpop.f32.mrf.mxu0
  %472 = vmatprep.mubr.bf16.mxu0 0
  %473 = vmatmul.mubr.bf16.gmra.mxu0 %v211
  %v474 = vpop.f32.mrf.mxu0
  %v475 = vadd.f32 %v124, %v474
  %v476 = vpop.f32.mrf.mxu0
  %v477 = vpop.f32.mrf.mxu0
  %v478 = vadd.f32 %v124, %v477
  %v479 = vpop.f32.mrf.mxu0
  %480 = vmatprep.mubr.bf16.mxu0 0
  %481 = vmatmul.mubr.bf16.gmra.mxu0 %v214
  %v482 = vpop.f32.mrf.mxu0
  %v483 = vadd.f32 %v124, %v482
  %v484 = vpop.f32.mrf.mxu0
  %v485 = vpop.f32.mrf.mxu0
  %v486 = vadd.f32 %v124, %v485
  %v487 = vpop.f32.mrf.mxu0
  %488 = vmatprep.mubr.bf16.mxu0 0
  %489 = vmatmul.mubr.bf16.gmra.mxu0 %v217
  %v490 = vpop.f32.mrf.mxu0
  %v491 = vadd.f32 %v124, %v490
  %v492 = vpop.f32.mrf.mxu0
  %v493 = vpop.f32.mrf.mxu0
  %v494 = vadd.f32 %v124, %v493
  %v495 = vpop.f32.mrf.mxu0
  %496 = vmatprep.mubr.bf16.mxu0 0
  %497 = vmatmul.mubr.bf16.gmra.mxu0 %v220
  %v498 = vpop.f32.mrf.mxu0
  %v499 = vadd.f32 %v124, %v498
  %v500 = vpop.f32.mrf.mxu0
  %v501 = vpop.f32.mrf.mxu0
  %v502 = vadd.f32 %v124, %v501
  %v503 = vpop.f32.mrf.mxu0
  %504 = vmatprep.mubr.bf16.mxu0 0
  %505 = vmatmul.mubr.bf16.gmra.mxu0 %v223
  %v506 = vpop.f32.mrf.mxu0
  %v507 = vadd.f32 %v124, %v506
  %v508 = vpop.f32.mrf.mxu0
  %v509 = vpop.f32.mrf.mxu0
  %v510 = vadd.f32 %v124, %v509
  %v511 = vpop.f32.mrf.mxu0
  %512 = vmatprep.mubr.bf16.mxu0 0
  %513 = vmatmul.mubr.bf16.gmra.mxu0 %v226
  %v514 = vpop.f32.mrf.mxu0
  %v515 = vadd.f32 %v124, %v514
  %v516 = vpop.f32.mrf.mxu0
  %v517 = vpop.f32.mrf.mxu0
  %v518 = vadd.f32 %v124, %v517
  %v519 = vpop.f32.mrf.mxu0
  %520 = vdwg.mxu0
  %v521 = vmax.f32 %v267, 0.0
  %v522 = vmax.f32 %v270, 0.0
  %v523 = vmax.f32 %v275, 0.0
  %v524 = vmax.f32 %v278, 0.0
  %v525 = vmax.f32 %v283, 0.0
  %v526 = vmax.f32 %v286, 0.0
  %v527 = vmax.f32 %v291, 0.0
  %v528 = vmax.f32 %v294, 0.0
  %v529 = vmax.f32 %v299, 0.0
  %v530 = vmax.f32 %v302, 0.0
  %v531 = vmax.f32 %v307, 0.0
  %v532 = vmax.f32 %v310, 0.0
  %v533 = vmax.f32 %v315, 0.0
  %v534 = vmax.f32 %v318, 0.0
  %v535 = vmax.f32 %v323, 0.0
  %v536 = vmax.f32 %v326, 0.0
  %v537 = vmax.f32 %v331, 0.0
  %v538 = vmax.f32 %v334, 0.0
  %v539 = vmax.f32 %v339, 0.0
  %v540 = vmax.f32 %v342, 0.0
  %v541 = vmax.f32 %v347, 0.0
  %v542 = vmax.f32 %v350, 0.0
  %v543 = vmax.f32 %v355, 0.0
  %v544 = vmax.f32 %v358, 0.0
  %v545 = vmax.f32 %v363, 0.0
  %v546 = vmax.f32 %v366, 0.0
  %v547 = vmax.f32 %v371, 0.0
  %v548 = vmax.f32 %v374, 0.0
  %v549 = vmax.f32 %v379, 0.0
  %v550 = vmax.f32 %v382, 0.0
  %v551 = vmax.f32 %v387, 0.0
  %v552 = vmax.f32 %v390, 0.0
  %v553 = vmax.f32 %v395, 0.0
  %v554 = vmax.f32 %v398, 0.0
  %v555 = vmax.f32 %v403, 0.0
  %v556 = vmax.f32 %v406, 0.0
  %v557 = vmax.f32 %v411, 0.0
  %v558 = vmax.f32 %v414, 0.0
  %v559 = vmax.f32 %v419, 0.0
  %v560 = vmax.f32 %v422, 0.0
  %v561 = vmax.f32 %v427, 0.0
  %v562 = vmax.f32 %v430, 0.0
  %v563 = vmax.f32 %v435, 0.0
  %v564 = vmax.f32 %v438, 0.0
  %v565 = vmax.f32 %v443, 0.0
  %v566 = vmax.f32 %v446, 0.0
  %v567 = vmax.f32 %v451, 0.0
  %v568 = vmax.f32 %v454, 0.0
  %v569 = vmax.f32 %v459, 0.0
  %v570 = vmax.f32 %v462, 0.0
  %v571 = vmax.f32 %v467, 0.0
  %v572 = vmax.f32 %v470, 0.0
  %v573 = vmax.f32 %v475, 0.0
  %v574 = vmax.f32 %v478, 0.0
  %v575 = vmax.f32 %v483, 0.0
  %v576 = vmax.f32 %v486, 0.0
  %v577 = vmax.f32 %v491, 0.0
  %v578 = vmax.f32 %v494, 0.0
  %v579 = vmax.f32 %v499, 0.0
  %v580 = vmax.f32 %v502, 0.0
  %v581 = vmax.f32 %v507, 0.0
  %v582 = vmax.f32 %v510, 0.0
  %v583 = vmax.f32 %v515, 0.0
  %v584 = vmax.f32 %v518, 0.0
  %v585 = vpack.c.bf16 %v522, %v521
  %v586 = vpack.c.bf16 %v524, %v523
  %v587 = vpack.c.bf16 %v526, %v525
  %v588 = vpack.c.bf16 %v528, %v527
  %v589 = vpack.c.bf16 %v530, %v529
  %v590 = vpack.c.bf16 %v532, %v531
  %v591 = vpack.c.bf16 %v534, %v533
  %v592 = vpack.c.bf16 %v536, %v535
  %v593 = vpack.c.bf16 %v538, %v537
  %v594 = vpack.c.bf16 %v540, %v539
  %v595 = vpack.c.bf16 %v542, %v541
  %v596 = vpack.c.bf16 %v544, %v543
  %v597 = vpack.c.bf16 %v546, %v545
  %v598 = vpack.c.bf16 %v548, %v547
  %v599 = vpack.c.bf16 %v550, %v549
  %v600 = vpack.c.bf16 %v552, %v551
  %v601 = vpack.c.bf16 %v554, %v553
  %v602 = vpack.c.bf16 %v556, %v555
  %v603 = vpack.c.bf16 %v558, %v557
  %v604 = vpack.c.bf16 %v560, %v559
  %v605 = vpack.c.bf16 %v562, %v561
  %v606 = vpack.c.bf16 %v564, %v563
  %v607 = vpack.c.bf16 %v566, %v565
  %v608 = vpack.c.bf16 %v568, %v567
  %v609 = vpack.c.bf16 %v570, %v569
  %v610 = vpack.c.bf16 %v572, %v571
  %v611 = vpack.c.bf16 %v574, %v573
  %v612 = vpack.c.bf16 %v576, %v575
  %v613 = vpack.c.bf16 %v578, %v577
  %v614 = vpack.c.bf16 %v580, %v579
  %v615 = vpack.c.bf16 %v582, %v581
  %v616 = vpack.c.bf16 %v584, %v583
  %v617 = vld [vmem:[%s3] sm:$0xf]
  %v618 = vld [vmem:[%s3 + $0x4] sm:$0xf]
  %v619 = vld [vmem:[%s3 + $0x8] sm:$0xf]
  %v620 = vld [vmem:[%s3 + $0xc] sm:$0xf]
  %v621 = vld [vmem:[%s3 + $0x10] sm:$0xf]
  %v622 = vld [vmem:[%s3 + $0x14] sm:$0xf]
  %v623 = vld [vmem:[%s3 + $0x18] sm:$0xf]
  %v624 = vld [vmem:[%s3 + $0x1c] sm:$0xf]
  %v625 = vld [vmem:[%s4] sm:$0x1]
  %v627 = vlaneseq
  %v628 = vshrl.u32 %v627, 7
  %v629 = vsub.s32 0, %v628
  %v630 = vrot.slane %v625, %v629
  %v640 = vunpack.c.l.b16 %v617
  %v641 = vunpack.c.l.b16 %v618
  %v642 = vunpack.c.l.b16 %v619
  %v643 = vunpack.c.l.b16 %v620
  %v644 = vunpack.c.l.b16 %v621
  %v645 = vunpack.c.l.b16 %v622
  %v646 = vunpack.c.l.b16 %v623
  %v647 = vunpack.c.l.b16 %v624
  %v648 = vpack.c.b16 %v641, %v640
  %v649 = vpack.c.b16 %v643, %v642
  %v650 = vpack.c.b16 %v645, %v644
  %v651 = vpack.c.b16 %v647, %v646
  %vm656 = vcmask 523264
  %v658 = vsel %vm656, %v585, 0
  %v661 = vsel %vm656, %v586, 0
  %v664 = vsel %vm656, %v587, 0
  %v667 = vsel %vm656, %v588, 0
  %v670 = vsel %vm656, %v589, 0
  %v673 = vsel %vm656, %v590, 0
  %v676 = vsel %vm656, %v591, 0
  %v679 = vsel %vm656, %v592, 0
  %v682 = vsel %vm656, %v593, 0
  %v685 = vsel %vm656, %v594, 0
  %v688 = vsel %vm656, %v595, 0
  %v691 = vsel %vm656, %v596, 0
  %v694 = vsel %vm656, %v597, 0
  %v697 = vsel %vm656, %v598, 0
  %v700 = vsel %vm656, %v599, 0
  %v703 = vsel %vm656, %v600, 0
  %v706 = vsel %vm656, %v601, 0
  %v709 = vsel %vm656, %v602, 0
  %v712 = vsel %vm656, %v603, 0
  %v715 = vsel %vm656, %v604, 0
  %v718 = vsel %vm656, %v605, 0
  %v721 = vsel %vm656, %v606, 0
  %v724 = vsel %vm656, %v607, 0
  %v727 = vsel %vm656, %v608, 0
  %v730 = vsel %vm656, %v609, 0
  %v733 = vsel %vm656, %v610, 0
  %v736 = vsel %vm656, %v611, 0
  %v739 = vsel %vm656, %v612, 0
  %v742 = vsel %vm656, %v613, 0
  %v745 = vsel %vm656, %v614, 0
  %v748 = vsel %vm656, %v615, 0
  %v751 = vsel %vm656, %v616, 0
  %753 = vmatprep.subr.bf16.mxu0 0
  %754 = vmatpush1.bf16.msra.mxu0 0
  %755 = vmatprep.subr.bf16.mxu0 0
  %756 = vmatpush1.bf16.msra.mxu0 0
  %757 = vmatprep.subr.bf16.mxu0 0
  %758 = vmatpush1.bf16.msra.mxu0 0
  %759 = vmatprep.subr.bf16.mxu0 0
  %760 = vmatpush1.bf16.msra.mxu0 0
  %761 = vmatprep.subr.bf16.mxu0 0
  %762 = vmatpush1.bf16.msra.mxu0 %v651
  %763 = vmatprep.subr.bf16.mxu0 0
  %764 = vmatpush1.bf16.msra.mxu0 %v650
  %765 = vmatprep.subr.bf16.mxu0 0
  %766 = vmatpush1.bf16.msra.mxu0 %v649
  %767 = vmatprep.subr.bf16.mxu0 0
  %768 = vmatpush1.bf16.msra.mxu0 %v648
  %769 = vmatprep.subr.bf16.mxu0 0
  %770 = vmatpush2.bf16.msra.mxu0 0
  %771 = vmatprep.subr.bf16.mxu0 0
  %772 = vmatpush2.bf16.msra.mxu0 0
  %773 = vmatprep.subr.bf16.mxu0 0
  %774 = vmatpush2.bf16.msra.mxu0 0
  %775 = vmatprep.subr.bf16.mxu0 0
  %776 = vmatpush2.bf16.msra.mxu0 0
  %777 = vmatprep.subr.bf16.mxu0 0
  %778 = vmatpush2.bf16.msra.mxu0 0
  %779 = vmatprep.subr.bf16.mxu0 0
  %780 = vmatpush2.bf16.msra.mxu0 0
  %781 = vmatprep.subr.bf16.mxu0 0
  %782 = vmatpush2.bf16.msra.mxu0 0
  %783 = vmatprep.subr.bf16.mxu0 0
  %784 = vmatpush2.bf16.msra.mxu0 0
  %785 = vmatprep.mubr.bf16.mxu0 0
  %786 = vmatmul.mubr.bf16.gmra.mxu0 %v658
  %v787 = vpop.f32.mrf.mxu0
  %v788 = vadd.f32 %v630, %v787
  %v789 = vpop.f32.mrf.mxu0
  %v790 = vpop.f32.mrf.mxu0
  %v791 = vadd.f32 %v630, %v790
  %v792 = vpop.f32.mrf.mxu0
  %793 = vmatprep.mubr.bf16.mxu0 0
  %794 = vmatmul.mubr.bf16.gmra.mxu0 %v661
  %v795 = vpop.f32.mrf.mxu0
  %v796 = vadd.f32 %v630, %v795
  %v797 = vpop.f32.mrf.mxu0
  %v798 = vpop.f32.mrf.mxu0
  %v799 = vadd.f32 %v630, %v798
  %v800 = vpop.f32.mrf.mxu0
  %801 = vmatprep.mubr.bf16.mxu0 0
  %802 = vmatmul.mubr.bf16.gmra.mxu0 %v664
  %v803 = vpop.f32.mrf.mxu0
  %v804 = vadd.f32 %v630, %v803
  %v805 = vpop.f32.mrf.mxu0
  %v806 = vpop.f32.mrf.mxu0
  %v807 = vadd.f32 %v630, %v806
  %v808 = vpop.f32.mrf.mxu0
  %809 = vmatprep.mubr.bf16.mxu0 0
  %810 = vmatmul.mubr.bf16.gmra.mxu0 %v667
  %v811 = vpop.f32.mrf.mxu0
  %v812 = vadd.f32 %v630, %v811
  %v813 = vpop.f32.mrf.mxu0
  %v814 = vpop.f32.mrf.mxu0
  %v815 = vadd.f32 %v630, %v814
  %v816 = vpop.f32.mrf.mxu0
  %817 = vmatprep.mubr.bf16.mxu0 0
  %818 = vmatmul.mubr.bf16.gmra.mxu0 %v670
  %v819 = vpop.f32.mrf.mxu0
  %v820 = vadd.f32 %v630, %v819
  %v821 = vpop.f32.mrf.mxu0
  %v822 = vpop.f32.mrf.mxu0
  %v823 = vadd.f32 %v630, %v822
  %v824 = vpop.f32.mrf.mxu0
  %825 = vmatprep.mubr.bf16.mxu0 0
  %826 = vmatmul.mubr.bf16.gmra.mxu0 %v673
  %v827 = vpop.f32.mrf.mxu0
  %v828 = vadd.f32 %v630, %v827
  %v829 = vpop.f32.mrf.mxu0
  %v830 = vpop.f32.mrf.mxu0
  %v831 = vadd.f32 %v630, %v830
  %v832 = vpop.f32.mrf.mxu0
  %833 = vmatprep.mubr.bf16.mxu0 0
  %834 = vmatmul.mubr.bf16.gmra.mxu0 %v676
  %v835 = vpop.f32.mrf.mxu0
  %v836 = vadd.f32 %v630, %v835
  %v837 = vpop.f32.mrf.mxu0
  %v838 = vpop.f32.mrf.mxu0
  %v839 = vadd.f32 %v630, %v838
  %v840 = vpop.f32.mrf.mxu0
  %841 = vmatprep.mubr.bf16.mxu0 0
  %842 = vmatmul.mubr.bf16.gmra.mxu0 %v679
  %v843 = vpop.f32.mrf.mxu0
  %v844 = vadd.f32 %v630, %v843
  %v845 = vpop.f32.mrf.mxu0
  %v846 = vpop.f32.mrf.mxu0
  %v847 = vadd.f32 %v630, %v846
  %v848 = vpop.f32.mrf.mxu0
  %849 = vmatprep.mubr.bf16.mxu0 0
  %850 = vmatmul.mubr.bf16.gmra.mxu0 %v682
  %v851 = vpop.f32.mrf.mxu0
  %v852 = vadd.f32 %v630, %v851
  %v853 = vpop.f32.mrf.mxu0
  %v854 = vpop.f32.mrf.mxu0
  %v855 = vadd.f32 %v630, %v854
  %v856 = vpop.f32.mrf.mxu0
  %857 = vmatprep.mubr.bf16.mxu0 0
  %858 = vmatmul.mubr.bf16.gmra.mxu0 %v685
  %v859 = vpop.f32.mrf.mxu0
  %v860 = vadd.f32 %v630, %v859
  %v861 = vpop.f32.mrf.mxu0
  %v862 = vpop.f32.mrf.mxu0
  %v863 = vadd.f32 %v630, %v862
  %v864 = vpop.f32.mrf.mxu0
  %865 = vmatprep.mubr.bf16.mxu0 0
  %866 = vmatmul.mubr.bf16.gmra.mxu0 %v688
  %v867 = vpop.f32.mrf.mxu0
  %v868 = vadd.f32 %v630, %v867
  %v869 = vpop.f32.mrf.mxu0
  %v870 = vpop.f32.mrf.mxu0
  %v871 = vadd.f32 %v630, %v870
  %v872 = vpop.f32.mrf.mxu0
  %873 = vmatprep.mubr.bf16.mxu0 0
  %874 = vmatmul.mubr.bf16.gmra.mxu0 %v691
  %v875 = vpop.f32.mrf.mxu0
  %v876 = vadd.f32 %v630, %v875
  %v877 = vpop.f32.mrf.mxu0
  %v878 = vpop.f32.mrf.mxu0
  %v879 = vadd.f32 %v630, %v878
  %v880 = vpop.f32.mrf.mxu0
  %881 = vmatprep.mubr.bf16.mxu0 0
  %882 = vmatmul.mubr.bf16.gmra.mxu0 %v694
  %v883 = vpop.f32.mrf.mxu0
  %v884 = vadd.f32 %v630, %v883
  %v885 = vpop.f32.mrf.mxu0
  %v886 = vpop.f32.mrf.mxu0
  %v887 = vadd.f32 %v630, %v886
  %v888 = vpop.f32.mrf.mxu0
  %889 = vmatprep.mubr.bf16.mxu0 0
  %890 = vmatmul.mubr.bf16.gmra.mxu0 %v697
  %v891 = vpop.f32.mrf.mxu0
  %v892 = vadd.f32 %v630, %v891
  %v893 = vpop.f32.mrf.mxu0
  %v894 = vpop.f32.mrf.mxu0
  %v895 = vadd.f32 %v630, %v894
  %v896 = vpop.f32.mrf.mxu0
  %897 = vmatprep.mubr.bf16.mxu0 0
  %898 = vmatmul.mubr.bf16.gmra.mxu0 %v700
  %v899 = vpop.f32.mrf.mxu0
  %v900 = vadd.f32 %v630, %v899
  %v901 = vpop.f32.mrf.mxu0
  %v902 = vpop.f32.mrf.mxu0
  %v903 = vadd.f32 %v630, %v902
  %v904 = vpop.f32.mrf.mxu0
  %905 = vmatprep.mubr.bf16.mxu0 0
  %906 = vmatmul.mubr.bf16.gmra.mxu0 %v703
  %v907 = vpop.f32.mrf.mxu0
  %v908 = vadd.f32 %v630, %v907
  %v909 = vpop.f32.mrf.mxu0
  %v910 = vpop.f32.mrf.mxu0
  %v911 = vadd.f32 %v630, %v910
  %v912 = vpop.f32.mrf.mxu0
  %913 = vmatprep.mubr.bf16.mxu0 0
  %914 = vmatmul.mubr.bf16.gmra.mxu0 %v706
  %v915 = vpop.f32.mrf.mxu0
  %v916 = vadd.f32 %v630, %v915
  %v917 = vpop.f32.mrf.mxu0
  %v918 = vpop.f32.mrf.mxu0
  %v919 = vadd.f32 %v630, %v918
  %v920 = vpop.f32.mrf.mxu0
  %921 = vmatprep.mubr.bf16.mxu0 0
  %922 = vmatmul.mubr.bf16.gmra.mxu0 %v709
  %v923 = vpop.f32.mrf.mxu0
  %v924 = vadd.f32 %v630, %v923
  %v925 = vpop.f32.mrf.mxu0
  %v926 = vpop.f32.mrf.mxu0
  %v927 = vadd.f32 %v630, %v926
  %v928 = vpop.f32.mrf.mxu0
  %929 = vmatprep.mubr.bf16.mxu0 0
  %930 = vmatmul.mubr.bf16.gmra.mxu0 %v712
  %v931 = vpop.f32.mrf.mxu0
  %v932 = vadd.f32 %v630, %v931
  %v933 = vpop.f32.mrf.mxu0
  %v934 = vpop.f32.mrf.mxu0
  %v935 = vadd.f32 %v630, %v934
  %v936 = vpop.f32.mrf.mxu0
  %937 = vmatprep.mubr.bf16.mxu0 0
  %938 = vmatmul.mubr.bf16.gmra.mxu0 %v715
  %v939 = vpop.f32.mrf.mxu0
  %v940 = vadd.f32 %v630, %v939
  %v941 = vpop.f32.mrf.mxu0
  %v942 = vpop.f32.mrf.mxu0
  %v943 = vadd.f32 %v630, %v942
  %v944 = vpop.f32.mrf.mxu0
  %945 = vmatprep.mubr.bf16.mxu0 0
  %946 = vmatmul.mubr.bf16.gmra.mxu0 %v718
  %v947 = vpop.f32.mrf.mxu0
  %v948 = vadd.f32 %v630, %v947
  %v949 = vpop.f32.mrf.mxu0
  %v950 = vpop.f32.mrf.mxu0
  %v951 = vadd.f32 %v630, %v950
  %v952 = vpop.f32.mrf.mxu0
  %953 = vmatprep.mubr.bf16.mxu0 0
  %954 = vmatmul.mubr.bf16.gmra.mxu0 %v721
  %v955 = vpop.f32.mrf.mxu0
  %v956 = vadd.f32 %v630, %v955
  %v957 = vpop.f32.mrf.mxu0
  %v958 = vpop.f32.mrf.mxu0
  %v959 = vadd.f32 %v630, %v958
  %v960 = vpop.f32.mrf.mxu0
  %961 = vmatprep.mubr.bf16.mxu0 0
  %962 = vmatmul.mubr.bf16.gmra.mxu0 %v724
  %v963 = vpop.f32.mrf.mxu0
  %v964 = vadd.f32 %v630, %v963
  %v965 = vpop.f32.mrf.mxu0
  %v966 = vpop.f32.mrf.mxu0
  %v967 = vadd.f32 %v630, %v966
  %v968 = vpop.f32.mrf.mxu0
  %969 = vmatprep.mubr.bf16.mxu0 0
  %970 = vmatmul.mubr.bf16.gmra.mxu0 %v727
  %v971 = vpop.f32.mrf.mxu0
  %v972 = vadd.f32 %v630, %v971
  %v973 = vpop.f32.mrf.mxu0
  %v974 = vpop.f32.mrf.mxu0
  %v975 = vadd.f32 %v630, %v974
  %v976 = vpop.f32.mrf.mxu0
  %977 = vmatprep.mubr.bf16.mxu0 0
  %978 = vmatmul.mubr.bf16.gmra.mxu0 %v730
  %v979 = vpop.f32.mrf.mxu0
  %v980 = vadd.f32 %v630, %v979
  %v981 = vpop.f32.mrf.mxu0
  %v982 = vpop.f32.mrf.mxu0
  %v983 = vadd.f32 %v630, %v982
  %v984 = vpop.f32.mrf.mxu0
  %985 = vmatprep.mubr.bf16.mxu0 0
  %986 = vmatmul.mubr.bf16.gmra.mxu0 %v733
  %v987 = vpop.f32.mrf.mxu0
  %v988 = vadd.f32 %v630, %v987
  %v989 = vpop.f32.mrf.mxu0
  %v990 = vpop.f32.mrf.mxu0
  %v991 = vadd.f32 %v630, %v990
  %v992 = vpop.f32.mrf.mxu0
  %993 = vmatprep.mubr.bf16.mxu0 0
  %994 = vmatmul.mubr.bf16.gmra.mxu0 %v736
  %v995 = vpop.f32.mrf.mxu0
  %v996 = vadd.f32 %v630, %v995
  %v997 = vpop.f32.mrf.mxu0
  %v998 = vpop.f32.mrf.mxu0
  %v999 = vadd.f32 %v630, %v998
  %v1000 = vpop.f32.mrf.mxu0
  %1001 = vmatprep.mubr.bf16.mxu0 0
  %1002 = vmatmul.mubr.bf16.gmra.mxu0 %v739
  %v1003 = vpop.f32.mrf.mxu0
  %v1004 = vadd.f32 %v630, %v1003
  %v1005 = vpop.f32.mrf.mxu0
  %v1006 = vpop.f32.mrf.mxu0
  %v1007 = vadd.f32 %v630, %v1006
  %v1008 = vpop.f32.mrf.mxu0
  %1009 = vmatprep.mubr.bf16.mxu0 0
  %1010 = vmatmul.mubr.bf16.gmra.mxu0 %v742
  %v1011 = vpop.f32.mrf.mxu0
  %v1012 = vadd.f32 %v630, %v1011
  %v1013 = vpop.f32.mrf.mxu0
  %v1014 = vpop.f32.mrf.mxu0
  %v1015 = vadd.f32 %v630, %v1014
  %v1016 = vpop.f32.mrf.mxu0
  %1017 = vmatprep.mubr.bf16.mxu0 0
  %1018 = vmatmul.mubr.bf16.gmra.mxu0 %v745
  %v1019 = vpop.f32.mrf.mxu0
  %v1020 = vadd.f32 %v630, %v1019
  %v1021 = vpop.f32.mrf.mxu0
  %v1022 = vpop.f32.mrf.mxu0
  %v1023 = vadd.f32 %v630, %v1022
  %v1024 = vpop.f32.mrf.mxu0
  %1025 = vmatprep.mubr.bf16.mxu0 0
  %1026 = vmatmul.mubr.bf16.gmra.mxu0 %v748
  %v1027 = vpop.f32.mrf.mxu0
  %v1028 = vadd.f32 %v630, %v1027
  %v1029 = vpop.f32.mrf.mxu0
  %v1030 = vpop.f32.mrf.mxu0
  %v1031 = vadd.f32 %v630, %v1030
  %v1032 = vpop.f32.mrf.mxu0
  %1033 = vmatprep.mubr.bf16.mxu0 0
  %1034 = vmatmul.mubr.bf16.gmra.mxu0 %v751
  %v1035 = vpop.f32.mrf.mxu0
  %v1036 = vadd.f32 %v630, %v1035
  %v1037 = vpop.f32.mrf.mxu0
  %v1038 = vpop.f32.mrf.mxu0
  %v1039 = vadd.f32 %v630, %v1038
  %v1040 = vpop.f32.mrf.mxu0
  %1041 = vdwg.mxu0
  %v1042 = vmax.f32 %v788, 0.0
  %v1043 = vmax.f32 %v791, 0.0
  %v1044 = vmax.f32 %v796, 0.0
  %v1045 = vmax.f32 %v799, 0.0
  %v1046 = vmax.f32 %v804, 0.0
  %v1047 = vmax.f32 %v807, 0.0
  %v1048 = vmax.f32 %v812, 0.0
  %v1049 = vmax.f32 %v815, 0.0
  %v1050 = vmax.f32 %v820, 0.0
  %v1051 = vmax.f32 %v823, 0.0
  %v1052 = vmax.f32 %v828, 0.0
  %v1053 = vmax.f32 %v831, 0.0
  %v1054 = vmax.f32 %v836, 0.0
  %v1055 = vmax.f32 %v839, 0.0
  %v1056 = vmax.f32 %v844, 0.0
  %v1057 = vmax.f32 %v847, 0.0
  %v1058 = vmax.f32 %v852, 0.0
  %v1059 = vmax.f32 %v855, 0.0
  %v1060 = vmax.f32 %v860, 0.0
  %v1061 = vmax.f32 %v863, 0.0
  %v1062 = vmax.f32 %v868, 0.0
  %v1063 = vmax.f32 %v871, 0.0
  %v1064 = vmax.f32 %v876, 0.0
  %v1065 = vmax.f32 %v879, 0.0
  %v1066 = vmax.f32 %v884, 0.0
  %v1067 = vmax.f32 %v887, 0.0
  %v1068 = vmax.f32 %v892, 0.0
  %v1069 = vmax.f32 %v895, 0.0
  %v1070 = vmax.f32 %v900, 0.0
  %v1071 = vmax.f32 %v903, 0.0
  %v1072 = vmax.f32 %v908, 0.0
  %v1073 = vmax.f32 %v911, 0.0
  %v1074 = vmax.f32 %v916, 0.0
  %v1075 = vmax.f32 %v919, 0.0
  %v1076 = vmax.f32 %v924, 0.0
  %v1077 = vmax.f32 %v927, 0.0
  %v1078 = vmax.f32 %v932, 0.0
  %v1079 = vmax.f32 %v935, 0.0
  %v1080 = vmax.f32 %v940, 0.0
  %v1081 = vmax.f32 %v943, 0.0
  %v1082 = vmax.f32 %v948, 0.0
  %v1083 = vmax.f32 %v951, 0.0
  %v1084 = vmax.f32 %v956, 0.0
  %v1085 = vmax.f32 %v959, 0.0
  %v1086 = vmax.f32 %v964, 0.0
  %v1087 = vmax.f32 %v967, 0.0
  %v1088 = vmax.f32 %v972, 0.0
  %v1089 = vmax.f32 %v975, 0.0
  %v1090 = vmax.f32 %v980, 0.0
  %v1091 = vmax.f32 %v983, 0.0
  %v1092 = vmax.f32 %v988, 0.0
  %v1093 = vmax.f32 %v991, 0.0
  %v1094 = vmax.f32 %v996, 0.0
  %v1095 = vmax.f32 %v999, 0.0
  %v1096 = vmax.f32 %v1004, 0.0
  %v1097 = vmax.f32 %v1007, 0.0
  %v1098 = vmax.f32 %v1012, 0.0
  %v1099 = vmax.f32 %v1015, 0.0
  %v1100 = vmax.f32 %v1020, 0.0
  %v1101 = vmax.f32 %v1023, 0.0
  %v1102 = vmax.f32 %v1028, 0.0
  %v1103 = vmax.f32 %v1031, 0.0
  %v1104 = vmax.f32 %v1036, 0.0
  %v1105 = vmax.f32 %v1039, 0.0
  %vm1106 = vcmask 261120
  %1107 = vst.msk [vmem:[%s5] sm:$0xff] %vm1106, %v1042
  %1108 = vst.msk [vmem:[%s5 + $0x8] sm:$0xff] %vm1106, %v1043
  %1109 = vst.msk [vmem:[%s5 + $0x10] sm:$0xff] %vm1106, %v1044
  %1110 = vst.msk [vmem:[%s5 + $0x18] sm:$0xff] %vm1106, %v1045
  %1111 = vst.msk [vmem:[%s5 + $0x20] sm:$0xff] %vm1106, %v1046
  %1112 = vst.msk [vmem:[%s5 + $0x28] sm:$0xff] %vm1106, %v1047
  %1113 = vst.msk [vmem:[%s5 + $0x30] sm:$0xff] %vm1106, %v1048
  %1114 = vst.msk [vmem:[%s5 + $0x38] sm:$0xff] %vm1106, %v1049
  %1115 = vst.msk [vmem:[%s5 + $0x40] sm:$0xff] %vm1106, %v1050
  %1116 = vst.msk [vmem:[%s5 + $0x48] sm:$0xff] %vm1106, %v1051
  %1117 = vst.msk [vmem:[%s5 + $0x50] sm:$0xff] %vm1106, %v1052
  %1118 = vst.msk [vmem:[%s5 + $0x58] sm:$0xff] %vm1106, %v1053
  %1119 = vst.msk [vmem:[%s5 + $0x60] sm:$0xff] %vm1106, %v1054
  %1120 = vst.msk [vmem:[%s5 + $0x68] sm:$0xff] %vm1106, %v1055
  %1121 = vst.msk [vmem:[%s5 + $0x70] sm:$0xff] %vm1106, %v1056
  %1122 = vst.msk [vmem:[%s5 + $0x78] sm:$0xff] %vm1106, %v1057
  %1123 = vst.msk [vmem:[%s5 + $0x80] sm:$0xff] %vm1106, %v1058
  %1124 = vst.msk [vmem:[%s5 + $0x88] sm:$0xff] %vm1106, %v1059
  %1125 = vst.msk [vmem:[%s5 + $0x90] sm:$0xff] %vm1106, %v1060
  %1126 = vst.msk [vmem:[%s5 + $0x98] sm:$0xff] %vm1106, %v1061
  %1127 = vst.msk [vmem:[%s5 + $0xa0] sm:$0xff] %vm1106, %v1062
  %1128 = vst.msk [vmem:[%s5 + $0xa8] sm:$0xff] %vm1106, %v1063
  %1129 = vst.msk [vmem:[%s5 + $0xb0] sm:$0xff] %vm1106, %v1064
  %1130 = vst.msk [vmem:[%s5 + $0xb8] sm:$0xff] %vm1106, %v1065
  %1131 = vst.msk [vmem:[%s5 + $0xc0] sm:$0xff] %vm1106, %v1066
  %1132 = vst.msk [vmem:[%s5 + $0xc8] sm:$0xff] %vm1106, %v1067
  %1133 = vst.msk [vmem:[%s5 + $0xd0] sm:$0xff] %vm1106, %v1068
  %1134 = vst.msk [vmem:[%s5 + $0xd8] sm:$0xff] %vm1106, %v1069
  %1135 = vst.msk [vmem:[%s5 + $0xe0] sm:$0xff] %vm1106, %v1070
  %1136 = vst.msk [vmem:[%s5 + $0xe8] sm:$0xff] %vm1106, %v1071
  %1137 = vst.msk [vmem:[%s5 + $0xf0] sm:$0xff] %vm1106, %v1072
  %1138 = vst.msk [vmem:[%s5 + $0xf8] sm:$0xff] %vm1106, %v1073
  %1139 = vst.msk [vmem:[%s5 + $0x100] sm:$0xff] %vm1106, %v1074
  %1140 = vst.msk [vmem:[%s5 + $0x108] sm:$0xff] %vm1106, %v1075
  %1141 = vst.msk [vmem:[%s5 + $0x110] sm:$0xff] %vm1106, %v1076
  %1142 = vst.msk [vmem:[%s5 + $0x118] sm:$0xff] %vm1106, %v1077
  %1143 = vst.msk [vmem:[%s5 + $0x120] sm:$0xff] %vm1106, %v1078
  %1144 = vst.msk [vmem:[%s5 + $0x128] sm:$0xff] %vm1106, %v1079
  %1145 = vst.msk [vmem:[%s5 + $0x130] sm:$0xff] %vm1106, %v1080
  %1146 = vst.msk [vmem:[%s5 + $0x138] sm:$0xff] %vm1106, %v1081
  %1147 = vst.msk [vmem:[%s5 + $0x140] sm:$0xff] %vm1106, %v1082
  %1148 = vst.msk [vmem:[%s5 + $0x148] sm:$0xff] %vm1106, %v1083
  %1149 = vst.msk [vmem:[%s5 + $0x150] sm:$0xff] %vm1106, %v1084
  %1150 = vst.msk [vmem:[%s5 + $0x158] sm:$0xff] %vm1106, %v1085
  %1151 = vst.msk [vmem:[%s5 + $0x160] sm:$0xff] %vm1106, %v1086
  %1152 = vst.msk [vmem:[%s5 + $0x168] sm:$0xff] %vm1106, %v1087
  %1153 = vst.msk [vmem:[%s5 + $0x170] sm:$0xff] %vm1106, %v1088
  %1154 = vst.msk [vmem:[%s5 + $0x178] sm:$0xff] %vm1106, %v1089
  %1155 = vst.msk [vmem:[%s5 + $0x180] sm:$0xff] %vm1106, %v1090
  %1156 = vst.msk [vmem:[%s5 + $0x188] sm:$0xff] %vm1106, %v1091
  %1157 = vst.msk [vmem:[%s5 + $0x190] sm:$0xff] %vm1106, %v1092
  %1158 = vst.msk [vmem:[%s5 + $0x198] sm:$0xff] %vm1106, %v1093
  %1159 = vst.msk [vmem:[%s5 + $0x1a0] sm:$0xff] %vm1106, %v1094
  %1160 = vst.msk [vmem:[%s5 + $0x1a8] sm:$0xff] %vm1106, %v1095
  %1161 = vst.msk [vmem:[%s5 + $0x1b0] sm:$0xff] %vm1106, %v1096
  %1162 = vst.msk [vmem:[%s5 + $0x1b8] sm:$0xff] %vm1106, %v1097
  %1163 = vst.msk [vmem:[%s5 + $0x1c0] sm:$0xff] %vm1106, %v1098
  %1164 = vst.msk [vmem:[%s5 + $0x1c8] sm:$0xff] %vm1106, %v1099
  %1165 = vst.msk [vmem:[%s5 + $0x1d0] sm:$0xff] %vm1106, %v1100
  %1166 = vst.msk [vmem:[%s5 + $0x1d8] sm:$0xff] %vm1106, %v1101
  %1167 = vst.msk [vmem:[%s5 + $0x1e0] sm:$0xff] %vm1106, %v1102
  %1168 = vst.msk [vmem:[%s5 + $0x1e8] sm:$0xff] %vm1106, %v1103
  %1169 = vst.msk [vmem:[%s5 + $0x1f0] sm:$0xff] %vm1106, %v1104
  %1170 = vst.msk [vmem:[%s5 + $0x1f8] sm:$0xff] %vm1106, %v1105
  // Predicated region
  $region22: #{flow_diffusion_forward.6} parent=0 // pred_check
    _
  $region23: #{flow_diffusion_forward.6} parent=0 // pred_check_branch
    %1172 = sbr.rel (0) target = $region25
  $region24: #{flow_diffusion_forward.6} parent=0 // pred_region
    _
  $region25: #{flow_diffusion_forward.6} parent=0 // pred_fallthru
    _
  // Predicated region
  $region26: #{flow_diffusion_forward.6} parent=0 // pred_check
    _
  $region27: #{flow_diffusion_forward.6} parent=0 // pred_check_branch
    %1174 = sbr.rel (0) target = $region29
  $region28: #{flow_diffusion_forward.6} parent=0 // pred_region
    _
  $region29: #{flow_diffusion_forward.6} parent=0 // pred_fallthru
    _

// kernel: flow_diffusion_forward.7
$region0: #{flow_diffusion_forward.7}
  #allocation0 [shape = 'u32[]', space=smem, size = 0x4, offset = 0x4, fixed_abs, tag = 'smem constant byte address 0x4 - core index']
  #allocation1 [shape = 'u32[144,128]{1,0:T(1,128)}', space=vmem, size = 0x12000, scoped, tag = 'internal scratch']
  %s0 = inlined_call_operand.vmem [shape: f32[512,32], index: 0, kind: input, shape index: {}]
  %s1 = inlined_call_operand.vmem [shape: f32[128,32], index: 1, kind: input, shape index: {}]
  %s2 = inlined_call_operand.vmem [shape: bf16[32,128], index: 2, kind: input, shape index: {}]
  %s3 = inlined_call_operand.vmem [shape: bf16[32,128], index: 3, kind: input, shape index: {}]
  %s4 = inlined_call_operand.vmem [shape: f32[1,128], index: 4, kind: input, shape index: {}]
  %s5 = inlined_call_operand.vmem [shape: f32[64,128], index: 5, kind: input, shape index: {}]
  %s6 = inlined_call_operand.vmem [shape: f32[512,128], index: 6, kind: output, shape index: {}]
  %s7 = sld [smem:[#allocation0]]
  $region34: #{flow_diffusion_forward.7} parent=0
    _
  %s9 = ssub.s32 1, %s7
  %s10 = scalar_select 0, %s9, %s7
  // Predicated region
  $region2: #{flow_diffusion_forward.7} parent=0 // pred_check
    _
  $region3: #{flow_diffusion_forward.7} parent=0 // pred_check_branch
    %12 = sbr.rel (0) target = $region5
  $region4: #{flow_diffusion_forward.7} parent=0 // pred_region
    _
  $region5: #{flow_diffusion_forward.7} parent=0 // pred_fallthru
    _
  // Predicated region
  $region6: #{flow_diffusion_forward.7} parent=0 // pred_check
    _
  $region7: #{flow_diffusion_forward.7} parent=0 // pred_check_branch
    %14 = sbr.rel (0) target = $region9
  $region8: #{flow_diffusion_forward.7} parent=0 // pred_region
    _
  $region9: #{flow_diffusion_forward.7} parent=0 // pred_fallthru
    _
  // Predicated region
  $region10: #{flow_diffusion_forward.7} parent=0 // pred_check
    _
  $region11: #{flow_diffusion_forward.7} parent=0 // pred_check_branch
    %16 = sbr.rel (0) target = $region13
  $region12: #{flow_diffusion_forward.7} parent=0 // pred_region
    _
  $region13: #{flow_diffusion_forward.7} parent=0 // pred_fallthru
    _
  // Predicated region
  $region14: #{flow_diffusion_forward.7} parent=0 // pred_check
    _
  $region15: #{flow_diffusion_forward.7} parent=0 // pred_check_branch
    %18 = sbr.rel (0) target = $region17
  $region16: #{flow_diffusion_forward.7} parent=0 // pred_region
    _
  $region17: #{flow_diffusion_forward.7} parent=0 // pred_fallthru
    _
  // Predicated region
  $region18: #{flow_diffusion_forward.7} parent=0 // pred_check
    _
  $region19: #{flow_diffusion_forward.7} parent=0 // pred_check_branch
    %20 = sbr.rel (0) target = $region21
  $region20: #{flow_diffusion_forward.7} parent=0 // pred_region
    _
  $region21: #{flow_diffusion_forward.7} parent=0 // pred_fallthru
    _
  // Predicated region
  $region22: #{flow_diffusion_forward.7} parent=0 // pred_check
    _
  $region23: #{flow_diffusion_forward.7} parent=0 // pred_check_branch
    %22 = sbr.rel (0) target = $region25
  $region24: #{flow_diffusion_forward.7} parent=0 // pred_region
    _
  $region25: #{flow_diffusion_forward.7} parent=0 // pred_fallthru
    _
  %v24 = vld [vmem:[%s0] sm:$0xff]
  %v25 = vld [vmem:[%s0 + $0x8] sm:$0xff]
  %v26 = vld [vmem:[%s0 + $0x10] sm:$0xff]
  %v27 = vld [vmem:[%s0 + $0x18] sm:$0xff]
  %v28 = vld [vmem:[%s0 + $0x20] sm:$0xff]
  %v29 = vld [vmem:[%s0 + $0x28] sm:$0xff]
  %v30 = vld [vmem:[%s0 + $0x30] sm:$0xff]
  %v31 = vld [vmem:[%s0 + $0x38] sm:$0xff]
  %v32 = vld [vmem:[%s0 + $0x40] sm:$0xff]
  %v33 = vld [vmem:[%s0 + $0x48] sm:$0xff]
  %v34 = vld [vmem:[%s0 + $0x50] sm:$0xff]
  %v35 = vld [vmem:[%s0 + $0x58] sm:$0xff]
  %v36 = vld [vmem:[%s0 + $0x60] sm:$0xff]
  %v37 = vld [vmem:[%s0 + $0x68] sm:$0xff]
  %v38 = vld [vmem:[%s0 + $0x70] sm:$0xff]
  %v39 = vld [vmem:[%s0 + $0x78] sm:$0xff]
  %v40 = vld [vmem:[%s0 + $0x80] sm:$0xff]
  %v41 = vld [vmem:[%s0 + $0x88] sm:$0xff]
  %v42 = vld [vmem:[%s0 + $0x90] sm:$0xff]
  %v43 = vld [vmem:[%s0 + $0x98] sm:$0xff]
  %v44 = vld [vmem:[%s0 + $0xa0] sm:$0xff]
  %v45 = vld [vmem:[%s0 + $0xa8] sm:$0xff]
  %v46 = vld [vmem:[%s0 + $0xb0] sm:$0xff]
  %v47 = vld [vmem:[%s0 + $0xb8] sm:$0xff]
  %v48 = vld [vmem:[%s0 + $0xc0] sm:$0xff]
  %v49 = vld [vmem:[%s0 + $0xc8] sm:$0xff]
  %v50 = vld [vmem:[%s0 + $0xd0] sm:$0xff]
  %v51 = vld [vmem:[%s0 + $0xd8] sm:$0xff]
  %v52 = vld [vmem:[%s0 + $0xe0] sm:$0xff]
  %v53 = vld [vmem:[%s0 + $0xe8] sm:$0xff]
  %v54 = vld [vmem:[%s0 + $0xf0] sm:$0xff]
  %v55 = vld [vmem:[%s0 + $0xf8] sm:$0xff]
  %v56 = vld [vmem:[%s0 + $0x100] sm:$0xff]
  %v57 = vld [vmem:[%s0 + $0x108] sm:$0xff]
  %v58 = vld [vmem:[%s0 + $0x110] sm:$0xff]
  %v59 = vld [vmem:[%s0 + $0x118] sm:$0xff]
  %v60 = vld [vmem:[%s0 + $0x120] sm:$0xff]
  %v61 = vld [vmem:[%s0 + $0x128] sm:$0xff]
  %v62 = vld [vmem:[%s0 + $0x130] sm:$0xff]
  %v63 = vld [vmem:[%s0 + $0x138] sm:$0xff]
  %v64 = vld [vmem:[%s0 + $0x140] sm:$0xff]
  %v65 = vld [vmem:[%s0 + $0x148] sm:$0xff]
  %v66 = vld [vmem:[%s0 + $0x150] sm:$0xff]
  %v67 = vld [vmem:[%s0 + $0x158] sm:$0xff]
  %v68 = vld [vmem:[%s0 + $0x160] sm:$0xff]
  %v69 = vld [vmem:[%s0 + $0x168] sm:$0xff]
  %v70 = vld [vmem:[%s0 + $0x170] sm:$0xff]
  %v71 = vld [vmem:[%s0 + $0x178] sm:$0xff]
  %v72 = vld [vmem:[%s0 + $0x180] sm:$0xff]
  %v73 = vld [vmem:[%s0 + $0x188] sm:$0xff]
  %v74 = vld [vmem:[%s0 + $0x190] sm:$0xff]
  %v75 = vld [vmem:[%s0 + $0x198] sm:$0xff]
  %v76 = vld [vmem:[%s0 + $0x1a0] sm:$0xff]
  %v77 = vld [vmem:[%s0 + $0x1a8] sm:$0xff]
  %v78 = vld [vmem:[%s0 + $0x1b0] sm:$0xff]
  %v79 = vld [vmem:[%s0 + $0x1b8] sm:$0xff]
  %v80 = vld [vmem:[%s0 + $0x1c0] sm:$0xff]
  %v81 = vld [vmem:[%s0 + $0x1c8] sm:$0xff]
  %v82 = vld [vmem:[%s0 + $0x1d0] sm:$0xff]
  %v83 = vld [vmem:[%s0 + $0x1d8] sm:$0xff]
  %v84 = vld [vmem:[%s0 + $0x1e0] sm:$0xff]
  %v85 = vld [vmem:[%s0 + $0x1e8] sm:$0xff]
  %v86 = vld [vmem:[%s0 + $0x1f0] sm:$0xff]
  %v87 = vld [vmem:[%s0 + $0x1f8] sm:$0xff]
  %v88 = vpack.c.bf16 %v25, %v24
  %v89 = vpack.c.bf16 %v27, %v26
  %v90 = vpack.c.bf16 %v29, %v28
  %v91 = vpack.c.bf16 %v31, %v30
  %v92 = vpack.c.bf16 %v33, %v32
  %v93 = vpack.c.bf16 %v35, %v34
  %v94 = vpack.c.bf16 %v37, %v36
  %v95 = vpack.c.bf16 %v39, %v38
  %v96 = vpack.c.bf16 %v41, %v40
  %v97 = vpack.c.bf16 %v43, %v42
  %v98 = vpack.c.bf16 %v45, %v44
  %v99 = vpack.c.bf16 %v47, %v46
  %v100 = vpack.c.bf16 %v49, %v48
  %v101 = vpack.c.bf16 %v51, %v50
  %v102 = vpack.c.bf16 %v53, %v52
  %v103 = vpack.c.bf16 %v55, %v54
  %v104 = vpack.c.bf16 %v57, %v56
  %v105 = vpack.c.bf16 %v59, %v58
  %v106 = vpack.c.bf16 %v61, %v60
  %v107 = vpack.c.bf16 %v63, %v62
  %v108 = vpack.c.bf16 %v65, %v64
  %v109 = vpack.c.bf16 %v67, %v66
  %v110 = vpack.c.bf16 %v69, %v68
  %v111 = vpack.c.bf16 %v71, %v70
  %v112 = vpack.c.bf16 %v73, %v72
  %v113 = vpack.c.bf16 %v75, %v74
  %v114 = vpack.c.bf16 %v77, %v76
  %v115 = vpack.c.bf16 %v79, %v78
  %v116 = vpack.c.bf16 %v81, %v80
  %v117 = vpack.c.bf16 %v83, %v82
  %v118 = vpack.c.bf16 %v85, %v84
  %v119 = vpack.c.bf16 %v87, %v86
  %v120 = vld [vmem:[%s2] sm:$0xf]
  %v121 = vld [vmem:[%s2 + $0x4] sm:$0xf]
  %v122 = vld [vmem:[%s2 + $0x8] sm:$0xf]
  %v123 = vld [vmem:[%s2 + $0xc] sm:$0xf]
  %v128 = vunpack.c.l.b16 %v120
  %v129 = vunpack.c.l.b16 %v121
  %v130 = vunpack.c.l.b16 %v122
  %v131 = vunpack.c.l.b16 %v123
  %v132 = vpack.c.b16 %v129, %v128
  %v133 = vpack.c.b16 %v131, %v130
  %vm136 = vcmask 261120
  %v138 = vsel %vm136, %v88, 0
  %v141 = vsel %vm136, %v89, 0
  %v144 = vsel %vm136, %v90, 0
  %v147 = vsel %vm136, %v91, 0
  %v150 = vsel %vm136, %v92, 0
  %v153 = vsel %vm136, %v93, 0
  %v156 = vsel %vm136, %v94, 0
  %v159 = vsel %vm136, %v95, 0
  %v162 = vsel %vm136, %v96, 0
  %v165 = vsel %vm136, %v97, 0
  %v168 = vsel %vm136, %v98, 0
  %v171 = vsel %vm136, %v99, 0
  %v174 = vsel %vm136, %v100, 0
  %v177 = vsel %vm136, %v101, 0
  %v180 = vsel %vm136, %v102, 0
  %v183 = vsel %vm136, %v103, 0
  %v186 = vsel %vm136, %v104, 0
  %v189 = vsel %vm136, %v105, 0
  %v192 = vsel %vm136, %v106, 0
  %v195 = vsel %vm136, %v107, 0
  %v198 = vsel %vm136, %v108, 0
  %v201 = vsel %vm136, %v109, 0
  %v204 = vsel %vm136, %v110, 0
  %v207 = vsel %vm136, %v111, 0
  %v210 = vsel %vm136, %v112, 0
  %v213 = vsel %vm136, %v113, 0
  %v216 = vsel %vm136, %v114, 0
  %v219 = vsel %vm136, %v115, 0
  %v222 = vsel %vm136, %v116, 0
  %v225 = vsel %vm136, %v117, 0
  %v228 = vsel %vm136, %v118, 0
  %v231 = vsel %vm136, %v119, 0
  %233 = vmatprep.subr.bf16.mxu0 0
  %234 = vmatpush1.bf16.msra.mxu0 0
  %235 = vmatprep.subr.bf16.mxu0 0
  %236 = vmatpush1.bf16.msra.mxu0 0
  %237 = vmatprep.subr.bf16.mxu0 0
  %238 = vmatpush1.bf16.msra.mxu0 0
  %239 = vmatprep.subr.bf16.mxu0 0
  %240 = vmatpush1.bf16.msra.mxu0 0
  %241 = vmatprep.subr.bf16.mxu0 0
  %242 = vmatpush1.bf16.msra.mxu0 0
  %243 = vmatprep.subr.bf16.mxu0 0
  %244 = vmatpush1.bf16.msra.mxu0 0
  %245 = vmatprep.subr.bf16.mxu0 0
  %246 = vmatpush1.bf16.msra.mxu0 %v133
  %247 = vmatprep.subr.bf16.mxu0 0
  %248 = vmatpush1.bf16.msra.mxu0 %v132
  %249 = vmatprep.subr.bf16.mxu0 0
  %250 = vmatpush2.bf16.msra.mxu0 0
  %251 = vmatprep.subr.bf16.mxu0 0
  %252 = vmatpush2.bf16.msra.mxu0 0
  %253 = vmatprep.subr.bf16.mxu0 0
  %254 = vmatpush2.bf16.msra.mxu0 0
  %255 = vmatprep.subr.bf16.mxu0 0
  %256 = vmatpush2.bf16.msra.mxu0 0
  %257 = vmatprep.subr.bf16.mxu0 0
  %258 = vmatpush2.bf16.msra.mxu0 0
  %259 = vmatprep.subr.bf16.mxu0 0
  %260 = vmatpush2.bf16.msra.mxu0 0
  %261 = vmatprep.subr.bf16.mxu0 0
  %262 = vmatpush2.bf16.msra.mxu0 0
  %263 = vmatprep.subr.bf16.mxu0 0
  %264 = vmatpush2.bf16.msra.mxu0 0
  %265 = vmatprep.mubr.bf16.mxu0 0
  %266 = vmatmul.mubr.bf16.gmra.mxu0 %v138
  %v267 = vpop.f32.mrf.mxu0
  %v268 = vadd.f32 0.0, %v267
  %v269 = vpop.f32.mrf.mxu0
  %v270 = vpop.f32.mrf.mxu0
  %v271 = vadd.f32 0.0, %v270
  %v272 = vpop.f32.mrf.mxu0
  %273 = vmatprep.mubr.bf16.mxu0 0
  %274 = vmatmul.mubr.bf16.gmra.mxu0 %v141
  %v275 = vpop.f32.mrf.mxu0
  %v276 = vadd.f32 0.0, %v275
  %v277 = vpop.f32.mrf.mxu0
  %v278 = vpop.f32.mrf.mxu0
  %v279 = vadd.f32 0.0, %v278
  %v280 = vpop.f32.mrf.mxu0
  %281 = vmatprep.mubr.bf16.mxu0 0
  %282 = vmatmul.mubr.bf16.gmra.mxu0 %v144
  %v283 = vpop.f32.mrf.mxu0
  %v284 = vadd.f32 0.0, %v283
  %v285 = vpop.f32.mrf.mxu0
  %v286 = vpop.f32.mrf.mxu0
  %v287 = vadd.f32 0.0, %v286
  %v288 = vpop.f32.mrf.mxu0
  %289 = vmatprep.mubr.bf16.mxu0 0
  %290 = vmatmul.mubr.bf16.gmra.mxu0 %v147
  %v291 = vpop.f32.mrf.mxu0
  %v292 = vadd.f32 0.0, %v291
  %v293 = vpop.f32.mrf.mxu0
  %v294 = vpop.f32.mrf.mxu0
  %v295 = vadd.f32 0.0, %v294
  %v296 = vpop.f32.mrf.mxu0
  %297 = vmatprep.mubr.bf16.mxu0 0
  %298 = vmatmul.mubr.bf16.gmra.mxu0 %v150
  %v299 = vpop.f32.mrf.mxu0
  %v300 = vadd.f32 0.0, %v299
  %v301 = vpop.f32.mrf.mxu0
  %v302 = vpop.f32.mrf.mxu0
  %v303 = vadd.f32 0.0, %v302
  %v304 = vpop.f32.mrf.mxu0
  %305 = vmatprep.mubr.bf16.mxu0 0
  %306 = vmatmul.mubr.bf16.gmra.mxu0 %v153
  %v307 = vpop.f32.mrf.mxu0
  %v308 = vadd.f32 0.0, %v307
  %v309 = vpop.f32.mrf.mxu0
  %v310 = vpop.f32.mrf.mxu0
  %v311 = vadd.f32 0.0, %v310
  %v312 = vpop.f32.mrf.mxu0
  %313 = vmatprep.mubr.bf16.mxu0 0
  %314 = vmatmul.mubr.bf16.gmra.mxu0 %v156
  %v315 = vpop.f32.mrf.mxu0
  %v316 = vadd.f32 0.0, %v315
  %v317 = vpop.f32.mrf.mxu0
  %v318 = vpop.f32.mrf.mxu0
  %v319 = vadd.f32 0.0, %v318
  %v320 = vpop.f32.mrf.mxu0
  %321 = vmatprep.mubr.bf16.mxu0 0
  %322 = vmatmul.mubr.bf16.gmra.mxu0 %v159
  %v323 = vpop.f32.mrf.mxu0
  %v324 = vadd.f32 0.0, %v323
  %v325 = vpop.f32.mrf.mxu0
  %v326 = vpop.f32.mrf.mxu0
  %v327 = vadd.f32 0.0, %v326
  %v328 = vpop.f32.mrf.mxu0
  %329 = vmatprep.mubr.bf16.mxu0 0
  %330 = vmatmul.mubr.bf16.gmra.mxu0 %v162
  %v331 = vpop.f32.mrf.mxu0
  %v332 = vadd.f32 0.0, %v331
  %v333 = vpop.f32.mrf.mxu0
  %v334 = vpop.f32.mrf.mxu0
  %v335 = vadd.f32 0.0, %v334
  %v336 = vpop.f32.mrf.mxu0
  %337 = vmatprep.mubr.bf16.mxu0 0
  %338 = vmatmul.mubr.bf16.gmra.mxu0 %v165
  %v339 = vpop.f32.mrf.mxu0
  %v340 = vadd.f32 0.0, %v339
  %v341 = vpop.f32.mrf.mxu0
  %v342 = vpop.f32.mrf.mxu0
  %v343 = vadd.f32 0.0, %v342
  %v344 = vpop.f32.mrf.mxu0
  %345 = vmatprep.mubr.bf16.mxu0 0
  %346 = vmatmul.mubr.bf16.gmra.mxu0 %v168
  %v347 = vpop.f32.mrf.mxu0
  %v348 = vadd.f32 0.0, %v347
  %v349 = vpop.f32.mrf.mxu0
  %v350 = vpop.f32.mrf.mxu0
  %v351 = vadd.f32 0.0, %v350
  %v352 = vpop.f32.mrf.mxu0
  %353 = vmatprep.mubr.bf16.mxu0 0
  %354 = vmatmul.mubr.bf16.gmra.mxu0 %v171
  %v355 = vpop.f32.mrf.mxu0
  %v356 = vadd.f32 0.0, %v355
  %v357 = vpop.f32.mrf.mxu0
  %v358 = vpop.f32.mrf.mxu0
  %v359 = vadd.f32 0.0, %v358
  %v360 = vpop.f32.mrf.mxu0
  %361 = vmatprep.mubr.bf16.mxu0 0
  %362 = vmatmul.mubr.bf16.gmra.mxu0 %v174
  %v363 = vpop.f32.mrf.mxu0
  %v364 = vadd.f32 0.0, %v363
  %v365 = vpop.f32.mrf.mxu0
  %v366 = vpop.f32.mrf.mxu0
  %v367 = vadd.f32 0.0, %v366
  %v368 = vpop.f32.mrf.mxu0
  %369 = vmatprep.mubr.bf16.mxu0 0
  %370 = vmatmul.mubr.bf16.gmra.mxu0 %v177
  %v371 = vpop.f32.mrf.mxu0
  %v372 = vadd.f32 0.0, %v371
  %v373 = vpop.f32.mrf.mxu0
  %v374 = vpop.f32.mrf.mxu0
  %v375 = vadd.f32 0.0, %v374
  %v376 = vpop.f32.mrf.mxu0
  %377 = vmatprep.mubr.bf16.mxu0 0
  %378 = vmatmul.mubr.bf16.gmra.mxu0 %v180
  %v379 = vpop.f32.mrf.mxu0
  %v380 = vadd.f32 0.0, %v379
  %v381 = vpop.f32.mrf.mxu0
  %v382 = vpop.f32.mrf.mxu0
  %v383 = vadd.f32 0.0, %v382
  %v384 = vpop.f32.mrf.mxu0
  %385 = vmatprep.mubr.bf16.mxu0 0
  %386 = vmatmul.mubr.bf16.gmra.mxu0 %v183
  %v387 = vpop.f32.mrf.mxu0
  %v388 = vadd.f32 0.0, %v387
  %v389 = vpop.f32.mrf.mxu0
  %v390 = vpop.f32.mrf.mxu0
  %v391 = vadd.f32 0.0, %v390
  %v392 = vpop.f32.mrf.mxu0
  %393 = vmatprep.mubr.bf16.mxu0 0
  %394 = vmatmul.mubr.bf16.gmra.mxu0 %v186
  %v395 = vpop.f32.mrf.mxu0
  %v396 = vadd.f32 0.0, %v395
  %v397 = vpop.f32.mrf.mxu0
  %v398 = vpop.f32.mrf.mxu0
  %v399 = vadd.f32 0.0, %v398
  %v400 = vpop.f32.mrf.mxu0
  %401 = vmatprep.mubr.bf16.mxu0 0
  %402 = vmatmul.mubr.bf16.gmra.mxu0 %v189
  %v403 = vpop.f32.mrf.mxu0
  %v404 = vadd.f32 0.0, %v403
  %v405 = vpop.f32.mrf.mxu0
  %v406 = vpop.f32.mrf.mxu0
  %v407 = vadd.f32 0.0, %v406
  %v408 = vpop.f32.mrf.mxu0
  %409 = vmatprep.mubr.bf16.mxu0 0
  %410 = vmatmul.mubr.bf16.gmra.mxu0 %v192
  %v411 = vpop.f32.mrf.mxu0
  %v412 = vadd.f32 0.0, %v411
  %v413 = vpop.f32.mrf.mxu0
  %v414 = vpop.f32.mrf.mxu0
  %v415 = vadd.f32 0.0, %v414
  %v416 = vpop.f32.mrf.mxu0
  %417 = vmatprep.mubr.bf16.mxu0 0
  %418 = vmatmul.mubr.bf16.gmra.mxu0 %v195
  %v419 = vpop.f32.mrf.mxu0
  %v420 = vadd.f32 0.0, %v419
  %v421 = vpop.f32.mrf.mxu0
  %v422 = vpop.f32.mrf.mxu0
  %v423 = vadd.f32 0.0, %v422
  %v424 = vpop.f32.mrf.mxu0
  %425 = vmatprep.mubr.bf16.mxu0 0
  %426 = vmatmul.mubr.bf16.gmra.mxu0 %v198
  %v427 = vpop.f32.mrf.mxu0
  %v428 = vadd.f32 0.0, %v427
  %v429 = vpop.f32.mrf.mxu0
  %v430 = vpop.f32.mrf.mxu0
  %v431 = vadd.f32 0.0, %v430
  %v432 = vpop.f32.mrf.mxu0
  %433 = vmatprep.mubr.bf16.mxu0 0
  %434 = vmatmul.mubr.bf16.gmra.mxu0 %v201
  %v435 = vpop.f32.mrf.mxu0
  %v436 = vadd.f32 0.0, %v435
  %v437 = vpop.f32.mrf.mxu0
  %v438 = vpop.f32.mrf.mxu0
  %v439 = vadd.f32 0.0, %v438
  %v440 = vpop.f32.mrf.mxu0
  %441 = vmatprep.mubr.bf16.mxu0 0
  %442 = vmatmul.mubr.bf16.gmra.mxu0 %v204
  %v443 = vpop.f32.mrf.mxu0
  %v444 = vadd.f32 0.0, %v443
  %v445 = vpop.f32.mrf.mxu0
  %v446 = vpop.f32.mrf.mxu0
  %v447 = vadd.f32 0.0, %v446
  %v448 = vpop.f32.mrf.mxu0
  %449 = vmatprep.mubr.bf16.mxu0 0
  %450 = vmatmul.mubr.bf16.gmra.mxu0 %v207
  %v451 = vpop.f32.mrf.mxu0
  %v452 = vadd.f32 0.0, %v451
  %v453 = vpop.f32.mrf.mxu0
  %v454 = vpop.f32.mrf.mxu0
  %v455 = vadd.f32 0.0, %v454
  %v456 = vpop.f32.mrf.mxu0
  %457 = vmatprep.mubr.bf16.mxu0 0
  %458 = vmatmul.mubr.bf16.gmra.mxu0 %v210
  %v459 = vpop.f32.mrf.mxu0
  %v460 = vadd.f32 0.0, %v459
  %v461 = vpop.f32.mrf.mxu0
  %v462 = vpop.f32.mrf.mxu0
  %v463 = vadd.f32 0.0, %v462
  %v464 = vpop.f32.mrf.mxu0
  %465 = vmatprep.mubr.bf16.mxu0 0
  %466 = vmatmul.mubr.bf16.gmra.mxu0 %v213
  %v467 = vpop.f32.mrf.mxu0
  %v468 = vadd.f32 0.0, %v467
  %v469 = vpop.f32.mrf.mxu0
  %v470 = vpop.f32.mrf.mxu0
  %v471 = vadd.f32 0.0, %v470
  %v472 = vpop.f32.mrf.mxu0
  %473 = vmatprep.mubr.bf16.mxu0 0
  %474 = vmatmul.mubr.bf16.gmra.mxu0 %v216
  %v475 = vpop.f32.mrf.mxu0
  %v476 = vadd.f32 0.0, %v475
  %v477 = vpop.f32.mrf.mxu0
  %v478 = vpop.f32.mrf.mxu0
  %v479 = vadd.f32 0.0, %v478
  %v480 = vpop.f32.mrf.mxu0
  %481 = vmatprep.mubr.bf16.mxu0 0
  %482 = vmatmul.mubr.bf16.gmra.mxu0 %v219
  %v483 = vpop.f32.mrf.mxu0
  %v484 = vadd.f32 0.0, %v483
  %v485 = vpop.f32.mrf.mxu0
  %v486 = vpop.f32.mrf.mxu0
  %v487 = vadd.f32 0.0, %v486
  %v488 = vpop.f32.mrf.mxu0
  %489 = vmatprep.mubr.bf16.mxu0 0
  %490 = vmatmul.mubr.bf16.gmra.mxu0 %v222
  %v491 = vpop.f32.mrf.mxu0
  %v492 = vadd.f32 0.0, %v491
  %v493 = vpop.f32.mrf.mxu0
  %v494 = vpop.f32.mrf.mxu0
  %v495 = vadd.f32 0.0, %v494
  %v496 = vpop.f32.mrf.mxu0
  %497 = vmatprep.mubr.bf16.mxu0 0
  %498 = vmatmul.mubr.bf16.gmra.mxu0 %v225
  %v499 = vpop.f32.mrf.mxu0
  %v500 = vadd.f32 0.0, %v499
  %v501 = vpop.f32.mrf.mxu0
  %v502 = vpop.f32.mrf.mxu0
  %v503 = vadd.f32 0.0, %v502
  %v504 = vpop.f32.mrf.mxu0
  %505 = vmatprep.mubr.bf16.mxu0 0
  %506 = vmatmul.mubr.bf16.gmra.mxu0 %v228
  %v507 = vpop.f32.mrf.mxu0
  %v508 = vadd.f32 0.0, %v507
  %v509 = vpop.f32.mrf.mxu0
  %v510 = vpop.f32.mrf.mxu0
  %v511 = vadd.f32 0.0, %v510
  %v512 = vpop.f32.mrf.mxu0
  %513 = vmatprep.mubr.bf16.mxu0 0
  %514 = vmatmul.mubr.bf16.gmra.mxu0 %v231
  %v515 = vpop.f32.mrf.mxu0
  %v516 = vadd.f32 0.0, %v515
  %v517 = vpop.f32.mrf.mxu0
  %v518 = vpop.f32.mrf.mxu0
  %v519 = vadd.f32 0.0, %v518
  %v520 = vpop.f32.mrf.mxu0
  %521 = vdwg.mxu0
  %v522 = vld [vmem:[%s1] sm:$0xff]
  %v523 = vld [vmem:[%s1 + $0x8] sm:$0xff]
  %v524 = vld [vmem:[%s1 + $0x10] sm:$0xff]
  %v525 = vld [vmem:[%s1 + $0x18] sm:$0xff]
  %v526 = vld [vmem:[%s1 + $0x20] sm:$0xff]
  %v527 = vld [vmem:[%s1 + $0x28] sm:$0xff]
  %v528 = vld [vmem:[%s1 + $0x30] sm:$0xff]
  %v529 = vld [vmem:[%s1 + $0x38] sm:$0xff]
  %v530 = vld [vmem:[%s1 + $0x40] sm:$0xff]
  %v531 = vld [vmem:[%s1 + $0x48] sm:$0xff]
  %v532 = vld [vmem:[%s1 + $0x50] sm:$0xff]
  %v533 = vld [vmem:[%s1 + $0x58] sm:$0xff]
  %v534 = vld [vmem:[%s1 + $0x60] sm:$0xff]
  %v535 = vld [vmem:[%s1 + $0x68] sm:$0xff]
  %v536 = vld [vmem:[%s1 + $0x70] sm:$0xff]
  %v537 = vld [vmem:[%s1 + $0x78] sm:$0xff]
  %v538 = vpack.c.bf16 %v523, %v522
  %v539 = vpack.c.bf16 %v525, %v524
  %v540 = vpack.c.bf16 %v527, %v526
  %v541 = vpack.c.bf16 %v529, %v528
  %v542 = vpack.c.bf16 %v531, %v530
  %v543 = vpack.c.bf16 %v533, %v532
  %v544 = vpack.c.bf16 %v535, %v534
  %v545 = vpack.c.bf16 %v537, %v536
  %v546 = vld [vmem:[%s3] sm:$0xf]
  %v547 = vld [vmem:[%s3 + $0x4] sm:$0xf]
  %v548 = vld [vmem:[%s3 + $0x8] sm:$0xf]
  %v549 = vld [vmem:[%s3 + $0xc] sm:$0xf]
  %v554 = vunpack.c.l.b16 %v546
  %v555 = vunpack.c.l.b16 %v547
  %v556 = vunpack.c.l.b16 %v548
  %v557 = vunpack.c.l.b16 %v549
  %v558 = vpack.c.b16 %v555, %v554
  %v559 = vpack.c.b16 %v557, %v556
  %v563 = vsel %vm136, %v538, 0
  %v566 = vsel %vm136, %v539, 0
  %v569 = vsel %vm136, %v540, 0
  %v572 = vsel %vm136, %v541, 0
  %v575 = vsel %vm136, %v542, 0
  %v578 = vsel %vm136, %v543, 0
  %v581 = vsel %vm136, %v544, 0
  %v584 = vsel %vm136, %v545, 0
  %586 = vmatprep.subr.bf16.mxu0 0
  %587 = vmatpush1.bf16.msra.mxu0 0
  %588 = vmatprep.subr.bf16.mxu0 0
  %589 = vmatpush1.bf16.msra.mxu0 0
  %590 = vmatprep.subr.bf16.mxu0 0
  %591 = vmatpush1.bf16.msra.mxu0 0
  %592 = vmatprep.subr.bf16.mxu0 0
  %593 = vmatpush1.bf16.msra.mxu0 0
  %594 = vmatprep.subr.bf16.mxu0 0
  %595 = vmatpush1.bf16.msra.mxu0 0
  %596 = vmatprep.subr.bf16.mxu0 0
  %597 = vmatpush1.bf16.msra.mxu0 0
  %598 = vmatprep.subr.bf16.mxu0 0
  %599 = vmatpush1.bf16.msra.mxu0 %v559
  %600 = vmatprep.subr.bf16.mxu0 0
  %601 = vmatpush1.bf16.msra.mxu0 %v558
  %602 = vmatprep.subr.bf16.mxu0 0
  %603 = vmatpush2.bf16.msra.mxu0 0
  %604 = vmatprep.subr.bf16.mxu0 0
  %605 = vmatpush2.bf16.msra.mxu0 0
  %606 = vmatprep.subr.bf16.mxu0 0
  %607 = vmatpush2.bf16.msra.mxu0 0
  %608 = vmatprep.subr.bf16.mxu0 0
  %609 = vmatpush2.bf16.msra.mxu0 0
  %610 = vmatprep.subr.bf16.mxu0 0
  %611 = vmatpush2.bf16.msra.mxu0 0
  %612 = vmatprep.subr.bf16.mxu0 0
  %613 = vmatpush2.bf16.msra.mxu0 0
  %614 = vmatprep.subr.bf16.mxu0 0
  %615 = vmatpush2.bf16.msra.mxu0 0
  %616 = vmatprep.subr.bf16.mxu0 0
  %617 = vmatpush2.bf16.msra.mxu0 0
  %618 = vmatprep.mubr.bf16.mxu0 0
  %619 = vmatmul.mubr.bf16.gmra.mxu0 %v563
  %v620 = vpop.f32.mrf.mxu0
  %v621 = vadd.f32 0.0, %v620
  %v622 = vpop.f32.mrf.mxu0
  %v623 = vpop.f32.mrf.mxu0
  %v624 = vadd.f32 0.0, %v623
  %v625 = vpop.f32.mrf.mxu0
  %626 = vmatprep.mubr.bf16.mxu0 0
  %627 = vmatmul.mubr.bf16.gmra.mxu0 %v566
  %v628 = vpop.f32.mrf.mxu0
  %v629 = vadd.f32 0.0, %v628
  %v630 = vpop.f32.mrf.mxu0
  %v631 = vpop.f32.mrf.mxu0
  %v632 = vadd.f32 0.0, %v631
  %v633 = vpop.f32.mrf.mxu0
  %634 = vmatprep.mubr.bf16.mxu0 0
  %635 = vmatmul.mubr.bf16.gmra.mxu0 %v569
  %v636 = vpop.f32.mrf.mxu0
  %v637 = vadd.f32 0.0, %v636
  %v638 = vpop.f32.mrf.mxu0
  %v639 = vpop.f32.mrf.mxu0
  %v640 = vadd.f32 0.0, %v639
  %v641 = vpop.f32.mrf.mxu0
  %642 = vmatprep.mubr.bf16.mxu0 0
  %643 = vmatmul.mubr.bf16.gmra.mxu0 %v572
  %v644 = vpop.f32.mrf.mxu0
  %v645 = vadd.f32 0.0, %v644
  %v646 = vpop.f32.mrf.mxu0
  %v647 = vpop.f32.mrf.mxu0
  %v648 = vadd.f32 0.0, %v647
  %v649 = vpop.f32.mrf.mxu0
  %650 = vmatprep.mubr.bf16.mxu0 0
  %651 = vmatmul.mubr.bf16.gmra.mxu0 %v575
  %v652 = vpop.f32.mrf.mxu0
  %v653 = vadd.f32 0.0, %v652
  %v654 = vpop.f32.mrf.mxu0
  %v655 = vpop.f32.mrf.mxu0
  %v656 = vadd.f32 0.0, %v655
  %v657 = vpop.f32.mrf.mxu0
  %658 = vmatprep.mubr.bf16.mxu0 0
  %659 = vmatmul.mubr.bf16.gmra.mxu0 %v578
  %v660 = vpop.f32.mrf.mxu0
  %v661 = vadd.f32 0.0, %v660
  %v662 = vpop.f32.mrf.mxu0
  %v663 = vpop.f32.mrf.mxu0
  %v664 = vadd.f32 0.0, %v663
  %v665 = vpop.f32.mrf.mxu0
  %666 = vmatprep.mubr.bf16.mxu0 0
  %667 = vmatmul.mubr.bf16.gmra.mxu0 %v581
  %v668 = vpop.f32.mrf.mxu0
  %v669 = vadd.f32 0.0, %v668
  %v670 = vpop.f32.mrf.mxu0
  %v671 = vpop.f32.mrf.mxu0
  %v672 = vadd.f32 0.0, %v671
  %v673 = vpop.f32.mrf.mxu0
  %674 = vmatprep.mubr.bf16.mxu0 0
  %675 = vmatmul.mubr.bf16.gmra.mxu0 %v584
  %v676 = vpop.f32.mrf.mxu0
  %v677 = vadd.f32 0.0, %v676
  %v678 = vpop.f32.mrf.mxu0
  %v679 = vpop.f32.mrf.mxu0
  %v680 = vadd.f32 0.0, %v679
  %v681 = vpop.f32.mrf.mxu0
  %682 = vdwg.mxu0
  %v683 = vlaneseq
  %v684 = vand.u32 %v683, 127
  %v685 = vld [vmem:[%s5] sm:$0xff]
  %v686 = vld [vmem:[%s5 + $0x8] sm:$0xff]
  %v687 = vld [vmem:[%s5 + $0x10] sm:$0xff]
  %v688 = vld [vmem:[%s5 + $0x18] sm:$0xff]
  %v689 = vld [vmem:[%s5 + $0x20] sm:$0xff]
  %v690 = vld [vmem:[%s5 + $0x28] sm:$0xff]
  %v691 = vld [vmem:[%s5 + $0x30] sm:$0xff]
  %v692 = vld [vmem:[%s5 + $0x38] sm:$0xff]
  %v693 = vld [vmem:[%s4] sm:$0x1]
  %v694 = vadd.f32 %v268, %v621
  %v695 = vadd.f32 %v271, %v624
  %v696 = vadd.f32 %v276, %v629
  %v697 = vadd.f32 %v279, %v632
  %v698 = vadd.f32 %v284, %v637
  %v699 = vadd.f32 %v287, %v640
  %v700 = vadd.f32 %v292, %v645
  %v701 = vadd.f32 %v295, %v648
  %v703 = vlaneseq
  %v704 = vshrl.u32 %v703, 7
  %v705 = vsub.s32 0, %v704
  %v706 = vrot.slane %v693, %v705
  %v708 = vadd.f32 %v694, %v706
  %v709 = vadd.f32 %v695, %v706
  %v710 = vadd.f32 %v696, %v706
  %v711 = vadd.f32 %v697, %v706
  %v712 = vadd.f32 %v698, %v706
  %v713 = vadd.f32 %v699, %v706
  %v714 = vadd.f32 %v700, %v706
  %v715 = vadd.f32 %v701, %v706
  %vm716 = vcmp.lt.s32.totalorder %v684, 2
  %v717 = vmul.f32 %v708, 0.5
  %v718 = vmul.f32 %v709, 0.5
  %v719 = vmul.f32 %v710, 0.5
  %v720 = vmul.f32 %v711, 0.5
  %v721 = vmul.f32 %v712, 0.5
  %v722 = vmul.f32 %v713, 0.5
  %v723 = vmul.f32 %v714, 0.5
  %v724 = vmul.f32 %v715, 0.5
  %v725 = vsel %vm716, %v708, %v717
  %v726 = vsel %vm716, %v709, %v718
  %v727 = vsel %vm716, %v710, %v719
  %v728 = vsel %vm716, %v711, %v720
  %v729 = vsel %vm716, %v712, %v721
  %v730 = vsel %vm716, %v713, %v722
  %v731 = vsel %vm716, %v714, %v723
  %v732 = vsel %vm716, %v715, %v724
  %v733 = vtanh.pop %v725
  %v734 = vtanh.pop %v726
  %v735 = vtanh.pop %v727
  %v736 = vtanh.pop %v728
  %v737 = vtanh.pop %v729
  %v738 = vtanh.pop %v730
  %v739 = vtanh.pop %v731
  %v740 = vtanh.pop %v732
  %v741 = vmul.f32 %v733, 0.1
  %v742 = vmul.f32 %v734, 0.1
  %v743 = vmul.f32 %v735, 0.1
  %v744 = vmul.f32 %v736, 0.1
  %v745 = vmul.f32 %v737, 0.1
  %v746 = vmul.f32 %v738, 0.1
  %v747 = vmul.f32 %v739, 0.1
  %v748 = vmul.f32 %v740, 0.1
  %vm749 = vcmp.eq.s32.totalorder %v684, 2
  %vm750 = vcmp.eq.s32.totalorder %v684, 3
  %v751 = vmul.f32 %v733, 0.5
  %v752 = vmul.f32 %v734, 0.5
  %v753 = vmul.f32 %v735, 0.5
  %v754 = vmul.f32 %v736, 0.5
  %v755 = vmul.f32 %v737, 0.5
  %v756 = vmul.f32 %v738, 0.5
  %v757 = vmul.f32 %v739, 0.5
  %v758 = vmul.f32 %v740, 0.5
  %v759 = vadd.f32 %v751, 0.5
  %v760 = vadd.f32 %v752, 0.5
  %v761 = vadd.f32 %v753, 0.5
  %v762 = vadd.f32 %v754, 0.5
  %v763 = vadd.f32 %v755, 0.5
  %v764 = vadd.f32 %v756, 0.5
  %v765 = vadd.f32 %v757, 0.5
  %v766 = vadd.f32 %v758, 0.5
  %v767 = vsel %vm750, %v759, 0.0
  %v768 = vsel %vm750, %v760, 0.0
  %v769 = vsel %vm750, %v761, 0.0
  %v770 = vsel %vm750, %v762, 0.0
  %v771 = vsel %vm750, %v763, 0.0
  %v772 = vsel %vm750, %v764, 0.0
  %v773 = vsel %vm750, %v765, 0.0
  %v774 = vsel %vm750, %v766, 0.0
  %v775 = vsel %vm749, %v733, %v767
  %v776 = vsel %vm749, %v734, %v768
  %v777 = vsel %vm749, %v735, %v769
  %v778 = vsel %vm749, %v736, %v770
  %v779 = vsel %vm749, %v737, %v771
  %v780 = vsel %vm749, %v738, %v772
  %v781 = vsel %vm749, %v739, %v773
  %v782 = vsel %vm749, %v740, %v774
  %v783 = vsel %vm716, %v741, %v775
  %v784 = vsel %vm716, %v742, %v776
  %v785 = vsel %vm716, %v743, %v777
  %v786 = vsel %vm716, %v744, %v778
  %v787 = vsel %vm716, %v745, %v779
  %v788 = vsel %vm716, %v746, %v780
  %v789 = vsel %vm716, %v747, %v781
  %v790 = vsel %vm716, %v748, %v782
  %v791 = vadd.f32 %v685, %v783
  %v792 = vadd.f32 %v686, %v784
  %v793 = vadd.f32 %v687, %v785
  %v794 = vadd.f32 %v688, %v786
  %v795 = vadd.f32 %v689, %v787
  %v796 = vadd.f32 %v690, %v788
  %v797 = vadd.f32 %v691, %v789
  %v798 = vadd.f32 %v692, %v790
  %799 = vst [vmem:[%s6] sm:$0xff] %v791
  %800 = vst [vmem:[%s6 + $0x8] sm:$0xff] %v792
  %801 = vst [vmem:[%s6 + $0x10] sm:$0xff] %v793
  %802 = vst [vmem:[%s6 + $0x18] sm:$0xff] %v794
  %803 = vst [vmem:[%s6 + $0x20] sm:$0xff] %v795
  %804 = vst [vmem:[%s6 + $0x28] sm:$0xff] %v796
  %805 = vst [vmem:[%s6 + $0x30] sm:$0xff] %v797
  %806 = vst [vmem:[%s6 + $0x38] sm:$0xff] %v798
  %v807 = vadd.f32 %v300, %v621
  %v808 = vadd.f32 %v303, %v624
  %v809 = vadd.f32 %v308, %v629
  %v810 = vadd.f32 %v311, %v632
  %v811 = vadd.f32 %v316, %v637
  %v812 = vadd.f32 %v319, %v640
  %v813 = vadd.f32 %v324, %v645
  %v814 = vadd.f32 %v327, %v648
  %v815 = vadd.f32 %v807, %v706
  %v816 = vadd.f32 %v808, %v706
  %v817 = vadd.f32 %v809, %v706
  %v818 = vadd.f32 %v810, %v706
  %v819 = vadd.f32 %v811, %v706
  %v820 = vadd.f32 %v812, %v706
  %v821 = vadd.f32 %v813, %v706
  %v822 = vadd.f32 %v814, %v706
  %v823 = vmul.f32 %v815, 0.5
  %v824 = vmul.f32 %v816, 0.5
  %v825 = vmul.f32 %v817, 0.5
  %v826 = vmul.f32 %v818, 0.5
  %v827 = vmul.f32 %v819, 0.5
  %v828 = vmul.f32 %v820, 0.5
  %v829 = vmul.f32 %v821, 0.5
  %v830 = vmul.f32 %v822, 0.5
  %v831 = vsel %vm716, %v815, %v823
  %v832 = vsel %vm716, %v816, %v824
  %v833 = vsel %vm716, %v817, %v825
  %v834 = vsel %vm716, %v818, %v826
  %v835 = vsel %vm716, %v819, %v827
  %v836 = vsel %vm716, %v820, %v828
  %v837 = vsel %vm716, %v821, %v829
  %v838 = vsel %vm716, %v822, %v830
  %v839 = vtanh.pop %v831
  %v840 = vtanh.pop %v832
  %v841 = vtanh.pop %v833
  %v842 = vtanh.pop %v834
  %v843 = vtanh.pop %v835
  %v844 = vtanh.pop %v836
  %v845 = vtanh.pop %v837
  %v846 = vtanh.pop %v838
  %v847 = vmul.f32 %v839, 0.1
  %v848 = vmul.f32 %v840, 0.1
  %v849 = vmul.f32 %v841, 0.1
  %v850 = vmul.f32 %v842, 0.1
  %v851 = vmul.f32 %v843, 0.1
  %v852 = vmul.f32 %v844, 0.1
  %v853 = vmul.f32 %v845, 0.1
  %v854 = vmul.f32 %v846, 0.1
  %v855 = vmul.f32 %v839, 0.5
  %v856 = vmul.f32 %v840, 0.5
  %v857 = vmul.f32 %v841, 0.5
  %v858 = vmul.f32 %v842, 0.5
  %v859 = vmul.f32 %v843, 0.5
  %v860 = vmul.f32 %v844, 0.5
  %v861 = vmul.f32 %v845, 0.5
  %v862 = vmul.f32 %v846, 0.5
  %v863 = vadd.f32 %v855, 0.5
  %v864 = vadd.f32 %v856, 0.5
  %v865 = vadd.f32 %v857, 0.5
  %v866 = vadd.f32 %v858, 0.5
  %v867 = vadd.f32 %v859, 0.5
  %v868 = vadd.f32 %v860, 0.5
  %v869 = vadd.f32 %v861, 0.5
  %v870 = vadd.f32 %v862, 0.5
  %v871 = vsel %vm750, %v863, 0.0
  %v872 = vsel %vm750, %v864, 0.0
  %v873 = vsel %vm750, %v865, 0.0
  %v874 = vsel %vm750, %v866, 0.0
  %v875 = vsel %vm750, %v867, 0.0
  %v876 = vsel %vm750, %v868, 0.0
  %v877 = vsel %vm750, %v869, 0.0
  %v878 = vsel %vm750, %v870, 0.0
  %v879 = vsel %vm749, %v839, %v871
  %v880 = vsel %vm749, %v840, %v872
  %v881 = vsel %vm749, %v841, %v873
  %v882 = vsel %vm749, %v842, %v874
  %v883 = vsel %vm749, %v843, %v875
  %v884 = vsel %vm749, %v844, %v876
  %v885 = vsel %vm749, %v845, %v877
  %v886 = vsel %vm749, %v846, %v878
  %v887 = vsel %vm716, %v847, %v879
  %v888 = vsel %vm716, %v848, %v880
  %v889 = vsel %vm716, %v849, %v881
  %v890 = vsel %vm716, %v850, %v882
  %v891 = vsel %vm716, %v851, %v883
  %v892 = vsel %vm716, %v852, %v884
  %v893 = vsel %vm716, %v853, %v885
  %v894 = vsel %vm716, %v854, %v886
  %v895 = vadd.f32 %v685, %v887
  %v896 = vadd.f32 %v686, %v888
  %v897 = vadd.f32 %v687, %v889
  %v898 = vadd.f32 %v688, %v890
  %v899 = vadd.f32 %v689, %v891
  %v900 = vadd.f32 %v690, %v892
  %v901 = vadd.f32 %v691, %v893
  %v902 = vadd.f32 %v692, %v894
  %903 = vst [vmem:[%s6 + $0x40] sm:$0xff] %v895
  %904 = vst [vmem:[%s6 + $0x48] sm:$0xff] %v896
  %905 = vst [vmem:[%s6 + $0x50] sm:$0xff] %v897
  %906 = vst [vmem:[%s6 + $0x58] sm:$0xff] %v898
  %907 = vst [vmem:[%s6 + $0x60] sm:$0xff] %v899
  %908 = vst [vmem:[%s6 + $0x68] sm:$0xff] %v900
  %909 = vst [vmem:[%s6 + $0x70] sm:$0xff] %v901
  %910 = vst [vmem:[%s6 + $0x78] sm:$0xff] %v902
  %v911 = vadd.f32 %v332, %v621
  %v912 = vadd.f32 %v335, %v624
  %v913 = vadd.f32 %v340, %v629
  %v914 = vadd.f32 %v343, %v632
  %v915 = vadd.f32 %v348, %v637
  %v916 = vadd.f32 %v351, %v640
  %v917 = vadd.f32 %v356, %v645
  %v918 = vadd.f32 %v359, %v648
  %v919 = vadd.f32 %v911, %v706
  %v920 = vadd.f32 %v912, %v706
  %v921 = vadd.f32 %v913, %v706
  %v922 = vadd.f32 %v914, %v706
  %v923 = vadd.f32 %v915, %v706
  %v924 = vadd.f32 %v916, %v706
  %v925 = vadd.f32 %v917, %v706
  %v926 = vadd.f32 %v918, %v706
  %v927 = vmul.f32 %v919, 0.5
  %v928 = vmul.f32 %v920, 0.5
  %v929 = vmul.f32 %v921, 0.5
  %v930 = vmul.f32 %v922, 0.5
  %v931 = vmul.f32 %v923, 0.5
  %v932 = vmul.f32 %v924, 0.5
  %v933 = vmul.f32 %v925, 0.5
  %v934 = vmul.f32 %v926, 0.5
  %v935 = vsel %vm716, %v919, %v927
  %v936 = vsel %vm716, %v920, %v928
  %v937 = vsel %vm716, %v921, %v929
  %v938 = vsel %vm716, %v922, %v930
  %v939 = vsel %vm716, %v923, %v931
  %v940 = vsel %vm716, %v924, %v932
  %v941 = vsel %vm716, %v925, %v933
  %v942 = vsel %vm716, %v926, %v934
  %v943 = vtanh.pop %v935
  %v944 = vtanh.pop %v936
  %v945 = vtanh.pop %v937
  %v946 = vtanh.pop %v938
  %v947 = vtanh.pop %v939
  %v948 = vtanh.pop %v940
  %v949 = vtanh.pop %v941
  %v950 = vtanh.pop %v942
  %v951 = vmul.f32 %v943, 0.1
  %v952 = vmul.f32 %v944, 0.1
  %v953 = vmul.f32 %v945, 0.1
  %v954 = vmul.f32 %v946, 0.1
  %v955 = vmul.f32 %v947, 0.1
  %v956 = vmul.f32 %v948, 0.1
  %v957 = vmul.f32 %v949, 0.1
  %v958 = vmul.f32 %v950, 0.1
  %v959 = vmul.f32 %v943, 0.5
  %v960 = vmul.f32 %v944, 0.5
  %v961 = vmul.f32 %v945, 0.5
  %v962 = vmul.f32 %v946, 0.5
  %v963 = vmul.f32 %v947, 0.5
  %v964 = vmul.f32 %v948, 0.5
  %v965 = vmul.f32 %v949, 0.5
  %v966 = vmul.f32 %v950, 0.5
  %v967 = vadd.f32 %v959, 0.5
  %v968 = vadd.f32 %v960, 0.5
  %v969 = vadd.f32 %v961, 0.5
  %v970 = vadd.f32 %v962, 0.5
  %v971 = vadd.f32 %v963, 0.5
  %v972 = vadd.f32 %v964, 0.5
  %v973 = vadd.f32 %v965, 0.5
  %v974 = vadd.f32 %v966, 0.5
  %v975 = vsel %vm750, %v967, 0.0
  %v976 = vsel %vm750, %v968, 0.0
  %v977 = vsel %vm750, %v969, 0.0
  %v978 = vsel %vm750, %v970, 0.0
  %v979 = vsel %vm750, %v971, 0.0
  %v980 = vsel %vm750, %v972, 0.0
  %v981 = vsel %vm750, %v973, 0.0
  %v982 = vsel %vm750, %v974, 0.0
  %v983 = vsel %vm749, %v943, %v975
  %v984 = vsel %vm749, %v944, %v976
  %v985 = vsel %vm749, %v945, %v977
  %v986 = vsel %vm749, %v946, %v978
  %v987 = vsel %vm749, %v947, %v979
  %v988 = vsel %vm749, %v948, %v980
  %v989 = vsel %vm749, %v949, %v981
  %v990 = vsel %vm749, %v950, %v982
  %v991 = vsel %vm716, %v951, %v983
  %v992 = vsel %vm716, %v952, %v984
  %v993 = vsel %vm716, %v953, %v985
  %v994 = vsel %vm716, %v954, %v986
  %v995 = vsel %vm716, %v955, %v987
  %v996 = vsel %vm716, %v956, %v988
  %v997 = vsel %vm716, %v957, %v989
  %v998 = vsel %vm716, %v958, %v990
  %v999 = vadd.f32 %v685, %v991
  %v1000 = vadd.f32 %v686, %v992
  %v1001 = vadd.f32 %v687, %v993
  %v1002 = vadd.f32 %v688, %v994
  %v1003 = vadd.f32 %v689, %v995
  %v1004 = vadd.f32 %v690, %v996
  %v1005 = vadd.f32 %v691, %v997
  %v1006 = vadd.f32 %v692, %v998
  %1007 = vst [vmem:[%s6 + $0x80] sm:$0xff] %v999
  %1008 = vst [vmem:[%s6 + $0x88] sm:$0xff] %v1000
  %1009 = vst [vmem:[%s6 + $0x90] sm:$0xff] %v1001
  %1010 = vst [vmem:[%s6 + $0x98] sm:$0xff] %v1002
  %1011 = vst [vmem:[%s6 + $0xa0] sm:$0xff] %v1003
  %1012 = vst [vmem:[%s6 + $0xa8] sm:$0xff] %v1004
  %1013 = vst [vmem:[%s6 + $0xb0] sm:$0xff] %v1005
  %1014 = vst [vmem:[%s6 + $0xb8] sm:$0xff] %v1006
  %v1015 = vadd.f32 %v364, %v621
  %v1016 = vadd.f32 %v367, %v624
  %v1017 = vadd.f32 %v372, %v629
  %v1018 = vadd.f32 %v375, %v632
  %v1019 = vadd.f32 %v380, %v637
  %v1020 = vadd.f32 %v383, %v640
  %v1021 = vadd.f32 %v388, %v645
  %v1022 = vadd.f32 %v391, %v648
  %v1023 = vadd.f32 %v1015, %v706
  %v1024 = vadd.f32 %v1016, %v706
  %v1025 = vadd.f32 %v1017, %v706
  %v1026 = vadd.f32 %v1018, %v706
  %v1027 = vadd.f32 %v1019, %v706
  %v1028 = vadd.f32 %v1020, %v706
  %v1029 = vadd.f32 %v1021, %v706
  %v1030 = vadd.f32 %v1022, %v706
  %v1031 = vmul.f32 %v1023, 0.5
  %v1032 = vmul.f32 %v1024, 0.5
  %v1033 = vmul.f32 %v1025, 0.5
  %v1034 = vmul.f32 %v1026, 0.5
  %v1035 = vmul.f32 %v1027, 0.5
  %v1036 = vmul.f32 %v1028, 0.5
  %v1037 = vmul.f32 %v1029, 0.5
  %v1038 = vmul.f32 %v1030, 0.5
  %v1039 = vsel %vm716, %v1023, %v1031
  %v1040 = vsel %vm716, %v1024, %v1032
  %v1041 = vsel %vm716, %v1025, %v1033
  %v1042 = vsel %vm716, %v1026, %v1034
  %v1043 = vsel %vm716, %v1027, %v1035
  %v1044 = vsel %vm716, %v1028, %v1036
  %v1045 = vsel %vm716, %v1029, %v1037
  %v1046 = vsel %vm716, %v1030, %v1038
  %v1047 = vtanh.pop %v1039
  %v1048 = vtanh.pop %v1040
  %v1049 = vtanh.pop %v1041
  %v1050 = vtanh.pop %v1042
  %v1051 = vtanh.pop %v1043
  %v1052 = vtanh.pop %v1044
  %v1053 = vtanh.pop %v1045
  %v1054 = vtanh.pop %v1046
  %v1055 = vmul.f32 %v1047, 0.1
  %v1056 = vmul.f32 %v1048, 0.1
  %v1057 = vmul.f32 %v1049, 0.1
  %v1058 = vmul.f32 %v1050, 0.1
  %v1059 = vmul.f32 %v1051, 0.1
  %v1060 = vmul.f32 %v1052, 0.1
  %v1061 = vmul.f32 %v1053, 0.1
  %v1062 = vmul.f32 %v1054, 0.1
  %v1063 = vmul.f32 %v1047, 0.5
  %v1064 = vmul.f32 %v1048, 0.5
  %v1065 = vmul.f32 %v1049, 0.5
  %v1066 = vmul.f32 %v1050, 0.5
  %v1067 = vmul.f32 %v1051, 0.5
  %v1068 = vmul.f32 %v1052, 0.5
  %v1069 = vmul.f32 %v1053, 0.5
  %v1070 = vmul.f32 %v1054, 0.5
  %v1071 = vadd.f32 %v1063, 0.5
  %v1072 = vadd.f32 %v1064, 0.5
  %v1073 = vadd.f32 %v1065, 0.5
  %v1074 = vadd.f32 %v1066, 0.5
  %v1075 = vadd.f32 %v1067, 0.5
  %v1076 = vadd.f32 %v1068, 0.5
  %v1077 = vadd.f32 %v1069, 0.5
  %v1078 = vadd.f32 %v1070, 0.5
  %v1079 = vsel %vm750, %v1071, 0.0
  %v1080 = vsel %vm750, %v1072, 0.0
  %v1081 = vsel %vm750, %v1073, 0.0
  %v1082 = vsel %vm750, %v1074, 0.0
  %v1083 = vsel %vm750, %v1075, 0.0
  %v1084 = vsel %vm750, %v1076, 0.0
  %v1085 = vsel %vm750, %v1077, 0.0
  %v1086 = vsel %vm750, %v1078, 0.0
  %v1087 = vsel %vm749, %v1047, %v1079
  %v1088 = vsel %vm749, %v1048, %v1080
  %v1089 = vsel %vm749, %v1049, %v1081
  %v1090 = vsel %vm749, %v1050, %v1082
  %v1091 = vsel %vm749, %v1051, %v1083
  %v1092 = vsel %vm749, %v1052, %v1084
  %v1093 = vsel %vm749, %v1053, %v1085
  %v1094 = vsel %vm749, %v1054, %v1086
  %v1095 = vsel %vm716, %v1055, %v1087
  %v1096 = vsel %vm716, %v1056, %v1088
  %v1097 = vsel %vm716, %v1057, %v1089
  %v1098 = vsel %vm716, %v1058, %v1090
  %v1099 = vsel %vm716, %v1059, %v1091
  %v1100 = vsel %vm716, %v1060, %v1092
  %v1101 = vsel %vm716, %v1061, %v1093
  %v1102 = vsel %vm716, %v1062, %v1094
  %v1103 = vadd.f32 %v685, %v1095
  %v1104 = vadd.f32 %v686, %v1096
  %v1105 = vadd.f32 %v687, %v1097
  %v1106 = vadd.f32 %v688, %v1098
  %v1107 = vadd.f32 %v689, %v1099
  %v1108 = vadd.f32 %v690, %v1100
  %v1109 = vadd.f32 %v691, %v1101
  %v1110 = vadd.f32 %v692, %v1102
  %1111 = vst [vmem:[%s6 + $0xc0] sm:$0xff] %v1103
  %1112 = vst [vmem:[%s6 + $0xc8] sm:$0xff] %v1104
  %1113 = vst [vmem:[%s6 + $0xd0] sm:$0xff] %v1105
  %1114 = vst [vmem:[%s6 + $0xd8] sm:$0xff] %v1106
  %1115 = vst [vmem:[%s6 + $0xe0] sm:$0xff] %v1107
  %1116 = vst [vmem:[%s6 + $0xe8] sm:$0xff] %v1108
  %1117 = vst [vmem:[%s6 + $0xf0] sm:$0xff] %v1109
  %1118 = vst [vmem:[%s6 + $0xf8] sm:$0xff] %v1110
  %v1119 = vadd.f32 %v396, %v653
  %v1120 = vadd.f32 %v399, %v656
  %v1121 = vadd.f32 %v404, %v661
  %v1122 = vadd.f32 %v407, %v664
  %v1123 = vadd.f32 %v412, %v669
  %v1124 = vadd.f32 %v415, %v672
  %v1125 = vadd.f32 %v420, %v677
  %v1126 = vadd.f32 %v423, %v680
  %v1127 = vadd.f32 %v1119, %v706
  %v1128 = vadd.f32 %v1120, %v706
  %v1129 = vadd.f32 %v1121, %v706
  %v1130 = vadd.f32 %v1122, %v706
  %v1131 = vadd.f32 %v1123, %v706
  %v1132 = vadd.f32 %v1124, %v706
  %v1133 = vadd.f32 %v1125, %v706
  %v1134 = vadd.f32 %v1126, %v706
  %v1135 = vmul.f32 %v1127, 0.5
  %v1136 = vmul.f32 %v1128, 0.5
  %v1137 = vmul.f32 %v1129, 0.5
  %v1138 = vmul.f32 %v1130, 0.5
  %v1139 = vmul.f32 %v1131, 0.5
  %v1140 = vmul.f32 %v1132, 0.5
  %v1141 = vmul.f32 %v1133, 0.5
  %v1142 = vmul.f32 %v1134, 0.5
  %v1143 = vsel %vm716, %v1127, %v1135
  %v1144 = vsel %vm716, %v1128, %v1136
  %v1145 = vsel %vm716, %v1129, %v1137
  %v1146 = vsel %vm716, %v1130, %v1138
  %v1147 = vsel %vm716, %v1131, %v1139
  %v1148 = vsel %vm716, %v1132, %v1140
  %v1149 = vsel %vm716, %v1133, %v1141
  %v1150 = vsel %vm716, %v1134, %v1142
  %v1151 = vtanh.pop %v1143
  %v1152 = vtanh.pop %v1144
  %v1153 = vtanh.pop %v1145
  %v1154 = vtanh.pop %v1146
  %v1155 = vtanh.pop %v1147
  %v1156 = vtanh.pop %v1148
  %v1157 = vtanh.pop %v1149
  %v1158 = vtanh.pop %v1150
  %v1159 = vmul.f32 %v1151, 0.1
  %v1160 = vmul.f32 %v1152, 0.1
  %v1161 = vmul.f32 %v1153, 0.1
  %v1162 = vmul.f32 %v1154, 0.1
  %v1163 = vmul.f32 %v1155, 0.1
  %v1164 = vmul.f32 %v1156, 0.1
  %v1165 = vmul.f32 %v1157, 0.1
  %v1166 = vmul.f32 %v1158, 0.1
  %v1167 = vmul.f32 %v1151, 0.5
  %v1168 = vmul.f32 %v1152, 0.5
  %v1169 = vmul.f32 %v1153, 0.5
  %v1170 = vmul.f32 %v1154, 0.5
  %v1171 = vmul.f32 %v1155, 0.5
  %v1172 = vmul.f32 %v1156, 0.5
  %v1173 = vmul.f32 %v1157, 0.5
  %v1174 = vmul.f32 %v1158, 0.5
  %v1175 = vadd.f32 %v1167, 0.5
  %v1176 = vadd.f32 %v1168, 0.5
  %v1177 = vadd.f32 %v1169, 0.5
  %v1178 = vadd.f32 %v1170, 0.5
  %v1179 = vadd.f32 %v1171, 0.5
  %v1180 = vadd.f32 %v1172, 0.5
  %v1181 = vadd.f32 %v1173, 0.5
  %v1182 = vadd.f32 %v1174, 0.5
  %v1183 = vsel %vm750, %v1175, 0.0
  %v1184 = vsel %vm750, %v1176, 0.0
  %v1185 = vsel %vm750, %v1177, 0.0
  %v1186 = vsel %vm750, %v1178, 0.0
  %v1187 = vsel %vm750, %v1179, 0.0
  %v1188 = vsel %vm750, %v1180, 0.0
  %v1189 = vsel %vm750, %v1181, 0.0
  %v1190 = vsel %vm750, %v1182, 0.0
  %v1191 = vsel %vm749, %v1151, %v1183
  %v1192 = vsel %vm749, %v1152, %v1184
  %v1193 = vsel %vm749, %v1153, %v1185
  %v1194 = vsel %vm749, %v1154, %v1186
  %v1195 = vsel %vm749, %v1155, %v1187
  %v1196 = vsel %vm749, %v1156, %v1188
  %v1197 = vsel %vm749, %v1157, %v1189
  %v1198 = vsel %vm749, %v1158, %v1190
  %v1199 = vsel %vm716, %v1159, %v1191
  %v1200 = vsel %vm716, %v1160, %v1192
  %v1201 = vsel %vm716, %v1161, %v1193
  %v1202 = vsel %vm716, %v1162, %v1194
  %v1203 = vsel %vm716, %v1163, %v1195
  %v1204 = vsel %vm716, %v1164, %v1196
  %v1205 = vsel %vm716, %v1165, %v1197
  %v1206 = vsel %vm716, %v1166, %v1198
  %v1207 = vadd.f32 %v685, %v1199
  %v1208 = vadd.f32 %v686, %v1200
  %v1209 = vadd.f32 %v687, %v1201
  %v1210 = vadd.f32 %v688, %v1202
  %v1211 = vadd.f32 %v689, %v1203
  %v1212 = vadd.f32 %v690, %v1204
  %v1213 = vadd.f32 %v691, %v1205
  %v1214 = vadd.f32 %v692, %v1206
  %1215 = vst [vmem:[%s6 + $0x100] sm:$0xff] %v1207
  %1216 = vst [vmem:[%s6 + $0x108] sm:$0xff] %v1208
  %1217 = vst [vmem:[%s6 + $0x110] sm:$0xff] %v1209
  %1218 = vst [vmem:[%s6 + $0x118] sm:$0xff] %v1210
  %1219 = vst [vmem:[%s6 + $0x120] sm:$0xff] %v1211
  %1220 = vst [vmem:[%s6 + $0x128] sm:$0xff] %v1212
  %1221 = vst [vmem:[%s6 + $0x130] sm:$0xff] %v1213
  %1222 = vst [vmem:[%s6 + $0x138] sm:$0xff] %v1214
  %v1223 = vadd.f32 %v428, %v653
  %v1224 = vadd.f32 %v431, %v656
  %v1225 = vadd.f32 %v436, %v661
  %v1226 = vadd.f32 %v439, %v664
  %v1227 = vadd.f32 %v444, %v669
  %v1228 = vadd.f32 %v447, %v672
  %v1229 = vadd.f32 %v452, %v677
  %v1230 = vadd.f32 %v455, %v680
  %v1231 = vadd.f32 %v1223, %v706
  %v1232 = vadd.f32 %v1224, %v706
  %v1233 = vadd.f32 %v1225, %v706
  %v1234 = vadd.f32 %v1226, %v706
  %v1235 = vadd.f32 %v1227, %v706
  %v1236 = vadd.f32 %v1228, %v706
  %v1237 = vadd.f32 %v1229, %v706
  %v1238 = vadd.f32 %v1230, %v706
  %v1239 = vmul.f32 %v1231, 0.5
  %v1240 = vmul.f32 %v1232, 0.5
  %v1241 = vmul.f32 %v1233, 0.5
  %v1242 = vmul.f32 %v1234, 0.5
  %v1243 = vmul.f32 %v1235, 0.5
  %v1244 = vmul.f32 %v1236, 0.5
  %v1245 = vmul.f32 %v1237, 0.5
  %v1246 = vmul.f32 %v1238, 0.5
  %v1247 = vsel %vm716, %v1231, %v1239
  %v1248 = vsel %vm716, %v1232, %v1240
  %v1249 = vsel %vm716, %v1233, %v1241
  %v1250 = vsel %vm716, %v1234, %v1242
  %v1251 = vsel %vm716, %v1235, %v1243
  %v1252 = vsel %vm716, %v1236, %v1244
  %v1253 = vsel %vm716, %v1237, %v1245
  %v1254 = vsel %vm716, %v1238, %v1246
  %v1255 = vtanh.pop %v1247
  %v1256 = vtanh.pop %v1248
  %v1257 = vtanh.pop %v1249
  %v1258 = vtanh.pop %v1250
  %v1259 = vtanh.pop %v1251
  %v1260 = vtanh.pop %v1252
  %v1261 = vtanh.pop %v1253
  %v1262 = vtanh.pop %v1254
  %v1263 = vmul.f32 %v1255, 0.1
  %v1264 = vmul.f32 %v1256, 0.1
  %v1265 = vmul.f32 %v1257, 0.1
  %v1266 = vmul.f32 %v1258, 0.1
  %v1267 = vmul.f32 %v1259, 0.1
  %v1268 = vmul.f32 %v1260, 0.1
  %v1269 = vmul.f32 %v1261, 0.1
  %v1270 = vmul.f32 %v1262, 0.1
  %v1271 = vmul.f32 %v1255, 0.5
  %v1272 = vmul.f32 %v1256, 0.5
  %v1273 = vmul.f32 %v1257, 0.5
  %v1274 = vmul.f32 %v1258, 0.5
  %v1275 = vmul.f32 %v1259, 0.5
  %v1276 = vmul.f32 %v1260, 0.5
  %v1277 = vmul.f32 %v1261, 0.5
  %v1278 = vmul.f32 %v1262, 0.5
  %v1279 = vadd.f32 %v1271, 0.5
  %v1280 = vadd.f32 %v1272, 0.5
  %v1281 = vadd.f32 %v1273, 0.5
  %v1282 = vadd.f32 %v1274, 0.5
  %v1283 = vadd.f32 %v1275, 0.5
  %v1284 = vadd.f32 %v1276, 0.5
  %v1285 = vadd.f32 %v1277, 0.5
  %v1286 = vadd.f32 %v1278, 0.5
  %v1287 = vsel %vm750, %v1279, 0.0
  %v1288 = vsel %vm750, %v1280, 0.0
  %v1289 = vsel %vm750, %v1281, 0.0
  %v1290 = vsel %vm750, %v1282, 0.0
  %v1291 = vsel %vm750, %v1283, 0.0
  %v1292 = vsel %vm750, %v1284, 0.0
  %v1293 = vsel %vm750, %v1285, 0.0
  %v1294 = vsel %vm750, %v1286, 0.0
  %v1295 = vsel %vm749, %v1255, %v1287
  %v1296 = vsel %vm749, %v1256, %v1288
  %v1297 = vsel %vm749, %v1257, %v1289
  %v1298 = vsel %vm749, %v1258, %v1290
  %v1299 = vsel %vm749, %v1259, %v1291
  %v1300 = vsel %vm749, %v1260, %v1292
  %v1301 = vsel %vm749, %v1261, %v1293
  %v1302 = vsel %vm749, %v1262, %v1294
  %v1303 = vsel %vm716, %v1263, %v1295
  %v1304 = vsel %vm716, %v1264, %v1296
  %v1305 = vsel %vm716, %v1265, %v1297
  %v1306 = vsel %vm716, %v1266, %v1298
  %v1307 = vsel %vm716, %v1267, %v1299
  %v1308 = vsel %vm716, %v1268, %v1300
  %v1309 = vsel %vm716, %v1269, %v1301
  %v1310 = vsel %vm716, %v1270, %v1302
  %v1311 = vadd.f32 %v685, %v1303
  %v1312 = vadd.f32 %v686, %v1304
  %v1313 = vadd.f32 %v687, %v1305
  %v1314 = vadd.f32 %v688, %v1306
  %v1315 = vadd.f32 %v689, %v1307
  %v1316 = vadd.f32 %v690, %v1308
  %v1317 = vadd.f32 %v691, %v1309
  %v1318 = vadd.f32 %v692, %v1310
  %1319 = vst [vmem:[%s6 + $0x140] sm:$0xff] %v1311
  %1320 = vst [vmem:[%s6 + $0x148] sm:$0xff] %v1312
  %1321 = vst [vmem:[%s6 + $0x150] sm:$0xff] %v1313
  %1322 = vst [vmem:[%s6 + $0x158] sm:$0xff] %v1314
  %1323 = vst [vmem:[%s6 + $0x160] sm:$0xff] %v1315
  %1324 = vst [vmem:[%s6 + $0x168] sm:$0xff] %v1316
  %1325 = vst [vmem:[%s6 + $0x170] sm:$0xff] %v1317
  %1326 = vst [vmem:[%s6 + $0x178] sm:$0xff] %v1318
  %v1327 = vadd.f32 %v460, %v653
  %v1328 = vadd.f32 %v463, %v656
  %v1329 = vadd.f32 %v468, %v661
  %v1330 = vadd.f32 %v471, %v664
  %v1331 = vadd.f32 %v476, %v669
  %v1332 = vadd.f32 %v479, %v672
  %v1333 = vadd.f32 %v484, %v677
  %v1334 = vadd.f32 %v487, %v680
  %v1335 = vadd.f32 %v1327, %v706
  %v1336 = vadd.f32 %v1328, %v706
  %v1337 = vadd.f32 %v1329, %v706
  %v1338 = vadd.f32 %v1330, %v706
  %v1339 = vadd.f32 %v1331, %v706
  %v1340 = vadd.f32 %v1332, %v706
  %v1341 = vadd.f32 %v1333, %v706
  %v1342 = vadd.f32 %v1334, %v706
  %v1343 = vmul.f32 %v1335, 0.5
  %v1344 = vmul.f32 %v1336, 0.5
  %v1345 = vmul.f32 %v1337, 0.5
  %v1346 = vmul.f32 %v1338, 0.5
  %v1347 = vmul.f32 %v1339, 0.5
  %v1348 = vmul.f32 %v1340, 0.5
  %v1349 = vmul.f32 %v1341, 0.5
  %v1350 = vmul.f32 %v1342, 0.5
  %v1351 = vsel %vm716, %v1335, %v1343
  %v1352 = vsel %vm716, %v1336, %v1344
  %v1353 = vsel %vm716, %v1337, %v1345
  %v1354 = vsel %vm716, %v1338, %v1346
  %v1355 = vsel %vm716, %v1339, %v1347
  %v1356 = vsel %vm716, %v1340, %v1348
  %v1357 = vsel %vm716, %v1341, %v1349
  %v1358 = vsel %vm716, %v1342, %v1350
  %v1359 = vtanh.pop %v1351
  %v1360 = vtanh.pop %v1352
  %v1361 = vtanh.pop %v1353
  %v1362 = vtanh.pop %v1354
  %v1363 = vtanh.pop %v1355
  %v1364 = vtanh.pop %v1356
  %v1365 = vtanh.pop %v1357
  %v1366 = vtanh.pop %v1358
  %v1367 = vmul.f32 %v1359, 0.1
  %v1368 = vmul.f32 %v1360, 0.1
  %v1369 = vmul.f32 %v1361, 0.1
  %v1370 = vmul.f32 %v1362, 0.1
  %v1371 = vmul.f32 %v1363, 0.1
  %v1372 = vmul.f32 %v1364, 0.1
  %v1373 = vmul.f32 %v1365, 0.1
  %v1374 = vmul.f32 %v1366, 0.1
  %v1375 = vmul.f32 %v1359, 0.5
  %v1376 = vmul.f32 %v1360, 0.5
  %v1377 = vmul.f32 %v1361, 0.5
  %v1378 = vmul.f32 %v1362, 0.5
  %v1379 = vmul.f32 %v1363, 0.5
  %v1380 = vmul.f32 %v1364, 0.5
  %v1381 = vmul.f32 %v1365, 0.5
  %v1382 = vmul.f32 %v1366, 0.5
  %v1383 = vadd.f32 %v1375, 0.5
  %v1384 = vadd.f32 %v1376, 0.5
  %v1385 = vadd.f32 %v1377, 0.5
  %v1386 = vadd.f32 %v1378, 0.5
  %v1387 = vadd.f32 %v1379, 0.5
  %v1388 = vadd.f32 %v1380, 0.5
  %v1389 = vadd.f32 %v1381, 0.5
  %v1390 = vadd.f32 %v1382, 0.5
  %v1391 = vsel %vm750, %v1383, 0.0
  %v1392 = vsel %vm750, %v1384, 0.0
  %v1393 = vsel %vm750, %v1385, 0.0
  %v1394 = vsel %vm750, %v1386, 0.0
  %v1395 = vsel %vm750, %v1387, 0.0
  %v1396 = vsel %vm750, %v1388, 0.0
  %v1397 = vsel %vm750, %v1389, 0.0
  %v1398 = vsel %vm750, %v1390, 0.0
  %v1399 = vsel %vm749, %v1359, %v1391
  %v1400 = vsel %vm749, %v1360, %v1392
  %v1401 = vsel %vm749, %v1361, %v1393
  %v1402 = vsel %vm749, %v1362, %v1394
  %v1403 = vsel %vm749, %v1363, %v1395
  %v1404 = vsel %vm749, %v1364, %v1396
  %v1405 = vsel %vm749, %v1365, %v1397
  %v1406 = vsel %vm749, %v1366, %v1398
  %v1407 = vsel %vm716, %v1367, %v1399
  %v1408 = vsel %vm716, %v1368, %v1400
  %v1409 = vsel %vm716, %v1369, %v1401
  %v1410 = vsel %vm716, %v1370, %v1402
  %v1411 = vsel %vm716, %v1371, %v1403
  %v1412 = vsel %vm716, %v1372, %v1404
  %v1413 = vsel %vm716, %v1373, %v1405
  %v1414 = vsel %vm716, %v1374, %v1406
  %v1415 = vadd.f32 %v685, %v1407
  %v1416 = vadd.f32 %v686, %v1408
  %v1417 = vadd.f32 %v687, %v1409
  %v1418 = vadd.f32 %v688, %v1410
  %v1419 = vadd.f32 %v689, %v1411
  %v1420 = vadd.f32 %v690, %v1412
  %v1421 = vadd.f32 %v691, %v1413
  %v1422 = vadd.f32 %v692, %v1414
  %1423 = vst [vmem:[%s6 + $0x180] sm:$0xff] %v1415
  %1424 = vst [vmem:[%s6 + $0x188] sm:$0xff] %v1416
  %1425 = vst [vmem:[%s6 + $0x190] sm:$0xff] %v1417
  %1426 = vst [vmem:[%s6 + $0x198] sm:$0xff] %v1418
  %1427 = vst [vmem:[%s6 + $0x1a0] sm:$0xff] %v1419
  %1428 = vst [vmem:[%s6 + $0x1a8] sm:$0xff] %v1420
  %1429 = vst [vmem:[%s6 + $0x1b0] sm:$0xff] %v1421
  %1430 = vst [vmem:[%s6 + $0x1b8] sm:$0xff] %v1422
  %v1431 = vadd.f32 %v492, %v653
  %v1432 = vadd.f32 %v495, %v656
  %v1433 = vadd.f32 %v500, %v661
  %v1434 = vadd.f32 %v503, %v664
  %v1435 = vadd.f32 %v508, %v669
  %v1436 = vadd.f32 %v511, %v672
  %v1437 = vadd.f32 %v516, %v677
  %v1438 = vadd.f32 %v519, %v680
  %v1439 = vadd.f32 %v1431, %v706
  %v1440 = vadd.f32 %v1432, %v706
  %v1441 = vadd.f32 %v1433, %v706
  %v1442 = vadd.f32 %v1434, %v706
  %v1443 = vadd.f32 %v1435, %v706
  %v1444 = vadd.f32 %v1436, %v706
  %v1445 = vadd.f32 %v1437, %v706
  %v1446 = vadd.f32 %v1438, %v706
  %v1447 = vmul.f32 %v1439, 0.5
  %v1448 = vmul.f32 %v1440, 0.5
  %v1449 = vmul.f32 %v1441, 0.5
  %v1450 = vmul.f32 %v1442, 0.5
  %v1451 = vmul.f32 %v1443, 0.5
  %v1452 = vmul.f32 %v1444, 0.5
  %v1453 = vmul.f32 %v1445, 0.5
  %v1454 = vmul.f32 %v1446, 0.5
  %v1455 = vsel %vm716, %v1439, %v1447
  %v1456 = vsel %vm716, %v1440, %v1448
  %v1457 = vsel %vm716, %v1441, %v1449
  %v1458 = vsel %vm716, %v1442, %v1450
  %v1459 = vsel %vm716, %v1443, %v1451
  %v1460 = vsel %vm716, %v1444, %v1452
  %v1461 = vsel %vm716, %v1445, %v1453
  %v1462 = vsel %vm716, %v1446, %v1454
  %v1463 = vtanh.pop %v1455
  %v1464 = vtanh.pop %v1456
  %v1465 = vtanh.pop %v1457
  %v1466 = vtanh.pop %v1458
  %v1467 = vtanh.pop %v1459
  %v1468 = vtanh.pop %v1460
  %v1469 = vtanh.pop %v1461
  %v1470 = vtanh.pop %v1462
  %v1471 = vmul.f32 %v1463, 0.1
  %v1472 = vmul.f32 %v1464, 0.1
  %v1473 = vmul.f32 %v1465, 0.1
  %v1474 = vmul.f32 %v1466, 0.1
  %v1475 = vmul.f32 %v1467, 0.1
  %v1476 = vmul.f32 %v1468, 0.1
  %v1477 = vmul.f32 %v1469, 0.1
  %v1478 = vmul.f32 %v1470, 0.1
  %v1479 = vmul.f32 %v1463, 0.5
  %v1480 = vmul.f32 %v1464, 0.5
  %v1481 = vmul.f32 %v1465, 0.5
  %v1482 = vmul.f32 %v1466, 0.5
  %v1483 = vmul.f32 %v1467, 0.5
  %v1484 = vmul.f32 %v1468, 0.5
  %v1485 = vmul.f32 %v1469, 0.5
  %v1486 = vmul.f32 %v1470, 0.5
  %v1487 = vadd.f32 %v1479, 0.5
  %v1488 = vadd.f32 %v1480, 0.5
  %v1489 = vadd.f32 %v1481, 0.5
  %v1490 = vadd.f32 %v1482, 0.5
  %v1491 = vadd.f32 %v1483, 0.5
  %v1492 = vadd.f32 %v1484, 0.5
  %v1493 = vadd.f32 %v1485, 0.5
  %v1494 = vadd.f32 %v1486, 0.5
  %v1495 = vsel %vm750, %v1487, 0.0
  %v1496 = vsel %vm750, %v1488, 0.0
  %v1497 = vsel %vm750, %v1489, 0.0
  %v1498 = vsel %vm750, %v1490, 0.0
  %v1499 = vsel %vm750, %v1491, 0.0
  %v1500 = vsel %vm750, %v1492, 0.0
  %v1501 = vsel %vm750, %v1493, 0.0
  %v1502 = vsel %vm750, %v1494, 0.0
  %v1503 = vsel %vm749, %v1463, %v1495
  %v1504 = vsel %vm749, %v1464, %v1496
  %v1505 = vsel %vm749, %v1465, %v1497
  %v1506 = vsel %vm749, %v1466, %v1498
  %v1507 = vsel %vm749, %v1467, %v1499
  %v1508 = vsel %vm749, %v1468, %v1500
  %v1509 = vsel %vm749, %v1469, %v1501
  %v1510 = vsel %vm749, %v1470, %v1502
  %v1511 = vsel %vm716, %v1471, %v1503
  %v1512 = vsel %vm716, %v1472, %v1504
  %v1513 = vsel %vm716, %v1473, %v1505
  %v1514 = vsel %vm716, %v1474, %v1506
  %v1515 = vsel %vm716, %v1475, %v1507
  %v1516 = vsel %vm716, %v1476, %v1508
  %v1517 = vsel %vm716, %v1477, %v1509
  %v1518 = vsel %vm716, %v1478, %v1510
  %v1519 = vadd.f32 %v685, %v1511
  %v1520 = vadd.f32 %v686, %v1512
  %v1521 = vadd.f32 %v687, %v1513
  %v1522 = vadd.f32 %v688, %v1514
  %v1523 = vadd.f32 %v689, %v1515
  %v1524 = vadd.f32 %v690, %v1516
  %v1525 = vadd.f32 %v691, %v1517
  %v1526 = vadd.f32 %v692, %v1518
  %1527 = vst [vmem:[%s6 + $0x1c0] sm:$0xff] %v1519
  %1528 = vst [vmem:[%s6 + $0x1c8] sm:$0xff] %v1520
  %1529 = vst [vmem:[%s6 + $0x1d0] sm:$0xff] %v1521
  %1530 = vst [vmem:[%s6 + $0x1d8] sm:$0xff] %v1522
  %1531 = vst [vmem:[%s6 + $0x1e0] sm:$0xff] %v1523
  %1532 = vst [vmem:[%s6 + $0x1e8] sm:$0xff] %v1524
  %1533 = vst [vmem:[%s6 + $0x1f0] sm:$0xff] %v1525
  %1534 = vst [vmem:[%s6 + $0x1f8] sm:$0xff] %v1526
  // Predicated region
  $region26: #{flow_diffusion_forward.7} parent=0 // pred_check
    _
  $region27: #{flow_diffusion_forward.7} parent=0 // pred_check_branch
    %1536 = sbr.rel (0) target = $region29
  $region28: #{flow_diffusion_forward.7} parent=0 // pred_region
    _
  $region29: #{flow_diffusion_forward.7} parent=0 // pred_fallthru
    _
  // Predicated region
  $region30: #{flow_diffusion_forward.7} parent=0 // pred_check
    _
  $region31: #{flow_diffusion_forward.7} parent=0 // pred_check_branch
    %1538 = sbr.rel (0) target = $region33
  $region32: #{flow_diffusion_forward.7} parent=0 // pred_region
    _
  $region33: #{flow_diffusion_forward.7} parent=0 // pred_fallthru
    _

// kernel: flow_diffusion_forward.8
$region0: #{flow_diffusion_forward.8}
  #allocation0 [shape = 'u32[]', space=smem, size = 0x4, offset = 0x4, fixed_abs, tag = 'smem constant byte address 0x4 - core index']
  #allocation1 [shape = 'u32[144,128]{1,0:T(1,128)}', space=vmem, size = 0x12000, scoped, tag = 'internal scratch']
  %s0 = inlined_call_operand.vmem [shape: f32[3], index: 0, kind: input, shape index: {}]
  %s1 = inlined_call_operand.vmem [shape: f32[256,128], index: 1, kind: input, shape index: {}]
  %s2 = inlined_call_operand.vmem [shape: f32[256,128], index: 2, kind: input, shape index: {}]
  %s3 = inlined_call_operand.vmem [shape: f32[256,128], index: 3, kind: input, shape index: {}]
  %s4 = inlined_call_operand.vmem [shape: f32[256,32], index: 4, kind: input, shape index: {}]
  %s5 = inlined_call_operand.vmem [shape: bf16[128,64], index: 5, kind: input, shape index: {}]
  %s6 = inlined_call_operand.vmem [shape: bf16[128,64], index: 6, kind: input, shape index: {}]
  %s7 = inlined_call_operand.vmem [shape: bf16[32,64], index: 7, kind: input, shape index: {}]
  %s8 = inlined_call_operand.vmem [shape: f32[1,64], index: 8, kind: input, shape index: {}]
  %s9 = inlined_call_operand.vmem [shape: bf16[64,128], index: 9, kind: input, shape index: {}]
  %s10 = inlined_call_operand.vmem [shape: f32[1,128], index: 10, kind: input, shape index: {}]
  %s11 = inlined_call_operand.vmem [shape: f32[256,128], index: 11, kind: output, shape index: {0}]
  %s12 = inlined_call_operand.hbm [shape: f32[1,1], index: 12, kind: output, shape index: {1}]
  %13 = xla_tuple %s11, %s12
  %s14 = sld [smem:[#allocation0]]
  $region66: #{flow_diffusion_forward.8} parent=0
    _
  %s16 = ssub.s32 1, %s14
  %s17 = scalar_select 0, %s16, %s14
  $region1: #{flow_diffusion_forward.8} parent=0
    #allocation2 [shape = 'u8[512]{0}', space=smem, size = 0x200, scoped, tag = 'input window, operand 0, single buffered']
    #allocation3 [shape = 's32[1]{0}', space=sflag, size = 0x4, scoped, tag = 'scoped memory for flow_diffusion_forward.8']
    #allocation4 [shape = 's32[1]{0}', space=sflag, size = 0x4, scoped, tag = 'scoped memory for flow_diffusion_forward.8']
    #allocation5 [shape = 'u8[512]{0}', space=vmem, size = 0x400, scoped, tag = 'output window, operand 1, single buffered']
    %18 = vsyncpa [#allocation4], 0
    %19 = vsyncpa [#allocation3], 0
    // Predicated region
    $region2: #{flow_diffusion_forward.8} parent=1 // pred_check
      _
    $region3: #{flow_diffusion_forward.8} parent=1 // pred_check_branch
      %21 = sbr.rel (0) target = $region5
    $region4: #{flow_diffusion_forward.8} parent=1 // pred_region
      %s23 = ssub.s32 16, 16
      %24 = vsyncadd [#allocation4], %s23
      %s26 = sshll.u32 %s0, 4
      %s27 = int_to_ptr.vmem [resolvable:$true] %s26
      %29 = dma.vmem_to_smem %s27, 16, [#allocation2], [#allocation4]
    $region5: #{flow_diffusion_forward.8} parent=1 // pred_fallthru
      _
    // Predicated region
    $region6: #{flow_diffusion_forward.8} parent=1 // pred_check
      _
    $region7: #{flow_diffusion_forward.8} parent=1 // pred_check_branch
      %31 = sbr.rel (0) target = $region9
    $region8: #{flow_diffusion_forward.8} parent=1 // pred_region
      _
    $region9: #{flow_diffusion_forward.8} parent=1 // pred_fallthru
      _
    // Predicated region
    $region10: #{flow_diffusion_forward.8} parent=1 // pred_check
      _
    $region11: #{flow_diffusion_forward.8} parent=1 // pred_check_branch
      %33 = sbr.rel (0) target = $region13
    $region12: #{flow_diffusion_forward.8} parent=1 // pred_region
      _
    $region13: #{flow_diffusion_forward.8} parent=1 // pred_fallthru
      _
    // Predicated region
    $region14: #{flow_diffusion_forward.8} parent=1 // pred_check
      _
    $region15: #{flow_diffusion_forward.8} parent=1 // pred_check_branch
      %35 = sbr.rel (0) target = $region17
    $region16: #{flow_diffusion_forward.8} parent=1 // pred_region
      _
    $region17: #{flow_diffusion_forward.8} parent=1 // pred_fallthru
      _
    // Predicated region
    $region18: #{flow_diffusion_forward.8} parent=1 // pred_check
      _
    $region19: #{flow_diffusion_forward.8} parent=1 // pred_check_branch
      %37 = sbr.rel (0) target = $region21
    $region20: #{flow_diffusion_forward.8} parent=1 // pred_region
      _
    $region21: #{flow_diffusion_forward.8} parent=1 // pred_fallthru
      _
    // Predicated region
    $region22: #{flow_diffusion_forward.8} parent=1 // pred_check
      _
    $region23: #{flow_diffusion_forward.8} parent=1 // pred_check_branch
      %39 = sbr.rel (0) target = $region25
    $region24: #{flow_diffusion_forward.8} parent=1 // pred_region
      _
    $region25: #{flow_diffusion_forward.8} parent=1 // pred_fallthru
      _
    // Predicated region
    $region26: #{flow_diffusion_forward.8} parent=1 // pred_check
      _
    $region27: #{flow_diffusion_forward.8} parent=1 // pred_check_branch
      %41 = sbr.rel (0) target = $region29
    $region28: #{flow_diffusion_forward.8} parent=1 // pred_region
      _
    $region29: #{flow_diffusion_forward.8} parent=1 // pred_fallthru
      _
    // Predicated region
    $region30: #{flow_diffusion_forward.8} parent=1 // pred_check
      _
    $region31: #{flow_diffusion_forward.8} parent=1 // pred_check_branch
      %43 = sbr.rel (0) target = $region33
    $region32: #{flow_diffusion_forward.8} parent=1 // pred_region
      _
    $region33: #{flow_diffusion_forward.8} parent=1 // pred_fallthru
      _
    // Predicated region
    $region34: #{flow_diffusion_forward.8} parent=1 // pred_check
      _
    $region35: #{flow_diffusion_forward.8} parent=1 // pred_check_branch
      %45 = sbr.rel (0) target = $region37
    $region36: #{flow_diffusion_forward.8} parent=1 // pred_region
      _
    $region37: #{flow_diffusion_forward.8} parent=1 // pred_fallthru
      _
    // Predicated region
    $region38: #{flow_diffusion_forward.8} parent=1 // pred_check
      _
    $region39: #{flow_diffusion_forward.8} parent=1 // pred_check_branch
      %47 = sbr.rel (0) target = $region41
    $region40: #{flow_diffusion_forward.8} parent=1 // pred_region
      _
    $region41: #{flow_diffusion_forward.8} parent=1 // pred_fallthru
      _
    // Predicated region
    $region42: #{flow_diffusion_forward.8} parent=1 // pred_check
      _
    $region43: #{flow_diffusion_forward.8} parent=1 // pred_check_branch
      %49 = sbr.rel (0) target = $region45
    $region44: #{flow_diffusion_forward.8} parent=1 // pred_region
      _
    $region45: #{flow_diffusion_forward.8} parent=1 // pred_fallthru
      _
    // Predicated region
    $region46: #{flow_diffusion_forward.8} parent=1 // pred_check
      _
    $region47: #{flow_diffusion_forward.8} parent=1 // pred_check_branch
      %51 = sbr.rel (0) target = $region49
    $region48: #{flow_diffusion_forward.8} parent=1 // pred_region
      %52 = dma.done [#allocation4], 16
    $region49: #{flow_diffusion_forward.8} parent=1 // pred_fallthru
      _
    %53 = sfence
    %s55 = sld [smem:[#allocation2]]
    %s56 = sld [smem:[#allocation2 + $0x1]]
    %s57 = sld [smem:[#allocation2 + $0x2]]
    %v58 = vld [vmem:[%s2] sm:$0xff]
    %v59 = vld [vmem:[%s2 + $0x8] sm:$0xff]
    %v60 = vld [vmem:[%s2 + $0x10] sm:$0xff]
    %v61 = vld [vmem:[%s2 + $0x18] sm:$0xff]
    %v62 = vld [vmem:[%s2 + $0x20] sm:$0xff]
    %v63 = vld [vmem:[%s2 + $0x28] sm:$0xff]
    %v64 = vld [vmem:[%s2 + $0x30] sm:$0xff]
    %v65 = vld [vmem:[%s2 + $0x38] sm:$0xff]
    %v66 = vld [vmem:[%s2 + $0x40] sm:$0xff]
    %v67 = vld [vmem:[%s2 + $0x48] sm:$0xff]
    %v68 = vld [vmem:[%s2 + $0x50] sm:$0xff]
    %v69 = vld [vmem:[%s2 + $0x58] sm:$0xff]
    %v70 = vld [vmem:[%s2 + $0x60] sm:$0xff]
    %v71 = vld [vmem:[%s2 + $0x68] sm:$0xff]
    %v72 = vld [vmem:[%s2 + $0x70] sm:$0xff]
    %v73 = vld [vmem:[%s2 + $0x78] sm:$0xff]
    %v74 = vld [vmem:[%s2 + $0x80] sm:$0xff]
    %v75 = vld [vmem:[%s2 + $0x88] sm:$0xff]
    %v76 = vld [vmem:[%s2 + $0x90] sm:$0xff]
    %v77 = vld [vmem:[%s2 + $0x98] sm:$0xff]
    %v78 = vld [vmem:[%s2 + $0xa0] sm:$0xff]
    %v79 = vld [vmem:[%s2 + $0xa8] sm:$0xff]
    %v80 = vld [vmem:[%s2 + $0xb0] sm:$0xff]
    %v81 = vld [vmem:[%s2 + $0xb8] sm:$0xff]
    %v82 = vld [vmem:[%s2 + $0xc0] sm:$0xff]
    %v83 = vld [vmem:[%s2 + $0xc8] sm:$0xff]
    %v84 = vld [vmem:[%s2 + $0xd0] sm:$0xff]
    %v85 = vld [vmem:[%s2 + $0xd8] sm:$0xff]
    %v86 = vld [vmem:[%s2 + $0xe0] sm:$0xff]
    %v87 = vld [vmem:[%s2 + $0xe8] sm:$0xff]
    %v88 = vld [vmem:[%s2 + $0xf0] sm:$0xff]
    %v89 = vld [vmem:[%s2 + $0xf8] sm:$0xff]
    %v90 = vld [vmem:[%s1] sm:$0xff]
    %v91 = vld [vmem:[%s1 + $0x8] sm:$0xff]
    %v92 = vld [vmem:[%s1 + $0x10] sm:$0xff]
    %v93 = vld [vmem:[%s1 + $0x18] sm:$0xff]
    %v94 = vld [vmem:[%s1 + $0x20] sm:$0xff]
    %v95 = vld [vmem:[%s1 + $0x28] sm:$0xff]
    %v96 = vld [vmem:[%s1 + $0x30] sm:$0xff]
    %v97 = vld [vmem:[%s1 + $0x38] sm:$0xff]
    %v98 = vld [vmem:[%s1 + $0x40] sm:$0xff]
    %v99 = vld [vmem:[%s1 + $0x48] sm:$0xff]
    %v100 = vld [vmem:[%s1 + $0x50] sm:$0xff]
    %v101 = vld [vmem:[%s1 + $0x58] sm:$0xff]
    %v102 = vld [vmem:[%s1 + $0x60] sm:$0xff]
    %v103 = vld [vmem:[%s1 + $0x68] sm:$0xff]
    %v104 = vld [vmem:[%s1 + $0x70] sm:$0xff]
    %v105 = vld [vmem:[%s1 + $0x78] sm:$0xff]
    %v106 = vld [vmem:[%s1 + $0x80] sm:$0xff]
    %v107 = vld [vmem:[%s1 + $0x88] sm:$0xff]
    %v108 = vld [vmem:[%s1 + $0x90] sm:$0xff]
    %v109 = vld [vmem:[%s1 + $0x98] sm:$0xff]
    %v110 = vld [vmem:[%s1 + $0xa0] sm:$0xff]
    %v111 = vld [vmem:[%s1 + $0xa8] sm:$0xff]
    %v112 = vld [vmem:[%s1 + $0xb0] sm:$0xff]
    %v113 = vld [vmem:[%s1 + $0xb8] sm:$0xff]
    %v114 = vld [vmem:[%s1 + $0xc0] sm:$0xff]
    %v115 = vld [vmem:[%s1 + $0xc8] sm:$0xff]
    %v116 = vld [vmem:[%s1 + $0xd0] sm:$0xff]
    %v117 = vld [vmem:[%s1 + $0xd8] sm:$0xff]
    %v118 = vld [vmem:[%s1 + $0xe0] sm:$0xff]
    %v119 = vld [vmem:[%s1 + $0xe8] sm:$0xff]
    %v120 = vld [vmem:[%s1 + $0xf0] sm:$0xff]
    %v121 = vld [vmem:[%s1 + $0xf8] sm:$0xff]
    %v122 = vstv %s55
    %v123 = vmul.f32 %v122, %v90
    %v124 = vmul.f32 %v122, %v91
    %v125 = vmul.f32 %v122, %v92
    %v126 = vmul.f32 %v122, %v93
    %v127 = vmul.f32 %v122, %v94
    %v128 = vmul.f32 %v122, %v95
    %v129 = vmul.f32 %v122, %v96
    %v130 = vmul.f32 %v122, %v97
    %v131 = vmul.f32 %v122, %v98
    %v132 = vmul.f32 %v122, %v99
    %v133 = vmul.f32 %v122, %v100
    %v134 = vmul.f32 %v122, %v101
    %v135 = vmul.f32 %v122, %v102
    %v136 = vmul.f32 %v122, %v103
    %v137 = vmul.f32 %v122, %v104
    %v138 = vmul.f32 %v122, %v105
    %v139 = vmul.f32 %v122, %v106
    %v140 = vmul.f32 %v122, %v107
    %v141 = vmul.f32 %v122, %v108
    %v142 = vmul.f32 %v122, %v109
    %v143 = vmul.f32 %v122, %v110
    %v144 = vmul.f32 %v122, %v111
    %v145 = vmul.f32 %v122, %v112
    %v146 = vmul.f32 %v122, %v113
    %v147 = vmul.f32 %v122, %v114
    %v148 = vmul.f32 %v122, %v115
    %v149 = vmul.f32 %v122, %v116
    %v150 = vmul.f32 %v122, %v117
    %v151 = vmul.f32 %v122, %v118
    %v152 = vmul.f32 %v122, %v119
    %v153 = vmul.f32 %v122, %v120
    %v154 = vmul.f32 %v122, %v121
    %v155 = vstv %s56
    %v156 = vmul.f32 %v155, %v58
    %v157 = vmul.f32 %v155, %v59
    %v158 = vmul.f32 %v155, %v60
    %v159 = vmul.f32 %v155, %v61
    %v160 = vmul.f32 %v155, %v62
    %v161 = vmul.f32 %v155, %v63
    %v162 = vmul.f32 %v155, %v64
    %v163 = vmul.f32 %v155, %v65
    %v164 = vmul.f32 %v155, %v66
    %v165 = vmul.f32 %v155, %v67
    %v166 = vmul.f32 %v155, %v68
    %v167 = vmul.f32 %v155, %v69
    %v168 = vmul.f32 %v155, %v70
    %v169 = vmul.f32 %v155, %v71
    %v170 = vmul.f32 %v155, %v72
    %v171 = vmul.f32 %v155, %v73
    %v172 = vmul.f32 %v155, %v74
    %v173 = vmul.f32 %v155, %v75
    %v174 = vmul.f32 %v155, %v76
    %v175 = vmul.f32 %v155, %v77
    %v176 = vmul.f32 %v155, %v78
    %v177 = vmul.f32 %v155, %v79
    %v178 = vmul.f32 %v155, %v80
    %v179 = vmul.f32 %v155, %v81
    %v180 = vmul.f32 %v155, %v82
    %v181 = vmul.f32 %v155, %v83
    %v182 = vmul.f32 %v155, %v84
    %v183 = vmul.f32 %v155, %v85
    %v184 = vmul.f32 %v155, %v86
    %v185 = vmul.f32 %v155, %v87
    %v186 = vmul.f32 %v155, %v88
    %v187 = vmul.f32 %v155, %v89
    %v188 = vadd.f32 %v123, %v156
    %v189 = vadd.f32 %v124, %v157
    %v190 = vadd.f32 %v125, %v158
    %v191 = vadd.f32 %v126, %v159
    %v192 = vadd.f32 %v127, %v160
    %v193 = vadd.f32 %v128, %v161
    %v194 = vadd.f32 %v129, %v162
    %v195 = vadd.f32 %v130, %v163
    %v196 = vadd.f32 %v131, %v164
    %v197 = vadd.f32 %v132, %v165
    %v198 = vadd.f32 %v133, %v166
    %v199 = vadd.f32 %v134, %v167
    %v200 = vadd.f32 %v135, %v168
    %v201 = vadd.f32 %v136, %v169
    %v202 = vadd.f32 %v137, %v170
    %v203 = vadd.f32 %v138, %v171
    %v204 = vadd.f32 %v139, %v172
    %v205 = vadd.f32 %v140, %v173
    %v206 = vadd.f32 %v141, %v174
    %v207 = vadd.f32 %v142, %v175
    %v208 = vadd.f32 %v143, %v176
    %v209 = vadd.f32 %v144, %v177
    %v210 = vadd.f32 %v145, %v178
    %v211 = vadd.f32 %v146, %v179
    %v212 = vadd.f32 %v147, %v180
    %v213 = vadd.f32 %v148, %v181
    %v214 = vadd.f32 %v149, %v182
    %v215 = vadd.f32 %v150, %v183
    %v216 = vadd.f32 %v151, %v184
    %v217 = vadd.f32 %v152, %v185
    %v218 = vadd.f32 %v153, %v186
    %v219 = vadd.f32 %v154, %v187
    %v220 = vpack.c.bf16 %v189, %v188
    %v221 = vpack.c.bf16 %v191, %v190
    %v222 = vpack.c.bf16 %v193, %v192
    %v223 = vpack.c.bf16 %v195, %v194
    %v224 = vpack.c.bf16 %v197, %v196
    %v225 = vpack.c.bf16 %v199, %v198
    %v226 = vpack.c.bf16 %v201, %v200
    %v227 = vpack.c.bf16 %v203, %v202
    %v228 = vpack.c.bf16 %v205, %v204
    %v229 = vpack.c.bf16 %v207, %v206
    %v230 = vpack.c.bf16 %v209, %v208
    %v231 = vpack.c.bf16 %v211, %v210
    %v232 = vpack.c.bf16 %v213, %v212
    %v233 = vpack.c.bf16 %v215, %v214
    %v234 = vpack.c.bf16 %v217, %v216
    %v235 = vpack.c.bf16 %v219, %v218
    %v236 = vld [vmem:[%s5] sm:$0xf]
    %v237 = vld [vmem:[%s5 + $0x4] sm:$0xf]
    %v238 = vld [vmem:[%s5 + $0x8] sm:$0xf]
    %v239 = vld [vmem:[%s5 + $0xc] sm:$0xf]
    %v240 = vld [vmem:[%s5 + $0x10] sm:$0xf]
    %v241 = vld [vmem:[%s5 + $0x14] sm:$0xf]
    %v242 = vld [vmem:[%s5 + $0x18] sm:$0xf]
    %v243 = vld [vmem:[%s5 + $0x1c] sm:$0xf]
    %v244 = vld [vmem:[%s5 + $0x20] sm:$0xf]
    %v245 = vld [vmem:[%s5 + $0x24] sm:$0xf]
    %v246 = vld [vmem:[%s5 + $0x28] sm:$0xf]
    %v247 = vld [vmem:[%s5 + $0x2c] sm:$0xf]
    %v248 = vld [vmem:[%s5 + $0x30] sm:$0xf]
    %v249 = vld [vmem:[%s5 + $0x34] sm:$0xf]
    %v250 = vld [vmem:[%s5 + $0x38] sm:$0xf]
    %v251 = vld [vmem:[%s5 + $0x3c] sm:$0xf]
    %v252 = vld [vmem:[%s3] sm:$0xff]
    %v253 = vld [vmem:[%s3 + $0x8] sm:$0xff]
    %v254 = vld [vmem:[%s3 + $0x10] sm:$0xff]
    %v255 = vld [vmem:[%s3 + $0x18] sm:$0xff]
    %v256 = vld [vmem:[%s3 + $0x20] sm:$0xff]
    %v257 = vld [vmem:[%s3 + $0x28] sm:$0xff]
    %v258 = vld [vmem:[%s3 + $0x30] sm:$0xff]
    %v259 = vld [vmem:[%s3 + $0x38] sm:$0xff]
    %v260 = vld [vmem:[%s3 + $0x40] sm:$0xff]
    %v261 = vld [vmem:[%s3 + $0x48] sm:$0xff]
    %v262 = vld [vmem:[%s3 + $0x50] sm:$0xff]
    %v263 = vld [vmem:[%s3 + $0x58] sm:$0xff]
    %v264 = vld [vmem:[%s3 + $0x60] sm:$0xff]
    %v265 = vld [vmem:[%s3 + $0x68] sm:$0xff]
    %v266 = vld [vmem:[%s3 + $0x70] sm:$0xff]
    %v267 = vld [vmem:[%s3 + $0x78] sm:$0xff]
    %v268 = vld [vmem:[%s3 + $0x80] sm:$0xff]
    %v269 = vld [vmem:[%s3 + $0x88] sm:$0xff]
    %v270 = vld [vmem:[%s3 + $0x90] sm:$0xff]
    %v271 = vld [vmem:[%s3 + $0x98] sm:$0xff]
    %v272 = vld [vmem:[%s3 + $0xa0] sm:$0xff]
    %v273 = vld [vmem:[%s3 + $0xa8] sm:$0xff]
    %v274 = vld [vmem:[%s3 + $0xb0] sm:$0xff]
    %v275 = vld [vmem:[%s3 + $0xb8] sm:$0xff]
    %v276 = vld [vmem:[%s3 + $0xc0] sm:$0xff]
    %v277 = vld [vmem:[%s3 + $0xc8] sm:$0xff]
    %v278 = vld [vmem:[%s3 + $0xd0] sm:$0xff]
    %v279 = vld [vmem:[%s3 + $0xd8] sm:$0xff]
    %v280 = vld [vmem:[%s3 + $0xe0] sm:$0xff]
    %v281 = vld [vmem:[%s3 + $0xe8] sm:$0xff]
    %v282 = vld [vmem:[%s3 + $0xf0] sm:$0xff]
    %v283 = vld [vmem:[%s3 + $0xf8] sm:$0xff]
    %v284 = vpack.c.bf16 %v253, %v252
    %v285 = vpack.c.bf16 %v255, %v254
    %v286 = vpack.c.bf16 %v257, %v256
    %v287 = vpack.c.bf16 %v259, %v258
    %v288 = vpack.c.bf16 %v261, %v260
    %v289 = vpack.c.bf16 %v263, %v262
    %v290 = vpack.c.bf16 %v265, %v264
    %v291 = vpack.c.bf16 %v267, %v266
    %v292 = vpack.c.bf16 %v269, %v268
    %v293 = vpack.c.bf16 %v271, %v270
    %v294 = vpack.c.bf16 %v273, %v272
    %v295 = vpack.c.bf16 %v275, %v274
    %v296 = vpack.c.bf16 %v277, %v276
    %v297 = vpack.c.bf16 %v279, %v278
    %v298 = vpack.c.bf16 %v281, %v280
    %v299 = vpack.c.bf16 %v283, %v282
    %v300 = vld [vmem:[%s6] sm:$0xf]
    %v301 = vld [vmem:[%s6 + $0x4] sm:$0xf]
    %v302 = vld [vmem:[%s6 + $0x8] sm:$0xf]
    %v303 = vld [vmem:[%s6 + $0xc] sm:$0xf]
    %v304 = vld [vmem:[%s6 + $0x10] sm:$0xf]
    %v305 = vld [vmem:[%s6 + $0x14] sm:$0xf]
    %v306 = vld [vmem:[%s6 + $0x18] sm:$0xf]
    %v307 = vld [vmem:[%s6 + $0x1c] sm:$0xf]
    %v308 = vld [vmem:[%s6 + $0x20] sm:$0xf]
    %v309 = vld [vmem:[%s6 + $0x24] sm:$0xf]
    %v310 = vld [vmem:[%s6 + $0x28] sm:$0xf]
    %v311 = vld [vmem:[%s6 + $0x2c] sm:$0xf]
    %v312 = vld [vmem:[%s6 + $0x30] sm:$0xf]
    %v313 = vld [vmem:[%s6 + $0x34] sm:$0xf]
    %v314 = vld [vmem:[%s6 + $0x38] sm:$0xf]
    %v315 = vld [vmem:[%s6 + $0x3c] sm:$0xf]
    %v332 = vunpack.c.l.b16 %v300
    %v333 = vunpack.c.l.b16 %v301
    %v334 = vunpack.c.l.b16 %v302
    %v335 = vunpack.c.l.b16 %v303
    %v336 = vunpack.c.l.b16 %v304
    %v337 = vunpack.c.l.b16 %v305
    %v338 = vunpack.c.l.b16 %v306
    %v339 = vunpack.c.l.b16 %v307
    %v340 = vunpack.c.l.b16 %v308
    %v341 = vunpack.c.l.b16 %v309
    %v342 = vunpack.c.l.b16 %v310
    %v343 = vunpack.c.l.b16 %v311
    %v344 = vunpack.c.l.b16 %v312
    %v345 = vunpack.c.l.b16 %v313
    %v346 = vunpack.c.l.b16 %v314
    %v347 = vunpack.c.l.b16 %v315
    %v348 = vpack.c.b16 %v333, %v332
    %v349 = vpack.c.b16 %v335, %v334
    %v350 = vpack.c.b16 %v337, %v336
    %v351 = vpack.c.b16 %v339, %v338
    %v352 = vpack.c.b16 %v341, %v340
    %v353 = vpack.c.b16 %v343, %v342
    %v354 = vpack.c.b16 %v345, %v344
    %v355 = vpack.c.b16 %v347, %v346
    %364 = vmatprep.subr.bf16.mxu0 0
    %365 = vmatpush1.bf16.msra.mxu0 %v355
    %366 = vmatprep.subr.bf16.mxu0 0
    %367 = vmatpush1.bf16.msra.mxu0 %v354
    %368 = vmatprep.subr.bf16.mxu0 0
    %369 = vmatpush1.bf16.msra.mxu0 %v353
    %370 = vmatprep.subr.bf16.mxu0 0
    %371 = vmatpush1.bf16.msra.mxu0 %v352
    %372 = vmatprep.subr.bf16.mxu0 0
    %373 = vmatpush1.bf16.msra.mxu0 %v351
    %374 = vmatprep.subr.bf16.mxu0 0
    %375 = vmatpush1.bf16.msra.mxu0 %v350
    %376 = vmatprep.subr.bf16.mxu0 0
    %377 = vmatpush1.bf16.msra.mxu0 %v349
    %378 = vmatprep.subr.bf16.mxu0 0
    %379 = vmatpush1.bf16.msra.mxu0 %v348
    %380 = vmatprep.subr.bf16.mxu0 0
    %381 = vmatpush2.bf16.msra.mxu0 0
    %382 = vmatprep.subr.bf16.mxu0 0
    %383 = vmatpush2.bf16.msra.mxu0 0
    %384 = vmatprep.subr.bf16.mxu0 0
    %385 = vmatpush2.bf16.msra.mxu0 0
    %386 = vmatprep.subr.bf16.mxu0 0
    %387 = vmatpush2.bf16.msra.mxu0 0
    %388 = vmatprep.subr.bf16.mxu0 0
    %389 = vmatpush2.bf16.msra.mxu0 0
    %390 = vmatprep.subr.bf16.mxu0 0
    %391 = vmatpush2.bf16.msra.mxu0 0
    %392 = vmatprep.subr.bf16.mxu0 0
    %393 = vmatpush2.bf16.msra.mxu0 0
    %394 = vmatprep.subr.bf16.mxu0 0
    %395 = vmatpush2.bf16.msra.mxu0 0
    %396 = vmatprep.mubr.bf16.mxu0 0
    %397 = vmatmul.mubr.bf16.gmra.mxu0 %v284
    %v398 = vpop.f32.mrf.mxu0
    %v399 = vadd.f32 0.0, %v398
    %v400 = vpop.f32.mrf.mxu0
    %v401 = vpop.f32.mrf.mxu0
    %v402 = vadd.f32 0.0, %v401
    %v403 = vpop.f32.mrf.mxu0
    %404 = vmatprep.mubr.bf16.mxu0 0
    %405 = vmatmul.mubr.bf16.gmra.mxu0 %v285
    %v406 = vpop.f32.mrf.mxu0
    %v407 = vadd.f32 0.0, %v406
    %v408 = vpop.f32.mrf.mxu0
    %v409 = vpop.f32.mrf.mxu0
    %v410 = vadd.f32 0.0, %v409
    %v411 = vpop.f32.mrf.mxu0
    %412 = vmatprep.mubr.bf16.mxu0 0
    %413 = vmatmul.mubr.bf16.gmra.mxu0 %v286
    %v414 = vpop.f32.mrf.mxu0
    %v415 = vadd.f32 0.0, %v414
    %v416 = vpop.f32.mrf.mxu0
    %v417 = vpop.f32.mrf.mxu0
    %v418 = vadd.f32 0.0, %v417
    %v419 = vpop.f32.mrf.mxu0
    %420 = vmatprep.mubr.bf16.mxu0 0
    %421 = vmatmul.mubr.bf16.gmra.mxu0 %v287
    %v422 = vpop.f32.mrf.mxu0
    %v423 = vadd.f32 0.0, %v422
    %v424 = vpop.f32.mrf.mxu0
    %v425 = vpop.f32.mrf.mxu0
    %v426 = vadd.f32 0.0, %v425
    %v427 = vpop.f32.mrf.mxu0
    %428 = vmatprep.mubr.bf16.mxu0 0
    %429 = vmatmul.mubr.bf16.gmra.mxu0 %v288
    %v430 = vpop.f32.mrf.mxu0
    %v431 = vadd.f32 0.0, %v430
    %v432 = vpop.f32.mrf.mxu0
    %v433 = vpop.f32.mrf.mxu0
    %v434 = vadd.f32 0.0, %v433
    %v435 = vpop.f32.mrf.mxu0
    %436 = vmatprep.mubr.bf16.mxu0 0
    %437 = vmatmul.mubr.bf16.gmra.mxu0 %v289
    %v438 = vpop.f32.mrf.mxu0
    %v439 = vadd.f32 0.0, %v438
    %v440 = vpop.f32.mrf.mxu0
    %v441 = vpop.f32.mrf.mxu0
    %v442 = vadd.f32 0.0, %v441
    %v443 = vpop.f32.mrf.mxu0
    %444 = vmatprep.mubr.bf16.mxu0 0
    %445 = vmatmul.mubr.bf16.gmra.mxu0 %v290
    %v446 = vpop.f32.mrf.mxu0
    %v447 = vadd.f32 0.0, %v446
    %v448 = vpop.f32.mrf.mxu0
    %v449 = vpop.f32.mrf.mxu0
    %v450 = vadd.f32 0.0, %v449
    %v451 = vpop.f32.mrf.mxu0
    %452 = vmatprep.mubr.bf16.mxu0 0
    %453 = vmatmul.mubr.bf16.gmra.mxu0 %v291
    %v454 = vpop.f32.mrf.mxu0
    %v455 = vadd.f32 0.0, %v454
    %v456 = vpop.f32.mrf.mxu0
    %v457 = vpop.f32.mrf.mxu0
    %v458 = vadd.f32 0.0, %v457
    %v459 = vpop.f32.mrf.mxu0
    %460 = vmatprep.mubr.bf16.mxu0 0
    %461 = vmatmul.mubr.bf16.gmra.mxu0 %v292
    %v462 = vpop.f32.mrf.mxu0
    %v463 = vadd.f32 0.0, %v462
    %v464 = vpop.f32.mrf.mxu0
    %v465 = vpop.f32.mrf.mxu0
    %v466 = vadd.f32 0.0, %v465
    %v467 = vpop.f32.mrf.mxu0
    %468 = vmatprep.mubr.bf16.mxu0 0
    %469 = vmatmul.mubr.bf16.gmra.mxu0 %v293
    %v470 = vpop.f32.mrf.mxu0
    %v471 = vadd.f32 0.0, %v470
    %v472 = vpop.f32.mrf.mxu0
    %v473 = vpop.f32.mrf.mxu0
    %v474 = vadd.f32 0.0, %v473
    %v475 = vpop.f32.mrf.mxu0
    %476 = vmatprep.mubr.bf16.mxu0 0
    %477 = vmatmul.mubr.bf16.gmra.mxu0 %v294
    %v478 = vpop.f32.mrf.mxu0
    %v479 = vadd.f32 0.0, %v478
    %v480 = vpop.f32.mrf.mxu0
    %v481 = vpop.f32.mrf.mxu0
    %v482 = vadd.f32 0.0, %v481
    %v483 = vpop.f32.mrf.mxu0
    %484 = vmatprep.mubr.bf16.mxu0 0
    %485 = vmatmul.mubr.bf16.gmra.mxu0 %v295
    %v486 = vpop.f32.mrf.mxu0
    %v487 = vadd.f32 0.0, %v486
    %v488 = vpop.f32.mrf.mxu0
    %v489 = vpop.f32.mrf.mxu0
    %v490 = vadd.f32 0.0, %v489
    %v491 = vpop.f32.mrf.mxu0
    %492 = vmatprep.mubr.bf16.mxu0 0
    %493 = vmatmul.mubr.bf16.gmra.mxu0 %v296
    %v494 = vpop.f32.mrf.mxu0
    %v495 = vadd.f32 0.0, %v494
    %v496 = vpop.f32.mrf.mxu0
    %v497 = vpop.f32.mrf.mxu0
    %v498 = vadd.f32 0.0, %v497
    %v499 = vpop.f32.mrf.mxu0
    %500 = vmatprep.mubr.bf16.mxu0 0
    %501 = vmatmul.mubr.bf16.gmra.mxu0 %v297
    %v502 = vpop.f32.mrf.mxu0
    %v503 = vadd.f32 0.0, %v502
    %v504 = vpop.f32.mrf.mxu0
    %v505 = vpop.f32.mrf.mxu0
    %v506 = vadd.f32 0.0, %v505
    %v507 = vpop.f32.mrf.mxu0
    %508 = vmatprep.mubr.bf16.mxu0 0
    %509 = vmatmul.mubr.bf16.gmra.mxu0 %v298
    %v510 = vpop.f32.mrf.mxu0
    %v511 = vadd.f32 0.0, %v510
    %v512 = vpop.f32.mrf.mxu0
    %v513 = vpop.f32.mrf.mxu0
    %v514 = vadd.f32 0.0, %v513
    %v515 = vpop.f32.mrf.mxu0
    %516 = vmatprep.mubr.bf16.mxu0 0
    %517 = vmatmul.mubr.bf16.gmra.mxu0 %v299
    %v518 = vpop.f32.mrf.mxu0
    %v519 = vadd.f32 0.0, %v518
    %v520 = vpop.f32.mrf.mxu0
    %v521 = vpop.f32.mrf.mxu0
    %v522 = vadd.f32 0.0, %v521
    %v523 = vpop.f32.mrf.mxu0
    %524 = vdwg.mxu0
    %v541 = vunpack.c.l.b16 %v236
    %v542 = vunpack.c.l.b16 %v237
    %v543 = vunpack.c.l.b16 %v238
    %v544 = vunpack.c.l.b16 %v239
    %v545 = vunpack.c.l.b16 %v240
    %v546 = vunpack.c.l.b16 %v241
    %v547 = vunpack.c.l.b16 %v242
    %v548 = vunpack.c.l.b16 %v243
    %v549 = vunpack.c.l.b16 %v244
    %v550 = vunpack.c.l.b16 %v245
    %v551 = vunpack.c.l.b16 %v246
    %v552 = vunpack.c.l.b16 %v247
    %v553 = vunpack.c.l.b16 %v248
    %v554 = vunpack.c.l.b16 %v249
    %v555 = vunpack.c.l.b16 %v250
    %v556 = vunpack.c.l.b16 %v251
    %v557 = vpack.c.b16 %v542, %v541
    %v558 = vpack.c.b16 %v544, %v543
    %v559 = vpack.c.b16 %v546, %v545
    %v560 = vpack.c.b16 %v548, %v547
    %v561 = vpack.c.b16 %v550, %v549
    %v562 = vpack.c.b16 %v552, %v551
    %v563 = vpack.c.b16 %v554, %v553
    %v564 = vpack.c.b16 %v556, %v555
    %573 = vmatprep.subr.bf16.mxu0 0
    %574 = vmatpush1.bf16.msra.mxu0 %v564
    %575 = vmatprep.subr.bf16.mxu0 0
    %576 = vmatpush1.bf16.msra.mxu0 %v563
    %577 = vmatprep.subr.bf16.mxu0 0
    %578 = vmatpush1.bf16.msra.mxu0 %v562
    %579 = vmatprep.subr.bf16.mxu0 0
    %580 = vmatpush1.bf16.msra.mxu0 %v561
    %581 = vmatprep.subr.bf16.mxu0 0
    %582 = vmatpush1.bf16.msra.mxu0 %v560
    %583 = vmatprep.subr.bf16.mxu0 0
    %584 = vmatpush1.bf16.msra.mxu0 %v559
    %585 = vmatprep.subr.bf16.mxu0 0
    %586 = vmatpush1.bf16.msra.mxu0 %v558
    %587 = vmatprep.subr.bf16.mxu0 0
    %588 = vmatpush1.bf16.msra.mxu0 %v557
    %589 = vmatprep.subr.bf16.mxu0 0
    %590 = vmatpush2.bf16.msra.mxu0 0
    %591 = vmatprep.subr.bf16.mxu0 0
    %592 = vmatpush2.bf16.msra.mxu0 0
    %593 = vmatprep.subr.bf16.mxu0 0
    %594 = vmatpush2.bf16.msra.mxu0 0
    %595 = vmatprep.subr.bf16.mxu0 0
    %596 = vmatpush2.bf16.msra.mxu0 0
    %597 = vmatprep.subr.bf16.mxu0 0
    %598 = vmatpush2.bf16.msra.mxu0 0
    %599 = vmatprep.subr.bf16.mxu0 0
    %600 = vmatpush2.bf16.msra.mxu0 0
    %601 = vmatprep.subr.bf16.mxu0 0
    %602 = vmatpush2.bf16.msra.mxu0 0
    %603 = vmatprep.subr.bf16.mxu0 0
    %604 = vmatpush2.bf16.msra.mxu0 0
    %605 = vmatprep.mubr.bf16.mxu0 0
    %606 = vmatmul.mubr.bf16.gmra.mxu0 %v220
    %v607 = vpop.f32.mrf.mxu0
    %v608 = vadd.f32 %v399, %v607
    %v609 = vpop.f32.mrf.mxu0
    %v610 = vpop.f32.mrf.mxu0
    %v611 = vadd.f32 %v402, %v610
    %v612 = vpop.f32.mrf.mxu0
    %613 = vmatprep.mubr.bf16.mxu0 0
    %614 = vmatmul.mubr.bf16.gmra.mxu0 %v221
    %v615 = vpop.f32.mrf.mxu0
    %v616 = vadd.f32 %v407, %v615
    %v617 = vpop.f32.mrf.mxu0
    %v618 = vpop.f32.mrf.mxu0
    %v619 = vadd.f32 %v410, %v618
    %v620 = vpop.f32.mrf.mxu0
    %621 = vmatprep.mubr.bf16.mxu0 0
    %622 = vmatmul.mubr.bf16.gmra.mxu0 %v222
    %v623 = vpop.f32.mrf.mxu0
    %v624 = vadd.f32 %v415, %v623
    %v625 = vpop.f32.mrf.mxu0
    %v626 = vpop.f32.mrf.mxu0
    %v627 = vadd.f32 %v418, %v626
    %v628 = vpop.f32.mrf.mxu0
    %629 = vmatprep.mubr.bf16.mxu0 0
    %630 = vmatmul.mubr.bf16.gmra.mxu0 %v223
    %v631 = vpop.f32.mrf.mxu0
    %v632 = vadd.f32 %v423, %v631
    %v633 = vpop.f32.mrf.mxu0
    %v634 = vpop.f32.mrf.mxu0
    %v635 = vadd.f32 %v426, %v634
    %v636 = vpop.f32.mrf.mxu0
    %637 = vmatprep.mubr.bf16.mxu0 0
    %638 = vmatmul.mubr.bf16.gmra.mxu0 %v224
    %v639 = vpop.f32.mrf.mxu0
    %v640 = vadd.f32 %v431, %v639
    %v641 = vpop.f32.mrf.mxu0
    %v642 = vpop.f32.mrf.mxu0
    %v643 = vadd.f32 %v434, %v642
    %v644 = vpop.f32.mrf.mxu0
    %645 = vmatprep.mubr.bf16.mxu0 0
    %646 = vmatmul.mubr.bf16.gmra.mxu0 %v225
    %v647 = vpop.f32.mrf.mxu0
    %v648 = vadd.f32 %v439, %v647
    %v649 = vpop.f32.mrf.mxu0
    %v650 = vpop.f32.mrf.mxu0
    %v651 = vadd.f32 %v442, %v650
    %v652 = vpop.f32.mrf.mxu0
    %653 = vmatprep.mubr.bf16.mxu0 0
    %654 = vmatmul.mubr.bf16.gmra.mxu0 %v226
    %v655 = vpop.f32.mrf.mxu0
    %v656 = vadd.f32 %v447, %v655
    %v657 = vpop.f32.mrf.mxu0
    %v658 = vpop.f32.mrf.mxu0
    %v659 = vadd.f32 %v450, %v658
    %v660 = vpop.f32.mrf.mxu0
    %661 = vmatprep.mubr.bf16.mxu0 0
    %662 = vmatmul.mubr.bf16.gmra.mxu0 %v227
    %v663 = vpop.f32.mrf.mxu0
    %v664 = vadd.f32 %v455, %v663
    %v665 = vpop.f32.mrf.mxu0
    %v666 = vpop.f32.mrf.mxu0
    %v667 = vadd.f32 %v458, %v666
    %v668 = vpop.f32.mrf.mxu0
    %669 = vmatprep.mubr.bf16.mxu0 0
    %670 = vmatmul.mubr.bf16.gmra.mxu0 %v228
    %v671 = vpop.f32.mrf.mxu0
    %v672 = vadd.f32 %v463, %v671
    %v673 = vpop.f32.mrf.mxu0
    %v674 = vpop.f32.mrf.mxu0
    %v675 = vadd.f32 %v466, %v674
    %v676 = vpop.f32.mrf.mxu0
    %677 = vmatprep.mubr.bf16.mxu0 0
    %678 = vmatmul.mubr.bf16.gmra.mxu0 %v229
    %v679 = vpop.f32.mrf.mxu0
    %v680 = vadd.f32 %v471, %v679
    %v681 = vpop.f32.mrf.mxu0
    %v682 = vpop.f32.mrf.mxu0
    %v683 = vadd.f32 %v474, %v682
    %v684 = vpop.f32.mrf.mxu0
    %685 = vmatprep.mubr.bf16.mxu0 0
    %686 = vmatmul.mubr.bf16.gmra.mxu0 %v230
    %v687 = vpop.f32.mrf.mxu0
    %v688 = vadd.f32 %v479, %v687
    %v689 = vpop.f32.mrf.mxu0
    %v690 = vpop.f32.mrf.mxu0
    %v691 = vadd.f32 %v482, %v690
    %v692 = vpop.f32.mrf.mxu0
    %693 = vmatprep.mubr.bf16.mxu0 0
    %694 = vmatmul.mubr.bf16.gmra.mxu0 %v231
    %v695 = vpop.f32.mrf.mxu0
    %v696 = vadd.f32 %v487, %v695
    %v697 = vpop.f32.mrf.mxu0
    %v698 = vpop.f32.mrf.mxu0
    %v699 = vadd.f32 %v490, %v698
    %v700 = vpop.f32.mrf.mxu0
    %701 = vmatprep.mubr.bf16.mxu0 0
    %702 = vmatmul.mubr.bf16.gmra.mxu0 %v232
    %v703 = vpop.f32.mrf.mxu0
    %v704 = vadd.f32 %v495, %v703
    %v705 = vpop.f32.mrf.mxu0
    %v706 = vpop.f32.mrf.mxu0
    %v707 = vadd.f32 %v498, %v706
    %v708 = vpop.f32.mrf.mxu0
    %709 = vmatprep.mubr.bf16.mxu0 0
    %710 = vmatmul.mubr.bf16.gmra.mxu0 %v233
    %v711 = vpop.f32.mrf.mxu0
    %v712 = vadd.f32 %v503, %v711
    %v713 = vpop.f32.mrf.mxu0
    %v714 = vpop.f32.mrf.mxu0
    %v715 = vadd.f32 %v506, %v714
    %v716 = vpop.f32.mrf.mxu0
    %717 = vmatprep.mubr.bf16.mxu0 0
    %718 = vmatmul.mubr.bf16.gmra.mxu0 %v234
    %v719 = vpop.f32.mrf.mxu0
    %v720 = vadd.f32 %v511, %v719
    %v721 = vpop.f32.mrf.mxu0
    %v722 = vpop.f32.mrf.mxu0
    %v723 = vadd.f32 %v514, %v722
    %v724 = vpop.f32.mrf.mxu0
    %725 = vmatprep.mubr.bf16.mxu0 0
    %726 = vmatmul.mubr.bf16.gmra.mxu0 %v235
    %v727 = vpop.f32.mrf.mxu0
    %v728 = vadd.f32 %v519, %v727
    %v729 = vpop.f32.mrf.mxu0
    %v730 = vpop.f32.mrf.mxu0
    %v731 = vadd.f32 %v522, %v730
    %v732 = vpop.f32.mrf.mxu0
    %733 = vdwg.mxu0
    %v734 = vld [vmem:[%s4] sm:$0xff]
    %v735 = vld [vmem:[%s4 + $0x8] sm:$0xff]
    %v736 = vld [vmem:[%s4 + $0x10] sm:$0xff]
    %v737 = vld [vmem:[%s4 + $0x18] sm:$0xff]
    %v738 = vld [vmem:[%s4 + $0x20] sm:$0xff]
    %v739 = vld [vmem:[%s4 + $0x28] sm:$0xff]
    %v740 = vld [vmem:[%s4 + $0x30] sm:$0xff]
    %v741 = vld [vmem:[%s4 + $0x38] sm:$0xff]
    %v742 = vld [vmem:[%s4 + $0x40] sm:$0xff]
    %v743 = vld [vmem:[%s4 + $0x48] sm:$0xff]
    %v744 = vld [vmem:[%s4 + $0x50] sm:$0xff]
    %v745 = vld [vmem:[%s4 + $0x58] sm:$0xff]
    %v746 = vld [vmem:[%s4 + $0x60] sm:$0xff]
    %v747 = vld [vmem:[%s4 + $0x68] sm:$0xff]
    %v748 = vld [vmem:[%s4 + $0x70] sm:$0xff]
    %v749 = vld [vmem:[%s4 + $0x78] sm:$0xff]
    %v750 = vld [vmem:[%s4 + $0x80] sm:$0xff]
    %v751 = vld [vmem:[%s4 + $0x88] sm:$0xff]
    %v752 = vld [vmem:[%s4 + $0x90] sm:$0xff]
    %v753 = vld [vmem:[%s4 + $0x98] sm:$0xff]
    %v754 = vld [vmem:[%s4 + $0xa0] sm:$0xff]
    %v755 = vld [vmem:[%s4 + $0xa8] sm:$0xff]
    %v756 = vld [vmem:[%s4 + $0xb0] sm:$0xff]
    %v757 = vld [vmem:[%s4 + $0xb8] sm:$0xff]
    %v758 = vld [vmem:[%s4 + $0xc0] sm:$0xff]
    %v759 = vld [vmem:[%s4 + $0xc8] sm:$0xff]
    %v760 = vld [vmem:[%s4 + $0xd0] sm:$0xff]
    %v761 = vld [vmem:[%s4 + $0xd8] sm:$0xff]
    %v762 = vld [vmem:[%s4 + $0xe0] sm:$0xff]
    %v763 = vld [vmem:[%s4 + $0xe8] sm:$0xff]
    %v764 = vld [vmem:[%s4 + $0xf0] sm:$0xff]
    %v765 = vld [vmem:[%s4 + $0xf8] sm:$0xff]
    %v766 = vpack.c.bf16 %v735, %v734
    %v767 = vpack.c.bf16 %v737, %v736
    %v768 = vpack.c.bf16 %v739, %v738
    %v769 = vpack.c.bf16 %v741, %v740
    %v770 = vpack.c.bf16 %v743, %v742
    %v771 = vpack.c.bf16 %v745, %v744
    %v772 = vpack.c.bf16 %v747, %v746
    %v773 = vpack.c.bf16 %v749, %v748
    %v774 = vpack.c.bf16 %v751, %v750
    %v775 = vpack.c.bf16 %v753, %v752
    %v776 = vpack.c.bf16 %v755, %v754
    %v777 = vpack.c.bf16 %v757, %v756
    %v778 = vpack.c.bf16 %v759, %v758
    %v779 = vpack.c.bf16 %v761, %v760
    %v780 = vpack.c.bf16 %v763, %v762
    %v781 = vpack.c.bf16 %v765, %v764
    %v782 = vld [vmem:[%s7] sm:$0xf]
    %v783 = vld [vmem:[%s7 + $0x4] sm:$0xf]
    %v784 = vld [vmem:[%s7 + $0x8] sm:$0xf]
    %v785 = vld [vmem:[%s7 + $0xc] sm:$0xf]
    %v790 = vunpack.c.l.b16 %v782
    %v791 = vunpack.c.l.b16 %v783
    %v792 = vunpack.c.l.b16 %v784
    %v793 = vunpack.c.l.b16 %v785
    %v794 = vpack.c.b16 %v791, %v790
    %v795 = vpack.c.b16 %v793, %v792
    %vm798 = vcmask 261120
    %v800 = vsel %vm798, %v766, 0
    %v803 = vsel %vm798, %v767, 0
    %v806 = vsel %vm798, %v768, 0
    %v809 = vsel %vm798, %v769, 0
    %v812 = vsel %vm798, %v770, 0
    %v815 = vsel %vm798, %v771, 0
    %v818 = vsel %vm798, %v772, 0
    %v821 = vsel %vm798, %v773, 0
    %v824 = vsel %vm798, %v774, 0
    %v827 = vsel %vm798, %v775, 0
    %v830 = vsel %vm798, %v776, 0
    %v833 = vsel %vm798, %v777, 0
    %v836 = vsel %vm798, %v778, 0
    %v839 = vsel %vm798, %v779, 0
    %v842 = vsel %vm798, %v780, 0
    %v845 = vsel %vm798, %v781, 0
    %847 = vmatprep.subr.bf16.mxu0 0
    %848 = vmatpush1.bf16.msra.mxu0 0
    %849 = vmatprep.subr.bf16.mxu0 0
    %850 = vmatpush1.bf16.msra.mxu0 0
    %851 = vmatprep.subr.bf16.mxu0 0
    %852 = vmatpush1.bf16.msra.mxu0 0
    %853 = vmatprep.subr.bf16.mxu0 0
    %854 = vmatpush1.bf16.msra.mxu0 0
    %855 = vmatprep.subr.bf16.mxu0 0
    %856 = vmatpush1.bf16.msra.mxu0 0
    %857 = vmatprep.subr.bf16.mxu0 0
    %858 = vmatpush1.bf16.msra.mxu0 0
    %859 = vmatprep.subr.bf16.mxu0 0
    %860 = vmatpush1.bf16.msra.mxu0 %v795
    %861 = vmatprep.subr.bf16.mxu0 0
    %862 = vmatpush1.bf16.msra.mxu0 %v794
    %863 = vmatprep.subr.bf16.mxu0 0
    %864 = vmatpush2.bf16.msra.mxu0 0
    %865 = vmatprep.subr.bf16.mxu0 0
    %866 = vmatpush2.bf16.msra.mxu0 0
    %867 = vmatprep.subr.bf16.mxu0 0
    %868 = vmatpush2.bf16.msra.mxu0 0
    %869 = vmatprep.subr.bf16.mxu0 0
    %870 = vmatpush2.bf16.msra.mxu0 0
    %871 = vmatprep.subr.bf16.mxu0 0
    %872 = vmatpush2.bf16.msra.mxu0 0
    %873 = vmatprep.subr.bf16.mxu0 0
    %874 = vmatpush2.bf16.msra.mxu0 0
    %875 = vmatprep.subr.bf16.mxu0 0
    %876 = vmatpush2.bf16.msra.mxu0 0
    %877 = vmatprep.subr.bf16.mxu0 0
    %878 = vmatpush2.bf16.msra.mxu0 0
    %879 = vmatprep.mubr.bf16.mxu0 0
    %880 = vmatmul.mubr.bf16.gmra.mxu0 %v800
    %v881 = vpop.f32.mrf.mxu0
    %v882 = vadd.f32 0.0, %v881
    %v883 = vpop.f32.mrf.mxu0
    %v884 = vpop.f32.mrf.mxu0
    %v885 = vadd.f32 0.0, %v884
    %v886 = vpop.f32.mrf.mxu0
    %887 = vmatprep.mubr.bf16.mxu0 0
    %888 = vmatmul.mubr.bf16.gmra.mxu0 %v803
    %v889 = vpop.f32.mrf.mxu0
    %v890 = vadd.f32 0.0, %v889
    %v891 = vpop.f32.mrf.mxu0
    %v892 = vpop.f32.mrf.mxu0
    %v893 = vadd.f32 0.0, %v892
    %v894 = vpop.f32.mrf.mxu0
    %895 = vmatprep.mubr.bf16.mxu0 0
    %896 = vmatmul.mubr.bf16.gmra.mxu0 %v806
    %v897 = vpop.f32.mrf.mxu0
    %v898 = vadd.f32 0.0, %v897
    %v899 = vpop.f32.mrf.mxu0
    %v900 = vpop.f32.mrf.mxu0
    %v901 = vadd.f32 0.0, %v900
    %v902 = vpop.f32.mrf.mxu0
    %903 = vmatprep.mubr.bf16.mxu0 0
    %904 = vmatmul.mubr.bf16.gmra.mxu0 %v809
    %v905 = vpop.f32.mrf.mxu0
    %v906 = vadd.f32 0.0, %v905
    %v907 = vpop.f32.mrf.mxu0
    %v908 = vpop.f32.mrf.mxu0
    %v909 = vadd.f32 0.0, %v908
    %v910 = vpop.f32.mrf.mxu0
    %911 = vmatprep.mubr.bf16.mxu0 0
    %912 = vmatmul.mubr.bf16.gmra.mxu0 %v812
    %v913 = vpop.f32.mrf.mxu0
    %v914 = vadd.f32 0.0, %v913
    %v915 = vpop.f32.mrf.mxu0
    %v916 = vpop.f32.mrf.mxu0
    %v917 = vadd.f32 0.0, %v916
    %v918 = vpop.f32.mrf.mxu0
    %919 = vmatprep.mubr.bf16.mxu0 0
    %920 = vmatmul.mubr.bf16.gmra.mxu0 %v815
    %v921 = vpop.f32.mrf.mxu0
    %v922 = vadd.f32 0.0, %v921
    %v923 = vpop.f32.mrf.mxu0
    %v924 = vpop.f32.mrf.mxu0
    %v925 = vadd.f32 0.0, %v924
    %v926 = vpop.f32.mrf.mxu0
    %927 = vmatprep.mubr.bf16.mxu0 0
    %928 = vmatmul.mubr.bf16.gmra.mxu0 %v818
    %v929 = vpop.f32.mrf.mxu0
    %v930 = vadd.f32 0.0, %v929
    %v931 = vpop.f32.mrf.mxu0
    %v932 = vpop.f32.mrf.mxu0
    %v933 = vadd.f32 0.0, %v932
    %v934 = vpop.f32.mrf.mxu0
    %935 = vmatprep.mubr.bf16.mxu0 0
    %936 = vmatmul.mubr.bf16.gmra.mxu0 %v821
    %v937 = vpop.f32.mrf.mxu0
    %v938 = vadd.f32 0.0, %v937
    %v939 = vpop.f32.mrf.mxu0
    %v940 = vpop.f32.mrf.mxu0
    %v941 = vadd.f32 0.0, %v940
    %v942 = vpop.f32.mrf.mxu0
    %943 = vmatprep.mubr.bf16.mxu0 0
    %944 = vmatmul.mubr.bf16.gmra.mxu0 %v824
    %v945 = vpop.f32.mrf.mxu0
    %v946 = vadd.f32 0.0, %v945
    %v947 = vpop.f32.mrf.mxu0
    %v948 = vpop.f32.mrf.mxu0
    %v949 = vadd.f32 0.0, %v948
    %v950 = vpop.f32.mrf.mxu0
    %951 = vmatprep.mubr.bf16.mxu0 0
    %952 = vmatmul.mubr.bf16.gmra.mxu0 %v827
    %v953 = vpop.f32.mrf.mxu0
    %v954 = vadd.f32 0.0, %v953
    %v955 = vpop.f32.mrf.mxu0
    %v956 = vpop.f32.mrf.mxu0
    %v957 = vadd.f32 0.0, %v956
    %v958 = vpop.f32.mrf.mxu0
    %959 = vmatprep.mubr.bf16.mxu0 0
    %960 = vmatmul.mubr.bf16.gmra.mxu0 %v830
    %v961 = vpop.f32.mrf.mxu0
    %v962 = vadd.f32 0.0, %v961
    %v963 = vpop.f32.mrf.mxu0
    %v964 = vpop.f32.mrf.mxu0
    %v965 = vadd.f32 0.0, %v964
    %v966 = vpop.f32.mrf.mxu0
    %967 = vmatprep.mubr.bf16.mxu0 0
    %968 = vmatmul.mubr.bf16.gmra.mxu0 %v833
    %v969 = vpop.f32.mrf.mxu0
    %v970 = vadd.f32 0.0, %v969
    %v971 = vpop.f32.mrf.mxu0
    %v972 = vpop.f32.mrf.mxu0
    %v973 = vadd.f32 0.0, %v972
    %v974 = vpop.f32.mrf.mxu0
    %975 = vmatprep.mubr.bf16.mxu0 0
    %976 = vmatmul.mubr.bf16.gmra.mxu0 %v836
    %v977 = vpop.f32.mrf.mxu0
    %v978 = vadd.f32 0.0, %v977
    %v979 = vpop.f32.mrf.mxu0
    %v980 = vpop.f32.mrf.mxu0
    %v981 = vadd.f32 0.0, %v980
    %v982 = vpop.f32.mrf.mxu0
    %983 = vmatprep.mubr.bf16.mxu0 0
    %984 = vmatmul.mubr.bf16.gmra.mxu0 %v839
    %v985 = vpop.f32.mrf.mxu0
    %v986 = vadd.f32 0.0, %v985
    %v987 = vpop.f32.mrf.mxu0
    %v988 = vpop.f32.mrf.mxu0
    %v989 = vadd.f32 0.0, %v988
    %v990 = vpop.f32.mrf.mxu0
    %991 = vmatprep.mubr.bf16.mxu0 0
    %992 = vmatmul.mubr.bf16.gmra.mxu0 %v842
    %v993 = vpop.f32.mrf.mxu0
    %v994 = vadd.f32 0.0, %v993
    %v995 = vpop.f32.mrf.mxu0
    %v996 = vpop.f32.mrf.mxu0
    %v997 = vadd.f32 0.0, %v996
    %v998 = vpop.f32.mrf.mxu0
    %999 = vmatprep.mubr.bf16.mxu0 0
    %1000 = vmatmul.mubr.bf16.gmra.mxu0 %v845
    %v1001 = vpop.f32.mrf.mxu0
    %v1002 = vadd.f32 0.0, %v1001
    %v1003 = vpop.f32.mrf.mxu0
    %v1004 = vpop.f32.mrf.mxu0
    %v1005 = vadd.f32 0.0, %v1004
    %v1006 = vpop.f32.mrf.mxu0
    %1007 = vdwg.mxu0
    %v1008 = vadd.f32 %v608, %v882
    %v1009 = vadd.f32 %v611, %v885
    %v1010 = vadd.f32 %v616, %v890
    %v1011 = vadd.f32 %v619, %v893
    %v1012 = vadd.f32 %v624, %v898
    %v1013 = vadd.f32 %v627, %v901
    %v1014 = vadd.f32 %v632, %v906
    %v1015 = vadd.f32 %v635, %v909
    %v1016 = vadd.f32 %v640, %v914
    %v1017 = vadd.f32 %v643, %v917
    %v1018 = vadd.f32 %v648, %v922
    %v1019 = vadd.f32 %v651, %v925
    %v1020 = vadd.f32 %v656, %v930
    %v1021 = vadd.f32 %v659, %v933
    %v1022 = vadd.f32 %v664, %v938
    %v1023 = vadd.f32 %v667, %v941
    %v1024 = vadd.f32 %v672, %v946
    %v1025 = vadd.f32 %v675, %v949
    %v1026 = vadd.f32 %v680, %v954
    %v1027 = vadd.f32 %v683, %v957
    %v1028 = vadd.f32 %v688, %v962
    %v1029 = vadd.f32 %v691, %v965
    %v1030 = vadd.f32 %v696, %v970
    %v1031 = vadd.f32 %v699, %v973
    %v1032 = vadd.f32 %v704, %v978
    %v1033 = vadd.f32 %v707, %v981
    %v1034 = vadd.f32 %v712, %v986
    %v1035 = vadd.f32 %v715, %v989
    %v1036 = vadd.f32 %v720, %v994
    %v1037 = vadd.f32 %v723, %v997
    %v1038 = vadd.f32 %v728, %v1002
    %v1039 = vadd.f32 %v731, %v1005
    %v1040 = vld [vmem:[%s8] sm:$0x1]
    %v1042 = vlaneseq
    %v1043 = vshrl.u32 %v1042, 7
    %v1044 = vsub.s32 0, %v1043
    %v1045 = vrot.slane %v1040, %v1044
    %v1047 = vadd.f32 %v1008, %v1045
    %v1048 = vadd.f32 %v1009, %v1045
    %v1049 = vadd.f32 %v1010, %v1045
    %v1050 = vadd.f32 %v1011, %v1045
    %v1051 = vadd.f32 %v1012, %v1045
    %v1052 = vadd.f32 %v1013, %v1045
    %v1053 = vadd.f32 %v1014, %v1045
    %v1054 = vadd.f32 %v1015, %v1045
    %v1055 = vadd.f32 %v1016, %v1045
    %v1056 = vadd.f32 %v1017, %v1045
    %v1057 = vadd.f32 %v1018, %v1045
    %v1058 = vadd.f32 %v1019, %v1045
    %v1059 = vadd.f32 %v1020, %v1045
    %v1060 = vadd.f32 %v1021, %v1045
    %v1061 = vadd.f32 %v1022, %v1045
    %v1062 = vadd.f32 %v1023, %v1045
    %v1063 = vadd.f32 %v1024, %v1045
    %v1064 = vadd.f32 %v1025, %v1045
    %v1065 = vadd.f32 %v1026, %v1045
    %v1066 = vadd.f32 %v1027, %v1045
    %v1067 = vadd.f32 %v1028, %v1045
    %v1068 = vadd.f32 %v1029, %v1045
    %v1069 = vadd.f32 %v1030, %v1045
    %v1070 = vadd.f32 %v1031, %v1045
    %v1071 = vadd.f32 %v1032, %v1045
    %v1072 = vadd.f32 %v1033, %v1045
    %v1073 = vadd.f32 %v1034, %v1045
    %v1074 = vadd.f32 %v1035, %v1045
    %v1075 = vadd.f32 %v1036, %v1045
    %v1076 = vadd.f32 %v1037, %v1045
    %v1077 = vadd.f32 %v1038, %v1045
    %v1078 = vadd.f32 %v1039, %v1045
    %v1079 = vmax.f32 %v1047, 0.0
    %v1080 = vmax.f32 %v1048, 0.0
    %v1081 = vmax.f32 %v1049, 0.0
    %v1082 = vmax.f32 %v1050, 0.0
    %v1083 = vmax.f32 %v1051, 0.0
    %v1084 = vmax.f32 %v1052, 0.0
    %v1085 = vmax.f32 %v1053, 0.0
    %v1086 = vmax.f32 %v1054, 0.0
    %v1087 = vmax.f32 %v1055, 0.0
    %v1088 = vmax.f32 %v1056, 0.0
    %v1089 = vmax.f32 %v1057, 0.0
    %v1090 = vmax.f32 %v1058, 0.0
    %v1091 = vmax.f32 %v1059, 0.0
    %v1092 = vmax.f32 %v1060, 0.0
    %v1093 = vmax.f32 %v1061, 0.0
    %v1094 = vmax.f32 %v1062, 0.0
    %v1095 = vmax.f32 %v1063, 0.0
    %v1096 = vmax.f32 %v1064, 0.0
    %v1097 = vmax.f32 %v1065, 0.0
    %v1098 = vmax.f32 %v1066, 0.0
    %v1099 = vmax.f32 %v1067, 0.0
    %v1100 = vmax.f32 %v1068, 0.0
    %v1101 = vmax.f32 %v1069, 0.0
    %v1102 = vmax.f32 %v1070, 0.0
    %v1103 = vmax.f32 %v1071, 0.0
    %v1104 = vmax.f32 %v1072, 0.0
    %v1105 = vmax.f32 %v1073, 0.0
    %v1106 = vmax.f32 %v1074, 0.0
    %v1107 = vmax.f32 %v1075, 0.0
    %v1108 = vmax.f32 %v1076, 0.0
    %v1109 = vmax.f32 %v1077, 0.0
    %v1110 = vmax.f32 %v1078, 0.0
    %v1111 = vpack.c.bf16 %v1080, %v1079
    %v1112 = vpack.c.bf16 %v1082, %v1081
    %v1113 = vpack.c.bf16 %v1084, %v1083
    %v1114 = vpack.c.bf16 %v1086, %v1085
    %v1115 = vpack.c.bf16 %v1088, %v1087
    %v1116 = vpack.c.bf16 %v1090, %v1089
    %v1117 = vpack.c.bf16 %v1092, %v1091
    %v1118 = vpack.c.bf16 %v1094, %v1093
    %v1119 = vpack.c.bf16 %v1096, %v1095
    %v1120 = vpack.c.bf16 %v1098, %v1097
    %v1121 = vpack.c.bf16 %v1100, %v1099
    %v1122 = vpack.c.bf16 %v1102, %v1101
    %v1123 = vpack.c.bf16 %v1104, %v1103
    %v1124 = vpack.c.bf16 %v1106, %v1105
    %v1125 = vpack.c.bf16 %v1108, %v1107
    %v1126 = vpack.c.bf16 %v1110, %v1109
    %v1127 = vld [vmem:[%s9] sm:$0xf]
    %v1128 = vld [vmem:[%s9 + $0x4] sm:$0xf]
    %v1129 = vld [vmem:[%s9 + $0x8] sm:$0xf]
    %v1130 = vld [vmem:[%s9 + $0xc] sm:$0xf]
    %v1131 = vld [vmem:[%s9 + $0x10] sm:$0xf]
    %v1132 = vld [vmem:[%s9 + $0x14] sm:$0xf]
    %v1133 = vld [vmem:[%s9 + $0x18] sm:$0xf]
    %v1134 = vld [vmem:[%s9 + $0x1c] sm:$0xf]
    %v1135 = vld [vmem:[%s10] sm:$0x1]
    %v1137 = vlaneseq
    %v1138 = vshrl.u32 %v1137, 7
    %v1139 = vsub.s32 0, %v1138
    %v1140 = vrot.slane %v1135, %v1139
    %v1150 = vunpack.c.l.b16 %v1127
    %v1151 = vunpack.c.l.b16 %v1128
    %v1152 = vunpack.c.l.b16 %v1129
    %v1153 = vunpack.c.l.b16 %v1130
    %v1154 = vunpack.c.l.b16 %v1131
    %v1155 = vunpack.c.l.b16 %v1132
    %v1156 = vunpack.c.l.b16 %v1133
    %v1157 = vunpack.c.l.b16 %v1134
    %v1158 = vpack.c.b16 %v1151, %v1150
    %v1159 = vpack.c.b16 %v1153, %v1152
    %v1160 = vpack.c.b16 %v1155, %v1154
    %v1161 = vpack.c.b16 %v1157, %v1156
    %vm1166 = vcmask 523264
    %v1168 = vsel %vm1166, %v1111, 0
    %v1171 = vsel %vm1166, %v1112, 0
    %v1174 = vsel %vm1166, %v1113, 0
    %v1177 = vsel %vm1166, %v1114, 0
    %v1180 = vsel %vm1166, %v1115, 0
    %v1183 = vsel %vm1166, %v1116, 0
    %v1186 = vsel %vm1166, %v1117, 0
    %v1189 = vsel %vm1166, %v1118, 0
    %v1192 = vsel %vm1166, %v1119, 0
    %v1195 = vsel %vm1166, %v1120, 0
    %v1198 = vsel %vm1166, %v1121, 0
    %v1201 = vsel %vm1166, %v1122, 0
    %v1204 = vsel %vm1166, %v1123, 0
    %v1207 = vsel %vm1166, %v1124, 0
    %v1210 = vsel %vm1166, %v1125, 0
    %v1213 = vsel %vm1166, %v1126, 0
    %1215 = vmatprep.subr.bf16.mxu0 0
    %1216 = vmatpush1.bf16.msra.mxu0 0
    %1217 = vmatprep.subr.bf16.mxu0 0
    %1218 = vmatpush1.bf16.msra.mxu0 0
    %1219 = vmatprep.subr.bf16.mxu0 0
    %1220 = vmatpush1.bf16.msra.mxu0 0
    %1221 = vmatprep.subr.bf16.mxu0 0
    %1222 = vmatpush1.bf16.msra.mxu0 0
    %1223 = vmatprep.subr.bf16.mxu0 0
    %1224 = vmatpush1.bf16.msra.mxu0 %v1161
    %1225 = vmatprep.subr.bf16.mxu0 0
    %1226 = vmatpush1.bf16.msra.mxu0 %v1160
    %1227 = vmatprep.subr.bf16.mxu0 0
    %1228 = vmatpush1.bf16.msra.mxu0 %v1159
    %1229 = vmatprep.subr.bf16.mxu0 0
    %1230 = vmatpush1.bf16.msra.mxu0 %v1158
    %1231 = vmatprep.subr.bf16.mxu0 0
    %1232 = vmatpush2.bf16.msra.mxu0 0
    %1233 = vmatprep.subr.bf16.mxu0 0
    %1234 = vmatpush2.bf16.msra.mxu0 0
    %1235 = vmatprep.subr.bf16.mxu0 0
    %1236 = vmatpush2.bf16.msra.mxu0 0
    %1237 = vmatprep.subr.bf16.mxu0 0
    %1238 = vmatpush2.bf16.msra.mxu0 0
    %1239 = vmatprep.subr.bf16.mxu0 0
    %1240 = vmatpush2.bf16.msra.mxu0 0
    %1241 = vmatprep.subr.bf16.mxu0 0
    %1242 = vmatpush2.bf16.msra.mxu0 0
    %1243 = vmatprep.subr.bf16.mxu0 0
    %1244 = vmatpush2.bf16.msra.mxu0 0
    %1245 = vmatprep.subr.bf16.mxu0 0
    %1246 = vmatpush2.bf16.msra.mxu0 0
    %1247 = vmatprep.mubr.bf16.mxu0 0
    %1248 = vmatmul.mubr.bf16.gmra.mxu0 %v1168
    %v1249 = vpop.f32.mrf.mxu0
    %v1250 = vadd.f32 %v1140, %v1249
    %v1251 = vpop.f32.mrf.mxu0
    %v1252 = vpop.f32.mrf.mxu0
    %v1253 = vadd.f32 %v1140, %v1252
    %v1254 = vpop.f32.mrf.mxu0
    %1255 = vmatprep.mubr.bf16.mxu0 0
    %1256 = vmatmul.mubr.bf16.gmra.mxu0 %v1171
    %v1257 = vpop.f32.mrf.mxu0
    %v1258 = vadd.f32 %v1140, %v1257
    %v1259 = vpop.f32.mrf.mxu0
    %v1260 = vpop.f32.mrf.mxu0
    %v1261 = vadd.f32 %v1140, %v1260
    %v1262 = vpop.f32.mrf.mxu0
    %1263 = vmatprep.mubr.bf16.mxu0 0
    %1264 = vmatmul.mubr.bf16.gmra.mxu0 %v1174
    %v1265 = vpop.f32.mrf.mxu0
    %v1266 = vadd.f32 %v1140, %v1265
    %v1267 = vpop.f32.mrf.mxu0
    %v1268 = vpop.f32.mrf.mxu0
    %v1269 = vadd.f32 %v1140, %v1268
    %v1270 = vpop.f32.mrf.mxu0
    %1271 = vmatprep.mubr.bf16.mxu0 0
    %1272 = vmatmul.mubr.bf16.gmra.mxu0 %v1177
    %v1273 = vpop.f32.mrf.mxu0
    %v1274 = vadd.f32 %v1140, %v1273
    %v1275 = vpop.f32.mrf.mxu0
    %v1276 = vpop.f32.mrf.mxu0
    %v1277 = vadd.f32 %v1140, %v1276
    %v1278 = vpop.f32.mrf.mxu0
    %1279 = vmatprep.mubr.bf16.mxu0 0
    %1280 = vmatmul.mubr.bf16.gmra.mxu0 %v1180
    %v1281 = vpop.f32.mrf.mxu0
    %v1282 = vadd.f32 %v1140, %v1281
    %v1283 = vpop.f32.mrf.mxu0
    %v1284 = vpop.f32.mrf.mxu0
    %v1285 = vadd.f32 %v1140, %v1284
    %v1286 = vpop.f32.mrf.mxu0
    %1287 = vmatprep.mubr.bf16.mxu0 0
    %1288 = vmatmul.mubr.bf16.gmra.mxu0 %v1183
    %v1289 = vpop.f32.mrf.mxu0
    %v1290 = vadd.f32 %v1140, %v1289
    %v1291 = vpop.f32.mrf.mxu0
    %v1292 = vpop.f32.mrf.mxu0
    %v1293 = vadd.f32 %v1140, %v1292
    %v1294 = vpop.f32.mrf.mxu0
    %1295 = vmatprep.mubr.bf16.mxu0 0
    %1296 = vmatmul.mubr.bf16.gmra.mxu0 %v1186
    %v1297 = vpop.f32.mrf.mxu0
    %v1298 = vadd.f32 %v1140, %v1297
    %v1299 = vpop.f32.mrf.mxu0
    %v1300 = vpop.f32.mrf.mxu0
    %v1301 = vadd.f32 %v1140, %v1300
    %v1302 = vpop.f32.mrf.mxu0
    %1303 = vmatprep.mubr.bf16.mxu0 0
    %1304 = vmatmul.mubr.bf16.gmra.mxu0 %v1189
    %v1305 = vpop.f32.mrf.mxu0
    %v1306 = vadd.f32 %v1140, %v1305
    %v1307 = vpop.f32.mrf.mxu0
    %v1308 = vpop.f32.mrf.mxu0
    %v1309 = vadd.f32 %v1140, %v1308
    %v1310 = vpop.f32.mrf.mxu0
    %1311 = vmatprep.mubr.bf16.mxu0 0
    %1312 = vmatmul.mubr.bf16.gmra.mxu0 %v1192
    %v1313 = vpop.f32.mrf.mxu0
    %v1314 = vadd.f32 %v1140, %v1313
    %v1315 = vpop.f32.mrf.mxu0
    %v1316 = vpop.f32.mrf.mxu0
    %v1317 = vadd.f32 %v1140, %v1316
    %v1318 = vpop.f32.mrf.mxu0
    %1319 = vmatprep.mubr.bf16.mxu0 0
    %1320 = vmatmul.mubr.bf16.gmra.mxu0 %v1195
    %v1321 = vpop.f32.mrf.mxu0
    %v1322 = vadd.f32 %v1140, %v1321
    %v1323 = vpop.f32.mrf.mxu0
    %v1324 = vpop.f32.mrf.mxu0
    %v1325 = vadd.f32 %v1140, %v1324
    %v1326 = vpop.f32.mrf.mxu0
    %1327 = vmatprep.mubr.bf16.mxu0 0
    %1328 = vmatmul.mubr.bf16.gmra.mxu0 %v1198
    %v1329 = vpop.f32.mrf.mxu0
    %v1330 = vadd.f32 %v1140, %v1329
    %v1331 = vpop.f32.mrf.mxu0
    %v1332 = vpop.f32.mrf.mxu0
    %v1333 = vadd.f32 %v1140, %v1332
    %v1334 = vpop.f32.mrf.mxu0
    %1335 = vmatprep.mubr.bf16.mxu0 0
    %1336 = vmatmul.mubr.bf16.gmra.mxu0 %v1201
    %v1337 = vpop.f32.mrf.mxu0
    %v1338 = vadd.f32 %v1140, %v1337
    %v1339 = vpop.f32.mrf.mxu0
    %v1340 = vpop.f32.mrf.mxu0
    %v1341 = vadd.f32 %v1140, %v1340
    %v1342 = vpop.f32.mrf.mxu0
    %1343 = vmatprep.mubr.bf16.mxu0 0
    %1344 = vmatmul.mubr.bf16.gmra.mxu0 %v1204
    %v1345 = vpop.f32.mrf.mxu0
    %v1346 = vadd.f32 %v1140, %v1345
    %v1347 = vpop.f32.mrf.mxu0
    %v1348 = vpop.f32.mrf.mxu0
    %v1349 = vadd.f32 %v1140, %v1348
    %v1350 = vpop.f32.mrf.mxu0
    %1351 = vmatprep.mubr.bf16.mxu0 0
    %1352 = vmatmul.mubr.bf16.gmra.mxu0 %v1207
    %v1353 = vpop.f32.mrf.mxu0
    %v1354 = vadd.f32 %v1140, %v1353
    %v1355 = vpop.f32.mrf.mxu0
    %v1356 = vpop.f32.mrf.mxu0
    %v1357 = vadd.f32 %v1140, %v1356
    %v1358 = vpop.f32.mrf.mxu0
    %1359 = vmatprep.mubr.bf16.mxu0 0
    %1360 = vmatmul.mubr.bf16.gmra.mxu0 %v1210
    %v1361 = vpop.f32.mrf.mxu0
    %v1362 = vadd.f32 %v1140, %v1361
    %v1363 = vpop.f32.mrf.mxu0
    %v1364 = vpop.f32.mrf.mxu0
    %v1365 = vadd.f32 %v1140, %v1364
    %v1366 = vpop.f32.mrf.mxu0
    %1367 = vmatprep.mubr.bf16.mxu0 0
    %1368 = vmatmul.mubr.bf16.gmra.mxu0 %v1213
    %v1369 = vpop.f32.mrf.mxu0
    %v1370 = vadd.f32 %v1140, %v1369
    %v1371 = vpop.f32.mrf.mxu0
    %v1372 = vpop.f32.mrf.mxu0
    %v1373 = vadd.f32 %v1140, %v1372
    %v1374 = vpop.f32.mrf.mxu0
    %1375 = vdwg.mxu0
    %v1376 = vsub.f32 %v1250, %v58
    %v1377 = vsub.f32 %v1253, %v59
    %v1378 = vsub.f32 %v1258, %v60
    %v1379 = vsub.f32 %v1261, %v61
    %v1380 = vsub.f32 %v1266, %v62
    %v1381 = vsub.f32 %v1269, %v63
    %v1382 = vsub.f32 %v1274, %v64
    %v1383 = vsub.f32 %v1277, %v65
    %v1384 = vsub.f32 %v1282, %v66
    %v1385 = vsub.f32 %v1285, %v67
    %v1386 = vsub.f32 %v1290, %v68
    %v1387 = vsub.f32 %v1293, %v69
    %v1388 = vsub.f32 %v1298, %v70
    %v1389 = vsub.f32 %v1301, %v71
    %v1390 = vsub.f32 %v1306, %v72
    %v1391 = vsub.f32 %v1309, %v73
    %v1392 = vsub.f32 %v1314, %v74
    %v1393 = vsub.f32 %v1317, %v75
    %v1394 = vsub.f32 %v1322, %v76
    %v1395 = vsub.f32 %v1325, %v77
    %v1396 = vsub.f32 %v1330, %v78
    %v1397 = vsub.f32 %v1333, %v79
    %v1398 = vsub.f32 %v1338, %v80
    %v1399 = vsub.f32 %v1341, %v81
    %v1400 = vsub.f32 %v1346, %v82
    %v1401 = vsub.f32 %v1349, %v83
    %v1402 = vsub.f32 %v1354, %v84
    %v1403 = vsub.f32 %v1357, %v85
    %v1404 = vsub.f32 %v1362, %v86
    %v1405 = vsub.f32 %v1365, %v87
    %v1406 = vsub.f32 %v1370, %v88
    %v1407 = vsub.f32 %v1373, %v89
    %v1408 = vmul.f32 %v1376, %v1376
    %v1409 = vmul.f32 %v1377, %v1377
    %v1410 = vmul.f32 %v1378, %v1378
    %v1411 = vmul.f32 %v1379, %v1379
    %v1412 = vmul.f32 %v1380, %v1380
    %v1413 = vmul.f32 %v1381, %v1381
    %v1414 = vmul.f32 %v1382, %v1382
    %v1415 = vmul.f32 %v1383, %v1383
    %v1416 = vmul.f32 %v1384, %v1384
    %v1417 = vmul.f32 %v1385, %v1385
    %v1418 = vmul.f32 %v1386, %v1386
    %v1419 = vmul.f32 %v1387, %v1387
    %v1420 = vmul.f32 %v1388, %v1388
    %v1421 = vmul.f32 %v1389, %v1389
    %v1422 = vmul.f32 %v1390, %v1390
    %v1423 = vmul.f32 %v1391, %v1391
    %v1424 = vmul.f32 %v1392, %v1392
    %v1425 = vmul.f32 %v1393, %v1393
    %v1426 = vmul.f32 %v1394, %v1394
    %v1427 = vmul.f32 %v1395, %v1395
    %v1428 = vmul.f32 %v1396, %v1396
    %v1429 = vmul.f32 %v1397, %v1397
    %v1430 = vmul.f32 %v1398, %v1398
    %v1431 = vmul.f32 %v1399, %v1399
    %v1432 = vmul.f32 %v1400, %v1400
    %v1433 = vmul.f32 %v1401, %v1401
    %v1434 = vmul.f32 %v1402, %v1402
    %v1435 = vmul.f32 %v1403, %v1403
    %v1436 = vmul.f32 %v1404, %v1404
    %v1437 = vmul.f32 %v1405, %v1405
    %v1438 = vmul.f32 %v1406, %v1406
    %v1439 = vmul.f32 %v1407, %v1407
    %v1440 = vadd.f32 %v1408, %v1409
    %v1441 = vadd.f32 %v1440, %v1410
    %v1442 = vadd.f32 %v1441, %v1411
    %v1443 = vadd.f32 %v1442, %v1412
    %v1444 = vadd.f32 %v1443, %v1413
    %v1445 = vadd.f32 %v1444, %v1414
    %v1446 = vadd.f32 %v1445, %v1415
    %v1447 = vadd.f32 %v1446, %v1416
    %v1448 = vadd.f32 %v1447, %v1417
    %v1449 = vadd.f32 %v1448, %v1418
    %v1450 = vadd.f32 %v1449, %v1419
    %v1451 = vadd.f32 %v1450, %v1420
    %v1452 = vadd.f32 %v1451, %v1421
    %v1453 = vadd.f32 %v1452, %v1422
    %v1454 = vadd.f32 %v1453, %v1423
    %v1455 = vadd.f32 %v1454, %v1424
    %v1456 = vadd.f32 %v1455, %v1425
    %v1457 = vadd.f32 %v1456, %v1426
    %v1458 = vadd.f32 %v1457, %v1427
    %v1459 = vadd.f32 %v1458, %v1428
    %v1460 = vadd.f32 %v1459, %v1429
    %v1461 = vadd.f32 %v1460, %v1430
    %v1462 = vadd.f32 %v1461, %v1431
    %v1463 = vadd.f32 %v1462, %v1432
    %v1464 = vadd.f32 %v1463, %v1433
    %v1465 = vadd.f32 %v1464, %v1434
    %v1466 = vadd.f32 %v1465, %v1435
    %v1467 = vadd.f32 %v1466, %v1436
    %v1468 = vadd.f32 %v1467, %v1437
    %v1469 = vadd.f32 %v1468, %v1438
    %v1470 = vadd.f32 %v1469, %v1439
    %1471 = vadd.xlane.f32.xlu0 %v1470
    %v1472 = vpop.xlane.xlu0 %1471
    %v1473 = vrot.slane %v1472, 4
    %v1474 = vadd.f32 %v1472, %v1473
    %v1475 = vrot.slane %v1474, 2
    %v1476 = vadd.f32 %v1474, %v1475
    %v1477 = vrot.slane %v1476, 1
    %v1478 = vadd.f32 %v1476, %v1477
    %s1479 = vtos %v1478
    %s1480 = smul.f32 %s1479, 0.0013020834
    %v1481 = vstv %s1480
    %vm1482 = vcmask 0
    %1483 = vst.msk [vmem:[#allocation5] sm:$0x1] %vm1482, %v1481
    %v1484 = vmul.f32 %v155, %v1250
    %v1485 = vmul.f32 %v155, %v1253
    %v1486 = vmul.f32 %v155, %v1258
    %v1487 = vmul.f32 %v155, %v1261
    %v1488 = vmul.f32 %v155, %v1266
    %v1489 = vmul.f32 %v155, %v1269
    %v1490 = vmul.f32 %v155, %v1274
    %v1491 = vmul.f32 %v155, %v1277
    %v1492 = vmul.f32 %v155, %v1282
    %v1493 = vmul.f32 %v155, %v1285
    %v1494 = vmul.f32 %v155, %v1290
    %v1495 = vmul.f32 %v155, %v1293
    %v1496 = vmul.f32 %v155, %v1298
    %v1497 = vmul.f32 %v155, %v1301
    %v1498 = vmul.f32 %v155, %v1306
    %v1499 = vmul.f32 %v155, %v1309
    %v1500 = vmul.f32 %v155, %v1314
    %v1501 = vmul.f32 %v155, %v1317
    %v1502 = vmul.f32 %v155, %v1322
    %v1503 = vmul.f32 %v155, %v1325
    %v1504 = vmul.f32 %v155, %v1330
    %v1505 = vmul.f32 %v155, %v1333
    %v1506 = vmul.f32 %v155, %v1338
    %v1507 = vmul.f32 %v155, %v1341
    %v1508 = vmul.f32 %v155, %v1346
    %v1509 = vmul.f32 %v155, %v1349
    %v1510 = vmul.f32 %v155, %v1354
    %v1511 = vmul.f32 %v155, %v1357
    %v1512 = vmul.f32 %v155, %v1362
    %v1513 = vmul.f32 %v155, %v1365
    %v1514 = vmul.f32 %v155, %v1370
    %v1515 = vmul.f32 %v155, %v1373
    %v1516 = vsub.f32 %v188, %v1484
    %v1517 = vsub.f32 %v189, %v1485
    %v1518 = vsub.f32 %v190, %v1486
    %v1519 = vsub.f32 %v191, %v1487
    %v1520 = vsub.f32 %v192, %v1488
    %v1521 = vsub.f32 %v193, %v1489
    %v1522 = vsub.f32 %v194, %v1490
    %v1523 = vsub.f32 %v195, %v1491
    %v1524 = vsub.f32 %v196, %v1492
    %v1525 = vsub.f32 %v197, %v1493
    %v1526 = vsub.f32 %v198, %v1494
    %v1527 = vsub.f32 %v199, %v1495
    %v1528 = vsub.f32 %v200, %v1496
    %v1529 = vsub.f32 %v201, %v1497
    %v1530 = vsub.f32 %v202, %v1498
    %v1531 = vsub.f32 %v203, %v1499
    %v1532 = vsub.f32 %v204, %v1500
    %v1533 = vsub.f32 %v205, %v1501
    %v1534 = vsub.f32 %v206, %v1502
    %v1535 = vsub.f32 %v207, %v1503
    %v1536 = vsub.f32 %v208, %v1504
    %v1537 = vsub.f32 %v209, %v1505
    %v1538 = vsub.f32 %v210, %v1506
    %v1539 = vsub.f32 %v211, %v1507
    %v1540 = vsub.f32 %v212, %v1508
    %v1541 = vsub.f32 %v213, %v1509
    %v1542 = vsub.f32 %v214, %v1510
    %v1543 = vsub.f32 %v215, %v1511
    %v1544 = vsub.f32 %v216, %v1512
    %v1545 = vsub.f32 %v217, %v1513
    %v1546 = vsub.f32 %v218, %v1514
    %v1547 = vsub.f32 %v219, %v1515
    %v1548 = vstv %s57
    %v1549 = vmul.f32 %v1516, %v1548
    %v1550 = vmul.f32 %v1517, %v1548
    %v1551 = vmul.f32 %v1518, %v1548
    %v1552 = vmul.f32 %v1519, %v1548
    %v1553 = vmul.f32 %v1520, %v1548
    %v1554 = vmul.f32 %v1521, %v1548
    %v1555 = vmul.f32 %v1522, %v1548
    %v1556 = vmul.f32 %v1523, %v1548
    %v1557 = vmul.f32 %v1524, %v1548
    %v1558 = vmul.f32 %v1525, %v1548
    %v1559 = vmul.f32 %v1526, %v1548
    %v1560 = vmul.f32 %v1527, %v1548
    %v1561 = vmul.f32 %v1528, %v1548
    %v1562 = vmul.f32 %v1529, %v1548
    %v1563 = vmul.f32 %v1530, %v1548
    %v1564 = vmul.f32 %v1531, %v1548
    %v1565 = vmul.f32 %v1532, %v1548
    %v1566 = vmul.f32 %v1533, %v1548
    %v1567 = vmul.f32 %v1534, %v1548
    %v1568 = vmul.f32 %v1535, %v1548
    %v1569 = vmul.f32 %v1536, %v1548
    %v1570 = vmul.f32 %v1537, %v1548
    %v1571 = vmul.f32 %v1538, %v1548
    %v1572 = vmul.f32 %v1539, %v1548
    %v1573 = vmul.f32 %v1540, %v1548
    %v1574 = vmul.f32 %v1541, %v1548
    %v1575 = vmul.f32 %v1542, %v1548
    %v1576 = vmul.f32 %v1543, %v1548
    %v1577 = vmul.f32 %v1544, %v1548
    %v1578 = vmul.f32 %v1545, %v1548
    %v1579 = vmul.f32 %v1546, %v1548
    %v1580 = vmul.f32 %v1547, %v1548
    %v1581 = vmax.f32 %v1549, -1.0
    %v1582 = vmax.f32 %v1550, -1.0
    %v1583 = vmax.f32 %v1551, -1.0
    %v1584 = vmax.f32 %v1552, -1.0
    %v1585 = vmax.f32 %v1553, -1.0
    %v1586 = vmax.f32 %v1554, -1.0
    %v1587 = vmax.f32 %v1555, -1.0
    %v1588 = vmax.f32 %v1556, -1.0
    %v1589 = vmax.f32 %v1557, -1.0
    %v1590 = vmax.f32 %v1558, -1.0
    %v1591 = vmax.f32 %v1559, -1.0
    %v1592 = vmax.f32 %v1560, -1.0
    %v1593 = vmax.f32 %v1561, -1.0
    %v1594 = vmax.f32 %v1562, -1.0
    %v1595 = vmax.f32 %v1563, -1.0
    %v1596 = vmax.f32 %v1564, -1.0
    %v1597 = vmax.f32 %v1565, -1.0
    %v1598 = vmax.f32 %v1566, -1.0
    %v1599 = vmax.f32 %v1567, -1.0
    %v1600 = vmax.f32 %v1568, -1.0
    %v1601 = vmax.f32 %v1569, -1.0
    %v1602 = vmax.f32 %v1570, -1.0
    %v1603 = vmax.f32 %v1571, -1.0
    %v1604 = vmax.f32 %v1572, -1.0
    %v1605 = vmax.f32 %v1573, -1.0
    %v1606 = vmax.f32 %v1574, -1.0
    %v1607 = vmax.f32 %v1575, -1.0
    %v1608 = vmax.f32 %v1576, -1.0
    %v1609 = vmax.f32 %v1577, -1.0
    %v1610 = vmax.f32 %v1578, -1.0
    %v1611 = vmax.f32 %v1579, -1.0
    %v1612 = vmax.f32 %v1580, -1.0
    %v1613 = vmin.f32 %v1581, 1.0
    %v1614 = vmin.f32 %v1582, 1.0
    %v1615 = vmin.f32 %v1583, 1.0
    %v1616 = vmin.f32 %v1584, 1.0
    %v1617 = vmin.f32 %v1585, 1.0
    %v1618 = vmin.f32 %v1586, 1.0
    %v1619 = vmin.f32 %v1587, 1.0
    %v1620 = vmin.f32 %v1588, 1.0
    %v1621 = vmin.f32 %v1589, 1.0
    %v1622 = vmin.f32 %v1590, 1.0
    %v1623 = vmin.f32 %v1591, 1.0
    %v1624 = vmin.f32 %v1592, 1.0
    %v1625 = vmin.f32 %v1593, 1.0
    %v1626 = vmin.f32 %v1594, 1.0
    %v1627 = vmin.f32 %v1595, 1.0
    %v1628 = vmin.f32 %v1596, 1.0
    %v1629 = vmin.f32 %v1597, 1.0
    %v1630 = vmin.f32 %v1598, 1.0
    %v1631 = vmin.f32 %v1599, 1.0
    %v1632 = vmin.f32 %v1600, 1.0
    %v1633 = vmin.f32 %v1601, 1.0
    %v1634 = vmin.f32 %v1602, 1.0
    %v1635 = vmin.f32 %v1603, 1.0
    %v1636 = vmin.f32 %v1604, 1.0
    %v1637 = vmin.f32 %v1605, 1.0
    %v1638 = vmin.f32 %v1606, 1.0
    %v1639 = vmin.f32 %v1607, 1.0
    %v1640 = vmin.f32 %v1608, 1.0
    %v1641 = vmin.f32 %v1609, 1.0
    %v1642 = vmin.f32 %v1610, 1.0
    %v1643 = vmin.f32 %v1611, 1.0
    %v1644 = vmin.f32 %v1612, 1.0
    %1645 = vst [vmem:[%s11] sm:$0xff] %v1613
    %1646 = vst [vmem:[%s11 + $0x8] sm:$0xff] %v1614
    %1647 = vst [vmem:[%s11 + $0x10] sm:$0xff] %v1615
    %1648 = vst [vmem:[%s11 + $0x18] sm:$0xff] %v1616
    %1649 = vst [vmem:[%s11 + $0x20] sm:$0xff] %v1617
    %1650 = vst [vmem:[%s11 + $0x28] sm:$0xff] %v1618
    %1651 = vst [vmem:[%s11 + $0x30] sm:$0xff] %v1619
    %1652 = vst [vmem:[%s11 + $0x38] sm:$0xff] %v1620
    %1653 = vst [vmem:[%s11 + $0x40] sm:$0xff] %v1621
    %1654 = vst [vmem:[%s11 + $0x48] sm:$0xff] %v1622
    %1655 = vst [vmem:[%s11 + $0x50] sm:$0xff] %v1623
    %1656 = vst [vmem:[%s11 + $0x58] sm:$0xff] %v1624
    %1657 = vst [vmem:[%s11 + $0x60] sm:$0xff] %v1625
    %1658 = vst [vmem:[%s11 + $0x68] sm:$0xff] %v1626
    %1659 = vst [vmem:[%s11 + $0x70] sm:$0xff] %v1627
    %1660 = vst [vmem:[%s11 + $0x78] sm:$0xff] %v1628
    %1661 = vst [vmem:[%s11 + $0x80] sm:$0xff] %v1629
    %1662 = vst [vmem:[%s11 + $0x88] sm:$0xff] %v1630
    %1663 = vst [vmem:[%s11 + $0x90] sm:$0xff] %v1631
    %1664 = vst [vmem:[%s11 + $0x98] sm:$0xff] %v1632
    %1665 = vst [vmem:[%s11 + $0xa0] sm:$0xff] %v1633
    %1666 = vst [vmem:[%s11 + $0xa8] sm:$0xff] %v1634
    %1667 = vst [vmem:[%s11 + $0xb0] sm:$0xff] %v1635
    %1668 = vst [vmem:[%s11 + $0xb8] sm:$0xff] %v1636
    %1669 = vst [vmem:[%s11 + $0xc0] sm:$0xff] %v1637
    %1670 = vst [vmem:[%s11 + $0xc8] sm:$0xff] %v1638
    %1671 = vst [vmem:[%s11 + $0xd0] sm:$0xff] %v1639
    %1672 = vst [vmem:[%s11 + $0xd8] sm:$0xff] %v1640
    %1673 = vst [vmem:[%s11 + $0xe0] sm:$0xff] %v1641
    %1674 = vst [vmem:[%s11 + $0xe8] sm:$0xff] %v1642
    %1675 = vst [vmem:[%s11 + $0xf0] sm:$0xff] %v1643
    %1676 = vst [vmem:[%s11 + $0xf8] sm:$0xff] %v1644
    // Predicated region
    $region50: #{flow_diffusion_forward.8} parent=1 // pred_check
      _
    $region51: #{flow_diffusion_forward.8} parent=1 // pred_check_branch
      %1678 = sbr.rel (0) target = $region53
    $region52: #{flow_diffusion_forward.8} parent=1 // pred_region
      _
    $region53: #{flow_diffusion_forward.8} parent=1 // pred_fallthru
      _
    // Predicated region
    $region54: #{flow_diffusion_forward.8} parent=1 // pred_check
      _
    $region55: #{flow_diffusion_forward.8} parent=1 // pred_check_branch
      %1680 = sbr.rel (0) target = $region57
    $region56: #{flow_diffusion_forward.8} parent=1 // pred_region
      %s1682 = ssub.s32 16, 16
      %1683 = vsyncadd [#allocation3], %s1682
      %s1685 = sshll.u32 [#allocation5], 4
      %s1686 = int_to_ptr.vmem [resolvable:$true] %s1685
      %1688 = dma.vmem_to_hbm [thread:$0]  %s1686, 16, %s12, [#allocation3]
    $region57: #{flow_diffusion_forward.8} parent=1 // pred_fallthru
      _
    // Predicated region
    $region58: #{flow_diffusion_forward.8} parent=1 // pred_check
      _
    $region59: #{flow_diffusion_forward.8} parent=1 // pred_check_branch
      %1690 = sbr.rel (0) target = $region61
    $region60: #{flow_diffusion_forward.8} parent=1 // pred_region
      _
    $region61: #{flow_diffusion_forward.8} parent=1 // pred_fallthru
      _
    // Predicated region
    $region62: #{flow_diffusion_forward.8} parent=1 // pred_check
      _
    $region63: #{flow_diffusion_forward.8} parent=1 // pred_check_branch
      %1692 = sbr.rel (0) target = $region65
    $region64: #{flow_diffusion_forward.8} parent=1 // pred_region
      %1693 = dma.done [#allocation3], 16
    $region65: #{flow_diffusion_forward.8} parent=1 // pred_fallthru
      _
    %1694 = vsyncpa [#allocation3], 1
    %1695 = vsyncpa [#allocation4], 1

// kernel: flow_diffusion_forward.9
$region0: #{flow_diffusion_forward.9}
  #allocation0 [shape = 'u32[]', space=smem, size = 0x4, offset = 0x4, fixed_abs, tag = 'smem constant byte address 0x4 - core index']
  #allocation1 [shape = 'u32[144,128]{1,0:T(1,128)}', space=vmem, size = 0x12000, scoped, tag = 'internal scratch']
  %s0 = inlined_call_operand.vmem [shape: f32[1024,3], index: 0, kind: input, shape index: {}]
  %s1 = inlined_call_operand.vmem [shape: f32[1024,1], index: 1, kind: input, shape index: {}]
  %s2 = inlined_call_operand.vmem [shape: bf16[3,128], index: 2, kind: input, shape index: {}]
  %s3 = inlined_call_operand.vmem [shape: f32[1,128], index: 3, kind: input, shape index: {}]
  %s4 = inlined_call_operand.vmem [shape: f32[1024,128], index: 4, kind: output, shape index: {}]
  %s5 = sld [smem:[#allocation0]]
  $region26: #{flow_diffusion_forward.9} parent=0
    _
  %s7 = ssub.s32 1, %s5
  %s8 = scalar_select 0, %s7, %s5
  // Predicated region
  $region2: #{flow_diffusion_forward.9} parent=0 // pred_check
    _
  $region3: #{flow_diffusion_forward.9} parent=0 // pred_check_branch
    %10 = sbr.rel (0) target = $region5
  $region4: #{flow_diffusion_forward.9} parent=0 // pred_region
    _
  $region5: #{flow_diffusion_forward.9} parent=0 // pred_fallthru
    _
  // Predicated region
  $region6: #{flow_diffusion_forward.9} parent=0 // pred_check
    _
  $region7: #{flow_diffusion_forward.9} parent=0 // pred_check_branch
    %12 = sbr.rel (0) target = $region9
  $region8: #{flow_diffusion_forward.9} parent=0 // pred_region
    _
  $region9: #{flow_diffusion_forward.9} parent=0 // pred_fallthru
    _
  // Predicated region
  $region10: #{flow_diffusion_forward.9} parent=0 // pred_check
    _
  $region11: #{flow_diffusion_forward.9} parent=0 // pred_check_branch
    %14 = sbr.rel (0) target = $region13
  $region12: #{flow_diffusion_forward.9} parent=0 // pred_region
    _
  $region13: #{flow_diffusion_forward.9} parent=0 // pred_fallthru
    _
  // Predicated region
  $region14: #{flow_diffusion_forward.9} parent=0 // pred_check
    _
  $region15: #{flow_diffusion_forward.9} parent=0 // pred_check_branch
    %16 = sbr.rel (0) target = $region17
  $region16: #{flow_diffusion_forward.9} parent=0 // pred_region
    _
  $region17: #{flow_diffusion_forward.9} parent=0 // pred_fallthru
    _
  %v18 = vld [vmem:[%s0] sm:$0xff]
  %v19 = vld [vmem:[%s0 + $0x8] sm:$0xff]
  %v20 = vld [vmem:[%s0 + $0x10] sm:$0xff]
  %v21 = vld [vmem:[%s0 + $0x18] sm:$0xff]
  %v22 = vld [vmem:[%s0 + $0x20] sm:$0xff]
  %v23 = vld [vmem:[%s0 + $0x28] sm:$0xff]
  %v24 = vld [vmem:[%s0 + $0x30] sm:$0xff]
  %v25 = vld [vmem:[%s0 + $0x38] sm:$0xff]
  %v26 = vld [vmem:[%s0 + $0x40] sm:$0xff]
  %v27 = vld [vmem:[%s0 + $0x48] sm:$0xff]
  %v28 = vld [vmem:[%s0 + $0x50] sm:$0xff]
  %v29 = vld [vmem:[%s0 + $0x58] sm:$0xff]
  %v30 = vld [vmem:[%s0 + $0x60] sm:$0xff]
  %v31 = vld [vmem:[%s0 + $0x68] sm:$0xff]
  %v32 = vld [vmem:[%s0 + $0x70] sm:$0xff]
  %v33 = vld [vmem:[%s0 + $0x78] sm:$0xff]
  %v34 = vld [vmem:[%s0 + $0x80] sm:$0xff]
  %v35 = vld [vmem:[%s0 + $0x88] sm:$0xff]
  %v36 = vld [vmem:[%s0 + $0x90] sm:$0xff]
  %v37 = vld [vmem:[%s0 + $0x98] sm:$0xff]
  %v38 = vld [vmem:[%s0 + $0xa0] sm:$0xff]
  %v39 = vld [vmem:[%s0 + $0xa8] sm:$0xff]
  %v40 = vld [vmem:[%s0 + $0xb0] sm:$0xff]
  %v41 = vld [vmem:[%s0 + $0xb8] sm:$0xff]
  %v42 = vld [vmem:[%s0 + $0xc0] sm:$0xff]
  %v43 = vld [vmem:[%s0 + $0xc8] sm:$0xff]
  %v44 = vld [vmem:[%s0 + $0xd0] sm:$0xff]
  %v45 = vld [vmem:[%s0 + $0xd8] sm:$0xff]
  %v46 = vld [vmem:[%s0 + $0xe0] sm:$0xff]
  %v47 = vld [vmem:[%s0 + $0xe8] sm:$0xff]
  %v48 = vld [vmem:[%s0 + $0xf0] sm:$0xff]
  %v49 = vld [vmem:[%s0 + $0xf8] sm:$0xff]
  %v50 = vld [vmem:[%s0 + $0x100] sm:$0xff]
  %v51 = vld [vmem:[%s0 + $0x108] sm:$0xff]
  %v52 = vld [vmem:[%s0 + $0x110] sm:$0xff]
  %v53 = vld [vmem:[%s0 + $0x118] sm:$0xff]
  %v54 = vld [vmem:[%s0 + $0x120] sm:$0xff]
  %v55 = vld [vmem:[%s0 + $0x128] sm:$0xff]
  %v56 = vld [vmem:[%s0 + $0x130] sm:$0xff]
  %v57 = vld [vmem:[%s0 + $0x138] sm:$0xff]
  %v58 = vld [vmem:[%s0 + $0x140] sm:$0xff]
  %v59 = vld [vmem:[%s0 + $0x148] sm:$0xff]
  %v60 = vld [vmem:[%s0 + $0x150] sm:$0xff]
  %v61 = vld [vmem:[%s0 + $0x158] sm:$0xff]
  %v62 = vld [vmem:[%s0 + $0x160] sm:$0xff]
  %v63 = vld [vmem:[%s0 + $0x168] sm:$0xff]
  %v64 = vld [vmem:[%s0 + $0x170] sm:$0xff]
  %v65 = vld [vmem:[%s0 + $0x178] sm:$0xff]
  %v66 = vld [vmem:[%s0 + $0x180] sm:$0xff]
  %v67 = vld [vmem:[%s0 + $0x188] sm:$0xff]
  %v68 = vld [vmem:[%s0 + $0x190] sm:$0xff]
  %v69 = vld [vmem:[%s0 + $0x198] sm:$0xff]
  %v70 = vld [vmem:[%s0 + $0x1a0] sm:$0xff]
  %v71 = vld [vmem:[%s0 + $0x1a8] sm:$0xff]
  %v72 = vld [vmem:[%s0 + $0x1b0] sm:$0xff]
  %v73 = vld [vmem:[%s0 + $0x1b8] sm:$0xff]
  %v74 = vld [vmem:[%s0 + $0x1c0] sm:$0xff]
  %v75 = vld [vmem:[%s0 + $0x1c8] sm:$0xff]
  %v76 = vld [vmem:[%s0 + $0x1d0] sm:$0xff]
  %v77 = vld [vmem:[%s0 + $0x1d8] sm:$0xff]
  %v78 = vld [vmem:[%s0 + $0x1e0] sm:$0xff]
  %v79 = vld [vmem:[%s0 + $0x1e8] sm:$0xff]
  %v80 = vld [vmem:[%s0 + $0x1f0] sm:$0xff]
  %v81 = vld [vmem:[%s0 + $0x1f8] sm:$0xff]
  %v82 = vld [vmem:[%s0 + $0x200] sm:$0xff]
  %v83 = vld [vmem:[%s0 + $0x208] sm:$0xff]
  %v84 = vld [vmem:[%s0 + $0x210] sm:$0xff]
  %v85 = vld [vmem:[%s0 + $0x218] sm:$0xff]
  %v86 = vld [vmem:[%s0 + $0x220] sm:$0xff]
  %v87 = vld [vmem:[%s0 + $0x228] sm:$0xff]
  %v88 = vld [vmem:[%s0 + $0x230] sm:$0xff]
  %v89 = vld [vmem:[%s0 + $0x238] sm:$0xff]
  %v90 = vld [vmem:[%s0 + $0x240] sm:$0xff]
  %v91 = vld [vmem:[%s0 + $0x248] sm:$0xff]
  %v92 = vld [vmem:[%s0 + $0x250] sm:$0xff]
  %v93 = vld [vmem:[%s0 + $0x258] sm:$0xff]
  %v94 = vld [vmem:[%s0 + $0x260] sm:$0xff]
  %v95 = vld [vmem:[%s0 + $0x268] sm:$0xff]
  %v96 = vld [vmem:[%s0 + $0x270] sm:$0xff]
  %v97 = vld [vmem:[%s0 + $0x278] sm:$0xff]
  %v98 = vld [vmem:[%s0 + $0x280] sm:$0xff]
  %v99 = vld [vmem:[%s0 + $0x288] sm:$0xff]
  %v100 = vld [vmem:[%s0 + $0x290] sm:$0xff]
  %v101 = vld [vmem:[%s0 + $0x298] sm:$0xff]
  %v102 = vld [vmem:[%s0 + $0x2a0] sm:$0xff]
  %v103 = vld [vmem:[%s0 + $0x2a8] sm:$0xff]
  %v104 = vld [vmem:[%s0 + $0x2b0] sm:$0xff]
  %v105 = vld [vmem:[%s0 + $0x2b8] sm:$0xff]
  %v106 = vld [vmem:[%s0 + $0x2c0] sm:$0xff]
  %v107 = vld [vmem:[%s0 + $0x2c8] sm:$0xff]
  %v108 = vld [vmem:[%s0 + $0x2d0] sm:$0xff]
  %v109 = vld [vmem:[%s0 + $0x2d8] sm:$0xff]
  %v110 = vld [vmem:[%s0 + $0x2e0] sm:$0xff]
  %v111 = vld [vmem:[%s0 + $0x2e8] sm:$0xff]
  %v112 = vld [vmem:[%s0 + $0x2f0] sm:$0xff]
  %v113 = vld [vmem:[%s0 + $0x2f8] sm:$0xff]
  %v114 = vld [vmem:[%s0 + $0x300] sm:$0xff]
  %v115 = vld [vmem:[%s0 + $0x308] sm:$0xff]
  %v116 = vld [vmem:[%s0 + $0x310] sm:$0xff]
  %v117 = vld [vmem:[%s0 + $0x318] sm:$0xff]
  %v118 = vld [vmem:[%s0 + $0x320] sm:$0xff]
  %v119 = vld [vmem:[%s0 + $0x328] sm:$0xff]
  %v120 = vld [vmem:[%s0 + $0x330] sm:$0xff]
  %v121 = vld [vmem:[%s0 + $0x338] sm:$0xff]
  %v122 = vld [vmem:[%s0 + $0x340] sm:$0xff]
  %v123 = vld [vmem:[%s0 + $0x348] sm:$0xff]
  %v124 = vld [vmem:[%s0 + $0x350] sm:$0xff]
  %v125 = vld [vmem:[%s0 + $0x358] sm:$0xff]
  %v126 = vld [vmem:[%s0 + $0x360] sm:$0xff]
  %v127 = vld [vmem:[%s0 + $0x368] sm:$0xff]
  %v128 = vld [vmem:[%s0 + $0x370] sm:$0xff]
  %v129 = vld [vmem:[%s0 + $0x378] sm:$0xff]
  %v130 = vld [vmem:[%s0 + $0x380] sm:$0xff]
  %v131 = vld [vmem:[%s0 + $0x388] sm:$0xff]
  %v132 = vld [vmem:[%s0 + $0x390] sm:$0xff]
  %v133 = vld [vmem:[%s0 + $0x398] sm:$0xff]
  %v134 = vld [vmem:[%s0 + $0x3a0] sm:$0xff]
  %v135 = vld [vmem:[%s0 + $0x3a8] sm:$0xff]
  %v136 = vld [vmem:[%s0 + $0x3b0] sm:$0xff]
  %v137 = vld [vmem:[%s0 + $0x3b8] sm:$0xff]
  %v138 = vld [vmem:[%s0 + $0x3c0] sm:$0xff]
  %v139 = vld [vmem:[%s0 + $0x3c8] sm:$0xff]
  %v140 = vld [vmem:[%s0 + $0x3d0] sm:$0xff]
  %v141 = vld [vmem:[%s0 + $0x3d8] sm:$0xff]
  %v142 = vld [vmem:[%s0 + $0x3e0] sm:$0xff]
  %v143 = vld [vmem:[%s0 + $0x3e8] sm:$0xff]
  %v144 = vld [vmem:[%s0 + $0x3f0] sm:$0xff]
  %v145 = vld [vmem:[%s0 + $0x3f8] sm:$0xff]
  %v146 = vpack.c.bf16 %v19, %v18
  %v147 = vpack.c.bf16 %v21, %v20
  %v148 = vpack.c.bf16 %v23, %v22
  %v149 = vpack.c.bf16 %v25, %v24
  %v150 = vpack.c.bf16 %v27, %v26
  %v151 = vpack.c.bf16 %v29, %v28
  %v152 = vpack.c.bf16 %v31, %v30
  %v153 = vpack.c.bf16 %v33, %v32
  %v154 = vpack.c.bf16 %v35, %v34
  %v155 = vpack.c.bf16 %v37, %v36
  %v156 = vpack.c.bf16 %v39, %v38
  %v157 = vpack.c.bf16 %v41, %v40
  %v158 = vpack.c.bf16 %v43, %v42
  %v159 = vpack.c.bf16 %v45, %v44
  %v160 = vpack.c.bf16 %v47, %v46
  %v161 = vpack.c.bf16 %v49, %v48
  %v162 = vpack.c.bf16 %v51, %v50
  %v163 = vpack.c.bf16 %v53, %v52
  %v164 = vpack.c.bf16 %v55, %v54
  %v165 = vpack.c.bf16 %v57, %v56
  %v166 = vpack.c.bf16 %v59, %v58
  %v167 = vpack.c.bf16 %v61, %v60
  %v168 = vpack.c.bf16 %v63, %v62
  %v169 = vpack.c.bf16 %v65, %v64
  %v170 = vpack.c.bf16 %v67, %v66
  %v171 = vpack.c.bf16 %v69, %v68
  %v172 = vpack.c.bf16 %v71, %v70
  %v173 = vpack.c.bf16 %v73, %v72
  %v174 = vpack.c.bf16 %v75, %v74
  %v175 = vpack.c.bf16 %v77, %v76
  %v176 = vpack.c.bf16 %v79, %v78
  %v177 = vpack.c.bf16 %v81, %v80
  %v178 = vpack.c.bf16 %v83, %v82
  %v179 = vpack.c.bf16 %v85, %v84
  %v180 = vpack.c.bf16 %v87, %v86
  %v181 = vpack.c.bf16 %v89, %v88
  %v182 = vpack.c.bf16 %v91, %v90
  %v183 = vpack.c.bf16 %v93, %v92
  %v184 = vpack.c.bf16 %v95, %v94
  %v185 = vpack.c.bf16 %v97, %v96
  %v186 = vpack.c.bf16 %v99, %v98
  %v187 = vpack.c.bf16 %v101, %v100
  %v188 = vpack.c.bf16 %v103, %v102
  %v189 = vpack.c.bf16 %v105, %v104
  %v190 = vpack.c.bf16 %v107, %v106
  %v191 = vpack.c.bf16 %v109, %v108
  %v192 = vpack.c.bf16 %v111, %v110
  %v193 = vpack.c.bf16 %v113, %v112
  %v194 = vpack.c.bf16 %v115, %v114
  %v195 = vpack.c.bf16 %v117, %v116
  %v196 = vpack.c.bf16 %v119, %v118
  %v197 = vpack.c.bf16 %v121, %v120
  %v198 = vpack.c.bf16 %v123, %v122
  %v199 = vpack.c.bf16 %v125, %v124
  %v200 = vpack.c.bf16 %v127, %v126
  %v201 = vpack.c.bf16 %v129, %v128
  %v202 = vpack.c.bf16 %v131, %v130
  %v203 = vpack.c.bf16 %v133, %v132
  %v204 = vpack.c.bf16 %v135, %v134
  %v205 = vpack.c.bf16 %v137, %v136
  %v206 = vpack.c.bf16 %v139, %v138
  %v207 = vpack.c.bf16 %v141, %v140
  %v208 = vpack.c.bf16 %v143, %v142
  %v209 = vpack.c.bf16 %v145, %v144
  %v210 = vld [vmem:[%s2] sm:$0x3]
  %v211 = vld [vmem:[%s3] sm:$0x1]
  %v213 = vlaneseq
  %v214 = vshrl.u32 %v213, 7
  %v215 = vsub.s32 0, %v214
  %v216 = vrot.slane %v211, %v215
  %vm218 = vcmask 23552
  %v220 = vsel %vm218, %v146, 0
  %v223 = vsel %vm218, %v147, 0
  %v226 = vsel %vm218, %v148, 0
  %v229 = vsel %vm218, %v149, 0
  %v232 = vsel %vm218, %v150, 0
  %v235 = vsel %vm218, %v151, 0
  %v238 = vsel %vm218, %v152, 0
  %v241 = vsel %vm218, %v153, 0
  %v244 = vsel %vm218, %v154, 0
  %v247 = vsel %vm218, %v155, 0
  %v250 = vsel %vm218, %v156, 0
  %v253 = vsel %vm218, %v157, 0
  %v256 = vsel %vm218, %v158, 0
  %v259 = vsel %vm218, %v159, 0
  %v262 = vsel %vm218, %v160, 0
  %v265 = vsel %vm218, %v161, 0
  %v268 = vsel %vm218, %v162, 0
  %v271 = vsel %vm218, %v163, 0
  %v274 = vsel %vm218, %v164, 0
  %v277 = vsel %vm218, %v165, 0
  %v280 = vsel %vm218, %v166, 0
  %v283 = vsel %vm218, %v167, 0
  %v286 = vsel %vm218, %v168, 0
  %v289 = vsel %vm218, %v169, 0
  %v292 = vsel %vm218, %v170, 0
  %v295 = vsel %vm218, %v171, 0
  %v298 = vsel %vm218, %v172, 0
  %v301 = vsel %vm218, %v173, 0
  %v304 = vsel %vm218, %v174, 0
  %v307 = vsel %vm218, %v175, 0
  %v310 = vsel %vm218, %v176, 0
  %v313 = vsel %vm218, %v177, 0
  %v316 = vsel %vm218, %v178, 0
  %v319 = vsel %vm218, %v179, 0
  %v322 = vsel %vm218, %v180, 0
  %v325 = vsel %vm218, %v181, 0
  %v328 = vsel %vm218, %v182, 0
  %v331 = vsel %vm218, %v183, 0
  %v334 = vsel %vm218, %v184, 0
  %v337 = vsel %vm218, %v185, 0
  %v340 = vsel %vm218, %v186, 0
  %v343 = vsel %vm218, %v187, 0
  %v346 = vsel %vm218, %v188, 0
  %v349 = vsel %vm218, %v189, 0
  %v352 = vsel %vm218, %v190, 0
  %v355 = vsel %vm218, %v191, 0
  %v358 = vsel %vm218, %v192, 0
  %v361 = vsel %vm218, %v193, 0
  %v364 = vsel %vm218, %v194, 0
  %v367 = vsel %vm218, %v195, 0
  %v370 = vsel %vm218, %v196, 0
  %v373 = vsel %vm218, %v197, 0
  %v376 = vsel %vm218, %v198, 0
  %v379 = vsel %vm218, %v199, 0
  %v382 = vsel %vm218, %v200, 0
  %v385 = vsel %vm218, %v201, 0
  %v388 = vsel %vm218, %v202, 0
  %v391 = vsel %vm218, %v203, 0
  %v394 = vsel %vm218, %v204, 0
  %v397 = vsel %vm218, %v205, 0
  %v400 = vsel %vm218, %v206, 0
  %v403 = vsel %vm218, %v207, 0
  %v406 = vsel %vm218, %v208, 0
  %v409 = vsel %vm218, %v209, 0
  %vm411 = vcmask 1040384
  %vm412 = vcmask 1041408
  %v413 = vsel %vm411, 4294967295, 65535
  %v414 = vsel %vm412, %v413, 0
  %v416 = vand.u32 %v210, %v414
  %418 = vmatprep.subr.bf16.mxu0 0
  %419 = vmatpush1.bf16.msra.mxu0 0
  %420 = vmatprep.subr.bf16.mxu0 0
  %421 = vmatpush1.bf16.msra.mxu0 0
  %422 = vmatprep.subr.bf16.mxu0 0
  %423 = vmatpush1.bf16.msra.mxu0 0
  %424 = vmatprep.subr.bf16.mxu0 0
  %425 = vmatpush1.bf16.msra.mxu0 0
  %426 = vmatprep.subr.bf16.mxu0 0
  %427 = vmatpush1.bf16.msra.mxu0 0
  %428 = vmatprep.subr.bf16.mxu0 0
  %429 = vmatpush1.bf16.msra.mxu0 0
  %430 = vmatprep.subr.bf16.mxu0 0
  %431 = vmatpush1.bf16.msra.mxu0 0
  %432 = vmatprep.subr.bf16.mxu0 0
  %433 = vmatpush1.bf16.msra.mxu0 %v416
  %434 = vmatprep.subr.bf16.mxu0 0
  %435 = vmatpush2.bf16.msra.mxu0 0
  %436 = vmatprep.subr.bf16.mxu0 0
  %437 = vmatpush2.bf16.msra.mxu0 0
  %438 = vmatprep.subr.bf16.mxu0 0
  %439 = vmatpush2.bf16.msra.mxu0 0
  %440 = vmatprep.subr.bf16.mxu0 0
  %441 = vmatpush2.bf16.msra.mxu0 0
  %442 = vmatprep.subr.bf16.mxu0 0
  %443 = vmatpush2.bf16.msra.mxu0 0
  %444 = vmatprep.subr.bf16.mxu0 0
  %445 = vmatpush2.bf16.msra.mxu0 0
  %446 = vmatprep.subr.bf16.mxu0 0
  %447 = vmatpush2.bf16.msra.mxu0 0
  %448 = vmatprep.subr.bf16.mxu0 0
  %449 = vmatpush2.bf16.msra.mxu0 0
  %450 = vmatprep.mubr.bf16.mxu0 0
  %451 = vmatmul.mubr.bf16.gmra.mxu0 %v220
  %v452 = vpop.f32.mrf.mxu0
  %v453 = vadd.f32 %v216, %v452
  %v454 = vpop.f32.mrf.mxu0
  %v455 = vpop.f32.mrf.mxu0
  %v456 = vadd.f32 %v216, %v455
  %v457 = vpop.f32.mrf.mxu0
  %458 = vmatprep.mubr.bf16.mxu0 0
  %459 = vmatmul.mubr.bf16.gmra.mxu0 %v223
  %v460 = vpop.f32.mrf.mxu0
  %v461 = vadd.f32 %v216, %v460
  %v462 = vpop.f32.mrf.mxu0
  %v463 = vpop.f32.mrf.mxu0
  %v464 = vadd.f32 %v216, %v463
  %v465 = vpop.f32.mrf.mxu0
  %466 = vmatprep.mubr.bf16.mxu0 0
  %467 = vmatmul.mubr.bf16.gmra.mxu0 %v226
  %v468 = vpop.f32.mrf.mxu0
  %v469 = vadd.f32 %v216, %v468
  %v470 = vpop.f32.mrf.mxu0
  %v471 = vpop.f32.mrf.mxu0
  %v472 = vadd.f32 %v216, %v471
  %v473 = vpop.f32.mrf.mxu0
  %474 = vmatprep.mubr.bf16.mxu0 0
  %475 = vmatmul.mubr.bf16.gmra.mxu0 %v229
  %v476 = vpop.f32.mrf.mxu0
  %v477 = vadd.f32 %v216, %v476
  %v478 = vpop.f32.mrf.mxu0
  %v479 = vpop.f32.mrf.mxu0
  %v480 = vadd.f32 %v216, %v479
  %v481 = vpop.f32.mrf.mxu0
  %482 = vmatprep.mubr.bf16.mxu0 0
  %483 = vmatmul.mubr.bf16.gmra.mxu0 %v232
  %v484 = vpop.f32.mrf.mxu0
  %v485 = vadd.f32 %v216, %v484
  %v486 = vpop.f32.mrf.mxu0
  %v487 = vpop.f32.mrf.mxu0
  %v488 = vadd.f32 %v216, %v487
  %v489 = vpop.f32.mrf.mxu0
  %490 = vmatprep.mubr.bf16.mxu0 0
  %491 = vmatmul.mubr.bf16.gmra.mxu0 %v235
  %v492 = vpop.f32.mrf.mxu0
  %v493 = vadd.f32 %v216, %v492
  %v494 = vpop.f32.mrf.mxu0
  %v495 = vpop.f32.mrf.mxu0
  %v496 = vadd.f32 %v216, %v495
  %v497 = vpop.f32.mrf.mxu0
  %498 = vmatprep.mubr.bf16.mxu0 0
  %499 = vmatmul.mubr.bf16.gmra.mxu0 %v238
  %v500 = vpop.f32.mrf.mxu0
  %v501 = vadd.f32 %v216, %v500
  %v502 = vpop.f32.mrf.mxu0
  %v503 = vpop.f32.mrf.mxu0
  %v504 = vadd.f32 %v216, %v503
  %v505 = vpop.f32.mrf.mxu0
  %506 = vmatprep.mubr.bf16.mxu0 0
  %507 = vmatmul.mubr.bf16.gmra.mxu0 %v241
  %v508 = vpop.f32.mrf.mxu0
  %v509 = vadd.f32 %v216, %v508
  %v510 = vpop.f32.mrf.mxu0
  %v511 = vpop.f32.mrf.mxu0
  %v512 = vadd.f32 %v216, %v511
  %v513 = vpop.f32.mrf.mxu0
  %514 = vmatprep.mubr.bf16.mxu0 0
  %515 = vmatmul.mubr.bf16.gmra.mxu0 %v244
  %v516 = vpop.f32.mrf.mxu0
  %v517 = vadd.f32 %v216, %v516
  %v518 = vpop.f32.mrf.mxu0
  %v519 = vpop.f32.mrf.mxu0
  %v520 = vadd.f32 %v216, %v519
  %v521 = vpop.f32.mrf.mxu0
  %522 = vmatprep.mubr.bf16.mxu0 0
  %523 = vmatmul.mubr.bf16.gmra.mxu0 %v247
  %v524 = vpop.f32.mrf.mxu0
  %v525 = vadd.f32 %v216, %v524
  %v526 = vpop.f32.mrf.mxu0
  %v527 = vpop.f32.mrf.mxu0
  %v528 = vadd.f32 %v216, %v527
  %v529 = vpop.f32.mrf.mxu0
  %530 = vmatprep.mubr.bf16.mxu0 0
  %531 = vmatmul.mubr.bf16.gmra.mxu0 %v250
  %v532 = vpop.f32.mrf.mxu0
  %v533 = vadd.f32 %v216, %v532
  %v534 = vpop.f32.mrf.mxu0
  %v535 = vpop.f32.mrf.mxu0
  %v536 = vadd.f32 %v216, %v535
  %v537 = vpop.f32.mrf.mxu0
  %538 = vmatprep.mubr.bf16.mxu0 0
  %539 = vmatmul.mubr.bf16.gmra.mxu0 %v253
  %v540 = vpop.f32.mrf.mxu0
  %v541 = vadd.f32 %v216, %v540
  %v542 = vpop.f32.mrf.mxu0
  %v543 = vpop.f32.mrf.mxu0
  %v544 = vadd.f32 %v216, %v543
  %v545 = vpop.f32.mrf.mxu0
  %546 = vmatprep.mubr.bf16.mxu0 0
  %547 = vmatmul.mubr.bf16.gmra.mxu0 %v256
  %v548 = vpop.f32.mrf.mxu0
  %v549 = vadd.f32 %v216, %v548
  %v550 = vpop.f32.mrf.mxu0
  %v551 = vpop.f32.mrf.mxu0
  %v552 = vadd.f32 %v216, %v551
  %v553 = vpop.f32.mrf.mxu0
  %554 = vmatprep.mubr.bf16.mxu0 0
  %555 = vmatmul.mubr.bf16.gmra.mxu0 %v259
  %v556 = vpop.f32.mrf.mxu0
  %v557 = vadd.f32 %v216, %v556
  %v558 = vpop.f32.mrf.mxu0
  %v559 = vpop.f32.mrf.mxu0
  %v560 = vadd.f32 %v216, %v559
  %v561 = vpop.f32.mrf.mxu0
  %562 = vmatprep.mubr.bf16.mxu0 0
  %563 = vmatmul.mubr.bf16.gmra.mxu0 %v262
  %v564 = vpop.f32.mrf.mxu0
  %v565 = vadd.f32 %v216, %v564
  %v566 = vpop.f32.mrf.mxu0
  %v567 = vpop.f32.mrf.mxu0
  %v568 = vadd.f32 %v216, %v567
  %v569 = vpop.f32.mrf.mxu0
  %570 = vmatprep.mubr.bf16.mxu0 0
  %571 = vmatmul.mubr.bf16.gmra.mxu0 %v265
  %v572 = vpop.f32.mrf.mxu0
  %v573 = vadd.f32 %v216, %v572
  %v574 = vpop.f32.mrf.mxu0
  %v575 = vpop.f32.mrf.mxu0
  %v576 = vadd.f32 %v216, %v575
  %v577 = vpop.f32.mrf.mxu0
  %578 = vmatprep.mubr.bf16.mxu0 0
  %579 = vmatmul.mubr.bf16.gmra.mxu0 %v268
  %v580 = vpop.f32.mrf.mxu0
  %v581 = vadd.f32 %v216, %v580
  %v582 = vpop.f32.mrf.mxu0
  %v583 = vpop.f32.mrf.mxu0
  %v584 = vadd.f32 %v216, %v583
  %v585 = vpop.f32.mrf.mxu0
  %586 = vmatprep.mubr.bf16.mxu0 0
  %587 = vmatmul.mubr.bf16.gmra.mxu0 %v271
  %v588 = vpop.f32.mrf.mxu0
  %v589 = vadd.f32 %v216, %v588
  %v590 = vpop.f32.mrf.mxu0
  %v591 = vpop.f32.mrf.mxu0
  %v592 = vadd.f32 %v216, %v591
  %v593 = vpop.f32.mrf.mxu0
  %594 = vmatprep.mubr.bf16.mxu0 0
  %595 = vmatmul.mubr.bf16.gmra.mxu0 %v274
  %v596 = vpop.f32.mrf.mxu0
  %v597 = vadd.f32 %v216, %v596
  %v598 = vpop.f32.mrf.mxu0
  %v599 = vpop.f32.mrf.mxu0
  %v600 = vadd.f32 %v216, %v599
  %v601 = vpop.f32.mrf.mxu0
  %602 = vmatprep.mubr.bf16.mxu0 0
  %603 = vmatmul.mubr.bf16.gmra.mxu0 %v277
  %v604 = vpop.f32.mrf.mxu0
  %v605 = vadd.f32 %v216, %v604
  %v606 = vpop.f32.mrf.mxu0
  %v607 = vpop.f32.mrf.mxu0
  %v608 = vadd.f32 %v216, %v607
  %v609 = vpop.f32.mrf.mxu0
  %610 = vmatprep.mubr.bf16.mxu0 0
  %611 = vmatmul.mubr.bf16.gmra.mxu0 %v280
  %v612 = vpop.f32.mrf.mxu0
  %v613 = vadd.f32 %v216, %v612
  %v614 = vpop.f32.mrf.mxu0
  %v615 = vpop.f32.mrf.mxu0
  %v616 = vadd.f32 %v216, %v615
  %v617 = vpop.f32.mrf.mxu0
  %618 = vmatprep.mubr.bf16.mxu0 0
  %619 = vmatmul.mubr.bf16.gmra.mxu0 %v283
  %v620 = vpop.f32.mrf.mxu0
  %v621 = vadd.f32 %v216, %v620
  %v622 = vpop.f32.mrf.mxu0
  %v623 = vpop.f32.mrf.mxu0
  %v624 = vadd.f32 %v216, %v623
  %v625 = vpop.f32.mrf.mxu0
  %626 = vmatprep.mubr.bf16.mxu0 0
  %627 = vmatmul.mubr.bf16.gmra.mxu0 %v286
  %v628 = vpop.f32.mrf.mxu0
  %v629 = vadd.f32 %v216, %v628
  %v630 = vpop.f32.mrf.mxu0
  %v631 = vpop.f32.mrf.mxu0
  %v632 = vadd.f32 %v216, %v631
  %v633 = vpop.f32.mrf.mxu0
  %634 = vmatprep.mubr.bf16.mxu0 0
  %635 = vmatmul.mubr.bf16.gmra.mxu0 %v289
  %v636 = vpop.f32.mrf.mxu0
  %v637 = vadd.f32 %v216, %v636
  %v638 = vpop.f32.mrf.mxu0
  %v639 = vpop.f32.mrf.mxu0
  %v640 = vadd.f32 %v216, %v639
  %v641 = vpop.f32.mrf.mxu0
  %642 = vmatprep.mubr.bf16.mxu0 0
  %643 = vmatmul.mubr.bf16.gmra.mxu0 %v292
  %v644 = vpop.f32.mrf.mxu0
  %v645 = vadd.f32 %v216, %v644
  %v646 = vpop.f32.mrf.mxu0
  %v647 = vpop.f32.mrf.mxu0
  %v648 = vadd.f32 %v216, %v647
  %v649 = vpop.f32.mrf.mxu0
  %650 = vmatprep.mubr.bf16.mxu0 0
  %651 = vmatmul.mubr.bf16.gmra.mxu0 %v295
  %v652 = vpop.f32.mrf.mxu0
  %v653 = vadd.f32 %v216, %v652
  %v654 = vpop.f32.mrf.mxu0
  %v655 = vpop.f32.mrf.mxu0
  %v656 = vadd.f32 %v216, %v655
  %v657 = vpop.f32.mrf.mxu0
  %658 = vmatprep.mubr.bf16.mxu0 0
  %659 = vmatmul.mubr.bf16.gmra.mxu0 %v298
  %v660 = vpop.f32.mrf.mxu0
  %v661 = vadd.f32 %v216, %v660
  %v662 = vpop.f32.mrf.mxu0
  %v663 = vpop.f32.mrf.mxu0
  %v664 = vadd.f32 %v216, %v663
  %v665 = vpop.f32.mrf.mxu0
  %666 = vmatprep.mubr.bf16.mxu0 0
  %667 = vmatmul.mubr.bf16.gmra.mxu0 %v301
  %v668 = vpop.f32.mrf.mxu0
  %v669 = vadd.f32 %v216, %v668
  %v670 = vpop.f32.mrf.mxu0
  %v671 = vpop.f32.mrf.mxu0
  %v672 = vadd.f32 %v216, %v671
  %v673 = vpop.f32.mrf.mxu0
  %674 = vmatprep.mubr.bf16.mxu0 0
  %675 = vmatmul.mubr.bf16.gmra.mxu0 %v304
  %v676 = vpop.f32.mrf.mxu0
  %v677 = vadd.f32 %v216, %v676
  %v678 = vpop.f32.mrf.mxu0
  %v679 = vpop.f32.mrf.mxu0
  %v680 = vadd.f32 %v216, %v679
  %v681 = vpop.f32.mrf.mxu0
  %682 = vmatprep.mubr.bf16.mxu0 0
  %683 = vmatmul.mubr.bf16.gmra.mxu0 %v307
  %v684 = vpop.f32.mrf.mxu0
  %v685 = vadd.f32 %v216, %v684
  %v686 = vpop.f32.mrf.mxu0
  %v687 = vpop.f32.mrf.mxu0
  %v688 = vadd.f32 %v216, %v687
  %v689 = vpop.f32.mrf.mxu0
  %690 = vmatprep.mubr.bf16.mxu0 0
  %691 = vmatmul.mubr.bf16.gmra.mxu0 %v310
  %v692 = vpop.f32.mrf.mxu0
  %v693 = vadd.f32 %v216, %v692
  %v694 = vpop.f32.mrf.mxu0
  %v695 = vpop.f32.mrf.mxu0
  %v696 = vadd.f32 %v216, %v695
  %v697 = vpop.f32.mrf.mxu0
  %698 = vmatprep.mubr.bf16.mxu0 0
  %699 = vmatmul.mubr.bf16.gmra.mxu0 %v313
  %v700 = vpop.f32.mrf.mxu0
  %v701 = vadd.f32 %v216, %v700
  %v702 = vpop.f32.mrf.mxu0
  %v703 = vpop.f32.mrf.mxu0
  %v704 = vadd.f32 %v216, %v703
  %v705 = vpop.f32.mrf.mxu0
  %706 = vmatprep.mubr.bf16.mxu0 0
  %707 = vmatmul.mubr.bf16.gmra.mxu0 %v316
  %v708 = vpop.f32.mrf.mxu0
  %v709 = vadd.f32 %v216, %v708
  %v710 = vpop.f32.mrf.mxu0
  %v711 = vpop.f32.mrf.mxu0
  %v712 = vadd.f32 %v216, %v711
  %v713 = vpop.f32.mrf.mxu0
  %714 = vmatprep.mubr.bf16.mxu0 0
  %715 = vmatmul.mubr.bf16.gmra.mxu0 %v319
  %v716 = vpop.f32.mrf.mxu0
  %v717 = vadd.f32 %v216, %v716
  %v718 = vpop.f32.mrf.mxu0
  %v719 = vpop.f32.mrf.mxu0
  %v720 = vadd.f32 %v216, %v719
  %v721 = vpop.f32.mrf.mxu0
  %722 = vmatprep.mubr.bf16.mxu0 0
  %723 = vmatmul.mubr.bf16.gmra.mxu0 %v322
  %v724 = vpop.f32.mrf.mxu0
  %v725 = vadd.f32 %v216, %v724
  %v726 = vpop.f32.mrf.mxu0
  %v727 = vpop.f32.mrf.mxu0
  %v728 = vadd.f32 %v216, %v727
  %v729 = vpop.f32.mrf.mxu0
  %730 = vmatprep.mubr.bf16.mxu0 0
  %731 = vmatmul.mubr.bf16.gmra.mxu0 %v325
  %v732 = vpop.f32.mrf.mxu0
  %v733 = vadd.f32 %v216, %v732
  %v734 = vpop.f32.mrf.mxu0
  %v735 = vpop.f32.mrf.mxu0
  %v736 = vadd.f32 %v216, %v735
  %v737 = vpop.f32.mrf.mxu0
  %738 = vmatprep.mubr.bf16.mxu0 0
  %739 = vmatmul.mubr.bf16.gmra.mxu0 %v328
  %v740 = vpop.f32.mrf.mxu0
  %v741 = vadd.f32 %v216, %v740
  %v742 = vpop.f32.mrf.mxu0
  %v743 = vpop.f32.mrf.mxu0
  %v744 = vadd.f32 %v216, %v743
  %v745 = vpop.f32.mrf.mxu0
  %746 = vmatprep.mubr.bf16.mxu0 0
  %747 = vmatmul.mubr.bf16.gmra.mxu0 %v331
  %v748 = vpop.f32.mrf.mxu0
  %v749 = vadd.f32 %v216, %v748
  %v750 = vpop.f32.mrf.mxu0
  %v751 = vpop.f32.mrf.mxu0
  %v752 = vadd.f32 %v216, %v751
  %v753 = vpop.f32.mrf.mxu0
  %754 = vmatprep.mubr.bf16.mxu0 0
  %755 = vmatmul.mubr.bf16.gmra.mxu0 %v334
  %v756 = vpop.f32.mrf.mxu0
  %v757 = vadd.f32 %v216, %v756
  %v758 = vpop.f32.mrf.mxu0
  %v759 = vpop.f32.mrf.mxu0
  %v760 = vadd.f32 %v216, %v759
  %v761 = vpop.f32.mrf.mxu0
  %762 = vmatprep.mubr.bf16.mxu0 0
  %763 = vmatmul.mubr.bf16.gmra.mxu0 %v337
  %v764 = vpop.f32.mrf.mxu0
  %v765 = vadd.f32 %v216, %v764
  %v766 = vpop.f32.mrf.mxu0
  %v767 = vpop.f32.mrf.mxu0
  %v768 = vadd.f32 %v216, %v767
  %v769 = vpop.f32.mrf.mxu0
  %770 = vmatprep.mubr.bf16.mxu0 0
  %771 = vmatmul.mubr.bf16.gmra.mxu0 %v340
  %v772 = vpop.f32.mrf.mxu0
  %v773 = vadd.f32 %v216, %v772
  %v774 = vpop.f32.mrf.mxu0
  %v775 = vpop.f32.mrf.mxu0
  %v776 = vadd.f32 %v216, %v775
  %v777 = vpop.f32.mrf.mxu0
  %778 = vmatprep.mubr.bf16.mxu0 0
  %779 = vmatmul.mubr.bf16.gmra.mxu0 %v343
  %v780 = vpop.f32.mrf.mxu0
  %v781 = vadd.f32 %v216, %v780
  %v782 = vpop.f32.mrf.mxu0
  %v783 = vpop.f32.mrf.mxu0
  %v784 = vadd.f32 %v216, %v783
  %v785 = vpop.f32.mrf.mxu0
  %786 = vmatprep.mubr.bf16.mxu0 0
  %787 = vmatmul.mubr.bf16.gmra.mxu0 %v346
  %v788 = vpop.f32.mrf.mxu0
  %v789 = vadd.f32 %v216, %v788
  %v790 = vpop.f32.mrf.mxu0
  %v791 = vpop.f32.mrf.mxu0
  %v792 = vadd.f32 %v216, %v791
  %v793 = vpop.f32.mrf.mxu0
  %794 = vmatprep.mubr.bf16.mxu0 0
  %795 = vmatmul.mubr.bf16.gmra.mxu0 %v349
  %v796 = vpop.f32.mrf.mxu0
  %v797 = vadd.f32 %v216, %v796
  %v798 = vpop.f32.mrf.mxu0
  %v799 = vpop.f32.mrf.mxu0
  %v800 = vadd.f32 %v216, %v799
  %v801 = vpop.f32.mrf.mxu0
  %802 = vmatprep.mubr.bf16.mxu0 0
  %803 = vmatmul.mubr.bf16.gmra.mxu0 %v352
  %v804 = vpop.f32.mrf.mxu0
  %v805 = vadd.f32 %v216, %v804
  %v806 = vpop.f32.mrf.mxu0
  %v807 = vpop.f32.mrf.mxu0
  %v808 = vadd.f32 %v216, %v807
  %v809 = vpop.f32.mrf.mxu0
  %810 = vmatprep.mubr.bf16.mxu0 0
  %811 = vmatmul.mubr.bf16.gmra.mxu0 %v355
  %v812 = vpop.f32.mrf.mxu0
  %v813 = vadd.f32 %v216, %v812
  %v814 = vpop.f32.mrf.mxu0
  %v815 = vpop.f32.mrf.mxu0
  %v816 = vadd.f32 %v216, %v815
  %v817 = vpop.f32.mrf.mxu0
  %818 = vmatprep.mubr.bf16.mxu0 0
  %819 = vmatmul.mubr.bf16.gmra.mxu0 %v358
  %v820 = vpop.f32.mrf.mxu0
  %v821 = vadd.f32 %v216, %v820
  %v822 = vpop.f32.mrf.mxu0
  %v823 = vpop.f32.mrf.mxu0
  %v824 = vadd.f32 %v216, %v823
  %v825 = vpop.f32.mrf.mxu0
  %826 = vmatprep.mubr.bf16.mxu0 0
  %827 = vmatmul.mubr.bf16.gmra.mxu0 %v361
  %v828 = vpop.f32.mrf.mxu0
  %v829 = vadd.f32 %v216, %v828
  %v830 = vpop.f32.mrf.mxu0
  %v831 = vpop.f32.mrf.mxu0
  %v832 = vadd.f32 %v216, %v831
  %v833 = vpop.f32.mrf.mxu0
  %834 = vmatprep.mubr.bf16.mxu0 0
  %835 = vmatmul.mubr.bf16.gmra.mxu0 %v364
  %v836 = vpop.f32.mrf.mxu0
  %v837 = vadd.f32 %v216, %v836
  %v838 = vpop.f32.mrf.mxu0
  %v839 = vpop.f32.mrf.mxu0
  %v840 = vadd.f32 %v216, %v839
  %v841 = vpop.f32.mrf.mxu0
  %842 = vmatprep.mubr.bf16.mxu0 0
  %843 = vmatmul.mubr.bf16.gmra.mxu0 %v367
  %v844 = vpop.f32.mrf.mxu0
  %v845 = vadd.f32 %v216, %v844
  %v846 = vpop.f32.mrf.mxu0
  %v847 = vpop.f32.mrf.mxu0
  %v848 = vadd.f32 %v216, %v847
  %v849 = vpop.f32.mrf.mxu0
  %850 = vmatprep.mubr.bf16.mxu0 0
  %851 = vmatmul.mubr.bf16.gmra.mxu0 %v370
  %v852 = vpop.f32.mrf.mxu0
  %v853 = vadd.f32 %v216, %v852
  %v854 = vpop.f32.mrf.mxu0
  %v855 = vpop.f32.mrf.mxu0
  %v856 = vadd.f32 %v216, %v855
  %v857 = vpop.f32.mrf.mxu0
  %858 = vmatprep.mubr.bf16.mxu0 0
  %859 = vmatmul.mubr.bf16.gmra.mxu0 %v373
  %v860 = vpop.f32.mrf.mxu0
  %v861 = vadd.f32 %v216, %v860
  %v862 = vpop.f32.mrf.mxu0
  %v863 = vpop.f32.mrf.mxu0
  %v864 = vadd.f32 %v216, %v863
  %v865 = vpop.f32.mrf.mxu0
  %866 = vmatprep.mubr.bf16.mxu0 0
  %867 = vmatmul.mubr.bf16.gmra.mxu0 %v376
  %v868 = vpop.f32.mrf.mxu0
  %v869 = vadd.f32 %v216, %v868
  %v870 = vpop.f32.mrf.mxu0
  %v871 = vpop.f32.mrf.mxu0
  %v872 = vadd.f32 %v216, %v871
  %v873 = vpop.f32.mrf.mxu0
  %874 = vmatprep.mubr.bf16.mxu0 0
  %875 = vmatmul.mubr.bf16.gmra.mxu0 %v379
  %v876 = vpop.f32.mrf.mxu0
  %v877 = vadd.f32 %v216, %v876
  %v878 = vpop.f32.mrf.mxu0
  %v879 = vpop.f32.mrf.mxu0
  %v880 = vadd.f32 %v216, %v879
  %v881 = vpop.f32.mrf.mxu0
  %882 = vmatprep.mubr.bf16.mxu0 0
  %883 = vmatmul.mubr.bf16.gmra.mxu0 %v382
  %v884 = vpop.f32.mrf.mxu0
  %v885 = vadd.f32 %v216, %v884
  %v886 = vpop.f32.mrf.mxu0
  %v887 = vpop.f32.mrf.mxu0
  %v888 = vadd.f32 %v216, %v887
  %v889 = vpop.f32.mrf.mxu0
  %890 = vmatprep.mubr.bf16.mxu0 0
  %891 = vmatmul.mubr.bf16.gmra.mxu0 %v385
  %v892 = vpop.f32.mrf.mxu0
  %v893 = vadd.f32 %v216, %v892
  %v894 = vpop.f32.mrf.mxu0
  %v895 = vpop.f32.mrf.mxu0
  %v896 = vadd.f32 %v216, %v895
  %v897 = vpop.f32.mrf.mxu0
  %898 = vmatprep.mubr.bf16.mxu0 0
  %899 = vmatmul.mubr.bf16.gmra.mxu0 %v388
  %v900 = vpop.f32.mrf.mxu0
  %v901 = vadd.f32 %v216, %v900
  %v902 = vpop.f32.mrf.mxu0
  %v903 = vpop.f32.mrf.mxu0
  %v904 = vadd.f32 %v216, %v903
  %v905 = vpop.f32.mrf.mxu0
  %906 = vmatprep.mubr.bf16.mxu0 0
  %907 = vmatmul.mubr.bf16.gmra.mxu0 %v391
  %v908 = vpop.f32.mrf.mxu0
  %v909 = vadd.f32 %v216, %v908
  %v910 = vpop.f32.mrf.mxu0
  %v911 = vpop.f32.mrf.mxu0
  %v912 = vadd.f32 %v216, %v911
  %v913 = vpop.f32.mrf.mxu0
  %914 = vmatprep.mubr.bf16.mxu0 0
  %915 = vmatmul.mubr.bf16.gmra.mxu0 %v394
  %v916 = vpop.f32.mrf.mxu0
  %v917 = vadd.f32 %v216, %v916
  %v918 = vpop.f32.mrf.mxu0
  %v919 = vpop.f32.mrf.mxu0
  %v920 = vadd.f32 %v216, %v919
  %v921 = vpop.f32.mrf.mxu0
  %922 = vmatprep.mubr.bf16.mxu0 0
  %923 = vmatmul.mubr.bf16.gmra.mxu0 %v397
  %v924 = vpop.f32.mrf.mxu0
  %v925 = vadd.f32 %v216, %v924
  %v926 = vpop.f32.mrf.mxu0
  %v927 = vpop.f32.mrf.mxu0
  %v928 = vadd.f32 %v216, %v927
  %v929 = vpop.f32.mrf.mxu0
  %930 = vmatprep.mubr.bf16.mxu0 0
  %931 = vmatmul.mubr.bf16.gmra.mxu0 %v400
  %v932 = vpop.f32.mrf.mxu0
  %v933 = vadd.f32 %v216, %v932
  %v934 = vpop.f32.mrf.mxu0
  %v935 = vpop.f32.mrf.mxu0
  %v936 = vadd.f32 %v216, %v935
  %v937 = vpop.f32.mrf.mxu0
  %938 = vmatprep.mubr.bf16.mxu0 0
  %939 = vmatmul.mubr.bf16.gmra.mxu0 %v403
  %v940 = vpop.f32.mrf.mxu0
  %v941 = vadd.f32 %v216, %v940
  %v942 = vpop.f32.mrf.mxu0
  %v943 = vpop.f32.mrf.mxu0
  %v944 = vadd.f32 %v216, %v943
  %v945 = vpop.f32.mrf.mxu0
  %946 = vmatprep.mubr.bf16.mxu0 0
  %947 = vmatmul.mubr.bf16.gmra.mxu0 %v406
  %v948 = vpop.f32.mrf.mxu0
  %v949 = vadd.f32 %v216, %v948
  %v950 = vpop.f32.mrf.mxu0
  %v951 = vpop.f32.mrf.mxu0
  %v952 = vadd.f32 %v216, %v951
  %v953 = vpop.f32.mrf.mxu0
  %954 = vmatprep.mubr.bf16.mxu0 0
  %955 = vmatmul.mubr.bf16.gmra.mxu0 %v409
  %v956 = vpop.f32.mrf.mxu0
  %v957 = vadd.f32 %v216, %v956
  %v958 = vpop.f32.mrf.mxu0
  %v959 = vpop.f32.mrf.mxu0
  %v960 = vadd.f32 %v216, %v959
  %v961 = vpop.f32.mrf.mxu0
  %962 = vdwg.mxu0
  %v963 = vxor.u32 %v453, 2147483648
  %v964 = vxor.u32 %v456, 2147483648
  %v965 = vxor.u32 %v461, 2147483648
  %v966 = vxor.u32 %v464, 2147483648
  %v967 = vxor.u32 %v469, 2147483648
  %v968 = vxor.u32 %v472, 2147483648
  %v969 = vxor.u32 %v477, 2147483648
  %v970 = vxor.u32 %v480, 2147483648
  %v971 = vxor.u32 %v485, 2147483648
  %v972 = vxor.u32 %v488, 2147483648
  %v973 = vxor.u32 %v493, 2147483648
  %v974 = vxor.u32 %v496, 2147483648
  %v975 = vxor.u32 %v501, 2147483648
  %v976 = vxor.u32 %v504, 2147483648
  %v977 = vxor.u32 %v509, 2147483648
  %v978 = vxor.u32 %v512, 2147483648
  %v979 = vxor.u32 %v517, 2147483648
  %v980 = vxor.u32 %v520, 2147483648
  %v981 = vxor.u32 %v525, 2147483648
  %v982 = vxor.u32 %v528, 2147483648
  %v983 = vxor.u32 %v533, 2147483648
  %v984 = vxor.u32 %v536, 2147483648
  %v985 = vxor.u32 %v541, 2147483648
  %v986 = vxor.u32 %v544, 2147483648
  %v987 = vxor.u32 %v549, 2147483648
  %v988 = vxor.u32 %v552, 2147483648
  %v989 = vxor.u32 %v557, 2147483648
  %v990 = vxor.u32 %v560, 2147483648
  %v991 = vxor.u32 %v565, 2147483648
  %v992 = vxor.u32 %v568, 2147483648
  %v993 = vxor.u32 %v573, 2147483648
  %v994 = vxor.u32 %v576, 2147483648
  %v995 = vxor.u32 %v581, 2147483648
  %v996 = vxor.u32 %v584, 2147483648
  %v997 = vxor.u32 %v589, 2147483648
  %v998 = vxor.u32 %v592, 2147483648
  %v999 = vxor.u32 %v597, 2147483648
  %v1000 = vxor.u32 %v600, 2147483648
  %v1001 = vxor.u32 %v605, 2147483648
  %v1002 = vxor.u32 %v608, 2147483648
  %v1003 = vxor.u32 %v613, 2147483648
  %v1004 = vxor.u32 %v616, 2147483648
  %v1005 = vxor.u32 %v621, 2147483648
  %v1006 = vxor.u32 %v624, 2147483648
  %v1007 = vxor.u32 %v629, 2147483648
  %v1008 = vxor.u32 %v632, 2147483648
  %v1009 = vxor.u32 %v637, 2147483648
  %v1010 = vxor.u32 %v640, 2147483648
  %v1011 = vxor.u32 %v645, 2147483648
  %v1012 = vxor.u32 %v648, 2147483648
  %v1013 = vxor.u32 %v653, 2147483648
  %v1014 = vxor.u32 %v656, 2147483648
  %v1015 = vxor.u32 %v661, 2147483648
  %v1016 = vxor.u32 %v664, 2147483648
  %v1017 = vxor.u32 %v669, 2147483648
  %v1018 = vxor.u32 %v672, 2147483648
  %v1019 = vxor.u32 %v677, 2147483648
  %v1020 = vxor.u32 %v680, 2147483648
  %v1021 = vxor.u32 %v685, 2147483648
  %v1022 = vxor.u32 %v688, 2147483648
  %v1023 = vxor.u32 %v693, 2147483648
  %v1024 = vxor.u32 %v696, 2147483648
  %v1025 = vxor.u32 %v701, 2147483648
  %v1026 = vxor.u32 %v704, 2147483648
  %v1027 = vxor.u32 %v709, 2147483648
  %v1028 = vxor.u32 %v712, 2147483648
  %v1029 = vxor.u32 %v717, 2147483648
  %v1030 = vxor.u32 %v720, 2147483648
  %v1031 = vxor.u32 %v725, 2147483648
  %v1032 = vxor.u32 %v728, 2147483648
  %v1033 = vxor.u32 %v733, 2147483648
  %v1034 = vxor.u32 %v736, 2147483648
  %v1035 = vxor.u32 %v741, 2147483648
  %v1036 = vxor.u32 %v744, 2147483648
  %v1037 = vxor.u32 %v749, 2147483648
  %v1038 = vxor.u32 %v752, 2147483648
  %v1039 = vxor.u32 %v757, 2147483648
  %v1040 = vxor.u32 %v760, 2147483648
  %v1041 = vxor.u32 %v765, 2147483648
  %v1042 = vxor.u32 %v768, 2147483648
  %v1043 = vxor.u32 %v773, 2147483648
  %v1044 = vxor.u32 %v776, 2147483648
  %v1045 = vxor.u32 %v781, 2147483648
  %v1046 = vxor.u32 %v784, 2147483648
  %v1047 = vxor.u32 %v789, 2147483648
  %v1048 = vxor.u32 %v792, 2147483648
  %v1049 = vxor.u32 %v797, 2147483648
  %v1050 = vxor.u32 %v800, 2147483648
  %v1051 = vxor.u32 %v805, 2147483648
  %v1052 = vxor.u32 %v808, 2147483648
  %v1053 = vxor.u32 %v813, 2147483648
  %v1054 = vxor.u32 %v816, 2147483648
  %v1055 = vxor.u32 %v821, 2147483648
  %v1056 = vxor.u32 %v824, 2147483648
  %v1057 = vxor.u32 %v829, 2147483648
  %v1058 = vxor.u32 %v832, 2147483648
  %v1059 = vxor.u32 %v837, 2147483648
  %v1060 = vxor.u32 %v840, 2147483648
  %v1061 = vxor.u32 %v845, 2147483648
  %v1062 = vxor.u32 %v848, 2147483648
  %v1063 = vxor.u32 %v853, 2147483648
  %v1064 = vxor.u32 %v856, 2147483648
  %v1065 = vxor.u32 %v861, 2147483648
  %v1066 = vxor.u32 %v864, 2147483648
  %v1067 = vxor.u32 %v869, 2147483648
  %v1068 = vxor.u32 %v872, 2147483648
  %v1069 = vxor.u32 %v877, 2147483648
  %v1070 = vxor.u32 %v880, 2147483648
  %v1071 = vxor.u32 %v885, 2147483648
  %v1072 = vxor.u32 %v888, 2147483648
  %v1073 = vxor.u32 %v893, 2147483648
  %v1074 = vxor.u32 %v896, 2147483648
  %v1075 = vxor.u32 %v901, 2147483648
  %v1076 = vxor.u32 %v904, 2147483648
  %v1077 = vxor.u32 %v909, 2147483648
  %v1078 = vxor.u32 %v912, 2147483648
  %v1079 = vxor.u32 %v917, 2147483648
  %v1080 = vxor.u32 %v920, 2147483648
  %v1081 = vxor.u32 %v925, 2147483648
  %v1082 = vxor.u32 %v928, 2147483648
  %v1083 = vxor.u32 %v933, 2147483648
  %v1084 = vxor.u32 %v936, 2147483648
  %v1085 = vxor.u32 %v941, 2147483648
  %v1086 = vxor.u32 %v944, 2147483648
  %v1087 = vxor.u32 %v949, 2147483648
  %v1088 = vxor.u32 %v952, 2147483648
  %v1089 = vxor.u32 %v957, 2147483648
  %v1090 = vxor.u32 %v960, 2147483648
  %v1091 = vmul.f32 %v963, 1.442695
  %v1092 = vpow.pop %v1091
  %v1093 = vmul.f32 %v964, 1.442695
  %v1094 = vpow.pop %v1093
  %v1095 = vmul.f32 %v965, 1.442695
  %v1096 = vpow.pop %v1095
  %v1097 = vmul.f32 %v966, 1.442695
  %v1098 = vpow.pop %v1097
  %v1099 = vmul.f32 %v967, 1.442695
  %v1100 = vpow.pop %v1099
  %v1101 = vmul.f32 %v968, 1.442695
  %v1102 = vpow.pop %v1101
  %v1103 = vmul.f32 %v969, 1.442695
  %v1104 = vpow.pop %v1103
  %v1105 = vmul.f32 %v970, 1.442695
  %v1106 = vpow.pop %v1105
  %v1107 = vmul.f32 %v971, 1.442695
  %v1108 = vpow.pop %v1107
  %v1109 = vmul.f32 %v972, 1.442695
  %v1110 = vpow.pop %v1109
  %v1111 = vmul.f32 %v973, 1.442695
  %v1112 = vpow.pop %v1111
  %v1113 = vmul.f32 %v974, 1.442695
  %v1114 = vpow.pop %v1113
  %v1115 = vmul.f32 %v975, 1.442695
  %v1116 = vpow.pop %v1115
  %v1117 = vmul.f32 %v976, 1.442695
  %v1118 = vpow.pop %v1117
  %v1119 = vmul.f32 %v977, 1.442695
  %v1120 = vpow.pop %v1119
  %v1121 = vmul.f32 %v978, 1.442695
  %v1122 = vpow.pop %v1121
  %v1123 = vmul.f32 %v979, 1.442695
  %v1124 = vpow.pop %v1123
  %v1125 = vmul.f32 %v980, 1.442695
  %v1126 = vpow.pop %v1125
  %v1127 = vmul.f32 %v981, 1.442695
  %v1128 = vpow.pop %v1127
  %v1129 = vmul.f32 %v982, 1.442695
  %v1130 = vpow.pop %v1129
  %v1131 = vmul.f32 %v983, 1.442695
  %v1132 = vpow.pop %v1131
  %v1133 = vmul.f32 %v984, 1.442695
  %v1134 = vpow.pop %v1133
  %v1135 = vmul.f32 %v985, 1.442695
  %v1136 = vpow.pop %v1135
  %v1137 = vmul.f32 %v986, 1.442695
  %v1138 = vpow.pop %v1137
  %v1139 = vmul.f32 %v987, 1.442695
  %v1140 = vpow.pop %v1139
  %v1141 = vmul.f32 %v988, 1.442695
  %v1142 = vpow.pop %v1141
  %v1143 = vmul.f32 %v989, 1.442695
  %v1144 = vpow.pop %v1143
  %v1145 = vmul.f32 %v990, 1.442695
  %v1146 = vpow.pop %v1145
  %v1147 = vmul.f32 %v991, 1.442695
  %v1148 = vpow.pop %v1147
  %v1149 = vmul.f32 %v992, 1.442695
  %v1150 = vpow.pop %v1149
  %v1151 = vmul.f32 %v993, 1.442695
  %v1152 = vpow.pop %v1151
  %v1153 = vmul.f32 %v994, 1.442695
  %v1154 = vpow.pop %v1153
  %v1155 = vmul.f32 %v995, 1.442695
  %v1156 = vpow.pop %v1155
  %v1157 = vmul.f32 %v996, 1.442695
  %v1158 = vpow.pop %v1157
  %v1159 = vmul.f32 %v997, 1.442695
  %v1160 = vpow.pop %v1159
  %v1161 = vmul.f32 %v998, 1.442695
  %v1162 = vpow.pop %v1161
  %v1163 = vmul.f32 %v999, 1.442695
  %v1164 = vpow.pop %v1163
  %v1165 = vmul.f32 %v1000, 1.442695
  %v1166 = vpow.pop %v1165
  %v1167 = vmul.f32 %v1001, 1.442695
  %v1168 = vpow.pop %v1167
  %v1169 = vmul.f32 %v1002, 1.442695
  %v1170 = vpow.pop %v1169
  %v1171 = vmul.f32 %v1003, 1.442695
  %v1172 = vpow.pop %v1171
  %v1173 = vmul.f32 %v1004, 1.442695
  %v1174 = vpow.pop %v1173
  %v1175 = vmul.f32 %v1005, 1.442695
  %v1176 = vpow.pop %v1175
  %v1177 = vmul.f32 %v1006, 1.442695
  %v1178 = vpow.pop %v1177
  %v1179 = vmul.f32 %v1007, 1.442695
  %v1180 = vpow.pop %v1179
  %v1181 = vmul.f32 %v1008, 1.442695
  %v1182 = vpow.pop %v1181
  %v1183 = vmul.f32 %v1009, 1.442695
  %v1184 = vpow.pop %v1183
  %v1185 = vmul.f32 %v1010, 1.442695
  %v1186 = vpow.pop %v1185
  %v1187 = vmul.f32 %v1011, 1.442695
  %v1188 = vpow.pop %v1187
  %v1189 = vmul.f32 %v1012, 1.442695
  %v1190 = vpow.pop %v1189
  %v1191 = vmul.f32 %v1013, 1.442695
  %v1192 = vpow.pop %v1191
  %v1193 = vmul.f32 %v1014, 1.442695
  %v1194 = vpow.pop %v1193
  %v1195 = vmul.f32 %v1015, 1.442695
  %v1196 = vpow.pop %v1195
  %v1197 = vmul.f32 %v1016, 1.442695
  %v1198 = vpow.pop %v1197
  %v1199 = vmul.f32 %v1017, 1.442695
  %v1200 = vpow.pop %v1199
  %v1201 = vmul.f32 %v1018, 1.442695
  %v1202 = vpow.pop %v1201
  %v1203 = vmul.f32 %v1019, 1.442695
  %v1204 = vpow.pop %v1203
  %v1205 = vmul.f32 %v1020, 1.442695
  %v1206 = vpow.pop %v1205
  %v1207 = vmul.f32 %v1021, 1.442695
  %v1208 = vpow.pop %v1207
  %v1209 = vmul.f32 %v1022, 1.442695
  %v1210 = vpow.pop %v1209
  %v1211 = vmul.f32 %v1023, 1.442695
  %v1212 = vpow.pop %v1211
  %v1213 = vmul.f32 %v1024, 1.442695
  %v1214 = vpow.pop %v1213
  %v1215 = vmul.f32 %v1025, 1.442695
  %v1216 = vpow.pop %v1215
  %v1217 = vmul.f32 %v1026, 1.442695
  %v1218 = vpow.pop %v1217
  %v1219 = vmul.f32 %v1027, 1.442695
  %v1220 = vpow.pop %v1219
  %v1221 = vmul.f32 %v1028, 1.442695
  %v1222 = vpow.pop %v1221
  %v1223 = vmul.f32 %v1029, 1.442695
  %v1224 = vpow.pop %v1223
  %v1225 = vmul.f32 %v1030, 1.442695
  %v1226 = vpow.pop %v1225
  %v1227 = vmul.f32 %v1031, 1.442695
  %v1228 = vpow.pop %v1227
  %v1229 = vmul.f32 %v1032, 1.442695
  %v1230 = vpow.pop %v1229
  %v1231 = vmul.f32 %v1033, 1.442695
  %v1232 = vpow.pop %v1231
  %v1233 = vmul.f32 %v1034, 1.442695
  %v1234 = vpow.pop %v1233
  %v1235 = vmul.f32 %v1035, 1.442695
  %v1236 = vpow.pop %v1235
  %v1237 = vmul.f32 %v1036, 1.442695
  %v1238 = vpow.pop %v1237
  %v1239 = vmul.f32 %v1037, 1.442695
  %v1240 = vpow.pop %v1239
  %v1241 = vmul.f32 %v1038, 1.442695
  %v1242 = vpow.pop %v1241
  %v1243 = vmul.f32 %v1039, 1.442695
  %v1244 = vpow.pop %v1243
  %v1245 = vmul.f32 %v1040, 1.442695
  %v1246 = vpow.pop %v1245
  %v1247 = vmul.f32 %v1041, 1.442695
  %v1248 = vpow.pop %v1247
  %v1249 = vmul.f32 %v1042, 1.442695
  %v1250 = vpow.pop %v1249
  %v1251 = vmul.f32 %v1043, 1.442695
  %v1252 = vpow.pop %v1251
  %v1253 = vmul.f32 %v1044, 1.442695
  %v1254 = vpow.pop %v1253
  %v1255 = vmul.f32 %v1045, 1.442695
  %v1256 = vpow.pop %v1255
  %v1257 = vmul.f32 %v1046, 1.442695
  %v1258 = vpow.pop %v1257
  %v1259 = vmul.f32 %v1047, 1.442695
  %v1260 = vpow.pop %v1259
  %v1261 = vmul.f32 %v1048, 1.442695
  %v1262 = vpow.pop %v1261
  %v1263 = vmul.f32 %v1049, 1.442695
  %v1264 = vpow.pop %v1263
  %v1265 = vmul.f32 %v1050, 1.442695
  %v1266 = vpow.pop %v1265
  %v1267 = vmul.f32 %v1051, 1.442695
  %v1268 = vpow.pop %v1267
  %v1269 = vmul.f32 %v1052, 1.442695
  %v1270 = vpow.pop %v1269
  %v1271 = vmul.f32 %v1053, 1.442695
  %v1272 = vpow.pop %v1271
  %v1273 = vmul.f32 %v1054, 1.442695
  %v1274 = vpow.pop %v1273
  %v1275 = vmul.f32 %v1055, 1.442695
  %v1276 = vpow.pop %v1275
  %v1277 = vmul.f32 %v1056, 1.442695
  %v1278 = vpow.pop %v1277
  %v1279 = vmul.f32 %v1057, 1.442695
  %v1280 = vpow.pop %v1279
  %v1281 = vmul.f32 %v1058, 1.442695
  %v1282 = vpow.pop %v1281
  %v1283 = vmul.f32 %v1059, 1.442695
  %v1284 = vpow.pop %v1283
  %v1285 = vmul.f32 %v1060, 1.442695
  %v1286 = vpow.pop %v1285
  %v1287 = vmul.f32 %v1061, 1.442695
  %v1288 = vpow.pop %v1287
  %v1289 = vmul.f32 %v1062, 1.442695
  %v1290 = vpow.pop %v1289
  %v1291 = vmul.f32 %v1063, 1.442695
  %v1292 = vpow.pop %v1291
  %v1293 = vmul.f32 %v1064, 1.442695
  %v1294 = vpow.pop %v1293
  %v1295 = vmul.f32 %v1065, 1.442695
  %v1296 = vpow.pop %v1295
  %v1297 = vmul.f32 %v1066, 1.442695
  %v1298 = vpow.pop %v1297
  %v1299 = vmul.f32 %v1067, 1.442695
  %v1300 = vpow.pop %v1299
  %v1301 = vmul.f32 %v1068, 1.442695
  %v1302 = vpow.pop %v1301
  %v1303 = vmul.f32 %v1069, 1.442695
  %v1304 = vpow.pop %v1303
  %v1305 = vmul.f32 %v1070, 1.442695
  %v1306 = vpow.pop %v1305
  %v1307 = vmul.f32 %v1071, 1.442695
  %v1308 = vpow.pop %v1307
  %v1309 = vmul.f32 %v1072, 1.442695
  %v1310 = vpow.pop %v1309
  %v1311 = vmul.f32 %v1073, 1.442695
  %v1312 = vpow.pop %v1311
  %v1313 = vmul.f32 %v1074, 1.442695
  %v1314 = vpow.pop %v1313
  %v1315 = vmul.f32 %v1075, 1.442695
  %v1316 = vpow.pop %v1315
  %v1317 = vmul.f32 %v1076, 1.442695
  %v1318 = vpow.pop %v1317
  %v1319 = vmul.f32 %v1077, 1.442695
  %v1320 = vpow.pop %v1319
  %v1321 = vmul.f32 %v1078, 1.442695
  %v1322 = vpow.pop %v1321
  %v1323 = vmul.f32 %v1079, 1.442695
  %v1324 = vpow.pop %v1323
  %v1325 = vmul.f32 %v1080, 1.442695
  %v1326 = vpow.pop %v1325
  %v1327 = vmul.f32 %v1081, 1.442695
  %v1328 = vpow.pop %v1327
  %v1329 = vmul.f32 %v1082, 1.442695
  %v1330 = vpow.pop %v1329
  %v1331 = vmul.f32 %v1083, 1.442695
  %v1332 = vpow.pop %v1331
  %v1333 = vmul.f32 %v1084, 1.442695
  %v1334 = vpow.pop %v1333
  %v1335 = vmul.f32 %v1085, 1.442695
  %v1336 = vpow.pop %v1335
  %v1337 = vmul.f32 %v1086, 1.442695
  %v1338 = vpow.pop %v1337
  %v1339 = vmul.f32 %v1087, 1.442695
  %v1340 = vpow.pop %v1339
  %v1341 = vmul.f32 %v1088, 1.442695
  %v1342 = vpow.pop %v1341
  %v1343 = vmul.f32 %v1089, 1.442695
  %v1344 = vpow.pop %v1343
  %v1345 = vmul.f32 %v1090, 1.442695
  %v1346 = vpow.pop %v1345
  %v1347 = vadd.f32 %v1092, 1.0
  %v1348 = vadd.f32 %v1094, 1.0
  %v1349 = vadd.f32 %v1096, 1.0
  %v1350 = vadd.f32 %v1098, 1.0
  %v1351 = vadd.f32 %v1100, 1.0
  %v1352 = vadd.f32 %v1102, 1.0
  %v1353 = vadd.f32 %v1104, 1.0
  %v1354 = vadd.f32 %v1106, 1.0
  %v1355 = vadd.f32 %v1108, 1.0
  %v1356 = vadd.f32 %v1110, 1.0
  %v1357 = vadd.f32 %v1112, 1.0
  %v1358 = vadd.f32 %v1114, 1.0
  %v1359 = vadd.f32 %v1116, 1.0
  %v1360 = vadd.f32 %v1118, 1.0
  %v1361 = vadd.f32 %v1120, 1.0
  %v1362 = vadd.f32 %v1122, 1.0
  %v1363 = vadd.f32 %v1124, 1.0
  %v1364 = vadd.f32 %v1126, 1.0
  %v1365 = vadd.f32 %v1128, 1.0
  %v1366 = vadd.f32 %v1130, 1.0
  %v1367 = vadd.f32 %v1132, 1.0
  %v1368 = vadd.f32 %v1134, 1.0
  %v1369 = vadd.f32 %v1136, 1.0
  %v1370 = vadd.f32 %v1138, 1.0
  %v1371 = vadd.f32 %v1140, 1.0
  %v1372 = vadd.f32 %v1142, 1.0
  %v1373 = vadd.f32 %v1144, 1.0
  %v1374 = vadd.f32 %v1146, 1.0
  %v1375 = vadd.f32 %v1148, 1.0
  %v1376 = vadd.f32 %v1150, 1.0
  %v1377 = vadd.f32 %v1152, 1.0
  %v1378 = vadd.f32 %v1154, 1.0
  %v1379 = vadd.f32 %v1156, 1.0
  %v1380 = vadd.f32 %v1158, 1.0
  %v1381 = vadd.f32 %v1160, 1.0
  %v1382 = vadd.f32 %v1162, 1.0
  %v1383 = vadd.f32 %v1164, 1.0
  %v1384 = vadd.f32 %v1166, 1.0
  %v1385 = vadd.f32 %v1168, 1.0
  %v1386 = vadd.f32 %v1170, 1.0
  %v1387 = vadd.f32 %v1172, 1.0
  %v1388 = vadd.f32 %v1174, 1.0
  %v1389 = vadd.f32 %v1176, 1.0
  %v1390 = vadd.f32 %v1178, 1.0
  %v1391 = vadd.f32 %v1180, 1.0
  %v1392 = vadd.f32 %v1182, 1.0
  %v1393 = vadd.f32 %v1184, 1.0
  %v1394 = vadd.f32 %v1186, 1.0
  %v1395 = vadd.f32 %v1188, 1.0
  %v1396 = vadd.f32 %v1190, 1.0
  %v1397 = vadd.f32 %v1192, 1.0
  %v1398 = vadd.f32 %v1194, 1.0
  %v1399 = vadd.f32 %v1196, 1.0
  %v1400 = vadd.f32 %v1198, 1.0
  %v1401 = vadd.f32 %v1200, 1.0
  %v1402 = vadd.f32 %v1202, 1.0
  %v1403 = vadd.f32 %v1204, 1.0
  %v1404 = vadd.f32 %v1206, 1.0
  %v1405 = vadd.f32 %v1208, 1.0
  %v1406 = vadd.f32 %v1210, 1.0
  %v1407 = vadd.f32 %v1212, 1.0
  %v1408 = vadd.f32 %v1214, 1.0
  %v1409 = vadd.f32 %v1216, 1.0
  %v1410 = vadd.f32 %v1218, 1.0
  %v1411 = vadd.f32 %v1220, 1.0
  %v1412 = vadd.f32 %v1222, 1.0
  %v1413 = vadd.f32 %v1224, 1.0
  %v1414 = vadd.f32 %v1226, 1.0
  %v1415 = vadd.f32 %v1228, 1.0
  %v1416 = vadd.f32 %v1230, 1.0
  %v1417 = vadd.f32 %v1232, 1.0
  %v1418 = vadd.f32 %v1234, 1.0
  %v1419 = vadd.f32 %v1236, 1.0
  %v1420 = vadd.f32 %v1238, 1.0
  %v1421 = vadd.f32 %v1240, 1.0
  %v1422 = vadd.f32 %v1242, 1.0
  %v1423 = vadd.f32 %v1244, 1.0
  %v1424 = vadd.f32 %v1246, 1.0
  %v1425 = vadd.f32 %v1248, 1.0
  %v1426 = vadd.f32 %v1250, 1.0
  %v1427 = vadd.f32 %v1252, 1.0
  %v1428 = vadd.f32 %v1254, 1.0
  %v1429 = vadd.f32 %v1256, 1.0
  %v1430 = vadd.f32 %v1258, 1.0
  %v1431 = vadd.f32 %v1260, 1.0
  %v1432 = vadd.f32 %v1262, 1.0
  %v1433 = vadd.f32 %v1264, 1.0
  %v1434 = vadd.f32 %v1266, 1.0
  %v1435 = vadd.f32 %v1268, 1.0
  %v1436 = vadd.f32 %v1270, 1.0
  %v1437 = vadd.f32 %v1272, 1.0
  %v1438 = vadd.f32 %v1274, 1.0
  %v1439 = vadd.f32 %v1276, 1.0
  %v1440 = vadd.f32 %v1278, 1.0
  %v1441 = vadd.f32 %v1280, 1.0
  %v1442 = vadd.f32 %v1282, 1.0
  %v1443 = vadd.f32 %v1284, 1.0
  %v1444 = vadd.f32 %v1286, 1.0
  %v1445 = vadd.f32 %v1288, 1.0
  %v1446 = vadd.f32 %v1290, 1.0
  %v1447 = vadd.f32 %v1292, 1.0
  %v1448 = vadd.f32 %v1294, 1.0
  %v1449 = vadd.f32 %v1296, 1.0
  %v1450 = vadd.f32 %v1298, 1.0
  %v1451 = vadd.f32 %v1300, 1.0
  %v1452 = vadd.f32 %v1302, 1.0
  %v1453 = vadd.f32 %v1304, 1.0
  %v1454 = vadd.f32 %v1306, 1.0
  %v1455 = vadd.f32 %v1308, 1.0
  %v1456 = vadd.f32 %v1310, 1.0
  %v1457 = vadd.f32 %v1312, 1.0
  %v1458 = vadd.f32 %v1314, 1.0
  %v1459 = vadd.f32 %v1316, 1.0
  %v1460 = vadd.f32 %v1318, 1.0
  %v1461 = vadd.f32 %v1320, 1.0
  %v1462 = vadd.f32 %v1322, 1.0
  %v1463 = vadd.f32 %v1324, 1.0
  %v1464 = vadd.f32 %v1326, 1.0
  %v1465 = vadd.f32 %v1328, 1.0
  %v1466 = vadd.f32 %v1330, 1.0
  %v1467 = vadd.f32 %v1332, 1.0
  %v1468 = vadd.f32 %v1334, 1.0
  %v1469 = vadd.f32 %v1336, 1.0
  %v1470 = vadd.f32 %v1338, 1.0
  %v1471 = vadd.f32 %v1340, 1.0
  %v1472 = vadd.f32 %v1342, 1.0
  %v1473 = vadd.f32 %v1344, 1.0
  %v1474 = vadd.f32 %v1346, 1.0
  %v1475 = vrcp.pop %v1347
  %v1476 = vmul.f32 1.0, %v1475
  %v1477 = vrcp.pop %v1348
  %v1478 = vmul.f32 1.0, %v1477
  %v1479 = vrcp.pop %v1349
  %v1480 = vmul.f32 1.0, %v1479
  %v1481 = vrcp.pop %v1350
  %v1482 = vmul.f32 1.0, %v1481
  %v1483 = vrcp.pop %v1351
  %v1484 = vmul.f32 1.0, %v1483
  %v1485 = vrcp.pop %v1352
  %v1486 = vmul.f32 1.0, %v1485
  %v1487 = vrcp.pop %v1353
  %v1488 = vmul.f32 1.0, %v1487
  %v1489 = vrcp.pop %v1354
  %v1490 = vmul.f32 1.0, %v1489
  %v1491 = vrcp.pop %v1355
  %v1492 = vmul.f32 1.0, %v1491
  %v1493 = vrcp.pop %v1356
  %v1494 = vmul.f32 1.0, %v1493
  %v1495 = vrcp.pop %v1357
  %v1496 = vmul.f32 1.0, %v1495
  %v1497 = vrcp.pop %v1358
  %v1498 = vmul.f32 1.0, %v1497
  %v1499 = vrcp.pop %v1359
  %v1500 = vmul.f32 1.0, %v1499
  %v1501 = vrcp.pop %v1360
  %v1502 = vmul.f32 1.0, %v1501
  %v1503 = vrcp.pop %v1361
  %v1504 = vmul.f32 1.0, %v1503
  %v1505 = vrcp.pop %v1362
  %v1506 = vmul.f32 1.0, %v1505
  %v1507 = vrcp.pop %v1363
  %v1508 = vmul.f32 1.0, %v1507
  %v1509 = vrcp.pop %v1364
  %v1510 = vmul.f32 1.0, %v1509
  %v1511 = vrcp.pop %v1365
  %v1512 = vmul.f32 1.0, %v1511
  %v1513 = vrcp.pop %v1366
  %v1514 = vmul.f32 1.0, %v1513
  %v1515 = vrcp.pop %v1367
  %v1516 = vmul.f32 1.0, %v1515
  %v1517 = vrcp.pop %v1368
  %v1518 = vmul.f32 1.0, %v1517
  %v1519 = vrcp.pop %v1369
  %v1520 = vmul.f32 1.0, %v1519
  %v1521 = vrcp.pop %v1370
  %v1522 = vmul.f32 1.0, %v1521
  %v1523 = vrcp.pop %v1371
  %v1524 = vmul.f32 1.0, %v1523
  %v1525 = vrcp.pop %v1372
  %v1526 = vmul.f32 1.0, %v1525
  %v1527 = vrcp.pop %v1373
  %v1528 = vmul.f32 1.0, %v1527
  %v1529 = vrcp.pop %v1374
  %v1530 = vmul.f32 1.0, %v1529
  %v1531 = vrcp.pop %v1375
  %v1532 = vmul.f32 1.0, %v1531
  %v1533 = vrcp.pop %v1376
  %v1534 = vmul.f32 1.0, %v1533
  %v1535 = vrcp.pop %v1377
  %v1536 = vmul.f32 1.0, %v1535
  %v1537 = vrcp.pop %v1378
  %v1538 = vmul.f32 1.0, %v1537
  %v1539 = vrcp.pop %v1379
  %v1540 = vmul.f32 1.0, %v1539
  %v1541 = vrcp.pop %v1380
  %v1542 = vmul.f32 1.0, %v1541
  %v1543 = vrcp.pop %v1381
  %v1544 = vmul.f32 1.0, %v1543
  %v1545 = vrcp.pop %v1382
  %v1546 = vmul.f32 1.0, %v1545
  %v1547 = vrcp.pop %v1383
  %v1548 = vmul.f32 1.0, %v1547
  %v1549 = vrcp.pop %v1384
  %v1550 = vmul.f32 1.0, %v1549
  %v1551 = vrcp.pop %v1385
  %v1552 = vmul.f32 1.0, %v1551
  %v1553 = vrcp.pop %v1386
  %v1554 = vmul.f32 1.0, %v1553
  %v1555 = vrcp.pop %v1387
  %v1556 = vmul.f32 1.0, %v1555
  %v1557 = vrcp.pop %v1388
  %v1558 = vmul.f32 1.0, %v1557
  %v1559 = vrcp.pop %v1389
  %v1560 = vmul.f32 1.0, %v1559
  %v1561 = vrcp.pop %v1390
  %v1562 = vmul.f32 1.0, %v1561
  %v1563 = vrcp.pop %v1391
  %v1564 = vmul.f32 1.0, %v1563
  %v1565 = vrcp.pop %v1392
  %v1566 = vmul.f32 1.0, %v1565
  %v1567 = vrcp.pop %v1393
  %v1568 = vmul.f32 1.0, %v1567
  %v1569 = vrcp.pop %v1394
  %v1570 = vmul.f32 1.0, %v1569
  %v1571 = vrcp.pop %v1395
  %v1572 = vmul.f32 1.0, %v1571
  %v1573 = vrcp.pop %v1396
  %v1574 = vmul.f32 1.0, %v1573
  %v1575 = vrcp.pop %v1397
  %v1576 = vmul.f32 1.0, %v1575
  %v1577 = vrcp.pop %v1398
  %v1578 = vmul.f32 1.0, %v1577
  %v1579 = vrcp.pop %v1399
  %v1580 = vmul.f32 1.0, %v1579
  %v1581 = vrcp.pop %v1400
  %v1582 = vmul.f32 1.0, %v1581
  %v1583 = vrcp.pop %v1401
  %v1584 = vmul.f32 1.0, %v1583
  %v1585 = vrcp.pop %v1402
  %v1586 = vmul.f32 1.0, %v1585
  %v1587 = vrcp.pop %v1403
  %v1588 = vmul.f32 1.0, %v1587
  %v1589 = vrcp.pop %v1404
  %v1590 = vmul.f32 1.0, %v1589
  %v1591 = vrcp.pop %v1405
  %v1592 = vmul.f32 1.0, %v1591
  %v1593 = vrcp.pop %v1406
  %v1594 = vmul.f32 1.0, %v1593
  %v1595 = vrcp.pop %v1407
  %v1596 = vmul.f32 1.0, %v1595
  %v1597 = vrcp.pop %v1408
  %v1598 = vmul.f32 1.0, %v1597
  %v1599 = vrcp.pop %v1409
  %v1600 = vmul.f32 1.0, %v1599
  %v1601 = vrcp.pop %v1410
  %v1602 = vmul.f32 1.0, %v1601
  %v1603 = vrcp.pop %v1411
  %v1604 = vmul.f32 1.0, %v1603
  %v1605 = vrcp.pop %v1412
  %v1606 = vmul.f32 1.0, %v1605
  %v1607 = vrcp.pop %v1413
  %v1608 = vmul.f32 1.0, %v1607
  %v1609 = vrcp.pop %v1414
  %v1610 = vmul.f32 1.0, %v1609
  %v1611 = vrcp.pop %v1415
  %v1612 = vmul.f32 1.0, %v1611
  %v1613 = vrcp.pop %v1416
  %v1614 = vmul.f32 1.0, %v1613
  %v1615 = vrcp.pop %v1417
  %v1616 = vmul.f32 1.0, %v1615
  %v1617 = vrcp.pop %v1418
  %v1618 = vmul.f32 1.0, %v1617
  %v1619 = vrcp.pop %v1419
  %v1620 = vmul.f32 1.0, %v1619
  %v1621 = vrcp.pop %v1420
  %v1622 = vmul.f32 1.0, %v1621
  %v1623 = vrcp.pop %v1421
  %v1624 = vmul.f32 1.0, %v1623
  %v1625 = vrcp.pop %v1422
  %v1626 = vmul.f32 1.0, %v1625
  %v1627 = vrcp.pop %v1423
  %v1628 = vmul.f32 1.0, %v1627
  %v1629 = vrcp.pop %v1424
  %v1630 = vmul.f32 1.0, %v1629
  %v1631 = vrcp.pop %v1425
  %v1632 = vmul.f32 1.0, %v1631
  %v1633 = vrcp.pop %v1426
  %v1634 = vmul.f32 1.0, %v1633
  %v1635 = vrcp.pop %v1427
  %v1636 = vmul.f32 1.0, %v1635
  %v1637 = vrcp.pop %v1428
  %v1638 = vmul.f32 1.0, %v1637
  %v1639 = vrcp.pop %v1429
  %v1640 = vmul.f32 1.0, %v1639
  %v1641 = vrcp.pop %v1430
  %v1642 = vmul.f32 1.0, %v1641
  %v1643 = vrcp.pop %v1431
  %v1644 = vmul.f32 1.0, %v1643
  %v1645 = vrcp.pop %v1432
  %v1646 = vmul.f32 1.0, %v1645
  %v1647 = vrcp.pop %v1433
  %v1648 = vmul.f32 1.0, %v1647
  %v1649 = vrcp.pop %v1434
  %v1650 = vmul.f32 1.0, %v1649
  %v1651 = vrcp.pop %v1435
  %v1652 = vmul.f32 1.0, %v1651
  %v1653 = vrcp.pop %v1436
  %v1654 = vmul.f32 1.0, %v1653
  %v1655 = vrcp.pop %v1437
  %v1656 = vmul.f32 1.0, %v1655
  %v1657 = vrcp.pop %v1438
  %v1658 = vmul.f32 1.0, %v1657
  %v1659 = vrcp.pop %v1439
  %v1660 = vmul.f32 1.0, %v1659
  %v1661 = vrcp.pop %v1440
  %v1662 = vmul.f32 1.0, %v1661
  %v1663 = vrcp.pop %v1441
  %v1664 = vmul.f32 1.0, %v1663
  %v1665 = vrcp.pop %v1442
  %v1666 = vmul.f32 1.0, %v1665
  %v1667 = vrcp.pop %v1443
  %v1668 = vmul.f32 1.0, %v1667
  %v1669 = vrcp.pop %v1444
  %v1670 = vmul.f32 1.0, %v1669
  %v1671 = vrcp.pop %v1445
  %v1672 = vmul.f32 1.0, %v1671
  %v1673 = vrcp.pop %v1446
  %v1674 = vmul.f32 1.0, %v1673
  %v1675 = vrcp.pop %v1447
  %v1676 = vmul.f32 1.0, %v1675
  %v1677 = vrcp.pop %v1448
  %v1678 = vmul.f32 1.0, %v1677
  %v1679 = vrcp.pop %v1449
  %v1680 = vmul.f32 1.0, %v1679
  %v1681 = vrcp.pop %v1450
  %v1682 = vmul.f32 1.0, %v1681
  %v1683 = vrcp.pop %v1451
  %v1684 = vmul.f32 1.0, %v1683
  %v1685 = vrcp.pop %v1452
  %v1686 = vmul.f32 1.0, %v1685
  %v1687 = vrcp.pop %v1453
  %v1688 = vmul.f32 1.0, %v1687
  %v1689 = vrcp.pop %v1454
  %v1690 = vmul.f32 1.0, %v1689
  %v1691 = vrcp.pop %v1455
  %v1692 = vmul.f32 1.0, %v1691
  %v1693 = vrcp.pop %v1456
  %v1694 = vmul.f32 1.0, %v1693
  %v1695 = vrcp.pop %v1457
  %v1696 = vmul.f32 1.0, %v1695
  %v1697 = vrcp.pop %v1458
  %v1698 = vmul.f32 1.0, %v1697
  %v1699 = vrcp.pop %v1459
  %v1700 = vmul.f32 1.0, %v1699
  %v1701 = vrcp.pop %v1460
  %v1702 = vmul.f32 1.0, %v1701
  %v1703 = vrcp.pop %v1461
  %v1704 = vmul.f32 1.0, %v1703
  %v1705 = vrcp.pop %v1462
  %v1706 = vmul.f32 1.0, %v1705
  %v1707 = vrcp.pop %v1463
  %v1708 = vmul.f32 1.0, %v1707
  %v1709 = vrcp.pop %v1464
  %v1710 = vmul.f32 1.0, %v1709
  %v1711 = vrcp.pop %v1465
  %v1712 = vmul.f32 1.0, %v1711
  %v1713 = vrcp.pop %v1466
  %v1714 = vmul.f32 1.0, %v1713
  %v1715 = vrcp.pop %v1467
  %v1716 = vmul.f32 1.0, %v1715
  %v1717 = vrcp.pop %v1468
  %v1718 = vmul.f32 1.0, %v1717
  %v1719 = vrcp.pop %v1469
  %v1720 = vmul.f32 1.0, %v1719
  %v1721 = vrcp.pop %v1470
  %v1722 = vmul.f32 1.0, %v1721
  %v1723 = vrcp.pop %v1471
  %v1724 = vmul.f32 1.0, %v1723
  %v1725 = vrcp.pop %v1472
  %v1726 = vmul.f32 1.0, %v1725
  %v1727 = vrcp.pop %v1473
  %v1728 = vmul.f32 1.0, %v1727
  %v1729 = vrcp.pop %v1474
  %v1730 = vmul.f32 1.0, %v1729
  %v1731 = vld [vmem:[%s1] sm:$0xff]
  %v1732 = vld [vmem:[%s1 + $0x8] sm:$0xff]
  %v1733 = vld [vmem:[%s1 + $0x10] sm:$0xff]
  %v1734 = vld [vmem:[%s1 + $0x18] sm:$0xff]
  %v1735 = vld [vmem:[%s1 + $0x20] sm:$0xff]
  %v1736 = vld [vmem:[%s1 + $0x28] sm:$0xff]
  %v1737 = vld [vmem:[%s1 + $0x30] sm:$0xff]
  %v1738 = vld [vmem:[%s1 + $0x38] sm:$0xff]
  %v1739 = vld [vmem:[%s1 + $0x40] sm:$0xff]
  %v1740 = vld [vmem:[%s1 + $0x48] sm:$0xff]
  %v1741 = vld [vmem:[%s1 + $0x50] sm:$0xff]
  %v1742 = vld [vmem:[%s1 + $0x58] sm:$0xff]
  %v1743 = vld [vmem:[%s1 + $0x60] sm:$0xff]
  %v1744 = vld [vmem:[%s1 + $0x68] sm:$0xff]
  %v1745 = vld [vmem:[%s1 + $0x70] sm:$0xff]
  %v1746 = vld [vmem:[%s1 + $0x78] sm:$0xff]
  %v1747 = vld [vmem:[%s1 + $0x80] sm:$0xff]
  %v1748 = vld [vmem:[%s1 + $0x88] sm:$0xff]
  %v1749 = vld [vmem:[%s1 + $0x90] sm:$0xff]
  %v1750 = vld [vmem:[%s1 + $0x98] sm:$0xff]
  %v1751 = vld [vmem:[%s1 + $0xa0] sm:$0xff]
  %v1752 = vld [vmem:[%s1 + $0xa8] sm:$0xff]
  %v1753 = vld [vmem:[%s1 + $0xb0] sm:$0xff]
  %v1754 = vld [vmem:[%s1 + $0xb8] sm:$0xff]
  %v1755 = vld [vmem:[%s1 + $0xc0] sm:$0xff]
  %v1756 = vld [vmem:[%s1 + $0xc8] sm:$0xff]
  %v1757 = vld [vmem:[%s1 + $0xd0] sm:$0xff]
  %v1758 = vld [vmem:[%s1 + $0xd8] sm:$0xff]
  %v1759 = vld [vmem:[%s1 + $0xe0] sm:$0xff]
  %v1760 = vld [vmem:[%s1 + $0xe8] sm:$0xff]
  %v1761 = vld [vmem:[%s1 + $0xf0] sm:$0xff]
  %v1762 = vld [vmem:[%s1 + $0xf8] sm:$0xff]
  %v1763 = vld [vmem:[%s1 + $0x100] sm:$0xff]
  %v1764 = vld [vmem:[%s1 + $0x108] sm:$0xff]
  %v1765 = vld [vmem:[%s1 + $0x110] sm:$0xff]
  %v1766 = vld [vmem:[%s1 + $0x118] sm:$0xff]
  %v1767 = vld [vmem:[%s1 + $0x120] sm:$0xff]
  %v1768 = vld [vmem:[%s1 + $0x128] sm:$0xff]
  %v1769 = vld [vmem:[%s1 + $0x130] sm:$0xff]
  %v1770 = vld [vmem:[%s1 + $0x138] sm:$0xff]
  %v1771 = vld [vmem:[%s1 + $0x140] sm:$0xff]
  %v1772 = vld [vmem:[%s1 + $0x148] sm:$0xff]
  %v1773 = vld [vmem:[%s1 + $0x150] sm:$0xff]
  %v1774 = vld [vmem:[%s1 + $0x158] sm:$0xff]
  %v1775 = vld [vmem:[%s1 + $0x160] sm:$0xff]
  %v1776 = vld [vmem:[%s1 + $0x168] sm:$0xff]
  %v1777 = vld [vmem:[%s1 + $0x170] sm:$0xff]
  %v1778 = vld [vmem:[%s1 + $0x178] sm:$0xff]
  %v1779 = vld [vmem:[%s1 + $0x180] sm:$0xff]
  %v1780 = vld [vmem:[%s1 + $0x188] sm:$0xff]
  %v1781 = vld [vmem:[%s1 + $0x190] sm:$0xff]
  %v1782 = vld [vmem:[%s1 + $0x198] sm:$0xff]
  %v1783 = vld [vmem:[%s1 + $0x1a0] sm:$0xff]
  %v1784 = vld [vmem:[%s1 + $0x1a8] sm:$0xff]
  %v1785 = vld [vmem:[%s1 + $0x1b0] sm:$0xff]
  %v1786 = vld [vmem:[%s1 + $0x1b8] sm:$0xff]
  %v1787 = vld [vmem:[%s1 + $0x1c0] sm:$0xff]
  %v1788 = vld [vmem:[%s1 + $0x1c8] sm:$0xff]
  %v1789 = vld [vmem:[%s1 + $0x1d0] sm:$0xff]
  %v1790 = vld [vmem:[%s1 + $0x1d8] sm:$0xff]
  %v1791 = vld [vmem:[%s1 + $0x1e0] sm:$0xff]
  %v1792 = vld [vmem:[%s1 + $0x1e8] sm:$0xff]
  %v1793 = vld [vmem:[%s1 + $0x1f0] sm:$0xff]
  %v1794 = vld [vmem:[%s1 + $0x1f8] sm:$0xff]
  %v1795 = vld [vmem:[%s1 + $0x200] sm:$0xff]
  %v1796 = vld [vmem:[%s1 + $0x208] sm:$0xff]
  %v1797 = vld [vmem:[%s1 + $0x210] sm:$0xff]
  %v1798 = vld [vmem:[%s1 + $0x218] sm:$0xff]
  %v1799 = vld [vmem:[%s1 + $0x220] sm:$0xff]
  %v1800 = vld [vmem:[%s1 + $0x228] sm:$0xff]
  %v1801 = vld [vmem:[%s1 + $0x230] sm:$0xff]
  %v1802 = vld [vmem:[%s1 + $0x238] sm:$0xff]
  %v1803 = vld [vmem:[%s1 + $0x240] sm:$0xff]
  %v1804 = vld [vmem:[%s1 + $0x248] sm:$0xff]
  %v1805 = vld [vmem:[%s1 + $0x250] sm:$0xff]
  %v1806 = vld [vmem:[%s1 + $0x258] sm:$0xff]
  %v1807 = vld [vmem:[%s1 + $0x260] sm:$0xff]
  %v1808 = vld [vmem:[%s1 + $0x268] sm:$0xff]
  %v1809 = vld [vmem:[%s1 + $0x270] sm:$0xff]
  %v1810 = vld [vmem:[%s1 + $0x278] sm:$0xff]
  %v1811 = vld [vmem:[%s1 + $0x280] sm:$0xff]
  %v1812 = vld [vmem:[%s1 + $0x288] sm:$0xff]
  %v1813 = vld [vmem:[%s1 + $0x290] sm:$0xff]
  %v1814 = vld [vmem:[%s1 + $0x298] sm:$0xff]
  %v1815 = vld [vmem:[%s1 + $0x2a0] sm:$0xff]
  %v1816 = vld [vmem:[%s1 + $0x2a8] sm:$0xff]
  %v1817 = vld [vmem:[%s1 + $0x2b0] sm:$0xff]
  %v1818 = vld [vmem:[%s1 + $0x2b8] sm:$0xff]
  %v1819 = vld [vmem:[%s1 + $0x2c0] sm:$0xff]
  %v1820 = vld [vmem:[%s1 + $0x2c8] sm:$0xff]
  %v1821 = vld [vmem:[%s1 + $0x2d0] sm:$0xff]
  %v1822 = vld [vmem:[%s1 + $0x2d8] sm:$0xff]
  %v1823 = vld [vmem:[%s1 + $0x2e0] sm:$0xff]
  %v1824 = vld [vmem:[%s1 + $0x2e8] sm:$0xff]
  %v1825 = vld [vmem:[%s1 + $0x2f0] sm:$0xff]
  %v1826 = vld [vmem:[%s1 + $0x2f8] sm:$0xff]
  %v1827 = vld [vmem:[%s1 + $0x300] sm:$0xff]
  %v1828 = vld [vmem:[%s1 + $0x308] sm:$0xff]
  %v1829 = vld [vmem:[%s1 + $0x310] sm:$0xff]
  %v1830 = vld [vmem:[%s1 + $0x318] sm:$0xff]
  %v1831 = vld [vmem:[%s1 + $0x320] sm:$0xff]
  %v1832 = vld [vmem:[%s1 + $0x328] sm:$0xff]
  %v1833 = vld [vmem:[%s1 + $0x330] sm:$0xff]
  %v1834 = vld [vmem:[%s1 + $0x338] sm:$0xff]
  %v1835 = vld [vmem:[%s1 + $0x340] sm:$0xff]
  %v1836 = vld [vmem:[%s1 + $0x348] sm:$0xff]
  %v1837 = vld [vmem:[%s1 + $0x350] sm:$0xff]
  %v1838 = vld [vmem:[%s1 + $0x358] sm:$0xff]
  %v1839 = vld [vmem:[%s1 + $0x360] sm:$0xff]
  %v1840 = vld [vmem:[%s1 + $0x368] sm:$0xff]
  %v1841 = vld [vmem:[%s1 + $0x370] sm:$0xff]
  %v1842 = vld [vmem:[%s1 + $0x378] sm:$0xff]
  %v1843 = vld [vmem:[%s1 + $0x380] sm:$0xff]
  %v1844 = vld [vmem:[%s1 + $0x388] sm:$0xff]
  %v1845 = vld [vmem:[%s1 + $0x390] sm:$0xff]
  %v1846 = vld [vmem:[%s1 + $0x398] sm:$0xff]
  %v1847 = vld [vmem:[%s1 + $0x3a0] sm:$0xff]
  %v1848 = vld [vmem:[%s1 + $0x3a8] sm:$0xff]
  %v1849 = vld [vmem:[%s1 + $0x3b0] sm:$0xff]
  %v1850 = vld [vmem:[%s1 + $0x3b8] sm:$0xff]
  %v1851 = vld [vmem:[%s1 + $0x3c0] sm:$0xff]
  %v1852 = vld [vmem:[%s1 + $0x3c8] sm:$0xff]
  %v1853 = vld [vmem:[%s1 + $0x3d0] sm:$0xff]
  %v1854 = vld [vmem:[%s1 + $0x3d8] sm:$0xff]
  %v1855 = vld [vmem:[%s1 + $0x3e0] sm:$0xff]
  %v1856 = vld [vmem:[%s1 + $0x3e8] sm:$0xff]
  %v1857 = vld [vmem:[%s1 + $0x3f0] sm:$0xff]
  %v1858 = vld [vmem:[%s1 + $0x3f8] sm:$0xff]
  %1860 = vset.pattern.permute.xlu0 0
  %1861 = vperm.xlu0 %1860, %v1731
  %v1862 = vpop.permute.xlu0 %1861
  %1865 = vset.pattern.permute.xlu0 0
  %1866 = vperm.xlu0 %1865, %v1732
  %v1867 = vpop.permute.xlu0 %1866
  %1870 = vset.pattern.permute.xlu0 0
  %1871 = vperm.xlu0 %1870, %v1733
  %v1872 = vpop.permute.xlu0 %1871
  %1875 = vset.pattern.permute.xlu0 0
  %1876 = vperm.xlu0 %1875, %v1734
  %v1877 = vpop.permute.xlu0 %1876
  %1880 = vset.pattern.permute.xlu0 0
  %1881 = vperm.xlu0 %1880, %v1735
  %v1882 = vpop.permute.xlu0 %1881
  %1885 = vset.pattern.permute.xlu0 0
  %1886 = vperm.xlu0 %1885, %v1736
  %v1887 = vpop.permute.xlu0 %1886
  %1890 = vset.pattern.permute.xlu0 0
  %1891 = vperm.xlu0 %1890, %v1737
  %v1892 = vpop.permute.xlu0 %1891
  %1895 = vset.pattern.permute.xlu0 0
  %1896 = vperm.xlu0 %1895, %v1738
  %v1897 = vpop.permute.xlu0 %1896
  %1900 = vset.pattern.permute.xlu0 0
  %1901 = vperm.xlu0 %1900, %v1739
  %v1902 = vpop.permute.xlu0 %1901
  %1905 = vset.pattern.permute.xlu0 0
  %1906 = vperm.xlu0 %1905, %v1740
  %v1907 = vpop.permute.xlu0 %1906
  %1910 = vset.pattern.permute.xlu0 0
  %1911 = vperm.xlu0 %1910, %v1741
  %v1912 = vpop.permute.xlu0 %1911
  %1915 = vset.pattern.permute.xlu0 0
  %1916 = vperm.xlu0 %1915, %v1742
  %v1917 = vpop.permute.xlu0 %1916
  %1920 = vset.pattern.permute.xlu0 0
  %1921 = vperm.xlu0 %1920, %v1743
  %v1922 = vpop.permute.xlu0 %1921
  %1925 = vset.pattern.permute.xlu0 0
  %1926 = vperm.xlu0 %1925, %v1744
  %v1927 = vpop.permute.xlu0 %1926
  %1930 = vset.pattern.permute.xlu0 0
  %1931 = vperm.xlu0 %1930, %v1745
  %v1932 = vpop.permute.xlu0 %1931
  %1935 = vset.pattern.permute.xlu0 0
  %1936 = vperm.xlu0 %1935, %v1746
  %v1937 = vpop.permute.xlu0 %1936
  %1940 = vset.pattern.permute.xlu0 0
  %1941 = vperm.xlu0 %1940, %v1747
  %v1942 = vpop.permute.xlu0 %1941
  %1945 = vset.pattern.permute.xlu0 0
  %1946 = vperm.xlu0 %1945, %v1748
  %v1947 = vpop.permute.xlu0 %1946
  %1950 = vset.pattern.permute.xlu0 0
  %1951 = vperm.xlu0 %1950, %v1749
  %v1952 = vpop.permute.xlu0 %1951
  %1955 = vset.pattern.permute.xlu0 0
  %1956 = vperm.xlu0 %1955, %v1750
  %v1957 = vpop.permute.xlu0 %1956
  %1960 = vset.pattern.permute.xlu0 0
  %1961 = vperm.xlu0 %1960, %v1751
  %v1962 = vpop.permute.xlu0 %1961
  %1965 = vset.pattern.permute.xlu0 0
  %1966 = vperm.xlu0 %1965, %v1752
  %v1967 = vpop.permute.xlu0 %1966
  %1970 = vset.pattern.permute.xlu0 0
  %1971 = vperm.xlu0 %1970, %v1753
  %v1972 = vpop.permute.xlu0 %1971
  %1975 = vset.pattern.permute.xlu0 0
  %1976 = vperm.xlu0 %1975, %v1754
  %v1977 = vpop.permute.xlu0 %1976
  %1980 = vset.pattern.permute.xlu0 0
  %1981 = vperm.xlu0 %1980, %v1755
  %v1982 = vpop.permute.xlu0 %1981
  %1985 = vset.pattern.permute.xlu0 0
  %1986 = vperm.xlu0 %1985, %v1756
  %v1987 = vpop.permute.xlu0 %1986
  %1990 = vset.pattern.permute.xlu0 0
  %1991 = vperm.xlu0 %1990, %v1757
  %v1992 = vpop.permute.xlu0 %1991
  %1995 = vset.pattern.permute.xlu0 0
  %1996 = vperm.xlu0 %1995, %v1758
  %v1997 = vpop.permute.xlu0 %1996
  %2000 = vset.pattern.permute.xlu0 0
  %2001 = vperm.xlu0 %2000, %v1759
  %v2002 = vpop.permute.xlu0 %2001
  %2005 = vset.pattern.permute.xlu0 0
  %2006 = vperm.xlu0 %2005, %v1760
  %v2007 = vpop.permute.xlu0 %2006
  %2010 = vset.pattern.permute.xlu0 0
  %2011 = vperm.xlu0 %2010, %v1761
  %v2012 = vpop.permute.xlu0 %2011
  %2015 = vset.pattern.permute.xlu0 0
  %2016 = vperm.xlu0 %2015, %v1762
  %v2017 = vpop.permute.xlu0 %2016
  %2020 = vset.pattern.permute.xlu0 0
  %2021 = vperm.xlu0 %2020, %v1763
  %v2022 = vpop.permute.xlu0 %2021
  %2025 = vset.pattern.permute.xlu0 0
  %2026 = vperm.xlu0 %2025, %v1764
  %v2027 = vpop.permute.xlu0 %2026
  %2030 = vset.pattern.permute.xlu0 0
  %2031 = vperm.xlu0 %2030, %v1765
  %v2032 = vpop.permute.xlu0 %2031
  %2035 = vset.pattern.permute.xlu0 0
  %2036 = vperm.xlu0 %2035, %v1766
  %v2037 = vpop.permute.xlu0 %2036
  %2040 = vset.pattern.permute.xlu0 0
  %2041 = vperm.xlu0 %2040, %v1767
  %v2042 = vpop.permute.xlu0 %2041
  %2045 = vset.pattern.permute.xlu0 0
  %2046 = vperm.xlu0 %2045, %v1768
  %v2047 = vpop.permute.xlu0 %2046
  %2050 = vset.pattern.permute.xlu0 0
  %2051 = vperm.xlu0 %2050, %v1769
  %v2052 = vpop.permute.xlu0 %2051
  %2055 = vset.pattern.permute.xlu0 0
  %2056 = vperm.xlu0 %2055, %v1770
  %v2057 = vpop.permute.xlu0 %2056
  %2060 = vset.pattern.permute.xlu0 0
  %2061 = vperm.xlu0 %2060, %v1771
  %v2062 = vpop.permute.xlu0 %2061
  %2065 = vset.pattern.permute.xlu0 0
  %2066 = vperm.xlu0 %2065, %v1772
  %v2067 = vpop.permute.xlu0 %2066
  %2070 = vset.pattern.permute.xlu0 0
  %2071 = vperm.xlu0 %2070, %v1773
  %v2072 = vpop.permute.xlu0 %2071
  %2075 = vset.pattern.permute.xlu0 0
  %2076 = vperm.xlu0 %2075, %v1774
  %v2077 = vpop.permute.xlu0 %2076
  %2080 = vset.pattern.permute.xlu0 0
  %2081 = vperm.xlu0 %2080, %v1775
  %v2082 = vpop.permute.xlu0 %2081
  %2085 = vset.pattern.permute.xlu0 0
  %2086 = vperm.xlu0 %2085, %v1776
  %v2087 = vpop.permute.xlu0 %2086
  %2090 = vset.pattern.permute.xlu0 0
  %2091 = vperm.xlu0 %2090, %v1777
  %v2092 = vpop.permute.xlu0 %2091
  %2095 = vset.pattern.permute.xlu0 0
  %2096 = vperm.xlu0 %2095, %v1778
  %v2097 = vpop.permute.xlu0 %2096
  %2100 = vset.pattern.permute.xlu0 0
  %2101 = vperm.xlu0 %2100, %v1779
  %v2102 = vpop.permute.xlu0 %2101
  %2105 = vset.pattern.permute.xlu0 0
  %2106 = vperm.xlu0 %2105, %v1780
  %v2107 = vpop.permute.xlu0 %2106
  %2110 = vset.pattern.permute.xlu0 0
  %2111 = vperm.xlu0 %2110, %v1781
  %v2112 = vpop.permute.xlu0 %2111
  %2115 = vset.pattern.permute.xlu0 0
  %2116 = vperm.xlu0 %2115, %v1782
  %v2117 = vpop.permute.xlu0 %2116
  %2120 = vset.pattern.permute.xlu0 0
  %2121 = vperm.xlu0 %2120, %v1783
  %v2122 = vpop.permute.xlu0 %2121
  %2125 = vset.pattern.permute.xlu0 0
  %2126 = vperm.xlu0 %2125, %v1784
  %v2127 = vpop.permute.xlu0 %2126
  %2130 = vset.pattern.permute.xlu0 0
  %2131 = vperm.xlu0 %2130, %v1785
  %v2132 = vpop.permute.xlu0 %2131
  %2135 = vset.pattern.permute.xlu0 0
  %2136 = vperm.xlu0 %2135, %v1786
  %v2137 = vpop.permute.xlu0 %2136
  %2140 = vset.pattern.permute.xlu0 0
  %2141 = vperm.xlu0 %2140, %v1787
  %v2142 = vpop.permute.xlu0 %2141
  %2145 = vset.pattern.permute.xlu0 0
  %2146 = vperm.xlu0 %2145, %v1788
  %v2147 = vpop.permute.xlu0 %2146
  %2150 = vset.pattern.permute.xlu0 0
  %2151 = vperm.xlu0 %2150, %v1789
  %v2152 = vpop.permute.xlu0 %2151
  %2155 = vset.pattern.permute.xlu0 0
  %2156 = vperm.xlu0 %2155, %v1790
  %v2157 = vpop.permute.xlu0 %2156
  %2160 = vset.pattern.permute.xlu0 0
  %2161 = vperm.xlu0 %2160, %v1791
  %v2162 = vpop.permute.xlu0 %2161
  %2165 = vset.pattern.permute.xlu0 0
  %2166 = vperm.xlu0 %2165, %v1792
  %v2167 = vpop.permute.xlu0 %2166
  %2170 = vset.pattern.permute.xlu0 0
  %2171 = vperm.xlu0 %2170, %v1793
  %v2172 = vpop.permute.xlu0 %2171
  %2175 = vset.pattern.permute.xlu0 0
  %2176 = vperm.xlu0 %2175, %v1794
  %v2177 = vpop.permute.xlu0 %2176
  %2180 = vset.pattern.permute.xlu0 0
  %2181 = vperm.xlu0 %2180, %v1795
  %v2182 = vpop.permute.xlu0 %2181
  %2185 = vset.pattern.permute.xlu0 0
  %2186 = vperm.xlu0 %2185, %v1796
  %v2187 = vpop.permute.xlu0 %2186
  %2190 = vset.pattern.permute.xlu0 0
  %2191 = vperm.xlu0 %2190, %v1797
  %v2192 = vpop.permute.xlu0 %2191
  %2195 = vset.pattern.permute.xlu0 0
  %2196 = vperm.xlu0 %2195, %v1798
  %v2197 = vpop.permute.xlu0 %2196
  %2200 = vset.pattern.permute.xlu0 0
  %2201 = vperm.xlu0 %2200, %v1799
  %v2202 = vpop.permute.xlu0 %2201
  %2205 = vset.pattern.permute.xlu0 0
  %2206 = vperm.xlu0 %2205, %v1800
  %v2207 = vpop.permute.xlu0 %2206
  %2210 = vset.pattern.permute.xlu0 0
  %2211 = vperm.xlu0 %2210, %v1801
  %v2212 = vpop.permute.xlu0 %2211
  %2215 = vset.pattern.permute.xlu0 0
  %2216 = vperm.xlu0 %2215, %v1802
  %v2217 = vpop.permute.xlu0 %2216
  %2220 = vset.pattern.permute.xlu0 0
  %2221 = vperm.xlu0 %2220, %v1803
  %v2222 = vpop.permute.xlu0 %2221
  %2225 = vset.pattern.permute.xlu0 0
  %2226 = vperm.xlu0 %2225, %v1804
  %v2227 = vpop.permute.xlu0 %2226
  %2230 = vset.pattern.permute.xlu0 0
  %2231 = vperm.xlu0 %2230, %v1805
  %v2232 = vpop.permute.xlu0 %2231
  %2235 = vset.pattern.permute.xlu0 0
  %2236 = vperm.xlu0 %2235, %v1806
  %v2237 = vpop.permute.xlu0 %2236
  %2240 = vset.pattern.permute.xlu0 0
  %2241 = vperm.xlu0 %2240, %v1807
  %v2242 = vpop.permute.xlu0 %2241
  %2245 = vset.pattern.permute.xlu0 0
  %2246 = vperm.xlu0 %2245, %v1808
  %v2247 = vpop.permute.xlu0 %2246
  %2250 = vset.pattern.permute.xlu0 0
  %2251 = vperm.xlu0 %2250, %v1809
  %v2252 = vpop.permute.xlu0 %2251
  %2255 = vset.pattern.permute.xlu0 0
  %2256 = vperm.xlu0 %2255, %v1810
  %v2257 = vpop.permute.xlu0 %2256
  %2260 = vset.pattern.permute.xlu0 0
  %2261 = vperm.xlu0 %2260, %v1811
  %v2262 = vpop.permute.xlu0 %2261
  %2265 = vset.pattern.permute.xlu0 0
  %2266 = vperm.xlu0 %2265, %v1812
  %v2267 = vpop.permute.xlu0 %2266
  %2270 = vset.pattern.permute.xlu0 0
  %2271 = vperm.xlu0 %2270, %v1813
  %v2272 = vpop.permute.xlu0 %2271
  %2275 = vset.pattern.permute.xlu0 0
  %2276 = vperm.xlu0 %2275, %v1814
  %v2277 = vpop.permute.xlu0 %2276
  %2280 = vset.pattern.permute.xlu0 0
  %2281 = vperm.xlu0 %2280, %v1815
  %v2282 = vpop.permute.xlu0 %2281
  %2285 = vset.pattern.permute.xlu0 0
  %2286 = vperm.xlu0 %2285, %v1816
  %v2287 = vpop.permute.xlu0 %2286
  %2290 = vset.pattern.permute.xlu0 0
  %2291 = vperm.xlu0 %2290, %v1817
  %v2292 = vpop.permute.xlu0 %2291
  %2295 = vset.pattern.permute.xlu0 0
  %2296 = vperm.xlu0 %2295, %v1818
  %v2297 = vpop.permute.xlu0 %2296
  %2300 = vset.pattern.permute.xlu0 0
  %2301 = vperm.xlu0 %2300, %v1819
  %v2302 = vpop.permute.xlu0 %2301
  %2305 = vset.pattern.permute.xlu0 0
  %2306 = vperm.xlu0 %2305, %v1820
  %v2307 = vpop.permute.xlu0 %2306
  %2310 = vset.pattern.permute.xlu0 0
  %2311 = vperm.xlu0 %2310, %v1821
  %v2312 = vpop.permute.xlu0 %2311
  %2315 = vset.pattern.permute.xlu0 0
  %2316 = vperm.xlu0 %2315, %v1822
  %v2317 = vpop.permute.xlu0 %2316
  %2320 = vset.pattern.permute.xlu0 0
  %2321 = vperm.xlu0 %2320, %v1823
  %v2322 = vpop.permute.xlu0 %2321
  %2325 = vset.pattern.permute.xlu0 0
  %2326 = vperm.xlu0 %2325, %v1824
  %v2327 = vpop.permute.xlu0 %2326
  %2330 = vset.pattern.permute.xlu0 0
  %2331 = vperm.xlu0 %2330, %v1825
  %v2332 = vpop.permute.xlu0 %2331
  %2335 = vset.pattern.permute.xlu0 0
  %2336 = vperm.xlu0 %2335, %v1826
  %v2337 = vpop.permute.xlu0 %2336
  %2340 = vset.pattern.permute.xlu0 0
  %2341 = vperm.xlu0 %2340, %v1827
  %v2342 = vpop.permute.xlu0 %2341
  %2345 = vset.pattern.permute.xlu0 0
  %2346 = vperm.xlu0 %2345, %v1828
  %v2347 = vpop.permute.xlu0 %2346
  %2350 = vset.pattern.permute.xlu0 0
  %2351 = vperm.xlu0 %2350, %v1829
  %v2352 = vpop.permute.xlu0 %2351
  %2355 = vset.pattern.permute.xlu0 0
  %2356 = vperm.xlu0 %2355, %v1830
  %v2357 = vpop.permute.xlu0 %2356
  %2360 = vset.pattern.permute.xlu0 0
  %2361 = vperm.xlu0 %2360, %v1831
  %v2362 = vpop.permute.xlu0 %2361
  %2365 = vset.pattern.permute.xlu0 0
  %2366 = vperm.xlu0 %2365, %v1832
  %v2367 = vpop.permute.xlu0 %2366
  %2370 = vset.pattern.permute.xlu0 0
  %2371 = vperm.xlu0 %2370, %v1833
  %v2372 = vpop.permute.xlu0 %2371
  %2375 = vset.pattern.permute.xlu0 0
  %2376 = vperm.xlu0 %2375, %v1834
  %v2377 = vpop.permute.xlu0 %2376
  %2380 = vset.pattern.permute.xlu0 0
  %2381 = vperm.xlu0 %2380, %v1835
  %v2382 = vpop.permute.xlu0 %2381
  %2385 = vset.pattern.permute.xlu0 0
  %2386 = vperm.xlu0 %2385, %v1836
  %v2387 = vpop.permute.xlu0 %2386
  %2390 = vset.pattern.permute.xlu0 0
  %2391 = vperm.xlu0 %2390, %v1837
  %v2392 = vpop.permute.xlu0 %2391
  %2395 = vset.pattern.permute.xlu0 0
  %2396 = vperm.xlu0 %2395, %v1838
  %v2397 = vpop.permute.xlu0 %2396
  %2400 = vset.pattern.permute.xlu0 0
  %2401 = vperm.xlu0 %2400, %v1839
  %v2402 = vpop.permute.xlu0 %2401
  %2405 = vset.pattern.permute.xlu0 0
  %2406 = vperm.xlu0 %2405, %v1840
  %v2407 = vpop.permute.xlu0 %2406
  %2410 = vset.pattern.permute.xlu0 0
  %2411 = vperm.xlu0 %2410, %v1841
  %v2412 = vpop.permute.xlu0 %2411
  %2415 = vset.pattern.permute.xlu0 0
  %2416 = vperm.xlu0 %2415, %v1842
  %v2417 = vpop.permute.xlu0 %2416
  %2420 = vset.pattern.permute.xlu0 0
  %2421 = vperm.xlu0 %2420, %v1843
  %v2422 = vpop.permute.xlu0 %2421
  %2425 = vset.pattern.permute.xlu0 0
  %2426 = vperm.xlu0 %2425, %v1844
  %v2427 = vpop.permute.xlu0 %2426
  %2430 = vset.pattern.permute.xlu0 0
  %2431 = vperm.xlu0 %2430, %v1845
  %v2432 = vpop.permute.xlu0 %2431
  %2435 = vset.pattern.permute.xlu0 0
  %2436 = vperm.xlu0 %2435, %v1846
  %v2437 = vpop.permute.xlu0 %2436
  %2440 = vset.pattern.permute.xlu0 0
  %2441 = vperm.xlu0 %2440, %v1847
  %v2442 = vpop.permute.xlu0 %2441
  %2445 = vset.pattern.permute.xlu0 0
  %2446 = vperm.xlu0 %2445, %v1848
  %v2447 = vpop.permute.xlu0 %2446
  %2450 = vset.pattern.permute.xlu0 0
  %2451 = vperm.xlu0 %2450, %v1849
  %v2452 = vpop.permute.xlu0 %2451
  %2455 = vset.pattern.permute.xlu0 0
  %2456 = vperm.xlu0 %2455, %v1850
  %v2457 = vpop.permute.xlu0 %2456
  %2460 = vset.pattern.permute.xlu0 0
  %2461 = vperm.xlu0 %2460, %v1851
  %v2462 = vpop.permute.xlu0 %2461
  %2465 = vset.pattern.permute.xlu0 0
  %2466 = vperm.xlu0 %2465, %v1852
  %v2467 = vpop.permute.xlu0 %2466
  %2470 = vset.pattern.permute.xlu0 0
  %2471 = vperm.xlu0 %2470, %v1853
  %v2472 = vpop.permute.xlu0 %2471
  %2475 = vset.pattern.permute.xlu0 0
  %2476 = vperm.xlu0 %2475, %v1854
  %v2477 = vpop.permute.xlu0 %2476
  %2480 = vset.pattern.permute.xlu0 0
  %2481 = vperm.xlu0 %2480, %v1855
  %v2482 = vpop.permute.xlu0 %2481
  %2485 = vset.pattern.permute.xlu0 0
  %2486 = vperm.xlu0 %2485, %v1856
  %v2487 = vpop.permute.xlu0 %2486
  %2490 = vset.pattern.permute.xlu0 0
  %2491 = vperm.xlu0 %2490, %v1857
  %v2492 = vpop.permute.xlu0 %2491
  %2495 = vset.pattern.permute.xlu0 0
  %2496 = vperm.xlu0 %2495, %v1858
  %v2497 = vpop.permute.xlu0 %2496
  %v2499 = vmul.f32 %v1476, %v1862
  %v2500 = vmul.f32 %v1478, %v1867
  %v2501 = vmul.f32 %v1480, %v1872
  %v2502 = vmul.f32 %v1482, %v1877
  %v2503 = vmul.f32 %v1484, %v1882
  %v2504 = vmul.f32 %v1486, %v1887
  %v2505 = vmul.f32 %v1488, %v1892
  %v2506 = vmul.f32 %v1490, %v1897
  %v2507 = vmul.f32 %v1492, %v1902
  %v2508 = vmul.f32 %v1494, %v1907
  %v2509 = vmul.f32 %v1496, %v1912
  %v2510 = vmul.f32 %v1498, %v1917
  %v2511 = vmul.f32 %v1500, %v1922
  %v2512 = vmul.f32 %v1502, %v1927
  %v2513 = vmul.f32 %v1504, %v1932
  %v2514 = vmul.f32 %v1506, %v1937
  %v2515 = vmul.f32 %v1508, %v1942
  %v2516 = vmul.f32 %v1510, %v1947
  %v2517 = vmul.f32 %v1512, %v1952
  %v2518 = vmul.f32 %v1514, %v1957
  %v2519 = vmul.f32 %v1516, %v1962
  %v2520 = vmul.f32 %v1518, %v1967
  %v2521 = vmul.f32 %v1520, %v1972
  %v2522 = vmul.f32 %v1522, %v1977
  %v2523 = vmul.f32 %v1524, %v1982
  %v2524 = vmul.f32 %v1526, %v1987
  %v2525 = vmul.f32 %v1528, %v1992
  %v2526 = vmul.f32 %v1530, %v1997
  %v2527 = vmul.f32 %v1532, %v2002
  %v2528 = vmul.f32 %v1534, %v2007
  %v2529 = vmul.f32 %v1536, %v2012
  %v2530 = vmul.f32 %v1538, %v2017
  %v2531 = vmul.f32 %v1540, %v2022
  %v2532 = vmul.f32 %v1542, %v2027
  %v2533 = vmul.f32 %v1544, %v2032
  %v2534 = vmul.f32 %v1546, %v2037
  %v2535 = vmul.f32 %v1548, %v2042
  %v2536 = vmul.f32 %v1550, %v2047
  %v2537 = vmul.f32 %v1552, %v2052
  %v2538 = vmul.f32 %v1554, %v2057
  %v2539 = vmul.f32 %v1556, %v2062
  %v2540 = vmul.f32 %v1558, %v2067
  %v2541 = vmul.f32 %v1560, %v2072
  %v2542 = vmul.f32 %v1562, %v2077
  %v2543 = vmul.f32 %v1564, %v2082
  %v2544 = vmul.f32 %v1566, %v2087
  %v2545 = vmul.f32 %v1568, %v2092
  %v2546 = vmul.f32 %v1570, %v2097
  %v2547 = vmul.f32 %v1572, %v2102
  %v2548 = vmul.f32 %v1574, %v2107
  %v2549 = vmul.f32 %v1576, %v2112
  %v2550 = vmul.f32 %v1578, %v2117
  %v2551 = vmul.f32 %v1580, %v2122
  %v2552 = vmul.f32 %v1582, %v2127
  %v2553 = vmul.f32 %v1584, %v2132
  %v2554 = vmul.f32 %v1586, %v2137
  %v2555 = vmul.f32 %v1588, %v2142
  %v2556 = vmul.f32 %v1590, %v2147
  %v2557 = vmul.f32 %v1592, %v2152
  %v2558 = vmul.f32 %v1594, %v2157
  %v2559 = vmul.f32 %v1596, %v2162
  %v2560 = vmul.f32 %v1598, %v2167
  %v2561 = vmul.f32 %v1600, %v2172
  %v2562 = vmul.f32 %v1602, %v2177
  %v2563 = vmul.f32 %v1604, %v2182
  %v2564 = vmul.f32 %v1606, %v2187
  %v2565 = vmul.f32 %v1608, %v2192
  %v2566 = vmul.f32 %v1610, %v2197
  %v2567 = vmul.f32 %v1612, %v2202
  %v2568 = vmul.f32 %v1614, %v2207
  %v2569 = vmul.f32 %v1616, %v2212
  %v2570 = vmul.f32 %v1618, %v2217
  %v2571 = vmul.f32 %v1620, %v2222
  %v2572 = vmul.f32 %v1622, %v2227
  %v2573 = vmul.f32 %v1624, %v2232
  %v2574 = vmul.f32 %v1626, %v2237
  %v2575 = vmul.f32 %v1628, %v2242
  %v2576 = vmul.f32 %v1630, %v2247
  %v2577 = vmul.f32 %v1632, %v2252
  %v2578 = vmul.f32 %v1634, %v2257
  %v2579 = vmul.f32 %v1636, %v2262
  %v2580 = vmul.f32 %v1638, %v2267
  %v2581 = vmul.f32 %v1640, %v2272
  %v2582 = vmul.f32 %v1642, %v2277
  %v2583 = vmul.f32 %v1644, %v2282
  %v2584 = vmul.f32 %v1646, %v2287
  %v2585 = vmul.f32 %v1648, %v2292
  %v2586 = vmul.f32 %v1650, %v2297
  %v2587 = vmul.f32 %v1652, %v2302
  %v2588 = vmul.f32 %v1654, %v2307
  %v2589 = vmul.f32 %v1656, %v2312
  %v2590 = vmul.f32 %v1658, %v2317
  %v2591 = vmul.f32 %v1660, %v2322
  %v2592 = vmul.f32 %v1662, %v2327
  %v2593 = vmul.f32 %v1664, %v2332
  %v2594 = vmul.f32 %v1666, %v2337
  %v2595 = vmul.f32 %v1668, %v2342
  %v2596 = vmul.f32 %v1670, %v2347
  %v2597 = vmul.f32 %v1672, %v2352
  %v2598 = vmul.f32 %v1674, %v2357
  %v2599 = vmul.f32 %v1676, %v2362
  %v2600 = vmul.f32 %v1678, %v2367
  %v2601 = vmul.f32 %v1680, %v2372
  %v2602 = vmul.f32 %v1682, %v2377
  %v2603 = vmul.f32 %v1684, %v2382
  %v2604 = vmul.f32 %v1686, %v2387
  %v2605 = vmul.f32 %v1688, %v2392
  %v2606 = vmul.f32 %v1690, %v2397
  %v2607 = vmul.f32 %v1692, %v2402
  %v2608 = vmul.f32 %v1694, %v2407
  %v2609 = vmul.f32 %v1696, %v2412
  %v2610 = vmul.f32 %v1698, %v2417
  %v2611 = vmul.f32 %v1700, %v2422
  %v2612 = vmul.f32 %v1702, %v2427
  %v2613 = vmul.f32 %v1704, %v2432
  %v2614 = vmul.f32 %v1706, %v2437
  %v2615 = vmul.f32 %v1708, %v2442
  %v2616 = vmul.f32 %v1710, %v2447
  %v2617 = vmul.f32 %v1712, %v2452
  %v2618 = vmul.f32 %v1714, %v2457
  %v2619 = vmul.f32 %v1716, %v2462
  %v2620 = vmul.f32 %v1718, %v2467
  %v2621 = vmul.f32 %v1720, %v2472
  %v2622 = vmul.f32 %v1722, %v2477
  %v2623 = vmul.f32 %v1724, %v2482
  %v2624 = vmul.f32 %v1726, %v2487
  %v2625 = vmul.f32 %v1728, %v2492
  %v2626 = vmul.f32 %v1730, %v2497
  %2627 = vst [vmem:[%s4] sm:$0xff] %v2499
  %2628 = vst [vmem:[%s4 + $0x8] sm:$0xff] %v2500
  %2629 = vst [vmem:[%s4 + $0x10] sm:$0xff] %v2501
  %2630 = vst [vmem:[%s4 + $0x18] sm:$0xff] %v2502
  %2631 = vst [vmem:[%s4 + $0x20] sm:$0xff] %v2503
  %2632 = vst [vmem:[%s4 + $0x28] sm:$0xff] %v2504
  %2633 = vst [vmem:[%s4 + $0x30] sm:$0xff] %v2505
  %2634 = vst [vmem:[%s4 + $0x38] sm:$0xff] %v2506
  %2635 = vst [vmem:[%s4 + $0x40] sm:$0xff] %v2507
  %2636 = vst [vmem:[%s4 + $0x48] sm:$0xff] %v2508
  %2637 = vst [vmem:[%s4 + $0x50] sm:$0xff] %v2509
  %2638 = vst [vmem:[%s4 + $0x58] sm:$0xff] %v2510
  %2639 = vst [vmem:[%s4 + $0x60] sm:$0xff] %v2511
  %2640 = vst [vmem:[%s4 + $0x68] sm:$0xff] %v2512
  %2641 = vst [vmem:[%s4 + $0x70] sm:$0xff] %v2513
  %2642 = vst [vmem:[%s4 + $0x78] sm:$0xff] %v2514
  %2643 = vst [vmem:[%s4 + $0x80] sm:$0xff] %v2515
  %2644 = vst [vmem:[%s4 + $0x88] sm:$0xff] %v2516
  %2645 = vst [vmem:[%s4 + $0x90] sm:$0xff] %v2517
  %2646 = vst [vmem:[%s4 + $0x98] sm:$0xff] %v2518
  %2647 = vst [vmem:[%s4 + $0xa0] sm:$0xff] %v2519
  %2648 = vst [vmem:[%s4 + $0xa8] sm:$0xff] %v2520
  %2649 = vst [vmem:[%s4 + $0xb0] sm:$0xff] %v2521
  %2650 = vst [vmem:[%s4 + $0xb8] sm:$0xff] %v2522
  %2651 = vst [vmem:[%s4 + $0xc0] sm:$0xff] %v2523
  %2652 = vst [vmem:[%s4 + $0xc8] sm:$0xff] %v2524
  %2653 = vst [vmem:[%s4 + $0xd0] sm:$0xff] %v2525
  %2654 = vst [vmem:[%s4 + $0xd8] sm:$0xff] %v2526
  %2655 = vst [vmem:[%s4 + $0xe0] sm:$0xff] %v2527
  %2656 = vst [vmem:[%s4 + $0xe8] sm:$0xff] %v2528
  %2657 = vst [vmem:[%s4 + $0xf0] sm:$0xff] %v2529
  %2658 = vst [vmem:[%s4 + $0xf8] sm:$0xff] %v2530
  %2659 = vst [vmem:[%s4 + $0x100] sm:$0xff] %v2531
  %2660 = vst [vmem:[%s4 + $0x108] sm:$0xff] %v2532
  %2661 = vst [vmem:[%s4 + $0x110] sm:$0xff] %v2533
  %2662 = vst [vmem:[%s4 + $0x118] sm:$0xff] %v2534
  %2663 = vst [vmem:[%s4 + $0x120] sm:$0xff] %v2535
  %2664 = vst [vmem:[%s4 + $0x128] sm:$0xff] %v2536
  %2665 = vst [vmem:[%s4 + $0x130] sm:$0xff] %v2537
  %2666 = vst [vmem:[%s4 + $0x138] sm:$0xff] %v2538
  %2667 = vst [vmem:[%s4 + $0x140] sm:$0xff] %v2539
  %2668 = vst [vmem:[%s4 + $0x148] sm:$0xff] %v2540
  %2669 = vst [vmem:[%s4 + $0x150] sm:$0xff] %v2541
  %2670 = vst [vmem:[%s4 + $0x158] sm:$0xff] %v2542
  %2671 = vst [vmem:[%s4 + $0x160] sm:$0xff] %v2543
  %2672 = vst [vmem:[%s4 + $0x168] sm:$0xff] %v2544
  %2673 = vst [vmem:[%s4 + $0x170] sm:$0xff] %v2545
  %2674 = vst [vmem:[%s4 + $0x178] sm:$0xff] %v2546
  %2675 = vst [vmem:[%s4 + $0x180] sm:$0xff] %v2547
  %2676 = vst [vmem:[%s4 + $0x188] sm:$0xff] %v2548
  %2677 = vst [vmem:[%s4 + $0x190] sm:$0xff] %v2549
  %2678 = vst [vmem:[%s4 + $0x198] sm:$0xff] %v2550
  %2679 = vst [vmem:[%s4 + $0x1a0] sm:$0xff] %v2551
  %2680 = vst [vmem:[%s4 + $0x1a8] sm:$0xff] %v2552
  %2681 = vst [vmem:[%s4 + $0x1b0] sm:$0xff] %v2553
  %2682 = vst [vmem:[%s4 + $0x1b8] sm:$0xff] %v2554
  %2683 = vst [vmem:[%s4 + $0x1c0] sm:$0xff] %v2555
  %2684 = vst [vmem:[%s4 + $0x1c8] sm:$0xff] %v2556
  %2685 = vst [vmem:[%s4 + $0x1d0] sm:$0xff] %v2557
  %2686 = vst [vmem:[%s4 + $0x1d8] sm:$0xff] %v2558
  %2687 = vst [vmem:[%s4 + $0x1e0] sm:$0xff] %v2559
  %2688 = vst [vmem:[%s4 + $0x1e8] sm:$0xff] %v2560
  %2689 = vst [vmem:[%s4 + $0x1f0] sm:$0xff] %v2561
  %2690 = vst [vmem:[%s4 + $0x1f8] sm:$0xff] %v2562
  %2691 = vst [vmem:[%s4 + $0x200] sm:$0xff] %v2563
  %2692 = vst [vmem:[%s4 + $0x208] sm:$0xff] %v2564
  %2693 = vst [vmem:[%s4 + $0x210] sm:$0xff] %v2565
  %2694 = vst [vmem:[%s4 + $0x218] sm:$0xff] %v2566
  %2695 = vst [vmem:[%s4 + $0x220] sm:$0xff] %v2567
  %2696 = vst [vmem:[%s4 + $0x228] sm:$0xff] %v2568
  %2697 = vst [vmem:[%s4 + $0x230] sm:$0xff] %v2569
  %2698 = vst [vmem:[%s4 + $0x238] sm:$0xff] %v2570
  %2699 = vst [vmem:[%s4 + $0x240] sm:$0xff] %v2571
  %2700 = vst [vmem:[%s4 + $0x248] sm:$0xff] %v2572
  %2701 = vst [vmem:[%s4 + $0x250] sm:$0xff] %v2573
  %2702 = vst [vmem:[%s4 + $0x258] sm:$0xff] %v2574
  %2703 = vst [vmem:[%s4 + $0x260] sm:$0xff] %v2575
  %2704 = vst [vmem:[%s4 + $0x268] sm:$0xff] %v2576
  %2705 = vst [vmem:[%s4 + $0x270] sm:$0xff] %v2577
  %2706 = vst [vmem:[%s4 + $0x278] sm:$0xff] %v2578
  %2707 = vst [vmem:[%s4 + $0x280] sm:$0xff] %v2579
  %2708 = vst [vmem:[%s4 + $0x288] sm:$0xff] %v2580
  %2709 = vst [vmem:[%s4 + $0x290] sm:$0xff] %v2581
  %2710 = vst [vmem:[%s4 + $0x298] sm:$0xff] %v2582
  %2711 = vst [vmem:[%s4 + $0x2a0] sm:$0xff] %v2583
  %2712 = vst [vmem:[%s4 + $0x2a8] sm:$0xff] %v2584
  %2713 = vst [vmem:[%s4 + $0x2b0] sm:$0xff] %v2585
  %2714 = vst [vmem:[%s4 + $0x2b8] sm:$0xff] %v2586
  %2715 = vst [vmem:[%s4 + $0x2c0] sm:$0xff] %v2587
  %2716 = vst [vmem:[%s4 + $0x2c8] sm:$0xff] %v2588
  %2717 = vst [vmem:[%s4 + $0x2d0] sm:$0xff] %v2589
  %2718 = vst [vmem:[%s4 + $0x2d8] sm:$0xff] %v2590
  %2719 = vst [vmem:[%s4 + $0x2e0] sm:$0xff] %v2591
  %2720 = vst [vmem:[%s4 + $0x2e8] sm:$0xff] %v2592
  %2721 = vst [vmem:[%s4 + $0x2f0] sm:$0xff] %v2593
  %2722 = vst [vmem:[%s4 + $0x2f8] sm:$0xff] %v2594
  %2723 = vst [vmem:[%s4 + $0x300] sm:$0xff] %v2595
  %2724 = vst [vmem:[%s4 + $0x308] sm:$0xff] %v2596
  %2725 = vst [vmem:[%s4 + $0x310] sm:$0xff] %v2597
  %2726 = vst [vmem:[%s4 + $0x318] sm:$0xff] %v2598
  %2727 = vst [vmem:[%s4 + $0x320] sm:$0xff] %v2599
  %2728 = vst [vmem:[%s4 + $0x328] sm:$0xff] %v2600
  %2729 = vst [vmem:[%s4 + $0x330] sm:$0xff] %v2601
  %2730 = vst [vmem:[%s4 + $0x338] sm:$0xff] %v2602
  %2731 = vst [vmem:[%s4 + $0x340] sm:$0xff] %v2603
  %2732 = vst [vmem:[%s4 + $0x348] sm:$0xff] %v2604
  %2733 = vst [vmem:[%s4 + $0x350] sm:$0xff] %v2605
  %2734 = vst [vmem:[%s4 + $0x358] sm:$0xff] %v2606
  %2735 = vst [vmem:[%s4 + $0x360] sm:$0xff] %v2607
  %2736 = vst [vmem:[%s4 + $0x368] sm:$0xff] %v2608
  %2737 = vst [vmem:[%s4 + $0x370] sm:$0xff] %v2609
  %2738 = vst [vmem:[%s4 + $0x378] sm:$0xff] %v2610
  %2739 = vst [vmem:[%s4 + $0x380] sm:$0xff] %v2611
  %2740 = vst [vmem:[%s4 + $0x388] sm:$0xff] %v2612
  %2741 = vst [vmem:[%s4 + $0x390] sm:$0xff] %v2613
  %2742 = vst [vmem:[%s4 + $0x398] sm:$0xff] %v2614
  %2743 = vst [vmem:[%s4 + $0x3a0] sm:$0xff] %v2615
  %2744 = vst [vmem:[%s4 + $0x3a8] sm:$0xff] %v2616
  %2745 = vst [vmem:[%s4 + $0x3b0] sm:$0xff] %v2617
  %2746 = vst [vmem:[%s4 + $0x3b8] sm:$0xff] %v2618
  %2747 = vst [vmem:[%s4 + $0x3c0] sm:$0xff] %v2619
  %2748 = vst [vmem:[%s4 + $0x3c8] sm:$0xff] %v2620
  %2749 = vst [vmem:[%s4 + $0x3d0] sm:$0xff] %v2621
  %2750 = vst [vmem:[%s4 + $0x3d8] sm:$0xff] %v2622
  %2751 = vst [vmem:[%s4 + $0x3e0] sm:$0xff] %v2623
  %2752 = vst [vmem:[%s4 + $0x3e8] sm:$0xff] %v2624
  %2753 = vst [vmem:[%s4 + $0x3f0] sm:$0xff] %v2625
  %2754 = vst [vmem:[%s4 + $0x3f8] sm:$0xff] %v2626
  // Predicated region
  $region18: #{flow_diffusion_forward.9} parent=0 // pred_check
    _
  $region19: #{flow_diffusion_forward.9} parent=0 // pred_check_branch
    %2756 = sbr.rel (0) target = $region21
  $region20: #{flow_diffusion_forward.9} parent=0 // pred_region
    _
  $region21: #{flow_diffusion_forward.9} parent=0 // pred_fallthru
    _
  // Predicated region
  $region22: #{flow_diffusion_forward.9} parent=0 // pred_check
    _
  $region23: #{flow_diffusion_forward.9} parent=0 // pred_check_branch
    %2758 = sbr.rel (0) target = $region25
  $region24: #{flow_diffusion_forward.9} parent=0 // pred_region
    _
  $region25: #{flow_diffusion_forward.9} parent=0 // pred_fallthru
    _

// kernel: flow_diffusion_forward.11
$region0: #{flow_diffusion_forward.11}
  #allocation0 [shape = 'u32[]', space=smem, size = 0x4, offset = 0x4, fixed_abs, tag = 'smem constant byte address 0x4 - core index']
  #allocation1 [shape = 'u32[144,128]{1,0:T(1,128)}', space=vmem, size = 0x12000, scoped, tag = 'internal scratch']
  %s0 = inlined_call_operand.vmem [shape: f32[24,128], index: 0, kind: input, shape index: {}]
  %s1 = inlined_call_operand.vmem [shape: f32[24,128], index: 1, kind: input, shape index: {}]
  %s2 = inlined_call_operand.vmem [shape: f32[24,128], index: 2, kind: input, shape index: {}]
  %s3 = inlined_call_operand.hbm [shape: f32[1,1], index: 3, kind: output, shape index: {0}]
  %s4 = inlined_call_operand.hbm [shape: f32[1,1], index: 4, kind: output, shape index: {1}]
  %5 = xla_tuple %s3, %s4
  %s6 = sld [smem:[#allocation0]]
  $region30: #{flow_diffusion_forward.11} parent=0
    _
  %s8 = ssub.s32 1, %s6
  %s9 = scalar_select 0, %s8, %s6
  $region1: #{flow_diffusion_forward.11} parent=0
    #allocation2 [shape = 'u8[512]{0}', space=vmem, size = 0x400, scoped, tag = 'output window, operand 0, single buffered']
    #allocation3 [shape = 's32[1]{0}', space=sflag, size = 0x4, scoped, tag = 'scoped memory for flow_diffusion_forward.11']
    #allocation4 [shape = 'u8[512]{0}', space=vmem, size = 0x400, scoped, tag = 'output window, operand 1, single buffered']
    #allocation5 [shape = 's32[1]{0}', space=sflag, size = 0x4, scoped, tag = 'scoped memory for flow_diffusion_forward.11']
    %10 = vsyncpa [#allocation3], 0
    %11 = vsyncpa [#allocation5], 0
    // Predicated region
    $region2: #{flow_diffusion_forward.11} parent=1 // pred_check
      _
    $region3: #{flow_diffusion_forward.11} parent=1 // pred_check_branch
      %13 = sbr.rel (0) target = $region5
    $region4: #{flow_diffusion_forward.11} parent=1 // pred_region
      _
    $region5: #{flow_diffusion_forward.11} parent=1 // pred_fallthru
      _
    // Predicated region
    $region6: #{flow_diffusion_forward.11} parent=1 // pred_check
      _
    $region7: #{flow_diffusion_forward.11} parent=1 // pred_check_branch
      %15 = sbr.rel (0) target = $region9
    $region8: #{flow_diffusion_forward.11} parent=1 // pred_region
      _
    $region9: #{flow_diffusion_forward.11} parent=1 // pred_fallthru
      _
    // Predicated region
    $region10: #{flow_diffusion_forward.11} parent=1 // pred_check
      _
    $region11: #{flow_diffusion_forward.11} parent=1 // pred_check_branch
      %17 = sbr.rel (0) target = $region13
    $region12: #{flow_diffusion_forward.11} parent=1 // pred_region
      _
    $region13: #{flow_diffusion_forward.11} parent=1 // pred_fallthru
      _
    %v18 = vld [vmem:[%s0] sm:$0xff]
    %v19 = vld [vmem:[%s0 + $0x8] sm:$0xff]
    %v20 = vld [vmem:[%s0 + $0x10] sm:$0xff]
    %v21 = vld [vmem:[%s1] sm:$0xff]
    %v22 = vld [vmem:[%s1 + $0x8] sm:$0xff]
    %v23 = vld [vmem:[%s1 + $0x10] sm:$0xff]
    %v24 = vsub.f32 %v18, %v21
    %v25 = vsub.f32 %v19, %v22
    %v26 = vsub.f32 %v20, %v23
    %v27 = vand.u32 2147483647, %v24
    %v28 = vand.u32 2147483647, %v25
    %v29 = vand.u32 2147483647, %v26
    %v30 = vadd.f32 %v27, %v28
    %v31 = vadd.f32 %v30, %v29
    %32 = vadd.xlane.f32.xlu0 %v31
    %v33 = vpop.xlane.xlu0 %32
    %v34 = vrot.slane %v33, 4
    %v35 = vadd.f32 %v33, %v34
    %v36 = vrot.slane %v35, 2
    %v37 = vadd.f32 %v35, %v36
    %v38 = vrot.slane %v37, 1
    %v39 = vadd.f32 %v37, %v38
    %s40 = vtos %v39
    %s41 = smul.f32 %s40, 0.00032552084
    %v42 = vstv %s41
    %vm43 = vcmask 0
    %44 = vst.msk [vmem:[#allocation2] sm:$0x1] %vm43, %v42
    %v45 = vld [vmem:[%s2] sm:$0xff]
    %v46 = vld [vmem:[%s2 + $0x8] sm:$0xff]
    %v47 = vld [vmem:[%s2 + $0x10] sm:$0xff]
    %v48 = vsub.f32 %v18, %v45
    %v49 = vsub.f32 %v19, %v46
    %v50 = vsub.f32 %v20, %v47
    %v51 = vand.u32 2147483647, %v48
    %v52 = vand.u32 2147483647, %v49
    %v53 = vand.u32 2147483647, %v50
    %v54 = vadd.f32 %v51, %v52
    %v55 = vadd.f32 %v54, %v53
    %56 = vadd.xlane.f32.xlu0 %v55
    %v57 = vpop.xlane.xlu0 %56
    %v58 = vrot.slane %v57, 4
    %v59 = vadd.f32 %v57, %v58
    %v60 = vrot.slane %v59, 2
    %v61 = vadd.f32 %v59, %v60
    %v62 = vrot.slane %v61, 1
    %v63 = vadd.f32 %v61, %v62
    %s64 = vtos %v63
    %s65 = smul.f32 %s64, 0.00032552084
    %v66 = vstv %s65
    %67 = vst.msk [vmem:[#allocation4] sm:$0x1] %vm43, %v66
    // Predicated region
    $region14: #{flow_diffusion_forward.11} parent=1 // pred_check
      _
    $region15: #{flow_diffusion_forward.11} parent=1 // pred_check_branch
      %69 = sbr.rel (0) target = $region17
    $region16: #{flow_diffusion_forward.11} parent=1 // pred_region
      %s71 = ssub.s32 16, 16
      %72 = vsyncadd [#allocation3], %s71
      %s74 = sshll.u32 [#allocation2], 4
      %s75 = int_to_ptr.vmem [resolvable:$true] %s74
      %77 = dma.vmem_to_hbm [thread:$0]  %s75, 16, %s3, [#allocation3]
    $region17: #{flow_diffusion_forward.11} parent=1 // pred_fallthru
      _
    // Predicated region
    $region18: #{flow_diffusion_forward.11} parent=1 // pred_check
      _
    $region19: #{flow_diffusion_forward.11} parent=1 // pred_check_branch
      %79 = sbr.rel (0) target = $region21
    $region20: #{flow_diffusion_forward.11} parent=1 // pred_region
      %s81 = ssub.s32 16, 16
      %82 = vsyncadd [#allocation5], %s81
      %s84 = sshll.u32 [#allocation4], 4
      %s85 = int_to_ptr.vmem [resolvable:$true] %s84
      %87 = dma.vmem_to_hbm [thread:$0]  %s85, 16, %s4, [#allocation5]
    $region21: #{flow_diffusion_forward.11} parent=1 // pred_fallthru
      _
    // Predicated region
    $region22: #{flow_diffusion_forward.11} parent=1 // pred_check
      _
    $region23: #{flow_diffusion_forward.11} parent=1 // pred_check_branch
      %89 = sbr.rel (0) target = $region25
    $region24: #{flow_diffusion_forward.11} parent=1 // pred_region
      %90 = dma.done [#allocation3], 16
    $region25: #{flow_diffusion_forward.11} parent=1 // pred_fallthru
      _
    // Predicated region
    $region26: #{flow_diffusion_forward.11} parent=1 // pred_check
      _
    $region27: #{flow_diffusion_forward.11} parent=1 // pred_check_branch
      %92 = sbr.rel (0) target = $region29
    $region28: #{flow_diffusion_forward.11} parent=1 // pred_region
      %93 = dma.done [#allocation5], 16
    $region29: #{flow_diffusion_forward.11} parent=1 // pred_fallthru
      _
    %94 = vsyncpa [#allocation3], 1
    %95 = vsyncpa [#allocation5], 1

// kernel: flow_diffusion_forward.10
$region0: #{flow_diffusion_forward.10}
  #allocation0 [shape = 'u32[]', space=smem, size = 0x4, offset = 0x4, fixed_abs, tag = 'smem constant byte address 0x4 - core index']
  #allocation1 [shape = 'u32[144,128]{1,0:T(1,128)}', space=vmem, size = 0x12000, scoped, tag = 'internal scratch']
  %s0 = inlined_call_operand.vmem [shape: f32[2048,3], index: 0, kind: input, shape index: {}]
  %s1 = inlined_call_operand.vmem [shape: f32[2048,1], index: 1, kind: input, shape index: {}]
  %s2 = inlined_call_operand.vmem [shape: bf16[3,128], index: 2, kind: input, shape index: {}]
  %s3 = inlined_call_operand.vmem [shape: f32[1,128], index: 3, kind: input, shape index: {}]
  %s4 = inlined_call_operand.vmem [shape: f32[2048,128], index: 4, kind: output, shape index: {}]
  %s5 = sld [smem:[#allocation0]]
  $region26: #{flow_diffusion_forward.10} parent=0
    _
  %s7 = ssub.s32 1, %s5
  %s8 = scalar_select 0, %s7, %s5
  // Predicated region
  $region2: #{flow_diffusion_forward.10} parent=0 // pred_check
    _
  $region3: #{flow_diffusion_forward.10} parent=0 // pred_check_branch
    %10 = sbr.rel (0) target = $region5
  $region4: #{flow_diffusion_forward.10} parent=0 // pred_region
    _
  $region5: #{flow_diffusion_forward.10} parent=0 // pred_fallthru
    _
  // Predicated region
  $region6: #{flow_diffusion_forward.10} parent=0 // pred_check
    _
  $region7: #{flow_diffusion_forward.10} parent=0 // pred_check_branch
    %12 = sbr.rel (0) target = $region9
  $region8: #{flow_diffusion_forward.10} parent=0 // pred_region
    _
  $region9: #{flow_diffusion_forward.10} parent=0 // pred_fallthru
    _
  // Predicated region
  $region10: #{flow_diffusion_forward.10} parent=0 // pred_check
    _
  $region11: #{flow_diffusion_forward.10} parent=0 // pred_check_branch
    %14 = sbr.rel (0) target = $region13
  $region12: #{flow_diffusion_forward.10} parent=0 // pred_region
    _
  $region13: #{flow_diffusion_forward.10} parent=0 // pred_fallthru
    _
  // Predicated region
  $region14: #{flow_diffusion_forward.10} parent=0 // pred_check
    _
  $region15: #{flow_diffusion_forward.10} parent=0 // pred_check_branch
    %16 = sbr.rel (0) target = $region17
  $region16: #{flow_diffusion_forward.10} parent=0 // pred_region
    _
  $region17: #{flow_diffusion_forward.10} parent=0 // pred_fallthru
    _
  %v18 = vld [vmem:[%s0] sm:$0xff]
  %v19 = vld [vmem:[%s0 + $0x8] sm:$0xff]
  %v20 = vld [vmem:[%s0 + $0x10] sm:$0xff]
  %v21 = vld [vmem:[%s0 + $0x18] sm:$0xff]
  %v22 = vld [vmem:[%s0 + $0x20] sm:$0xff]
  %v23 = vld [vmem:[%s0 + $0x28] sm:$0xff]
  %v24 = vld [vmem:[%s0 + $0x30] sm:$0xff]
  %v25 = vld [vmem:[%s0 + $0x38] sm:$0xff]
  %v26 = vld [vmem:[%s0 + $0x40] sm:$0xff]
  %v27 = vld [vmem:[%s0 + $0x48] sm:$0xff]
  %v28 = vld [vmem:[%s0 + $0x50] sm:$0xff]
  %v29 = vld [vmem:[%s0 + $0x58] sm:$0xff]
  %v30 = vld [vmem:[%s0 + $0x60] sm:$0xff]
  %v31 = vld [vmem:[%s0 + $0x68] sm:$0xff]
  %v32 = vld [vmem:[%s0 + $0x70] sm:$0xff]
  %v33 = vld [vmem:[%s0 + $0x78] sm:$0xff]
  %v34 = vld [vmem:[%s0 + $0x80] sm:$0xff]
  %v35 = vld [vmem:[%s0 + $0x88] sm:$0xff]
  %v36 = vld [vmem:[%s0 + $0x90] sm:$0xff]
  %v37 = vld [vmem:[%s0 + $0x98] sm:$0xff]
  %v38 = vld [vmem:[%s0 + $0xa0] sm:$0xff]
  %v39 = vld [vmem:[%s0 + $0xa8] sm:$0xff]
  %v40 = vld [vmem:[%s0 + $0xb0] sm:$0xff]
  %v41 = vld [vmem:[%s0 + $0xb8] sm:$0xff]
  %v42 = vld [vmem:[%s0 + $0xc0] sm:$0xff]
  %v43 = vld [vmem:[%s0 + $0xc8] sm:$0xff]
  %v44 = vld [vmem:[%s0 + $0xd0] sm:$0xff]
  %v45 = vld [vmem:[%s0 + $0xd8] sm:$0xff]
  %v46 = vld [vmem:[%s0 + $0xe0] sm:$0xff]
  %v47 = vld [vmem:[%s0 + $0xe8] sm:$0xff]
  %v48 = vld [vmem:[%s0 + $0xf0] sm:$0xff]
  %v49 = vld [vmem:[%s0 + $0xf8] sm:$0xff]
  %v50 = vld [vmem:[%s0 + $0x100] sm:$0xff]
  %v51 = vld [vmem:[%s0 + $0x108] sm:$0xff]
  %v52 = vld [vmem:[%s0 + $0x110] sm:$0xff]
  %v53 = vld [vmem:[%s0 + $0x118] sm:$0xff]
  %v54 = vld [vmem:[%s0 + $0x120] sm:$0xff]
  %v55 = vld [vmem:[%s0 + $0x128] sm:$0xff]
  %v56 = vld [vmem:[%s0 + $0x130] sm:$0xff]
  %v57 = vld [vmem:[%s0 + $0x138] sm:$0xff]
  %v58 = vld [vmem:[%s0 + $0x140] sm:$0xff]
  %v59 = vld [vmem:[%s0 + $0x148] sm:$0xff]
  %v60 = vld [vmem:[%s0 + $0x150] sm:$0xff]
  %v61 = vld [vmem:[%s0 + $0x158] sm:$0xff]
  %v62 = vld [vmem:[%s0 + $0x160] sm:$0xff]
  %v63 = vld [vmem:[%s0 + $0x168] sm:$0xff]
  %v64 = vld [vmem:[%s0 + $0x170] sm:$0xff]
  %v65 = vld [vmem:[%s0 + $0x178] sm:$0xff]
  %v66 = vld [vmem:[%s0 + $0x180] sm:$0xff]
  %v67 = vld [vmem:[%s0 + $0x188] sm:$0xff]
  %v68 = vld [vmem:[%s0 + $0x190] sm:$0xff]
  %v69 = vld [vmem:[%s0 + $0x198] sm:$0xff]
  %v70 = vld [vmem:[%s0 + $0x1a0] sm:$0xff]
  %v71 = vld [vmem:[%s0 + $0x1a8] sm:$0xff]
  %v72 = vld [vmem:[%s0 + $0x1b0] sm:$0xff]
  %v73 = vld [vmem:[%s0 + $0x1b8] sm:$0xff]
  %v74 = vld [vmem:[%s0 + $0x1c0] sm:$0xff]
  %v75 = vld [vmem:[%s0 + $0x1c8] sm:$0xff]
  %v76 = vld [vmem:[%s0 + $0x1d0] sm:$0xff]
  %v77 = vld [vmem:[%s0 + $0x1d8] sm:$0xff]
  %v78 = vld [vmem:[%s0 + $0x1e0] sm:$0xff]
  %v79 = vld [vmem:[%s0 + $0x1e8] sm:$0xff]
  %v80 = vld [vmem:[%s0 + $0x1f0] sm:$0xff]
  %v81 = vld [vmem:[%s0 + $0x1f8] sm:$0xff]
  %v82 = vld [vmem:[%s0 + $0x200] sm:$0xff]
  %v83 = vld [vmem:[%s0 + $0x208] sm:$0xff]
  %v84 = vld [vmem:[%s0 + $0x210] sm:$0xff]
  %v85 = vld [vmem:[%s0 + $0x218] sm:$0xff]
  %v86 = vld [vmem:[%s0 + $0x220] sm:$0xff]
  %v87 = vld [vmem:[%s0 + $0x228] sm:$0xff]
  %v88 = vld [vmem:[%s0 + $0x230] sm:$0xff]
  %v89 = vld [vmem:[%s0 + $0x238] sm:$0xff]
  %v90 = vld [vmem:[%s0 + $0x240] sm:$0xff]
  %v91 = vld [vmem:[%s0 + $0x248] sm:$0xff]
  %v92 = vld [vmem:[%s0 + $0x250] sm:$0xff]
  %v93 = vld [vmem:[%s0 + $0x258] sm:$0xff]
  %v94 = vld [vmem:[%s0 + $0x260] sm:$0xff]
  %v95 = vld [vmem:[%s0 + $0x268] sm:$0xff]
  %v96 = vld [vmem:[%s0 + $0x270] sm:$0xff]
  %v97 = vld [vmem:[%s0 + $0x278] sm:$0xff]
  %v98 = vld [vmem:[%s0 + $0x280] sm:$0xff]
  %v99 = vld [vmem:[%s0 + $0x288] sm:$0xff]
  %v100 = vld [vmem:[%s0 + $0x290] sm:$0xff]
  %v101 = vld [vmem:[%s0 + $0x298] sm:$0xff]
  %v102 = vld [vmem:[%s0 + $0x2a0] sm:$0xff]
  %v103 = vld [vmem:[%s0 + $0x2a8] sm:$0xff]
  %v104 = vld [vmem:[%s0 + $0x2b0] sm:$0xff]
  %v105 = vld [vmem:[%s0 + $0x2b8] sm:$0xff]
  %v106 = vld [vmem:[%s0 + $0x2c0] sm:$0xff]
  %v107 = vld [vmem:[%s0 + $0x2c8] sm:$0xff]
  %v108 = vld [vmem:[%s0 + $0x2d0] sm:$0xff]
  %v109 = vld [vmem:[%s0 + $0x2d8] sm:$0xff]
  %v110 = vld [vmem:[%s0 + $0x2e0] sm:$0xff]
  %v111 = vld [vmem:[%s0 + $0x2e8] sm:$0xff]
  %v112 = vld [vmem:[%s0 + $0x2f0] sm:$0xff]
  %v113 = vld [vmem:[%s0 + $0x2f8] sm:$0xff]
  %v114 = vld [vmem:[%s0 + $0x300] sm:$0xff]
  %v115 = vld [vmem:[%s0 + $0x308] sm:$0xff]
  %v116 = vld [vmem:[%s0 + $0x310] sm:$0xff]
  %v117 = vld [vmem:[%s0 + $0x318] sm:$0xff]
  %v118 = vld [vmem:[%s0 + $0x320] sm:$0xff]
  %v119 = vld [vmem:[%s0 + $0x328] sm:$0xff]
  %v120 = vld [vmem:[%s0 + $0x330] sm:$0xff]
  %v121 = vld [vmem:[%s0 + $0x338] sm:$0xff]
  %v122 = vld [vmem:[%s0 + $0x340] sm:$0xff]
  %v123 = vld [vmem:[%s0 + $0x348] sm:$0xff]
  %v124 = vld [vmem:[%s0 + $0x350] sm:$0xff]
  %v125 = vld [vmem:[%s0 + $0x358] sm:$0xff]
  %v126 = vld [vmem:[%s0 + $0x360] sm:$0xff]
  %v127 = vld [vmem:[%s0 + $0x368] sm:$0xff]
  %v128 = vld [vmem:[%s0 + $0x370] sm:$0xff]
  %v129 = vld [vmem:[%s0 + $0x378] sm:$0xff]
  %v130 = vld [vmem:[%s0 + $0x380] sm:$0xff]
  %v131 = vld [vmem:[%s0 + $0x388] sm:$0xff]
  %v132 = vld [vmem:[%s0 + $0x390] sm:$0xff]
  %v133 = vld [vmem:[%s0 + $0x398] sm:$0xff]
  %v134 = vld [vmem:[%s0 + $0x3a0] sm:$0xff]
  %v135 = vld [vmem:[%s0 + $0x3a8] sm:$0xff]
  %v136 = vld [vmem:[%s0 + $0x3b0] sm:$0xff]
  %v137 = vld [vmem:[%s0 + $0x3b8] sm:$0xff]
  %v138 = vld [vmem:[%s0 + $0x3c0] sm:$0xff]
  %v139 = vld [vmem:[%s0 + $0x3c8] sm:$0xff]
  %v140 = vld [vmem:[%s0 + $0x3d0] sm:$0xff]
  %v141 = vld [vmem:[%s0 + $0x3d8] sm:$0xff]
  %v142 = vld [vmem:[%s0 + $0x3e0] sm:$0xff]
  %v143 = vld [vmem:[%s0 + $0x3e8] sm:$0xff]
  %v144 = vld [vmem:[%s0 + $0x3f0] sm:$0xff]
  %v145 = vld [vmem:[%s0 + $0x3f8] sm:$0xff]
  %v146 = vld [vmem:[%s0 + $0x400] sm:$0xff]
  %v147 = vld [vmem:[%s0 + $0x408] sm:$0xff]
  %v148 = vld [vmem:[%s0 + $0x410] sm:$0xff]
  %v149 = vld [vmem:[%s0 + $0x418] sm:$0xff]
  %v150 = vld [vmem:[%s0 + $0x420] sm:$0xff]
  %v151 = vld [vmem:[%s0 + $0x428] sm:$0xff]
  %v152 = vld [vmem:[%s0 + $0x430] sm:$0xff]
  %v153 = vld [vmem:[%s0 + $0x438] sm:$0xff]
  %v154 = vld [vmem:[%s0 + $0x440] sm:$0xff]
  %v155 = vld [vmem:[%s0 + $0x448] sm:$0xff]
  %v156 = vld [vmem:[%s0 + $0x450] sm:$0xff]
  %v157 = vld [vmem:[%s0 + $0x458] sm:$0xff]
  %v158 = vld [vmem:[%s0 + $0x460] sm:$0xff]
  %v159 = vld [vmem:[%s0 + $0x468] sm:$0xff]
  %v160 = vld [vmem:[%s0 + $0x470] sm:$0xff]
  %v161 = vld [vmem:[%s0 + $0x478] sm:$0xff]
  %v162 = vld [vmem:[%s0 + $0x480] sm:$0xff]
  %v163 = vld [vmem:[%s0 + $0x488] sm:$0xff]
  %v164 = vld [vmem:[%s0 + $0x490] sm:$0xff]
  %v165 = vld [vmem:[%s0 + $0x498] sm:$0xff]
  %v166 = vld [vmem:[%s0 + $0x4a0] sm:$0xff]
  %v167 = vld [vmem:[%s0 + $0x4a8] sm:$0xff]
  %v168 = vld [vmem:[%s0 + $0x4b0] sm:$0xff]
  %v169 = vld [vmem:[%s0 + $0x4b8] sm:$0xff]
  %v170 = vld [vmem:[%s0 + $0x4c0] sm:$0xff]
  %v171 = vld [vmem:[%s0 + $0x4c8] sm:$0xff]
  %v172 = vld [vmem:[%s0 + $0x4d0] sm:$0xff]
  %v173 = vld [vmem:[%s0 + $0x4d8] sm:$0xff]
  %v174 = vld [vmem:[%s0 + $0x4e0] sm:$0xff]
  %v175 = vld [vmem:[%s0 + $0x4e8] sm:$0xff]
  %v176 = vld [vmem:[%s0 + $0x4f0] sm:$0xff]
  %v177 = vld [vmem:[%s0 + $0x4f8] sm:$0xff]
  %v178 = vld [vmem:[%s0 + $0x500] sm:$0xff]
  %v179 = vld [vmem:[%s0 + $0x508] sm:$0xff]
  %v180 = vld [vmem:[%s0 + $0x510] sm:$0xff]
  %v181 = vld [vmem:[%s0 + $0x518] sm:$0xff]
  %v182 = vld [vmem:[%s0 + $0x520] sm:$0xff]
  %v183 = vld [vmem:[%s0 + $0x528] sm:$0xff]
  %v184 = vld [vmem:[%s0 + $0x530] sm:$0xff]
  %v185 = vld [vmem:[%s0 + $0x538] sm:$0xff]
  %v186 = vld [vmem:[%s0 + $0x540] sm:$0xff]
  %v187 = vld [vmem:[%s0 + $0x548] sm:$0xff]
  %v188 = vld [vmem:[%s0 + $0x550] sm:$0xff]
  %v189 = vld [vmem:[%s0 + $0x558] sm:$0xff]
  %v190 = vld [vmem:[%s0 + $0x560] sm:$0xff]
  %v191 = vld [vmem:[%s0 + $0x568] sm:$0xff]
  %v192 = vld [vmem:[%s0 + $0x570] sm:$0xff]
  %v193 = vld [vmem:[%s0 + $0x578] sm:$0xff]
  %v194 = vld [vmem:[%s0 + $0x580] sm:$0xff]
  %v195 = vld [vmem:[%s0 + $0x588] sm:$0xff]
  %v196 = vld [vmem:[%s0 + $0x590] sm:$0xff]
  %v197 = vld [vmem:[%s0 + $0x598] sm:$0xff]
  %v198 = vld [vmem:[%s0 + $0x5a0] sm:$0xff]
  %v199 = vld [vmem:[%s0 + $0x5a8] sm:$0xff]
  %v200 = vld [vmem:[%s0 + $0x5b0] sm:$0xff]
  %v201 = vld [vmem:[%s0 + $0x5b8] sm:$0xff]
  %v202 = vld [vmem:[%s0 + $0x5c0] sm:$0xff]
  %v203 = vld [vmem:[%s0 + $0x5c8] sm:$0xff]
  %v204 = vld [vmem:[%s0 + $0x5d0] sm:$0xff]
  %v205 = vld [vmem:[%s0 + $0x5d8] sm:$0xff]
  %v206 = vld [vmem:[%s0 + $0x5e0] sm:$0xff]
  %v207 = vld [vmem:[%s0 + $0x5e8] sm:$0xff]
  %v208 = vld [vmem:[%s0 + $0x5f0] sm:$0xff]
  %v209 = vld [vmem:[%s0 + $0x5f8] sm:$0xff]
  %v210 = vld [vmem:[%s0 + $0x600] sm:$0xff]
  %v211 = vld [vmem:[%s0 + $0x608] sm:$0xff]
  %v212 = vld [vmem:[%s0 + $0x610] sm:$0xff]
  %v213 = vld [vmem:[%s0 + $0x618] sm:$0xff]
  %v214 = vld [vmem:[%s0 + $0x620] sm:$0xff]
  %v215 = vld [vmem:[%s0 + $0x628] sm:$0xff]
  %v216 = vld [vmem:[%s0 + $0x630] sm:$0xff]
  %v217 = vld [vmem:[%s0 + $0x638] sm:$0xff]
  %v218 = vld [vmem:[%s0 + $0x640] sm:$0xff]
  %v219 = vld [vmem:[%s0 + $0x648] sm:$0xff]
  %v220 = vld [vmem:[%s0 + $0x650] sm:$0xff]
  %v221 = vld [vmem:[%s0 + $0x658] sm:$0xff]
  %v222 = vld [vmem:[%s0 + $0x660] sm:$0xff]
  %v223 = vld [vmem:[%s0 + $0x668] sm:$0xff]
  %v224 = vld [vmem:[%s0 + $0x670] sm:$0xff]
  %v225 = vld [vmem:[%s0 + $0x678] sm:$0xff]
  %v226 = vld [vmem:[%s0 + $0x680] sm:$0xff]
  %v227 = vld [vmem:[%s0 + $0x688] sm:$0xff]
  %v228 = vld [vmem:[%s0 + $0x690] sm:$0xff]
  %v229 = vld [vmem:[%s0 + $0x698] sm:$0xff]
  %v230 = vld [vmem:[%s0 + $0x6a0] sm:$0xff]
  %v231 = vld [vmem:[%s0 + $0x6a8] sm:$0xff]
  %v232 = vld [vmem:[%s0 + $0x6b0] sm:$0xff]
  %v233 = vld [vmem:[%s0 + $0x6b8] sm:$0xff]
  %v234 = vld [vmem:[%s0 + $0x6c0] sm:$0xff]
  %v235 = vld [vmem:[%s0 + $0x6c8] sm:$0xff]
  %v236 = vld [vmem:[%s0 + $0x6d0] sm:$0xff]
  %v237 = vld [vmem:[%s0 + $0x6d8] sm:$0xff]
  %v238 = vld [vmem:[%s0 + $0x6e0] sm:$0xff]
  %v239 = vld [vmem:[%s0 + $0x6e8] sm:$0xff]
  %v240 = vld [vmem:[%s0 + $0x6f0] sm:$0xff]
  %v241 = vld [vmem:[%s0 + $0x6f8] sm:$0xff]
  %v242 = vld [vmem:[%s0 + $0x700] sm:$0xff]
  %v243 = vld [vmem:[%s0 + $0x708] sm:$0xff]
  %v244 = vld [vmem:[%s0 + $0x710] sm:$0xff]
  %v245 = vld [vmem:[%s0 + $0x718] sm:$0xff]
  %v246 = vld [vmem:[%s0 + $0x720] sm:$0xff]
  %v247 = vld [vmem:[%s0 + $0x728] sm:$0xff]
  %v248 = vld [vmem:[%s0 + $0x730] sm:$0xff]
  %v249 = vld [vmem:[%s0 + $0x738] sm:$0xff]
  %v250 = vld [vmem:[%s0 + $0x740] sm:$0xff]
  %v251 = vld [vmem:[%s0 + $0x748] sm:$0xff]
  %v252 = vld [vmem:[%s0 + $0x750] sm:$0xff]
  %v253 = vld [vmem:[%s0 + $0x758] sm:$0xff]
  %v254 = vld [vmem:[%s0 + $0x760] sm:$0xff]
  %v255 = vld [vmem:[%s0 + $0x768] sm:$0xff]
  %v256 = vld [vmem:[%s0 + $0x770] sm:$0xff]
  %v257 = vld [vmem:[%s0 + $0x778] sm:$0xff]
  %v258 = vld [vmem:[%s0 + $0x780] sm:$0xff]
  %v259 = vld [vmem:[%s0 + $0x788] sm:$0xff]
  %v260 = vld [vmem:[%s0 + $0x790] sm:$0xff]
  %v261 = vld [vmem:[%s0 + $0x798] sm:$0xff]
  %v262 = vld [vmem:[%s0 + $0x7a0] sm:$0xff]
  %v263 = vld [vmem:[%s0 + $0x7a8] sm:$0xff]
  %v264 = vld [vmem:[%s0 + $0x7b0] sm:$0xff]
  %v265 = vld [vmem:[%s0 + $0x7b8] sm:$0xff]
  %v266 = vld [vmem:[%s0 + $0x7c0] sm:$0xff]
  %v267 = vld [vmem:[%s0 + $0x7c8] sm:$0xff]
  %v268 = vld [vmem:[%s0 + $0x7d0] sm:$0xff]
  %v269 = vld [vmem:[%s0 + $0x7d8] sm:$0xff]
  %v270 = vld [vmem:[%s0 + $0x7e0] sm:$0xff]
  %v271 = vld [vmem:[%s0 + $0x7e8] sm:$0xff]
  %v272 = vld [vmem:[%s0 + $0x7f0] sm:$0xff]
  %v273 = vld [vmem:[%s0 + $0x7f8] sm:$0xff]
  %v274 = vpack.c.bf16 %v19, %v18
  %v275 = vpack.c.bf16 %v21, %v20
  %v276 = vpack.c.bf16 %v23, %v22
  %v277 = vpack.c.bf16 %v25, %v24
  %v278 = vpack.c.bf16 %v27, %v26
  %v279 = vpack.c.bf16 %v29, %v28
  %v280 = vpack.c.bf16 %v31, %v30
  %v281 = vpack.c.bf16 %v33, %v32
  %v282 = vpack.c.bf16 %v35, %v34
  %v283 = vpack.c.bf16 %v37, %v36
  %v284 = vpack.c.bf16 %v39, %v38
  %v285 = vpack.c.bf16 %v41, %v40
  %v286 = vpack.c.bf16 %v43, %v42
  %v287 = vpack.c.bf16 %v45, %v44
  %v288 = vpack.c.bf16 %v47, %v46
  %v289 = vpack.c.bf16 %v49, %v48
  %v290 = vpack.c.bf16 %v51, %v50
  %v291 = vpack.c.bf16 %v53, %v52
  %v292 = vpack.c.bf16 %v55, %v54
  %v293 = vpack.c.bf16 %v57, %v56
  %v294 = vpack.c.bf16 %v59, %v58
  %v295 = vpack.c.bf16 %v61, %v60
  %v296 = vpack.c.bf16 %v63, %v62
  %v297 = vpack.c.bf16 %v65, %v64
  %v298 = vpack.c.bf16 %v67, %v66
  %v299 = vpack.c.bf16 %v69, %v68
  %v300 = vpack.c.bf16 %v71, %v70
  %v301 = vpack.c.bf16 %v73, %v72
  %v302 = vpack.c.bf16 %v75, %v74
  %v303 = vpack.c.bf16 %v77, %v76
  %v304 = vpack.c.bf16 %v79, %v78
  %v305 = vpack.c.bf16 %v81, %v80
  %v306 = vpack.c.bf16 %v83, %v82
  %v307 = vpack.c.bf16 %v85, %v84
  %v308 = vpack.c.bf16 %v87, %v86
  %v309 = vpack.c.bf16 %v89, %v88
  %v310 = vpack.c.bf16 %v91, %v90
  %v311 = vpack.c.bf16 %v93, %v92
  %v312 = vpack.c.bf16 %v95, %v94
  %v313 = vpack.c.bf16 %v97, %v96
  %v314 = vpack.c.bf16 %v99, %v98
  %v315 = vpack.c.bf16 %v101, %v100
  %v316 = vpack.c.bf16 %v103, %v102
  %v317 = vpack.c.bf16 %v105, %v104
  %v318 = vpack.c.bf16 %v107, %v106
  %v319 = vpack.c.bf16 %v109, %v108
  %v320 = vpack.c.bf16 %v111, %v110
  %v321 = vpack.c.bf16 %v113, %v112
  %v322 = vpack.c.bf16 %v115, %v114
  %v323 = vpack.c.bf16 %v117, %v116
  %v324 = vpack.c.bf16 %v119, %v118
  %v325 = vpack.c.bf16 %v121, %v120
  %v326 = vpack.c.bf16 %v123, %v122
  %v327 = vpack.c.bf16 %v125, %v124
  %v328 = vpack.c.bf16 %v127, %v126
  %v329 = vpack.c.bf16 %v129, %v128
  %v330 = vpack.c.bf16 %v131, %v130
  %v331 = vpack.c.bf16 %v133, %v132
  %v332 = vpack.c.bf16 %v135, %v134
  %v333 = vpack.c.bf16 %v137, %v136
  %v334 = vpack.c.bf16 %v139, %v138
  %v335 = vpack.c.bf16 %v141, %v140
  %v336 = vpack.c.bf16 %v143, %v142
  %v337 = vpack.c.bf16 %v145, %v144
  %v338 = vpack.c.bf16 %v147, %v146
  %v339 = vpack.c.bf16 %v149, %v148
  %v340 = vpack.c.bf16 %v151, %v150
  %v341 = vpack.c.bf16 %v153, %v152
  %v342 = vpack.c.bf16 %v155, %v154
  %v343 = vpack.c.bf16 %v157, %v156
  %v344 = vpack.c.bf16 %v159, %v158
  %v345 = vpack.c.bf16 %v161, %v160
  %v346 = vpack.c.bf16 %v163, %v162
  %v347 = vpack.c.bf16 %v165, %v164
  %v348 = vpack.c.bf16 %v167, %v166
  %v349 = vpack.c.bf16 %v169, %v168
  %v350 = vpack.c.bf16 %v171, %v170
  %v351 = vpack.c.bf16 %v173, %v172
  %v352 = vpack.c.bf16 %v175, %v174
  %v353 = vpack.c.bf16 %v177, %v176
  %v354 = vpack.c.bf16 %v179, %v178
  %v355 = vpack.c.bf16 %v181, %v180
  %v356 = vpack.c.bf16 %v183, %v182
  %v357 = vpack.c.bf16 %v185, %v184
  %v358 = vpack.c.bf16 %v187, %v186
  %v359 = vpack.c.bf16 %v189, %v188
  %v360 = vpack.c.bf16 %v191, %v190
  %v361 = vpack.c.bf16 %v193, %v192
  %v362 = vpack.c.bf16 %v195, %v194
  %v363 = vpack.c.bf16 %v197, %v196
  %v364 = vpack.c.bf16 %v199, %v198
  %v365 = vpack.c.bf16 %v201, %v200
  %v366 = vpack.c.bf16 %v203, %v202
  %v367 = vpack.c.bf16 %v205, %v204
  %v368 = vpack.c.bf16 %v207, %v206
  %v369 = vpack.c.bf16 %v209, %v208
  %v370 = vpack.c.bf16 %v211, %v210
  %v371 = vpack.c.bf16 %v213, %v212
  %v372 = vpack.c.bf16 %v215, %v214
  %v373 = vpack.c.bf16 %v217, %v216
  %v374 = vpack.c.bf16 %v219, %v218
  %v375 = vpack.c.bf16 %v221, %v220
  %v376 = vpack.c.bf16 %v223, %v222
  %v377 = vpack.c.bf16 %v225, %v224
  %v378 = vpack.c.bf16 %v227, %v226
  %v379 = vpack.c.bf16 %v229, %v228
  %v380 = vpack.c.bf16 %v231, %v230
  %v381 = vpack.c.bf16 %v233, %v232
  %v382 = vpack.c.bf16 %v235, %v234
  %v383 = vpack.c.bf16 %v237, %v236
  %v384 = vpack.c.bf16 %v239, %v238
  %v385 = vpack.c.bf16 %v241, %v240
  %v386 = vpack.c.bf16 %v243, %v242
  %v387 = vpack.c.bf16 %v245, %v244
  %v388 = vpack.c.bf16 %v247, %v246
  %v389 = vpack.c.bf16 %v249, %v248
  %v390 = vpack.c.bf16 %v251, %v250
  %v391 = vpack.c.bf16 %v253, %v252
  %v392 = vpack.c.bf16 %v255, %v254
  %v393 = vpack.c.bf16 %v257, %v256
  %v394 = vpack.c.bf16 %v259, %v258
  %v395 = vpack.c.bf16 %v261, %v260
  %v396 = vpack.c.bf16 %v263, %v262
  %v397 = vpack.c.bf16 %v265, %v264
  %v398 = vpack.c.bf16 %v267, %v266
  %v399 = vpack.c.bf16 %v269, %v268
  %v400 = vpack.c.bf16 %v271, %v270
  %v401 = vpack.c.bf16 %v273, %v272
  %v402 = vld [vmem:[%s2] sm:$0x3]
  %v403 = vld [vmem:[%s3] sm:$0x1]
  %v405 = vlaneseq
  %v406 = vshrl.u32 %v405, 7
  %v407 = vsub.s32 0, %v406
  %v408 = vrot.slane %v403, %v407
  %vm410 = vcmask 23552
  %v412 = vsel %vm410, %v274, 0
  %v415 = vsel %vm410, %v275, 0
  %v418 = vsel %vm410, %v276, 0
  %v421 = vsel %vm410, %v277, 0
  %v424 = vsel %vm410, %v278, 0
  %v427 = vsel %vm410, %v279, 0
  %v430 = vsel %vm410, %v280, 0
  %v433 = vsel %vm410, %v281, 0
  %v436 = vsel %vm410, %v282, 0
  %v439 = vsel %vm410, %v283, 0
  %v442 = vsel %vm410, %v284, 0
  %v445 = vsel %vm410, %v285, 0
  %v448 = vsel %vm410, %v286, 0
  %v451 = vsel %vm410, %v287, 0
  %v454 = vsel %vm410, %v288, 0
  %v457 = vsel %vm410, %v289, 0
  %v460 = vsel %vm410, %v290, 0
  %v463 = vsel %vm410, %v291, 0
  %v466 = vsel %vm410, %v292, 0
  %v469 = vsel %vm410, %v293, 0
  %v472 = vsel %vm410, %v294, 0
  %v475 = vsel %vm410, %v295, 0
  %v478 = vsel %vm410, %v296, 0
  %v481 = vsel %vm410, %v297, 0
  %v484 = vsel %vm410, %v298, 0
  %v487 = vsel %vm410, %v299, 0
  %v490 = vsel %vm410, %v300, 0
  %v493 = vsel %vm410, %v301, 0
  %v496 = vsel %vm410, %v302, 0
  %v499 = vsel %vm410, %v303, 0
  %v502 = vsel %vm410, %v304, 0
  %v505 = vsel %vm410, %v305, 0
  %v508 = vsel %vm410, %v306, 0
  %v511 = vsel %vm410, %v307, 0
  %v514 = vsel %vm410, %v308, 0
  %v517 = vsel %vm410, %v309, 0
  %v520 = vsel %vm410, %v310, 0
  %v523 = vsel %vm410, %v311, 0
  %v526 = vsel %vm410, %v312, 0
  %v529 = vsel %vm410, %v313, 0
  %v532 = vsel %vm410, %v314, 0
  %v535 = vsel %vm410, %v315, 0
  %v538 = vsel %vm410, %v316, 0
  %v541 = vsel %vm410, %v317, 0
  %v544 = vsel %vm410, %v318, 0
  %v547 = vsel %vm410, %v319, 0
  %v550 = vsel %vm410, %v320, 0
  %v553 = vsel %vm410, %v321, 0
  %v556 = vsel %vm410, %v322, 0
  %v559 = vsel %vm410, %v323, 0
  %v562 = vsel %vm410, %v324, 0
  %v565 = vsel %vm410, %v325, 0
  %v568 = vsel %vm410, %v326, 0
  %v571 = vsel %vm410, %v327, 0
  %v574 = vsel %vm410, %v328, 0
  %v577 = vsel %vm410, %v329, 0
  %v580 = vsel %vm410, %v330, 0
  %v583 = vsel %vm410, %v331, 0
  %v586 = vsel %vm410, %v332, 0
  %v589 = vsel %vm410, %v333, 0
  %v592 = vsel %vm410, %v334, 0
  %v595 = vsel %vm410, %v335, 0
  %v598 = vsel %vm410, %v336, 0
  %v601 = vsel %vm410, %v337, 0
  %v604 = vsel %vm410, %v338, 0
  %v607 = vsel %vm410, %v339, 0
  %v610 = vsel %vm410, %v340, 0
  %v613 = vsel %vm410, %v341, 0
  %v616 = vsel %vm410, %v342, 0
  %v619 = vsel %vm410, %v343, 0
  %v622 = vsel %vm410, %v344, 0
  %v625 = vsel %vm410, %v345, 0
  %v628 = vsel %vm410, %v346, 0
  %v631 = vsel %vm410, %v347, 0
  %v634 = vsel %vm410, %v348, 0
  %v637 = vsel %vm410, %v349, 0
  %v640 = vsel %vm410, %v350, 0
  %v643 = vsel %vm410, %v351, 0
  %v646 = vsel %vm410, %v352, 0
  %v649 = vsel %vm410, %v353, 0
  %v652 = vsel %vm410, %v354, 0
  %v655 = vsel %vm410, %v355, 0
  %v658 = vsel %vm410, %v356, 0
  %v661 = vsel %vm410, %v357, 0
  %v664 = vsel %vm410, %v358, 0
  %v667 = vsel %vm410, %v359, 0
  %v670 = vsel %vm410, %v360, 0
  %v673 = vsel %vm410, %v361, 0
  %v676 = vsel %vm410, %v362, 0
  %v679 = vsel %vm410, %v363, 0
  %v682 = vsel %vm410, %v364, 0
  %v685 = vsel %vm410, %v365, 0
  %v688 = vsel %vm410, %v366, 0
  %v691 = vsel %vm410, %v367, 0
  %v694 = vsel %vm410, %v368, 0
  %v697 = vsel %vm410, %v369, 0
  %v700 = vsel %vm410, %v370, 0
  %v703 = vsel %vm410, %v371, 0
  %v706 = vsel %vm410, %v372, 0
  %v709 = vsel %vm410, %v373, 0
  %v712 = vsel %vm410, %v374, 0
  %v715 = vsel %vm410, %v375, 0
  %v718 = vsel %vm410, %v376, 0
  %v721 = vsel %vm410, %v377, 0
  %v724 = vsel %vm410, %v378, 0
  %v727 = vsel %vm410, %v379, 0
  %v730 = vsel %vm410, %v380, 0
  %v733 = vsel %vm410, %v381, 0
  %v736 = vsel %vm410, %v382, 0
  %v739 = vsel %vm410, %v383, 0
  %v742 = vsel %vm410, %v384, 0
  %v745 = vsel %vm410, %v385, 0
  %v748 = vsel %vm410, %v386, 0
  %v751 = vsel %vm410, %v387, 0
  %v754 = vsel %vm410, %v388, 0
  %v757 = vsel %vm410, %v389, 0
  %v760 = vsel %vm410, %v390, 0
  %v763 = vsel %vm410, %v391, 0
  %v766 = vsel %vm410, %v392, 0
  %v769 = vsel %vm410, %v393, 0
  %v772 = vsel %vm410, %v394, 0
  %v775 = vsel %vm410, %v395, 0
  %v778 = vsel %vm410, %v396, 0
  %v781 = vsel %vm410, %v397, 0
  %v784 = vsel %vm410, %v398, 0
  %v787 = vsel %vm410, %v399, 0
  %v790 = vsel %vm410, %v400, 0
  %v793 = vsel %vm410, %v401, 0
  %vm795 = vcmask 1040384
  %vm796 = vcmask 1041408
  %v797 = vsel %vm795, 4294967295, 65535
  %v798 = vsel %vm796, %v797, 0
  %v800 = vand.u32 %v402, %v798
  %802 = vmatprep.subr.bf16.mxu0 0
  %803 = vmatpush1.bf16.msra.mxu0 0
  %804 = vmatprep.subr.bf16.mxu0 0
  %805 = vmatpush1.bf16.msra.mxu0 0
  %806 = vmatprep.subr.bf16.mxu0 0
  %807 = vmatpush1.bf16.msra.mxu0 0
  %808 = vmatprep.subr.bf16.mxu0 0
  %809 = vmatpush1.bf16.msra.mxu0 0
  %810 = vmatprep.subr.bf16.mxu0 0
  %811 = vmatpush1.bf16.msra.mxu0 0
  %812 = vmatprep.subr.bf16.mxu0 0
  %813 = vmatpush1.bf16.msra.mxu0 0
  %814 = vmatprep.subr.bf16.mxu0 0
  %815 = vmatpush1.bf16.msra.mxu0 0
  %816 = vmatprep.subr.bf16.mxu0 0
  %817 = vmatpush1.bf16.msra.mxu0 %v800
  %818 = vmatprep.subr.bf16.mxu0 0
  %819 = vmatpush2.bf16.msra.mxu0 0
  %820 = vmatprep.subr.bf16.mxu0 0
  %821 = vmatpush2.bf16.msra.mxu0 0
  %822 = vmatprep.subr.bf16.mxu0 0
  %823 = vmatpush2.bf16.msra.mxu0 0
  %824 = vmatprep.subr.bf16.mxu0 0
  %825 = vmatpush2.bf16.msra.mxu0 0
  %826 = vmatprep.subr.bf16.mxu0 0
  %827 = vmatpush2.bf16.msra.mxu0 0
  %828 = vmatprep.subr.bf16.mxu0 0
  %829 = vmatpush2.bf16.msra.mxu0 0
  %830 = vmatprep.subr.bf16.mxu0 0
  %831 = vmatpush2.bf16.msra.mxu0 0
  %832 = vmatprep.subr.bf16.mxu0 0
  %833 = vmatpush2.bf16.msra.mxu0 0
  %834 = vmatprep.mubr.bf16.mxu0 0
  %835 = vmatmul.mubr.bf16.gmra.mxu0 %v412
  %v836 = vpop.f32.mrf.mxu0
  %v837 = vadd.f32 %v408, %v836
  %v838 = vpop.f32.mrf.mxu0
  %v839 = vpop.f32.mrf.mxu0
  %v840 = vadd.f32 %v408, %v839
  %v841 = vpop.f32.mrf.mxu0
  %842 = vmatprep.mubr.bf16.mxu0 0
  %843 = vmatmul.mubr.bf16.gmra.mxu0 %v415
  %v844 = vpop.f32.mrf.mxu0
  %v845 = vadd.f32 %v408, %v844
  %v846 = vpop.f32.mrf.mxu0
  %v847 = vpop.f32.mrf.mxu0
  %v848 = vadd.f32 %v408, %v847
  %v849 = vpop.f32.mrf.mxu0
  %850 = vmatprep.mubr.bf16.mxu0 0
  %851 = vmatmul.mubr.bf16.gmra.mxu0 %v418
  %v852 = vpop.f32.mrf.mxu0
  %v853 = vadd.f32 %v408, %v852
  %v854 = vpop.f32.mrf.mxu0
  %v855 = vpop.f32.mrf.mxu0
  %v856 = vadd.f32 %v408, %v855
  %v857 = vpop.f32.mrf.mxu0
  %858 = vmatprep.mubr.bf16.mxu0 0
  %859 = vmatmul.mubr.bf16.gmra.mxu0 %v421
  %v860 = vpop.f32.mrf.mxu0
  %v861 = vadd.f32 %v408, %v860
  %v862 = vpop.f32.mrf.mxu0
  %v863 = vpop.f32.mrf.mxu0
  %v864 = vadd.f32 %v408, %v863
  %v865 = vpop.f32.mrf.mxu0
  %866 = vmatprep.mubr.bf16.mxu0 0
  %867 = vmatmul.mubr.bf16.gmra.mxu0 %v424
  %v868 = vpop.f32.mrf.mxu0
  %v869 = vadd.f32 %v408, %v868
  %v870 = vpop.f32.mrf.mxu0
  %v871 = vpop.f32.mrf.mxu0
  %v872 = vadd.f32 %v408, %v871
  %v873 = vpop.f32.mrf.mxu0
  %874 = vmatprep.mubr.bf16.mxu0 0
  %875 = vmatmul.mubr.bf16.gmra.mxu0 %v427
  %v876 = vpop.f32.mrf.mxu0
  %v877 = vadd.f32 %v408, %v876
  %v878 = vpop.f32.mrf.mxu0
  %v879 = vpop.f32.mrf.mxu0
  %v880 = vadd.f32 %v408, %v879
  %v881 = vpop.f32.mrf.mxu0
  %882 = vmatprep.mubr.bf16.mxu0 0
  %883 = vmatmul.mubr.bf16.gmra.mxu0 %v430
  %v884 = vpop.f32.mrf.mxu0
  %v885 = vadd.f32 %v408, %v884
  %v886 = vpop.f32.mrf.mxu0
  %v887 = vpop.f32.mrf.mxu0
  %v888 = vadd.f32 %v408, %v887
  %v889 = vpop.f32.mrf.mxu0
  %890 = vmatprep.mubr.bf16.mxu0 0
  %891 = vmatmul.mubr.bf16.gmra.mxu0 %v433
  %v892 = vpop.f32.mrf.mxu0
  %v893 = vadd.f32 %v408, %v892
  %v894 = vpop.f32.mrf.mxu0
  %v895 = vpop.f32.mrf.mxu0
  %v896 = vadd.f32 %v408, %v895
  %v897 = vpop.f32.mrf.mxu0
  %898 = vmatprep.mubr.bf16.mxu0 0
  %899 = vmatmul.mubr.bf16.gmra.mxu0 %v436
  %v900 = vpop.f32.mrf.mxu0
  %v901 = vadd.f32 %v408, %v900
  %v902 = vpop.f32.mrf.mxu0
  %v903 = vpop.f32.mrf.mxu0
  %v904 = vadd.f32 %v408, %v903
  %v905 = vpop.f32.mrf.mxu0
  %906 = vmatprep.mubr.bf16.mxu0 0
  %907 = vmatmul.mubr.bf16.gmra.mxu0 %v439
  %v908 = vpop.f32.mrf.mxu0
  %v909 = vadd.f32 %v408, %v908
  %v910 = vpop.f32.mrf.mxu0
  %v911 = vpop.f32.mrf.mxu0
  %v912 = vadd.f32 %v408, %v911
  %v913 = vpop.f32.mrf.mxu0
  %914 = vmatprep.mubr.bf16.mxu0 0
  %915 = vmatmul.mubr.bf16.gmra.mxu0 %v442
  %v916 = vpop.f32.mrf.mxu0
  %v917 = vadd.f32 %v408, %v916
  %v918 = vpop.f32.mrf.mxu0
  %v919 = vpop.f32.mrf.mxu0
  %v920 = vadd.f32 %v408, %v919
  %v921 = vpop.f32.mrf.mxu0
  %922 = vmatprep.mubr.bf16.mxu0 0
  %923 = vmatmul.mubr.bf16.gmra.mxu0 %v445
  %v924 = vpop.f32.mrf.mxu0
  %v925 = vadd.f32 %v408, %v924
  %v926 = vpop.f32.mrf.mxu0
  %v927 = vpop.f32.mrf.mxu0
  %v928 = vadd.f32 %v408, %v927
  %v929 = vpop.f32.mrf.mxu0
  %930 = vmatprep.mubr.bf16.mxu0 0
  %931 = vmatmul.mubr.bf16.gmra.mxu0 %v448
  %v932 = vpop.f32.mrf.mxu0
  %v933 = vadd.f32 %v408, %v932
  %v934 = vpop.f32.mrf.mxu0
  %v935 = vpop.f32.mrf.mxu0
  %v936 = vadd.f32 %v408, %v935
  %v937 = vpop.f32.mrf.mxu0
  %938 = vmatprep.mubr.bf16.mxu0 0
  %939 = vmatmul.mubr.bf16.gmra.mxu0 %v451
  %v940 = vpop.f32.mrf.mxu0
  %v941 = vadd.f32 %v408, %v940
  %v942 = vpop.f32.mrf.mxu0
  %v943 = vpop.f32.mrf.mxu0
  %v944 = vadd.f32 %v408, %v943
  %v945 = vpop.f32.mrf.mxu0
  %946 = vmatprep.mubr.bf16.mxu0 0
  %947 = vmatmul.mubr.bf16.gmra.mxu0 %v454
  %v948 = vpop.f32.mrf.mxu0
  %v949 = vadd.f32 %v408, %v948
  %v950 = vpop.f32.mrf.mxu0
  %v951 = vpop.f32.mrf.mxu0
  %v952 = vadd.f32 %v408, %v951
  %v953 = vpop.f32.mrf.mxu0
  %954 = vmatprep.mubr.bf16.mxu0 0
  %955 = vmatmul.mubr.bf16.gmra.mxu0 %v457
  %v956 = vpop.f32.mrf.mxu0
  %v957 = vadd.f32 %v408, %v956
  %v958 = vpop.f32.mrf.mxu0
  %v959 = vpop.f32.mrf.mxu0
  %v960 = vadd.f32 %v408, %v959
  %v961 = vpop.f32.mrf.mxu0
  %962 = vmatprep.mubr.bf16.mxu0 0
  %963 = vmatmul.mubr.bf16.gmra.mxu0 %v460
  %v964 = vpop.f32.mrf.mxu0
  %v965 = vadd.f32 %v408, %v964
  %v966 = vpop.f32.mrf.mxu0
  %v967 = vpop.f32.mrf.mxu0
  %v968 = vadd.f32 %v408, %v967
  %v969 = vpop.f32.mrf.mxu0
  %970 = vmatprep.mubr.bf16.mxu0 0
  %971 = vmatmul.mubr.bf16.gmra.mxu0 %v463
  %v972 = vpop.f32.mrf.mxu0
  %v973 = vadd.f32 %v408, %v972
  %v974 = vpop.f32.mrf.mxu0
  %v975 = vpop.f32.mrf.mxu0
  %v976 = vadd.f32 %v408, %v975
  %v977 = vpop.f32.mrf.mxu0
  %978 = vmatprep.mubr.bf16.mxu0 0
  %979 = vmatmul.mubr.bf16.gmra.mxu0 %v466
  %v980 = vpop.f32.mrf.mxu0
  %v981 = vadd.f32 %v408, %v980
  %v982 = vpop.f32.mrf.mxu0
  %v983 = vpop.f32.mrf.mxu0
  %v984 = vadd.f32 %v408, %v983
  %v985 = vpop.f32.mrf.mxu0
  %986 = vmatprep.mubr.bf16.mxu0 0
  %987 = vmatmul.mubr.bf16.gmra.mxu0 %v469
  %v988 = vpop.f32.mrf.mxu0
  %v989 = vadd.f32 %v408, %v988
  %v990 = vpop.f32.mrf.mxu0
  %v991 = vpop.f32.mrf.mxu0
  %v992 = vadd.f32 %v408, %v991
  %v993 = vpop.f32.mrf.mxu0
  %994 = vmatprep.mubr.bf16.mxu0 0
  %995 = vmatmul.mubr.bf16.gmra.mxu0 %v472
  %v996 = vpop.f32.mrf.mxu0
  %v997 = vadd.f32 %v408, %v996
  %v998 = vpop.f32.mrf.mxu0
  %v999 = vpop.f32.mrf.mxu0
  %v1000 = vadd.f32 %v408, %v999
  %v1001 = vpop.f32.mrf.mxu0
  %1002 = vmatprep.mubr.bf16.mxu0 0
  %1003 = vmatmul.mubr.bf16.gmra.mxu0 %v475
  %v1004 = vpop.f32.mrf.mxu0
  %v1005 = vadd.f32 %v408, %v1004
  %v1006 = vpop.f32.mrf.mxu0
  %v1007 = vpop.f32.mrf.mxu0
  %v1008 = vadd.f32 %v408, %v1007
  %v1009 = vpop.f32.mrf.mxu0
  %1010 = vmatprep.mubr.bf16.mxu0 0
  %1011 = vmatmul.mubr.bf16.gmra.mxu0 %v478
  %v1012 = vpop.f32.mrf.mxu0
  %v1013 = vadd.f32 %v408, %v1012
  %v1014 = vpop.f32.mrf.mxu0
  %v1015 = vpop.f32.mrf.mxu0
  %v1016 = vadd.f32 %v408, %v1015
  %v1017 = vpop.f32.mrf.mxu0
  %1018 = vmatprep.mubr.bf16.mxu0 0
  %1019 = vmatmul.mubr.bf16.gmra.mxu0 %v481
  %v1020 = vpop.f32.mrf.mxu0
  %v1021 = vadd.f32 %v408, %v1020
  %v1022 = vpop.f32.mrf.mxu0
  %v1023 = vpop.f32.mrf.mxu0
  %v1024 = vadd.f32 %v408, %v1023
  %v1025 = vpop.f32.mrf.mxu0
  %1026 = vmatprep.mubr.bf16.mxu0 0
  %1027 = vmatmul.mubr.bf16.gmra.mxu0 %v484
  %v1028 = vpop.f32.mrf.mxu0
  %v1029 = vadd.f32 %v408, %v1028
  %v1030 = vpop.f32.mrf.mxu0
  %v1031 = vpop.f32.mrf.mxu0
  %v1032 = vadd.f32 %v408, %v1031
  %v1033 = vpop.f32.mrf.mxu0
  %1034 = vmatprep.mubr.bf16.mxu0 0
  %1035 = vmatmul.mubr.bf16.gmra.mxu0 %v487
  %v1036 = vpop.f32.mrf.mxu0
  %v1037 = vadd.f32 %v408, %v1036
  %v1038 = vpop.f32.mrf.mxu0
  %v1039 = vpop.f32.mrf.mxu0
  %v1040 = vadd.f32 %v408, %v1039
  %v1041 = vpop.f32.mrf.mxu0
  %1042 = vmatprep.mubr.bf16.mxu0 0
  %1043 = vmatmul.mubr.bf16.gmra.mxu0 %v490
  %v1044 = vpop.f32.mrf.mxu0
  %v1045 = vadd.f32 %v408, %v1044
  %v1046 = vpop.f32.mrf.mxu0
  %v1047 = vpop.f32.mrf.mxu0
  %v1048 = vadd.f32 %v408, %v1047
  %v1049 = vpop.f32.mrf.mxu0
  %1050 = vmatprep.mubr.bf16.mxu0 0
  %1051 = vmatmul.mubr.bf16.gmra.mxu0 %v493
  %v1052 = vpop.f32.mrf.mxu0
  %v1053 = vadd.f32 %v408, %v1052
  %v1054 = vpop.f32.mrf.mxu0
  %v1055 = vpop.f32.mrf.mxu0
  %v1056 = vadd.f32 %v408, %v1055
  %v1057 = vpop.f32.mrf.mxu0
  %1058 = vmatprep.mubr.bf16.mxu0 0
  %1059 = vmatmul.mubr.bf16.gmra.mxu0 %v496
  %v1060 = vpop.f32.mrf.mxu0
  %v1061 = vadd.f32 %v408, %v1060
  %v1062 = vpop.f32.mrf.mxu0
  %v1063 = vpop.f32.mrf.mxu0
  %v1064 = vadd.f32 %v408, %v1063
  %v1065 = vpop.f32.mrf.mxu0
  %1066 = vmatprep.mubr.bf16.mxu0 0
  %1067 = vmatmul.mubr.bf16.gmra.mxu0 %v499
  %v1068 = vpop.f32.mrf.mxu0
  %v1069 = vadd.f32 %v408, %v1068
  %v1070 = vpop.f32.mrf.mxu0
  %v1071 = vpop.f32.mrf.mxu0
  %v1072 = vadd.f32 %v408, %v1071
  %v1073 = vpop.f32.mrf.mxu0
  %1074 = vmatprep.mubr.bf16.mxu0 0
  %1075 = vmatmul.mubr.bf16.gmra.mxu0 %v502
  %v1076 = vpop.f32.mrf.mxu0
  %v1077 = vadd.f32 %v408, %v1076
  %v1078 = vpop.f32.mrf.mxu0
  %v1079 = vpop.f32.mrf.mxu0
  %v1080 = vadd.f32 %v408, %v1079
  %v1081 = vpop.f32.mrf.mxu0
  %1082 = vmatprep.mubr.bf16.mxu0 0
  %1083 = vmatmul.mubr.bf16.gmra.mxu0 %v505
  %v1084 = vpop.f32.mrf.mxu0
  %v1085 = vadd.f32 %v408, %v1084
  %v1086 = vpop.f32.mrf.mxu0
  %v1087 = vpop.f32.mrf.mxu0
  %v1088 = vadd.f32 %v408, %v1087
  %v1089 = vpop.f32.mrf.mxu0
  %1090 = vmatprep.mubr.bf16.mxu0 0
  %1091 = vmatmul.mubr.bf16.gmra.mxu0 %v508
  %v1092 = vpop.f32.mrf.mxu0
  %v1093 = vadd.f32 %v408, %v1092
  %v1094 = vpop.f32.mrf.mxu0
  %v1095 = vpop.f32.mrf.mxu0
  %v1096 = vadd.f32 %v408, %v1095
  %v1097 = vpop.f32.mrf.mxu0
  %1098 = vmatprep.mubr.bf16.mxu0 0
  %1099 = vmatmul.mubr.bf16.gmra.mxu0 %v511
  %v1100 = vpop.f32.mrf.mxu0
  %v1101 = vadd.f32 %v408, %v1100
  %v1102 = vpop.f32.mrf.mxu0
  %v1103 = vpop.f32.mrf.mxu0
  %v1104 = vadd.f32 %v408, %v1103
  %v1105 = vpop.f32.mrf.mxu0
  %1106 = vmatprep.mubr.bf16.mxu0 0
  %1107 = vmatmul.mubr.bf16.gmra.mxu0 %v514
  %v1108 = vpop.f32.mrf.mxu0
  %v1109 = vadd.f32 %v408, %v1108
  %v1110 = vpop.f32.mrf.mxu0
  %v1111 = vpop.f32.mrf.mxu0
  %v1112 = vadd.f32 %v408, %v1111
  %v1113 = vpop.f32.mrf.mxu0
  %1114 = vmatprep.mubr.bf16.mxu0 0
  %1115 = vmatmul.mubr.bf16.gmra.mxu0 %v517
  %v1116 = vpop.f32.mrf.mxu0
  %v1117 = vadd.f32 %v408, %v1116
  %v1118 = vpop.f32.mrf.mxu0
  %v1119 = vpop.f32.mrf.mxu0
  %v1120 = vadd.f32 %v408, %v1119
  %v1121 = vpop.f32.mrf.mxu0
  %1122 = vmatprep.mubr.bf16.mxu0 0
  %1123 = vmatmul.mubr.bf16.gmra.mxu0 %v520
  %v1124 = vpop.f32.mrf.mxu0
  %v1125 = vadd.f32 %v408, %v1124
  %v1126 = vpop.f32.mrf.mxu0
  %v1127 = vpop.f32.mrf.mxu0
  %v1128 = vadd.f32 %v408, %v1127
  %v1129 = vpop.f32.mrf.mxu0
  %1130 = vmatprep.mubr.bf16.mxu0 0
  %1131 = vmatmul.mubr.bf16.gmra.mxu0 %v523
  %v1132 = vpop.f32.mrf.mxu0
  %v1133 = vadd.f32 %v408, %v1132
  %v1134 = vpop.f32.mrf.mxu0
  %v1135 = vpop.f32.mrf.mxu0
  %v1136 = vadd.f32 %v408, %v1135
  %v1137 = vpop.f32.mrf.mxu0
  %1138 = vmatprep.mubr.bf16.mxu0 0
  %1139 = vmatmul.mubr.bf16.gmra.mxu0 %v526
  %v1140 = vpop.f32.mrf.mxu0
  %v1141 = vadd.f32 %v408, %v1140
  %v1142 = vpop.f32.mrf.mxu0
  %v1143 = vpop.f32.mrf.mxu0
  %v1144 = vadd.f32 %v408, %v1143
  %v1145 = vpop.f32.mrf.mxu0
  %1146 = vmatprep.mubr.bf16.mxu0 0
  %1147 = vmatmul.mubr.bf16.gmra.mxu0 %v529
  %v1148 = vpop.f32.mrf.mxu0
  %v1149 = vadd.f32 %v408, %v1148
  %v1150 = vpop.f32.mrf.mxu0
  %v1151 = vpop.f32.mrf.mxu0
  %v1152 = vadd.f32 %v408, %v1151
  %v1153 = vpop.f32.mrf.mxu0
  %1154 = vmatprep.mubr.bf16.mxu0 0
  %1155 = vmatmul.mubr.bf16.gmra.mxu0 %v532
  %v1156 = vpop.f32.mrf.mxu0
  %v1157 = vadd.f32 %v408, %v1156
  %v1158 = vpop.f32.mrf.mxu0
  %v1159 = vpop.f32.mrf.mxu0
  %v1160 = vadd.f32 %v408, %v1159
  %v1161 = vpop.f32.mrf.mxu0
  %1162 = vmatprep.mubr.bf16.mxu0 0
  %1163 = vmatmul.mubr.bf16.gmra.mxu0 %v535
  %v1164 = vpop.f32.mrf.mxu0
  %v1165 = vadd.f32 %v408, %v1164
  %v1166 = vpop.f32.mrf.mxu0
  %v1167 = vpop.f32.mrf.mxu0
  %v1168 = vadd.f32 %v408, %v1167
  %v1169 = vpop.f32.mrf.mxu0
  %1170 = vmatprep.mubr.bf16.mxu0 0
  %1171 = vmatmul.mubr.bf16.gmra.mxu0 %v538
  %v1172 = vpop.f32.mrf.mxu0
  %v1173 = vadd.f32 %v408, %v1172
  %v1174 = vpop.f32.mrf.mxu0
  %v1175 = vpop.f32.mrf.mxu0
  %v1176 = vadd.f32 %v408, %v1175
  %v1177 = vpop.f32.mrf.mxu0
  %1178 = vmatprep.mubr.bf16.mxu0 0
  %1179 = vmatmul.mubr.bf16.gmra.mxu0 %v541
  %v1180 = vpop.f32.mrf.mxu0
  %v1181 = vadd.f32 %v408, %v1180
  %v1182 = vpop.f32.mrf.mxu0
  %v1183 = vpop.f32.mrf.mxu0
  %v1184 = vadd.f32 %v408, %v1183
  %v1185 = vpop.f32.mrf.mxu0
  %1186 = vmatprep.mubr.bf16.mxu0 0
  %1187 = vmatmul.mubr.bf16.gmra.mxu0 %v544
  %v1188 = vpop.f32.mrf.mxu0
  %v1189 = vadd.f32 %v408, %v1188
  %v1190 = vpop.f32.mrf.mxu0
  %v1191 = vpop.f32.mrf.mxu0
  %v1192 = vadd.f32 %v408, %v1191
  %v1193 = vpop.f32.mrf.mxu0
  %1194 = vmatprep.mubr.bf16.mxu0 0
  %1195 = vmatmul.mubr.bf16.gmra.mxu0 %v547
  %v1196 = vpop.f32.mrf.mxu0
  %v1197 = vadd.f32 %v408, %v1196
  %v1198 = vpop.f32.mrf.mxu0
  %v1199 = vpop.f32.mrf.mxu0
  %v1200 = vadd.f32 %v408, %v1199
  %v1201 = vpop.f32.mrf.mxu0
  %1202 = vmatprep.mubr.bf16.mxu0 0
  %1203 = vmatmul.mubr.bf16.gmra.mxu0 %v550
  %v1204 = vpop.f32.mrf.mxu0
  %v1205 = vadd.f32 %v408, %v1204
  %v1206 = vpop.f32.mrf.mxu0
  %v1207 = vpop.f32.mrf.mxu0
  %v1208 = vadd.f32 %v408, %v1207
  %v1209 = vpop.f32.mrf.mxu0
  %1210 = vmatprep.mubr.bf16.mxu0 0
  %1211 = vmatmul.mubr.bf16.gmra.mxu0 %v553
  %v1212 = vpop.f32.mrf.mxu0
  %v1213 = vadd.f32 %v408, %v1212
  %v1214 = vpop.f32.mrf.mxu0
  %v1215 = vpop.f32.mrf.mxu0
  %v1216 = vadd.f32 %v408, %v1215
  %v1217 = vpop.f32.mrf.mxu0
  %1218 = vmatprep.mubr.bf16.mxu0 0
  %1219 = vmatmul.mubr.bf16.gmra.mxu0 %v556
  %v1220 = vpop.f32.mrf.mxu0
  %v1221 = vadd.f32 %v408, %v1220
  %v1222 = vpop.f32.mrf.mxu0
  %v1223 = vpop.f32.mrf.mxu0
  %v1224 = vadd.f32 %v408, %v1223
  %v1225 = vpop.f32.mrf.mxu0
  %1226 = vmatprep.mubr.bf16.mxu0 0
  %1227 = vmatmul.mubr.bf16.gmra.mxu0 %v559
  %v1228 = vpop.f32.mrf.mxu0
  %v1229 = vadd.f32 %v408, %v1228
  %v1230 = vpop.f32.mrf.mxu0
  %v1231 = vpop.f32.mrf.mxu0
  %v1232 = vadd.f32 %v408, %v1231
  %v1233 = vpop.f32.mrf.mxu0
  %1234 = vmatprep.mubr.bf16.mxu0 0
  %1235 = vmatmul.mubr.bf16.gmra.mxu0 %v562
  %v1236 = vpop.f32.mrf.mxu0
  %v1237 = vadd.f32 %v408, %v1236
  %v1238 = vpop.f32.mrf.mxu0
  %v1239 = vpop.f32.mrf.mxu0
  %v1240 = vadd.f32 %v408, %v1239
  %v1241 = vpop.f32.mrf.mxu0
  %1242 = vmatprep.mubr.bf16.mxu0 0
  %1243 = vmatmul.mubr.bf16.gmra.mxu0 %v565
  %v1244 = vpop.f32.mrf.mxu0
  %v1245 = vadd.f32 %v408, %v1244
  %v1246 = vpop.f32.mrf.mxu0
  %v1247 = vpop.f32.mrf.mxu0
  %v1248 = vadd.f32 %v408, %v1247
  %v1249 = vpop.f32.mrf.mxu0
  %1250 = vmatprep.mubr.bf16.mxu0 0
  %1251 = vmatmul.mubr.bf16.gmra.mxu0 %v568
  %v1252 = vpop.f32.mrf.mxu0
  %v1253 = vadd.f32 %v408, %v1252
  %v1254 = vpop.f32.mrf.mxu0
  %v1255 = vpop.f32.mrf.mxu0
  %v1256 = vadd.f32 %v408, %v1255
  %v1257 = vpop.f32.mrf.mxu0
  %1258 = vmatprep.mubr.bf16.mxu0 0
  %1259 = vmatmul.mubr.bf16.gmra.mxu0 %v571
  %v1260 = vpop.f32.mrf.mxu0
  %v1261 = vadd.f32 %v408, %v1260
  %v1262 = vpop.f32.mrf.mxu0
  %v1263 = vpop.f32.mrf.mxu0
  %v1264 = vadd.f32 %v408, %v1263
  %v1265 = vpop.f32.mrf.mxu0
  %1266 = vmatprep.mubr.bf16.mxu0 0
  %1267 = vmatmul.mubr.bf16.gmra.mxu0 %v574
  %v1268 = vpop.f32.mrf.mxu0
  %v1269 = vadd.f32 %v408, %v1268
  %v1270 = vpop.f32.mrf.mxu0
  %v1271 = vpop.f32.mrf.mxu0
  %v1272 = vadd.f32 %v408, %v1271
  %v1273 = vpop.f32.mrf.mxu0
  %1274 = vmatprep.mubr.bf16.mxu0 0
  %1275 = vmatmul.mubr.bf16.gmra.mxu0 %v577
  %v1276 = vpop.f32.mrf.mxu0
  %v1277 = vadd.f32 %v408, %v1276
  %v1278 = vpop.f32.mrf.mxu0
  %v1279 = vpop.f32.mrf.mxu0
  %v1280 = vadd.f32 %v408, %v1279
  %v1281 = vpop.f32.mrf.mxu0
  %1282 = vmatprep.mubr.bf16.mxu0 0
  %1283 = vmatmul.mubr.bf16.gmra.mxu0 %v580
  %v1284 = vpop.f32.mrf.mxu0
  %v1285 = vadd.f32 %v408, %v1284
  %v1286 = vpop.f32.mrf.mxu0
  %v1287 = vpop.f32.mrf.mxu0
  %v1288 = vadd.f32 %v408, %v1287
  %v1289 = vpop.f32.mrf.mxu0
  %1290 = vmatprep.mubr.bf16.mxu0 0
  %1291 = vmatmul.mubr.bf16.gmra.mxu0 %v583
  %v1292 = vpop.f32.mrf.mxu0
  %v1293 = vadd.f32 %v408, %v1292
  %v1294 = vpop.f32.mrf.mxu0
  %v1295 = vpop.f32.mrf.mxu0
  %v1296 = vadd.f32 %v408, %v1295
  %v1297 = vpop.f32.mrf.mxu0
  %1298 = vmatprep.mubr.bf16.mxu0 0
  %1299 = vmatmul.mubr.bf16.gmra.mxu0 %v586
  %v1300 = vpop.f32.mrf.mxu0
  %v1301 = vadd.f32 %v408, %v1300
  %v1302 = vpop.f32.mrf.mxu0
  %v1303 = vpop.f32.mrf.mxu0
  %v1304 = vadd.f32 %v408, %v1303
  %v1305 = vpop.f32.mrf.mxu0
  %1306 = vmatprep.mubr.bf16.mxu0 0
  %1307 = vmatmul.mubr.bf16.gmra.mxu0 %v589
  %v1308 = vpop.f32.mrf.mxu0
  %v1309 = vadd.f32 %v408, %v1308
  %v1310 = vpop.f32.mrf.mxu0
  %v1311 = vpop.f32.mrf.mxu0
  %v1312 = vadd.f32 %v408, %v1311
  %v1313 = vpop.f32.mrf.mxu0
  %1314 = vmatprep.mubr.bf16.mxu0 0
  %1315 = vmatmul.mubr.bf16.gmra.mxu0 %v592
  %v1316 = vpop.f32.mrf.mxu0
  %v1317 = vadd.f32 %v408, %v1316
  %v1318 = vpop.f32.mrf.mxu0
  %v1319 = vpop.f32.mrf.mxu0
  %v1320 = vadd.f32 %v408, %v1319
  %v1321 = vpop.f32.mrf.mxu0
  %1322 = vmatprep.mubr.bf16.mxu0 0
  %1323 = vmatmul.mubr.bf16.gmra.mxu0 %v595
  %v1324 = vpop.f32.mrf.mxu0
  %v1325 = vadd.f32 %v408, %v1324
  %v1326 = vpop.f32.mrf.mxu0
  %v1327 = vpop.f32.mrf.mxu0
  %v1328 = vadd.f32 %v408, %v1327
  %v1329 = vpop.f32.mrf.mxu0
  %1330 = vmatprep.mubr.bf16.mxu0 0
  %1331 = vmatmul.mubr.bf16.gmra.mxu0 %v598
  %v1332 = vpop.f32.mrf.mxu0
  %v1333 = vadd.f32 %v408, %v1332
  %v1334 = vpop.f32.mrf.mxu0
  %v1335 = vpop.f32.mrf.mxu0
  %v1336 = vadd.f32 %v408, %v1335
  %v1337 = vpop.f32.mrf.mxu0
  %1338 = vmatprep.mubr.bf16.mxu0 0
  %1339 = vmatmul.mubr.bf16.gmra.mxu0 %v601
  %v1340 = vpop.f32.mrf.mxu0
  %v1341 = vadd.f32 %v408, %v1340
  %v1342 = vpop.f32.mrf.mxu0
  %v1343 = vpop.f32.mrf.mxu0
  %v1344 = vadd.f32 %v408, %v1343
  %v1345 = vpop.f32.mrf.mxu0
  %1346 = vmatprep.mubr.bf16.mxu0 0
  %1347 = vmatmul.mubr.bf16.gmra.mxu0 %v604
  %v1348 = vpop.f32.mrf.mxu0
  %v1349 = vadd.f32 %v408, %v1348
  %v1350 = vpop.f32.mrf.mxu0
  %v1351 = vpop.f32.mrf.mxu0
  %v1352 = vadd.f32 %v408, %v1351
  %v1353 = vpop.f32.mrf.mxu0
  %1354 = vmatprep.mubr.bf16.mxu0 0
  %1355 = vmatmul.mubr.bf16.gmra.mxu0 %v607
  %v1356 = vpop.f32.mrf.mxu0
  %v1357 = vadd.f32 %v408, %v1356
  %v1358 = vpop.f32.mrf.mxu0
  %v1359 = vpop.f32.mrf.mxu0
  %v1360 = vadd.f32 %v408, %v1359
  %v1361 = vpop.f32.mrf.mxu0
  %1362 = vmatprep.mubr.bf16.mxu0 0
  %1363 = vmatmul.mubr.bf16.gmra.mxu0 %v610
  %v1364 = vpop.f32.mrf.mxu0
  %v1365 = vadd.f32 %v408, %v1364
  %v1366 = vpop.f32.mrf.mxu0
  %v1367 = vpop.f32.mrf.mxu0
  %v1368 = vadd.f32 %v408, %v1367
  %v1369 = vpop.f32.mrf.mxu0
  %1370 = vmatprep.mubr.bf16.mxu0 0
  %1371 = vmatmul.mubr.bf16.gmra.mxu0 %v613
  %v1372 = vpop.f32.mrf.mxu0
  %v1373 = vadd.f32 %v408, %v1372
  %v1374 = vpop.f32.mrf.mxu0
  %v1375 = vpop.f32.mrf.mxu0
  %v1376 = vadd.f32 %v408, %v1375
  %v1377 = vpop.f32.mrf.mxu0
  %1378 = vmatprep.mubr.bf16.mxu0 0
  %1379 = vmatmul.mubr.bf16.gmra.mxu0 %v616
  %v1380 = vpop.f32.mrf.mxu0
  %v1381 = vadd.f32 %v408, %v1380
  %v1382 = vpop.f32.mrf.mxu0
  %v1383 = vpop.f32.mrf.mxu0
  %v1384 = vadd.f32 %v408, %v1383
  %v1385 = vpop.f32.mrf.mxu0
  %1386 = vmatprep.mubr.bf16.mxu0 0
  %1387 = vmatmul.mubr.bf16.gmra.mxu0 %v619
  %v1388 = vpop.f32.mrf.mxu0
  %v1389 = vadd.f32 %v408, %v1388
  %v1390 = vpop.f32.mrf.mxu0
  %v1391 = vpop.f32.mrf.mxu0
  %v1392 = vadd.f32 %v408, %v1391
  %v1393 = vpop.f32.mrf.mxu0
  %1394 = vmatprep.mubr.bf16.mxu0 0
  %1395 = vmatmul.mubr.bf16.gmra.mxu0 %v622
  %v1396 = vpop.f32.mrf.mxu0
  %v1397 = vadd.f32 %v408, %v1396
  %v1398 = vpop.f32.mrf.mxu0
  %v1399 = vpop.f32.mrf.mxu0
  %v1400 = vadd.f32 %v408, %v1399
  %v1401 = vpop.f32.mrf.mxu0
  %1402 = vmatprep.mubr.bf16.mxu0 0
  %1403 = vmatmul.mubr.bf16.gmra.mxu0 %v625
  %v1404 = vpop.f32.mrf.mxu0
  %v1405 = vadd.f32 %v408, %v1404
  %v1406 = vpop.f32.mrf.mxu0
  %v1407 = vpop.f32.mrf.mxu0
  %v1408 = vadd.f32 %v408, %v1407
  %v1409 = vpop.f32.mrf.mxu0
  %1410 = vmatprep.mubr.bf16.mxu0 0
  %1411 = vmatmul.mubr.bf16.gmra.mxu0 %v628
  %v1412 = vpop.f32.mrf.mxu0
  %v1413 = vadd.f32 %v408, %v1412
  %v1414 = vpop.f32.mrf.mxu0
  %v1415 = vpop.f32.mrf.mxu0
  %v1416 = vadd.f32 %v408, %v1415
  %v1417 = vpop.f32.mrf.mxu0
  %1418 = vmatprep.mubr.bf16.mxu0 0
  %1419 = vmatmul.mubr.bf16.gmra.mxu0 %v631
  %v1420 = vpop.f32.mrf.mxu0
  %v1421 = vadd.f32 %v408, %v1420
  %v1422 = vpop.f32.mrf.mxu0
  %v1423 = vpop.f32.mrf.mxu0
  %v1424 = vadd.f32 %v408, %v1423
  %v1425 = vpop.f32.mrf.mxu0
  %1426 = vmatprep.mubr.bf16.mxu0 0
  %1427 = vmatmul.mubr.bf16.gmra.mxu0 %v634
  %v1428 = vpop.f32.mrf.mxu0
  %v1429 = vadd.f32 %v408, %v1428
  %v1430 = vpop.f32.mrf.mxu0
  %v1431 = vpop.f32.mrf.mxu0
  %v1432 = vadd.f32 %v408, %v1431
  %v1433 = vpop.f32.mrf.mxu0
  %1434 = vmatprep.mubr.bf16.mxu0 0
  %1435 = vmatmul.mubr.bf16.gmra.mxu0 %v637
  %v1436 = vpop.f32.mrf.mxu0
  %v1437 = vadd.f32 %v408, %v1436
  %v1438 = vpop.f32.mrf.mxu0
  %v1439 = vpop.f32.mrf.mxu0
  %v1440 = vadd.f32 %v408, %v1439
  %v1441 = vpop.f32.mrf.mxu0
  %1442 = vmatprep.mubr.bf16.mxu0 0
  %1443 = vmatmul.mubr.bf16.gmra.mxu0 %v640
  %v1444 = vpop.f32.mrf.mxu0
  %v1445 = vadd.f32 %v408, %v1444
  %v1446 = vpop.f32.mrf.mxu0
  %v1447 = vpop.f32.mrf.mxu0
  %v1448 = vadd.f32 %v408, %v1447
  %v1449 = vpop.f32.mrf.mxu0
  %1450 = vmatprep.mubr.bf16.mxu0 0
  %1451 = vmatmul.mubr.bf16.gmra.mxu0 %v643
  %v1452 = vpop.f32.mrf.mxu0
  %v1453 = vadd.f32 %v408, %v1452
  %v1454 = vpop.f32.mrf.mxu0
  %v1455 = vpop.f32.mrf.mxu0
  %v1456 = vadd.f32 %v408, %v1455
  %v1457 = vpop.f32.mrf.mxu0
  %1458 = vmatprep.mubr.bf16.mxu0 0
  %1459 = vmatmul.mubr.bf16.gmra.mxu0 %v646
  %v1460 = vpop.f32.mrf.mxu0
  %v1461 = vadd.f32 %v408, %v1460
  %v1462 = vpop.f32.mrf.mxu0
  %v1463 = vpop.f32.mrf.mxu0
  %v1464 = vadd.f32 %v408, %v1463
  %v1465 = vpop.f32.mrf.mxu0
  %1466 = vmatprep.mubr.bf16.mxu0 0
  %1467 = vmatmul.mubr.bf16.gmra.mxu0 %v649
  %v1468 = vpop.f32.mrf.mxu0
  %v1469 = vadd.f32 %v408, %v1468
  %v1470 = vpop.f32.mrf.mxu0
  %v1471 = vpop.f32.mrf.mxu0
  %v1472 = vadd.f32 %v408, %v1471
  %v1473 = vpop.f32.mrf.mxu0
  %1474 = vmatprep.mubr.bf16.mxu0 0
  %1475 = vmatmul.mubr.bf16.gmra.mxu0 %v652
  %v1476 = vpop.f32.mrf.mxu0
  %v1477 = vadd.f32 %v408, %v1476
  %v1478 = vpop.f32.mrf.mxu0
  %v1479 = vpop.f32.mrf.mxu0
  %v1480 = vadd.f32 %v408, %v1479
  %v1481 = vpop.f32.mrf.mxu0
  %1482 = vmatprep.mubr.bf16.mxu0 0
  %1483 = vmatmul.mubr.bf16.gmra.mxu0 %v655
  %v1484 = vpop.f32.mrf.mxu0
  %v1485 = vadd.f32 %v408, %v1484
  %v1486 = vpop.f32.mrf.mxu0
  %v1487 = vpop.f32.mrf.mxu0
  %v1488 = vadd.f32 %v408, %v1487
  %v1489 = vpop.f32.mrf.mxu0
  %1490 = vmatprep.mubr.bf16.mxu0 0
  %1491 = vmatmul.mubr.bf16.gmra.mxu0 %v658
  %v1492 = vpop.f32.mrf.mxu0
  %v1493 = vadd.f32 %v408, %v1492
  %v1494 = vpop.f32.mrf.mxu0
  %v1495 = vpop.f32.mrf.mxu0
  %v1496 = vadd.f32 %v408, %v1495
  %v1497 = vpop.f32.mrf.mxu0
  %1498 = vmatprep.mubr.bf16.mxu0 0
  %1499 = vmatmul.mubr.bf16.gmra.mxu0 %v661
  %v1500 = vpop.f32.mrf.mxu0
  %v1501 = vadd.f32 %v408, %v1500
  %v1502 = vpop.f32.mrf.mxu0
  %v1503 = vpop.f32.mrf.mxu0
  %v1504 = vadd.f32 %v408, %v1503
  %v1505 = vpop.f32.mrf.mxu0
  %1506 = vmatprep.mubr.bf16.mxu0 0
  %1507 = vmatmul.mubr.bf16.gmra.mxu0 %v664
  %v1508 = vpop.f32.mrf.mxu0
  %v1509 = vadd.f32 %v408, %v1508
  %v1510 = vpop.f32.mrf.mxu0
  %v1511 = vpop.f32.mrf.mxu0
  %v1512 = vadd.f32 %v408, %v1511
  %v1513 = vpop.f32.mrf.mxu0
  %1514 = vmatprep.mubr.bf16.mxu0 0
  %1515 = vmatmul.mubr.bf16.gmra.mxu0 %v667
  %v1516 = vpop.f32.mrf.mxu0
  %v1517 = vadd.f32 %v408, %v1516
  %v1518 = vpop.f32.mrf.mxu0
  %v1519 = vpop.f32.mrf.mxu0
  %v1520 = vadd.f32 %v408, %v1519
  %v1521 = vpop.f32.mrf.mxu0
  %1522 = vmatprep.mubr.bf16.mxu0 0
  %1523 = vmatmul.mubr.bf16.gmra.mxu0 %v670
  %v1524 = vpop.f32.mrf.mxu0
  %v1525 = vadd.f32 %v408, %v1524
  %v1526 = vpop.f32.mrf.mxu0
  %v1527 = vpop.f32.mrf.mxu0
  %v1528 = vadd.f32 %v408, %v1527
  %v1529 = vpop.f32.mrf.mxu0
  %1530 = vmatprep.mubr.bf16.mxu0 0
  %1531 = vmatmul.mubr.bf16.gmra.mxu0 %v673
  %v1532 = vpop.f32.mrf.mxu0
  %v1533 = vadd.f32 %v408, %v1532
  %v1534 = vpop.f32.mrf.mxu0
  %v1535 = vpop.f32.mrf.mxu0
  %v1536 = vadd.f32 %v408, %v1535
  %v1537 = vpop.f32.mrf.mxu0
  %1538 = vmatprep.mubr.bf16.mxu0 0
  %1539 = vmatmul.mubr.bf16.gmra.mxu0 %v676
  %v1540 = vpop.f32.mrf.mxu0
  %v1541 = vadd.f32 %v408, %v1540
  %v1542 = vpop.f32.mrf.mxu0
  %v1543 = vpop.f32.mrf.mxu0
  %v1544 = vadd.f32 %v408, %v1543
  %v1545 = vpop.f32.mrf.mxu0
  %1546 = vmatprep.mubr.bf16.mxu0 0
  %1547 = vmatmul.mubr.bf16.gmra.mxu0 %v679
  %v1548 = vpop.f32.mrf.mxu0
  %v1549 = vadd.f32 %v408, %v1548
  %v1550 = vpop.f32.mrf.mxu0
  %v1551 = vpop.f32.mrf.mxu0
  %v1552 = vadd.f32 %v408, %v1551
  %v1553 = vpop.f32.mrf.mxu0
  %1554 = vmatprep.mubr.bf16.mxu0 0
  %1555 = vmatmul.mubr.bf16.gmra.mxu0 %v682
  %v1556 = vpop.f32.mrf.mxu0
  %v1557 = vadd.f32 %v408, %v1556
  %v1558 = vpop.f32.mrf.mxu0
  %v1559 = vpop.f32.mrf.mxu0
  %v1560 = vadd.f32 %v408, %v1559
  %v1561 = vpop.f32.mrf.mxu0
  %1562 = vmatprep.mubr.bf16.mxu0 0
  %1563 = vmatmul.mubr.bf16.gmra.mxu0 %v685
  %v1564 = vpop.f32.mrf.mxu0
  %v1565 = vadd.f32 %v408, %v1564
  %v1566 = vpop.f32.mrf.mxu0
  %v1567 = vpop.f32.mrf.mxu0
  %v1568 = vadd.f32 %v408, %v1567
  %v1569 = vpop.f32.mrf.mxu0
  %1570 = vmatprep.mubr.bf16.mxu0 0
  %1571 = vmatmul.mubr.bf16.gmra.mxu0 %v688
  %v1572 = vpop.f32.mrf.mxu0
  %v1573 = vadd.f32 %v408, %v1572
  %v1574 = vpop.f32.mrf.mxu0
  %v1575 = vpop.f32.mrf.mxu0
  %v1576 = vadd.f32 %v408, %v1575
  %v1577 = vpop.f32.mrf.mxu0
  %1578 = vmatprep.mubr.bf16.mxu0 0
  %1579 = vmatmul.mubr.bf16.gmra.mxu0 %v691
  %v1580 = vpop.f32.mrf.mxu0
  %v1581 = vadd.f32 %v408, %v1580
  %v1582 = vpop.f32.mrf.mxu0
  %v1583 = vpop.f32.mrf.mxu0
  %v1584 = vadd.f32 %v408, %v1583
  %v1585 = vpop.f32.mrf.mxu0
  %1586 = vmatprep.mubr.bf16.mxu0 0
  %1587 = vmatmul.mubr.bf16.gmra.mxu0 %v694
  %v1588 = vpop.f32.mrf.mxu0
  %v1589 = vadd.f32 %v408, %v1588
  %v1590 = vpop.f32.mrf.mxu0
  %v1591 = vpop.f32.mrf.mxu0
  %v1592 = vadd.f32 %v408, %v1591
  %v1593 = vpop.f32.mrf.mxu0
  %1594 = vmatprep.mubr.bf16.mxu0 0
  %1595 = vmatmul.mubr.bf16.gmra.mxu0 %v697
  %v1596 = vpop.f32.mrf.mxu0
  %v1597 = vadd.f32 %v408, %v1596
  %v1598 = vpop.f32.mrf.mxu0
  %v1599 = vpop.f32.mrf.mxu0
  %v1600 = vadd.f32 %v408, %v1599
  %v1601 = vpop.f32.mrf.mxu0
  %1602 = vmatprep.mubr.bf16.mxu0 0
  %1603 = vmatmul.mubr.bf16.gmra.mxu0 %v700
  %v1604 = vpop.f32.mrf.mxu0
  %v1605 = vadd.f32 %v408, %v1604
  %v1606 = vpop.f32.mrf.mxu0
  %v1607 = vpop.f32.mrf.mxu0
  %v1608 = vadd.f32 %v408, %v1607
  %v1609 = vpop.f32.mrf.mxu0
  %1610 = vmatprep.mubr.bf16.mxu0 0
  %1611 = vmatmul.mubr.bf16.gmra.mxu0 %v703
  %v1612 = vpop.f32.mrf.mxu0
  %v1613 = vadd.f32 %v408, %v1612
  %v1614 = vpop.f32.mrf.mxu0
  %v1615 = vpop.f32.mrf.mxu0
  %v1616 = vadd.f32 %v408, %v1615
  %v1617 = vpop.f32.mrf.mxu0
  %1618 = vmatprep.mubr.bf16.mxu0 0
  %1619 = vmatmul.mubr.bf16.gmra.mxu0 %v706
  %v1620 = vpop.f32.mrf.mxu0
  %v1621 = vadd.f32 %v408, %v1620
  %v1622 = vpop.f32.mrf.mxu0
  %v1623 = vpop.f32.mrf.mxu0
  %v1624 = vadd.f32 %v408, %v1623
  %v1625 = vpop.f32.mrf.mxu0
  %1626 = vmatprep.mubr.bf16.mxu0 0
  %1627 = vmatmul.mubr.bf16.gmra.mxu0 %v709
  %v1628 = vpop.f32.mrf.mxu0
  %v1629 = vadd.f32 %v408, %v1628
  %v1630 = vpop.f32.mrf.mxu0
  %v1631 = vpop.f32.mrf.mxu0
  %v1632 = vadd.f32 %v408, %v1631
  %v1633 = vpop.f32.mrf.mxu0
  %1634 = vmatprep.mubr.bf16.mxu0 0
  %1635 = vmatmul.mubr.bf16.gmra.mxu0 %v712
  %v1636 = vpop.f32.mrf.mxu0
  %v1637 = vadd.f32 %v408, %v1636
  %v1638 = vpop.f32.mrf.mxu0
  %v1639 = vpop.f32.mrf.mxu0
  %v1640 = vadd.f32 %v408, %v1639
  %v1641 = vpop.f32.mrf.mxu0
  %1642 = vmatprep.mubr.bf16.mxu0 0
  %1643 = vmatmul.mubr.bf16.gmra.mxu0 %v715
  %v1644 = vpop.f32.mrf.mxu0
  %v1645 = vadd.f32 %v408, %v1644
  %v1646 = vpop.f32.mrf.mxu0
  %v1647 = vpop.f32.mrf.mxu0
  %v1648 = vadd.f32 %v408, %v1647
  %v1649 = vpop.f32.mrf.mxu0
  %1650 = vmatprep.mubr.bf16.mxu0 0
  %1651 = vmatmul.mubr.bf16.gmra.mxu0 %v718
  %v1652 = vpop.f32.mrf.mxu0
  %v1653 = vadd.f32 %v408, %v1652
  %v1654 = vpop.f32.mrf.mxu0
  %v1655 = vpop.f32.mrf.mxu0
  %v1656 = vadd.f32 %v408, %v1655
  %v1657 = vpop.f32.mrf.mxu0
  %1658 = vmatprep.mubr.bf16.mxu0 0
  %1659 = vmatmul.mubr.bf16.gmra.mxu0 %v721
  %v1660 = vpop.f32.mrf.mxu0
  %v1661 = vadd.f32 %v408, %v1660
  %v1662 = vpop.f32.mrf.mxu0
  %v1663 = vpop.f32.mrf.mxu0
  %v1664 = vadd.f32 %v408, %v1663
  %v1665 = vpop.f32.mrf.mxu0
  %1666 = vmatprep.mubr.bf16.mxu0 0
  %1667 = vmatmul.mubr.bf16.gmra.mxu0 %v724
  %v1668 = vpop.f32.mrf.mxu0
  %v1669 = vadd.f32 %v408, %v1668
  %v1670 = vpop.f32.mrf.mxu0
  %v1671 = vpop.f32.mrf.mxu0
  %v1672 = vadd.f32 %v408, %v1671
  %v1673 = vpop.f32.mrf.mxu0
  %1674 = vmatprep.mubr.bf16.mxu0 0
  %1675 = vmatmul.mubr.bf16.gmra.mxu0 %v727
  %v1676 = vpop.f32.mrf.mxu0
  %v1677 = vadd.f32 %v408, %v1676
  %v1678 = vpop.f32.mrf.mxu0
  %v1679 = vpop.f32.mrf.mxu0
  %v1680 = vadd.f32 %v408, %v1679
  %v1681 = vpop.f32.mrf.mxu0
  %1682 = vmatprep.mubr.bf16.mxu0 0
  %1683 = vmatmul.mubr.bf16.gmra.mxu0 %v730
  %v1684 = vpop.f32.mrf.mxu0
  %v1685 = vadd.f32 %v408, %v1684
  %v1686 = vpop.f32.mrf.mxu0
  %v1687 = vpop.f32.mrf.mxu0
  %v1688 = vadd.f32 %v408, %v1687
  %v1689 = vpop.f32.mrf.mxu0
  %1690 = vmatprep.mubr.bf16.mxu0 0
  %1691 = vmatmul.mubr.bf16.gmra.mxu0 %v733
  %v1692 = vpop.f32.mrf.mxu0
  %v1693 = vadd.f32 %v408, %v1692
  %v1694 = vpop.f32.mrf.mxu0
  %v1695 = vpop.f32.mrf.mxu0
  %v1696 = vadd.f32 %v408, %v1695
  %v1697 = vpop.f32.mrf.mxu0
  %1698 = vmatprep.mubr.bf16.mxu0 0
  %1699 = vmatmul.mubr.bf16.gmra.mxu0 %v736
  %v1700 = vpop.f32.mrf.mxu0
  %v1701 = vadd.f32 %v408, %v1700
  %v1702 = vpop.f32.mrf.mxu0
  %v1703 = vpop.f32.mrf.mxu0
  %v1704 = vadd.f32 %v408, %v1703
  %v1705 = vpop.f32.mrf.mxu0
  %1706 = vmatprep.mubr.bf16.mxu0 0
  %1707 = vmatmul.mubr.bf16.gmra.mxu0 %v739
  %v1708 = vpop.f32.mrf.mxu0
  %v1709 = vadd.f32 %v408, %v1708
  %v1710 = vpop.f32.mrf.mxu0
  %v1711 = vpop.f32.mrf.mxu0
  %v1712 = vadd.f32 %v408, %v1711
  %v1713 = vpop.f32.mrf.mxu0
  %1714 = vmatprep.mubr.bf16.mxu0 0
  %1715 = vmatmul.mubr.bf16.gmra.mxu0 %v742
  %v1716 = vpop.f32.mrf.mxu0
  %v1717 = vadd.f32 %v408, %v1716
  %v1718 = vpop.f32.mrf.mxu0
  %v1719 = vpop.f32.mrf.mxu0
  %v1720 = vadd.f32 %v408, %v1719
  %v1721 = vpop.f32.mrf.mxu0
  %1722 = vmatprep.mubr.bf16.mxu0 0
  %1723 = vmatmul.mubr.bf16.gmra.mxu0 %v745
  %v1724 = vpop.f32.mrf.mxu0
  %v1725 = vadd.f32 %v408, %v1724
  %v1726 = vpop.f32.mrf.mxu0
  %v1727 = vpop.f32.mrf.mxu0
  %v1728 = vadd.f32 %v408, %v1727
  %v1729 = vpop.f32.mrf.mxu0
  %1730 = vmatprep.mubr.bf16.mxu0 0
  %1731 = vmatmul.mubr.bf16.gmra.mxu0 %v748
  %v1732 = vpop.f32.mrf.mxu0
  %v1733 = vadd.f32 %v408, %v1732
  %v1734 = vpop.f32.mrf.mxu0
  %v1735 = vpop.f32.mrf.mxu0
  %v1736 = vadd.f32 %v408, %v1735
  %v1737 = vpop.f32.mrf.mxu0
  %1738 = vmatprep.mubr.bf16.mxu0 0
  %1739 = vmatmul.mubr.bf16.gmra.mxu0 %v751
  %v1740 = vpop.f32.mrf.mxu0
  %v1741 = vadd.f32 %v408, %v1740
  %v1742 = vpop.f32.mrf.mxu0
  %v1743 = vpop.f32.mrf.mxu0
  %v1744 = vadd.f32 %v408, %v1743
  %v1745 = vpop.f32.mrf.mxu0
  %1746 = vmatprep.mubr.bf16.mxu0 0
  %1747 = vmatmul.mubr.bf16.gmra.mxu0 %v754
  %v1748 = vpop.f32.mrf.mxu0
  %v1749 = vadd.f32 %v408, %v1748
  %v1750 = vpop.f32.mrf.mxu0
  %v1751 = vpop.f32.mrf.mxu0
  %v1752 = vadd.f32 %v408, %v1751
  %v1753 = vpop.f32.mrf.mxu0
  %1754 = vmatprep.mubr.bf16.mxu0 0
  %1755 = vmatmul.mubr.bf16.gmra.mxu0 %v757
  %v1756 = vpop.f32.mrf.mxu0
  %v1757 = vadd.f32 %v408, %v1756
  %v1758 = vpop.f32.mrf.mxu0
  %v1759 = vpop.f32.mrf.mxu0
  %v1760 = vadd.f32 %v408, %v1759
  %v1761 = vpop.f32.mrf.mxu0
  %1762 = vmatprep.mubr.bf16.mxu0 0
  %1763 = vmatmul.mubr.bf16.gmra.mxu0 %v760
  %v1764 = vpop.f32.mrf.mxu0
  %v1765 = vadd.f32 %v408, %v1764
  %v1766 = vpop.f32.mrf.mxu0
  %v1767 = vpop.f32.mrf.mxu0
  %v1768 = vadd.f32 %v408, %v1767
  %v1769 = vpop.f32.mrf.mxu0
  %1770 = vmatprep.mubr.bf16.mxu0 0
  %1771 = vmatmul.mubr.bf16.gmra.mxu0 %v763
  %v1772 = vpop.f32.mrf.mxu0
  %v1773 = vadd.f32 %v408, %v1772
  %v1774 = vpop.f32.mrf.mxu0
  %v1775 = vpop.f32.mrf.mxu0
  %v1776 = vadd.f32 %v408, %v1775
  %v1777 = vpop.f32.mrf.mxu0
  %1778 = vmatprep.mubr.bf16.mxu0 0
  %1779 = vmatmul.mubr.bf16.gmra.mxu0 %v766
  %v1780 = vpop.f32.mrf.mxu0
  %v1781 = vadd.f32 %v408, %v1780
  %v1782 = vpop.f32.mrf.mxu0
  %v1783 = vpop.f32.mrf.mxu0
  %v1784 = vadd.f32 %v408, %v1783
  %v1785 = vpop.f32.mrf.mxu0
  %1786 = vmatprep.mubr.bf16.mxu0 0
  %1787 = vmatmul.mubr.bf16.gmra.mxu0 %v769
  %v1788 = vpop.f32.mrf.mxu0
  %v1789 = vadd.f32 %v408, %v1788
  %v1790 = vpop.f32.mrf.mxu0
  %v1791 = vpop.f32.mrf.mxu0
  %v1792 = vadd.f32 %v408, %v1791
  %v1793 = vpop.f32.mrf.mxu0
  %1794 = vmatprep.mubr.bf16.mxu0 0
  %1795 = vmatmul.mubr.bf16.gmra.mxu0 %v772
  %v1796 = vpop.f32.mrf.mxu0
  %v1797 = vadd.f32 %v408, %v1796
  %v1798 = vpop.f32.mrf.mxu0
  %v1799 = vpop.f32.mrf.mxu0
  %v1800 = vadd.f32 %v408, %v1799
  %v1801 = vpop.f32.mrf.mxu0
  %1802 = vmatprep.mubr.bf16.mxu0 0
  %1803 = vmatmul.mubr.bf16.gmra.mxu0 %v775
  %v1804 = vpop.f32.mrf.mxu0
  %v1805 = vadd.f32 %v408, %v1804
  %v1806 = vpop.f32.mrf.mxu0
  %v1807 = vpop.f32.mrf.mxu0
  %v1808 = vadd.f32 %v408, %v1807
  %v1809 = vpop.f32.mrf.mxu0
  %1810 = vmatprep.mubr.bf16.mxu0 0
  %1811 = vmatmul.mubr.bf16.gmra.mxu0 %v778
  %v1812 = vpop.f32.mrf.mxu0
  %v1813 = vadd.f32 %v408, %v1812
  %v1814 = vpop.f32.mrf.mxu0
  %v1815 = vpop.f32.mrf.mxu0
  %v1816 = vadd.f32 %v408, %v1815
  %v1817 = vpop.f32.mrf.mxu0
  %1818 = vmatprep.mubr.bf16.mxu0 0
  %1819 = vmatmul.mubr.bf16.gmra.mxu0 %v781
  %v1820 = vpop.f32.mrf.mxu0
  %v1821 = vadd.f32 %v408, %v1820
  %v1822 = vpop.f32.mrf.mxu0
  %v1823 = vpop.f32.mrf.mxu0
  %v1824 = vadd.f32 %v408, %v1823
  %v1825 = vpop.f32.mrf.mxu0
  %1826 = vmatprep.mubr.bf16.mxu0 0
  %1827 = vmatmul.mubr.bf16.gmra.mxu0 %v784
  %v1828 = vpop.f32.mrf.mxu0
  %v1829 = vadd.f32 %v408, %v1828
  %v1830 = vpop.f32.mrf.mxu0
  %v1831 = vpop.f32.mrf.mxu0
  %v1832 = vadd.f32 %v408, %v1831
  %v1833 = vpop.f32.mrf.mxu0
  %1834 = vmatprep.mubr.bf16.mxu0 0
  %1835 = vmatmul.mubr.bf16.gmra.mxu0 %v787
  %v1836 = vpop.f32.mrf.mxu0
  %v1837 = vadd.f32 %v408, %v1836
  %v1838 = vpop.f32.mrf.mxu0
  %v1839 = vpop.f32.mrf.mxu0
  %v1840 = vadd.f32 %v408, %v1839
  %v1841 = vpop.f32.mrf.mxu0
  %1842 = vmatprep.mubr.bf16.mxu0 0
  %1843 = vmatmul.mubr.bf16.gmra.mxu0 %v790
  %v1844 = vpop.f32.mrf.mxu0
  %v1845 = vadd.f32 %v408, %v1844
  %v1846 = vpop.f32.mrf.mxu0
  %v1847 = vpop.f32.mrf.mxu0
  %v1848 = vadd.f32 %v408, %v1847
  %v1849 = vpop.f32.mrf.mxu0
  %1850 = vmatprep.mubr.bf16.mxu0 0
  %1851 = vmatmul.mubr.bf16.gmra.mxu0 %v793
  %v1852 = vpop.f32.mrf.mxu0
  %v1853 = vadd.f32 %v408, %v1852
  %v1854 = vpop.f32.mrf.mxu0
  %v1855 = vpop.f32.mrf.mxu0
  %v1856 = vadd.f32 %v408, %v1855
  %v1857 = vpop.f32.mrf.mxu0
  %1858 = vdwg.mxu0
  %v1859 = vxor.u32 %v837, 2147483648
  %v1860 = vxor.u32 %v840, 2147483648
  %v1861 = vxor.u32 %v845, 2147483648
  %v1862 = vxor.u32 %v848, 2147483648
  %v1863 = vxor.u32 %v853, 2147483648
  %v1864 = vxor.u32 %v856, 2147483648
  %v1865 = vxor.u32 %v861, 2147483648
  %v1866 = vxor.u32 %v864, 2147483648
  %v1867 = vxor.u32 %v869, 2147483648
  %v1868 = vxor.u32 %v872, 2147483648
  %v1869 = vxor.u32 %v877, 2147483648
  %v1870 = vxor.u32 %v880, 2147483648
  %v1871 = vxor.u32 %v885, 2147483648
  %v1872 = vxor.u32 %v888, 2147483648
  %v1873 = vxor.u32 %v893, 2147483648
  %v1874 = vxor.u32 %v896, 2147483648
  %v1875 = vxor.u32 %v901, 2147483648
  %v1876 = vxor.u32 %v904, 2147483648
  %v1877 = vxor.u32 %v909, 2147483648
  %v1878 = vxor.u32 %v912, 2147483648
  %v1879 = vxor.u32 %v917, 2147483648
  %v1880 = vxor.u32 %v920, 2147483648
  %v1881 = vxor.u32 %v925, 2147483648
  %v1882 = vxor.u32 %v928, 2147483648
  %v1883 = vxor.u32 %v933, 2147483648
  %v1884 = vxor.u32 %v936, 2147483648
  %v1885 = vxor.u32 %v941, 2147483648
  %v1886 = vxor.u32 %v944, 2147483648
  %v1887 = vxor.u32 %v949, 2147483648
  %v1888 = vxor.u32 %v952, 2147483648
  %v1889 = vxor.u32 %v957, 2147483648
  %v1890 = vxor.u32 %v960, 2147483648
  %v1891 = vxor.u32 %v965, 2147483648
  %v1892 = vxor.u32 %v968, 2147483648
  %v1893 = vxor.u32 %v973, 2147483648
  %v1894 = vxor.u32 %v976, 2147483648
  %v1895 = vxor.u32 %v981, 2147483648
  %v1896 = vxor.u32 %v984, 2147483648
  %v1897 = vxor.u32 %v989, 2147483648
  %v1898 = vxor.u32 %v992, 2147483648
  %v1899 = vxor.u32 %v997, 2147483648
  %v1900 = vxor.u32 %v1000, 2147483648
  %v1901 = vxor.u32 %v1005, 2147483648
  %v1902 = vxor.u32 %v1008, 2147483648
  %v1903 = vxor.u32 %v1013, 2147483648
  %v1904 = vxor.u32 %v1016, 2147483648
  %v1905 = vxor.u32 %v1021, 2147483648
  %v1906 = vxor.u32 %v1024, 2147483648
  %v1907 = vxor.u32 %v1029, 2147483648
  %v1908 = vxor.u32 %v1032, 2147483648
  %v1909 = vxor.u32 %v1037, 2147483648
  %v1910 = vxor.u32 %v1040, 2147483648
  %v1911 = vxor.u32 %v1045, 2147483648
  %v1912 = vxor.u32 %v1048, 2147483648
  %v1913 = vxor.u32 %v1053, 2147483648
  %v1914 = vxor.u32 %v1056, 2147483648
  %v1915 = vxor.u32 %v1061, 2147483648
  %v1916 = vxor.u32 %v1064, 2147483648
  %v1917 = vxor.u32 %v1069, 2147483648
  %v1918 = vxor.u32 %v1072, 2147483648
  %v1919 = vxor.u32 %v1077, 2147483648
  %v1920 = vxor.u32 %v1080, 2147483648
  %v1921 = vxor.u32 %v1085, 2147483648
  %v1922 = vxor.u32 %v1088, 2147483648
  %v1923 = vxor.u32 %v1093, 2147483648
  %v1924 = vxor.u32 %v1096, 2147483648
  %v1925 = vxor.u32 %v1101, 2147483648
  %v1926 = vxor.u32 %v1104, 2147483648
  %v1927 = vxor.u32 %v1109, 2147483648
  %v1928 = vxor.u32 %v1112, 2147483648
  %v1929 = vxor.u32 %v1117, 2147483648
  %v1930 = vxor.u32 %v1120, 2147483648
  %v1931 = vxor.u32 %v1125, 2147483648
  %v1932 = vxor.u32 %v1128, 2147483648
  %v1933 = vxor.u32 %v1133, 2147483648
  %v1934 = vxor.u32 %v1136, 2147483648
  %v1935 = vxor.u32 %v1141, 2147483648
  %v1936 = vxor.u32 %v1144, 2147483648
  %v1937 = vxor.u32 %v1149, 2147483648
  %v1938 = vxor.u32 %v1152, 2147483648
  %v1939 = vxor.u32 %v1157, 2147483648
  %v1940 = vxor.u32 %v1160, 2147483648
  %v1941 = vxor.u32 %v1165, 2147483648
  %v1942 = vxor.u32 %v1168, 2147483648
  %v1943 = vxor.u32 %v1173, 2147483648
  %v1944 = vxor.u32 %v1176, 2147483648
  %v1945 = vxor.u32 %v1181, 2147483648
  %v1946 = vxor.u32 %v1184, 2147483648
  %v1947 = vxor.u32 %v1189, 2147483648
  %v1948 = vxor.u32 %v1192, 2147483648
  %v1949 = vxor.u32 %v1197, 2147483648
  %v1950 = vxor.u32 %v1200, 2147483648
  %v1951 = vxor.u32 %v1205, 2147483648
  %v1952 = vxor.u32 %v1208, 2147483648
  %v1953 = vxor.u32 %v1213, 2147483648
  %v1954 = vxor.u32 %v1216, 2147483648
  %v1955 = vxor.u32 %v1221, 2147483648
  %v1956 = vxor.u32 %v1224, 2147483648
  %v1957 = vxor.u32 %v1229, 2147483648
  %v1958 = vxor.u32 %v1232, 2147483648
  %v1959 = vxor.u32 %v1237, 2147483648
  %v1960 = vxor.u32 %v1240, 2147483648
  %v1961 = vxor.u32 %v1245, 2147483648
  %v1962 = vxor.u32 %v1248, 2147483648
  %v1963 = vxor.u32 %v1253, 2147483648
  %v1964 = vxor.u32 %v1256, 2147483648
  %v1965 = vxor.u32 %v1261, 2147483648
  %v1966 = vxor.u32 %v1264, 2147483648
  %v1967 = vxor.u32 %v1269, 2147483648
  %v1968 = vxor.u32 %v1272, 2147483648
  %v1969 = vxor.u32 %v1277, 2147483648
  %v1970 = vxor.u32 %v1280, 2147483648
  %v1971 = vxor.u32 %v1285, 2147483648
  %v1972 = vxor.u32 %v1288, 2147483648
  %v1973 = vxor.u32 %v1293, 2147483648
  %v1974 = vxor.u32 %v1296, 2147483648
  %v1975 = vxor.u32 %v1301, 2147483648
  %v1976 = vxor.u32 %v1304, 2147483648
  %v1977 = vxor.u32 %v1309, 2147483648
  %v1978 = vxor.u32 %v1312, 2147483648
  %v1979 = vxor.u32 %v1317, 2147483648
  %v1980 = vxor.u32 %v1320, 2147483648
  %v1981 = vxor.u32 %v1325, 2147483648
  %v1982 = vxor.u32 %v1328, 2147483648
  %v1983 = vxor.u32 %v1333, 2147483648
  %v1984 = vxor.u32 %v1336, 2147483648
  %v1985 = vxor.u32 %v1341, 2147483648
  %v1986 = vxor.u32 %v1344, 2147483648
  %v1987 = vxor.u32 %v1349, 2147483648
  %v1988 = vxor.u32 %v1352, 2147483648
  %v1989 = vxor.u32 %v1357, 2147483648
  %v1990 = vxor.u32 %v1360, 2147483648
  %v1991 = vxor.u32 %v1365, 2147483648
  %v1992 = vxor.u32 %v1368, 2147483648
  %v1993 = vxor.u32 %v1373, 2147483648
  %v1994 = vxor.u32 %v1376, 2147483648
  %v1995 = vxor.u32 %v1381, 2147483648
  %v1996 = vxor.u32 %v1384, 2147483648
  %v1997 = vxor.u32 %v1389, 2147483648
  %v1998 = vxor.u32 %v1392, 2147483648
  %v1999 = vxor.u32 %v1397, 2147483648
  %v2000 = vxor.u32 %v1400, 2147483648
  %v2001 = vxor.u32 %v1405, 2147483648
  %v2002 = vxor.u32 %v1408, 2147483648
  %v2003 = vxor.u32 %v1413, 2147483648
  %v2004 = vxor.u32 %v1416, 2147483648
  %v2005 = vxor.u32 %v1421, 2147483648
  %v2006 = vxor.u32 %v1424, 2147483648
  %v2007 = vxor.u32 %v1429, 2147483648
  %v2008 = vxor.u32 %v1432, 2147483648
  %v2009 = vxor.u32 %v1437, 2147483648
  %v2010 = vxor.u32 %v1440, 2147483648
  %v2011 = vxor.u32 %v1445, 2147483648
  %v2012 = vxor.u32 %v1448, 2147483648
  %v2013 = vxor.u32 %v1453, 2147483648
  %v2014 = vxor.u32 %v1456, 2147483648
  %v2015 = vxor.u32 %v1461, 2147483648
  %v2016 = vxor.u32 %v1464, 2147483648
  %v2017 = vxor.u32 %v1469, 2147483648
  %v2018 = vxor.u32 %v1472, 2147483648
  %v2019 = vxor.u32 %v1477, 2147483648
  %v2020 = vxor.u32 %v1480, 2147483648
  %v2021 = vxor.u32 %v1485, 2147483648
  %v2022 = vxor.u32 %v1488, 2147483648
  %v2023 = vxor.u32 %v1493, 2147483648
  %v2024 = vxor.u32 %v1496, 2147483648
  %v2025 = vxor.u32 %v1501, 2147483648
  %v2026 = vxor.u32 %v1504, 2147483648
  %v2027 = vxor.u32 %v1509, 2147483648
  %v2028 = vxor.u32 %v1512, 2147483648
  %v2029 = vxor.u32 %v1517, 2147483648
  %v2030 = vxor.u32 %v1520, 2147483648
  %v2031 = vxor.u32 %v1525, 2147483648
  %v2032 = vxor.u32 %v1528, 2147483648
  %v2033 = vxor.u32 %v1533, 2147483648
  %v2034 = vxor.u32 %v1536, 2147483648
  %v2035 = vxor.u32 %v1541, 2147483648
  %v2036 = vxor.u32 %v1544, 2147483648
  %v2037 = vxor.u32 %v1549, 2147483648
  %v2038 = vxor.u32 %v1552, 2147483648
  %v2039 = vxor.u32 %v1557, 2147483648
  %v2040 = vxor.u32 %v1560, 2147483648
  %v2041 = vxor.u32 %v1565, 2147483648
  %v2042 = vxor.u32 %v1568, 2147483648
  %v2043 = vxor.u32 %v1573, 2147483648
  %v2044 = vxor.u32 %v1576, 2147483648
  %v2045 = vxor.u32 %v1581, 2147483648
  %v2046 = vxor.u32 %v1584, 2147483648
  %v2047 = vxor.u32 %v1589, 2147483648
  %v2048 = vxor.u32 %v1592, 2147483648
  %v2049 = vxor.u32 %v1597, 2147483648
  %v2050 = vxor.u32 %v1600, 2147483648
  %v2051 = vxor.u32 %v1605, 2147483648
  %v2052 = vxor.u32 %v1608, 2147483648
  %v2053 = vxor.u32 %v1613, 2147483648
  %v2054 = vxor.u32 %v1616, 2147483648
  %v2055 = vxor.u32 %v1621, 2147483648
  %v2056 = vxor.u32 %v1624, 2147483648
  %v2057 = vxor.u32 %v1629, 2147483648
  %v2058 = vxor.u32 %v1632, 2147483648
  %v2059 = vxor.u32 %v1637, 2147483648
  %v2060 = vxor.u32 %v1640, 2147483648
  %v2061 = vxor.u32 %v1645, 2147483648
  %v2062 = vxor.u32 %v1648, 2147483648
  %v2063 = vxor.u32 %v1653, 2147483648
  %v2064 = vxor.u32 %v1656, 2147483648
  %v2065 = vxor.u32 %v1661, 2147483648
  %v2066 = vxor.u32 %v1664, 2147483648
  %v2067 = vxor.u32 %v1669, 2147483648
  %v2068 = vxor.u32 %v1672, 2147483648
  %v2069 = vxor.u32 %v1677, 2147483648
  %v2070 = vxor.u32 %v1680, 2147483648
  %v2071 = vxor.u32 %v1685, 2147483648
  %v2072 = vxor.u32 %v1688, 2147483648
  %v2073 = vxor.u32 %v1693, 2147483648
  %v2074 = vxor.u32 %v1696, 2147483648
  %v2075 = vxor.u32 %v1701, 2147483648
  %v2076 = vxor.u32 %v1704, 2147483648
  %v2077 = vxor.u32 %v1709, 2147483648
  %v2078 = vxor.u32 %v1712, 2147483648
  %v2079 = vxor.u32 %v1717, 2147483648
  %v2080 = vxor.u32 %v1720, 2147483648
  %v2081 = vxor.u32 %v1725, 2147483648
  %v2082 = vxor.u32 %v1728, 2147483648
  %v2083 = vxor.u32 %v1733, 2147483648
  %v2084 = vxor.u32 %v1736, 2147483648
  %v2085 = vxor.u32 %v1741, 2147483648
  %v2086 = vxor.u32 %v1744, 2147483648
  %v2087 = vxor.u32 %v1749, 2147483648
  %v2088 = vxor.u32 %v1752, 2147483648
  %v2089 = vxor.u32 %v1757, 2147483648
  %v2090 = vxor.u32 %v1760, 2147483648
  %v2091 = vxor.u32 %v1765, 2147483648
  %v2092 = vxor.u32 %v1768, 2147483648
  %v2093 = vxor.u32 %v1773, 2147483648
  %v2094 = vxor.u32 %v1776, 2147483648
  %v2095 = vxor.u32 %v1781, 2147483648
  %v2096 = vxor.u32 %v1784, 2147483648
  %v2097 = vxor.u32 %v1789, 2147483648
  %v2098 = vxor.u32 %v1792, 2147483648
  %v2099 = vxor.u32 %v1797, 2147483648
  %v2100 = vxor.u32 %v1800, 2147483648
  %v2101 = vxor.u32 %v1805, 2147483648
  %v2102 = vxor.u32 %v1808, 2147483648
  %v2103 = vxor.u32 %v1813, 2147483648
  %v2104 = vxor.u32 %v1816, 2147483648
  %v2105 = vxor.u32 %v1821, 2147483648
  %v2106 = vxor.u32 %v1824, 2147483648
  %v2107 = vxor.u32 %v1829, 2147483648
  %v2108 = vxor.u32 %v1832, 2147483648
  %v2109 = vxor.u32 %v1837, 2147483648
  %v2110 = vxor.u32 %v1840, 2147483648
  %v2111 = vxor.u32 %v1845, 2147483648
  %v2112 = vxor.u32 %v1848, 2147483648
  %v2113 = vxor.u32 %v1853, 2147483648
  %v2114 = vxor.u32 %v1856, 2147483648
  %v2115 = vmul.f32 %v1859, 1.442695
  %v2116 = vpow.pop %v2115
  %v2117 = vmul.f32 %v1860, 1.442695
  %v2118 = vpow.pop %v2117
  %v2119 = vmul.f32 %v1861, 1.442695
  %v2120 = vpow.pop %v2119
  %v2121 = vmul.f32 %v1862, 1.442695
  %v2122 = vpow.pop %v2121
  %v2123 = vmul.f32 %v1863, 1.442695
  %v2124 = vpow.pop %v2123
  %v2125 = vmul.f32 %v1864, 1.442695
  %v2126 = vpow.pop %v2125
  %v2127 = vmul.f32 %v1865, 1.442695
  %v2128 = vpow.pop %v2127
  %v2129 = vmul.f32 %v1866, 1.442695
  %v2130 = vpow.pop %v2129
  %v2131 = vmul.f32 %v1867, 1.442695
  %v2132 = vpow.pop %v2131
  %v2133 = vmul.f32 %v1868, 1.442695
  %v2134 = vpow.pop %v2133
  %v2135 = vmul.f32 %v1869, 1.442695
  %v2136 = vpow.pop %v2135
  %v2137 = vmul.f32 %v1870, 1.442695
  %v2138 = vpow.pop %v2137
  %v2139 = vmul.f32 %v1871, 1.442695
  %v2140 = vpow.pop %v2139
  %v2141 = vmul.f32 %v1872, 1.442695
  %v2142 = vpow.pop %v2141
  %v2143 = vmul.f32 %v1873, 1.442695
  %v2144 = vpow.pop %v2143
  %v2145 = vmul.f32 %v1874, 1.442695
  %v2146 = vpow.pop %v2145
  %v2147 = vmul.f32 %v1875, 1.442695
  %v2148 = vpow.pop %v2147
  %v2149 = vmul.f32 %v1876, 1.442695
  %v2150 = vpow.pop %v2149
  %v2151 = vmul.f32 %v1877, 1.442695
  %v2152 = vpow.pop %v2151
  %v2153 = vmul.f32 %v1878, 1.442695
  %v2154 = vpow.pop %v2153
  %v2155 = vmul.f32 %v1879, 1.442695
  %v2156 = vpow.pop %v2155
  %v2157 = vmul.f32 %v1880, 1.442695
  %v2158 = vpow.pop %v2157
  %v2159 = vmul.f32 %v1881, 1.442695
  %v2160 = vpow.pop %v2159
  %v2161 = vmul.f32 %v1882, 1.442695
  %v2162 = vpow.pop %v2161
  %v2163 = vmul.f32 %v1883, 1.442695
  %v2164 = vpow.pop %v2163
  %v2165 = vmul.f32 %v1884, 1.442695
  %v2166 = vpow.pop %v2165
  %v2167 = vmul.f32 %v1885, 1.442695
  %v2168 = vpow.pop %v2167
  %v2169 = vmul.f32 %v1886, 1.442695
  %v2170 = vpow.pop %v2169
  %v2171 = vmul.f32 %v1887, 1.442695
  %v2172 = vpow.pop %v2171
  %v2173 = vmul.f32 %v1888, 1.442695
  %v2174 = vpow.pop %v2173
  %v2175 = vmul.f32 %v1889, 1.442695
  %v2176 = vpow.pop %v2175
  %v2177 = vmul.f32 %v1890, 1.442695
  %v2178 = vpow.pop %v2177
  %v2179 = vmul.f32 %v1891, 1.442695
  %v2180 = vpow.pop %v2179
  %v2181 = vmul.f32 %v1892, 1.442695
  %v2182 = vpow.pop %v2181
  %v2183 = vmul.f32 %v1893, 1.442695
  %v2184 = vpow.pop %v2183
  %v2185 = vmul.f32 %v1894, 1.442695
  %v2186 = vpow.pop %v2185
  %v2187 = vmul.f32 %v1895, 1.442695
  %v2188 = vpow.pop %v2187
  %v2189 = vmul.f32 %v1896, 1.442695
  %v2190 = vpow.pop %v2189
  %v2191 = vmul.f32 %v1897, 1.442695
  %v2192 = vpow.pop %v2191
  %v2193 = vmul.f32 %v1898, 1.442695
  %v2194 = vpow.pop %v2193
  %v2195 = vmul.f32 %v1899, 1.442695
  %v2196 = vpow.pop %v2195
  %v2197 = vmul.f32 %v1900, 1.442695
  %v2198 = vpow.pop %v2197
  %v2199 = vmul.f32 %v1901, 1.442695
  %v2200 = vpow.pop %v2199
  %v2201 = vmul.f32 %v1902, 1.442695
  %v2202 = vpow.pop %v2201
  %v2203 = vmul.f32 %v1903, 1.442695
  %v2204 = vpow.pop %v2203
  %v2205 = vmul.f32 %v1904, 1.442695
  %v2206 = vpow.pop %v2205
  %v2207 = vmul.f32 %v1905, 1.442695
  %v2208 = vpow.pop %v2207
  %v2209 = vmul.f32 %v1906, 1.442695
  %v2210 = vpow.pop %v2209
  %v2211 = vmul.f32 %v1907, 1.442695
  %v2212 = vpow.pop %v2211
  %v2213 = vmul.f32 %v1908, 1.442695
  %v2214 = vpow.pop %v2213
  %v2215 = vmul.f32 %v1909, 1.442695
  %v2216 = vpow.pop %v2215
  %v2217 = vmul.f32 %v1910, 1.442695
  %v2218 = vpow.pop %v2217
  %v2219 = vmul.f32 %v1911, 1.442695
  %v2220 = vpow.pop %v2219
  %v2221 = vmul.f32 %v1912, 1.442695
  %v2222 = vpow.pop %v2221
  %v2223 = vmul.f32 %v1913, 1.442695
  %v2224 = vpow.pop %v2223
  %v2225 = vmul.f32 %v1914, 1.442695
  %v2226 = vpow.pop %v2225
  %v2227 = vmul.f32 %v1915, 1.442695
  %v2228 = vpow.pop %v2227
  %v2229 = vmul.f32 %v1916, 1.442695
  %v2230 = vpow.pop %v2229
  %v2231 = vmul.f32 %v1917, 1.442695
  %v2232 = vpow.pop %v2231
  %v2233 = vmul.f32 %v1918, 1.442695
  %v2234 = vpow.pop %v2233
  %v2235 = vmul.f32 %v1919, 1.442695
  %v2236 = vpow.pop %v2235
  %v2237 = vmul.f32 %v1920, 1.442695
  %v2238 = vpow.pop %v2237
  %v2239 = vmul.f32 %v1921, 1.442695
  %v2240 = vpow.pop %v2239
  %v2241 = vmul.f32 %v1922, 1.442695
  %v2242 = vpow.pop %v2241
  %v2243 = vmul.f32 %v1923, 1.442695
  %v2244 = vpow.pop %v2243
  %v2245 = vmul.f32 %v1924, 1.442695
  %v2246 = vpow.pop %v2245
  %v2247 = vmul.f32 %v1925, 1.442695
  %v2248 = vpow.pop %v2247
  %v2249 = vmul.f32 %v1926, 1.442695
  %v2250 = vpow.pop %v2249
  %v2251 = vmul.f32 %v1927, 1.442695
  %v2252 = vpow.pop %v2251
  %v2253 = vmul.f32 %v1928, 1.442695
  %v2254 = vpow.pop %v2253
  %v2255 = vmul.f32 %v1929, 1.442695
  %v2256 = vpow.pop %v2255
  %v2257 = vmul.f32 %v1930, 1.442695
  %v2258 = vpow.pop %v2257
  %v2259 = vmul.f32 %v1931, 1.442695
  %v2260 = vpow.pop %v2259
  %v2261 = vmul.f32 %v1932, 1.442695
  %v2262 = vpow.pop %v2261
  %v2263 = vmul.f32 %v1933, 1.442695
  %v2264 = vpow.pop %v2263
  %v2265 = vmul.f32 %v1934, 1.442695
  %v2266 = vpow.pop %v2265
  %v2267 = vmul.f32 %v1935, 1.442695
  %v2268 = vpow.pop %v2267
  %v2269 = vmul.f32 %v1936, 1.442695
  %v2270 = vpow.pop %v2269
  %v2271 = vmul.f32 %v1937, 1.442695
  %v2272 = vpow.pop %v2271
  %v2273 = vmul.f32 %v1938, 1.442695
  %v2274 = vpow.pop %v2273
  %v2275 = vmul.f32 %v1939, 1.442695
  %v2276 = vpow.pop %v2275
  %v2277 = vmul.f32 %v1940, 1.442695
  %v2278 = vpow.pop %v2277
  %v2279 = vmul.f32 %v1941, 1.442695
  %v2280 = vpow.pop %v2279
  %v2281 = vmul.f32 %v1942, 1.442695
  %v2282 = vpow.pop %v2281
  %v2283 = vmul.f32 %v1943, 1.442695
  %v2284 = vpow.pop %v2283
  %v2285 = vmul.f32 %v1944, 1.442695
  %v2286 = vpow.pop %v2285
  %v2287 = vmul.f32 %v1945, 1.442695
  %v2288 = vpow.pop %v2287
  %v2289 = vmul.f32 %v1946, 1.442695
  %v2290 = vpow.pop %v2289
  %v2291 = vmul.f32 %v1947, 1.442695
  %v2292 = vpow.pop %v2291
  %v2293 = vmul.f32 %v1948, 1.442695
  %v2294 = vpow.pop %v2293
  %v2295 = vmul.f32 %v1949, 1.442695
  %v2296 = vpow.pop %v2295
  %v2297 = vmul.f32 %v1950, 1.442695
  %v2298 = vpow.pop %v2297
  %v2299 = vmul.f32 %v1951, 1.442695
  %v2300 = vpow.pop %v2299
  %v2301 = vmul.f32 %v1952, 1.442695
  %v2302 = vpow.pop %v2301
  %v2303 = vmul.f32 %v1953, 1.442695
  %v2304 = vpow.pop %v2303
  %v2305 = vmul.f32 %v1954, 1.442695
  %v2306 = vpow.pop %v2305
  %v2307 = vmul.f32 %v1955, 1.442695
  %v2308 = vpow.pop %v2307
  %v2309 = vmul.f32 %v1956, 1.442695
  %v2310 = vpow.pop %v2309
  %v2311 = vmul.f32 %v1957, 1.442695
  %v2312 = vpow.pop %v2311
  %v2313 = vmul.f32 %v1958, 1.442695
  %v2314 = vpow.pop %v2313
  %v2315 = vmul.f32 %v1959, 1.442695
  %v2316 = vpow.pop %v2315
  %v2317 = vmul.f32 %v1960, 1.442695
  %v2318 = vpow.pop %v2317
  %v2319 = vmul.f32 %v1961, 1.442695
  %v2320 = vpow.pop %v2319
  %v2321 = vmul.f32 %v1962, 1.442695
  %v2322 = vpow.pop %v2321
  %v2323 = vmul.f32 %v1963, 1.442695
  %v2324 = vpow.pop %v2323
  %v2325 = vmul.f32 %v1964, 1.442695
  %v2326 = vpow.pop %v2325
  %v2327 = vmul.f32 %v1965, 1.442695
  %v2328 = vpow.pop %v2327
  %v2329 = vmul.f32 %v1966, 1.442695
  %v2330 = vpow.pop %v2329
  %v2331 = vmul.f32 %v1967, 1.442695
  %v2332 = vpow.pop %v2331
  %v2333 = vmul.f32 %v1968, 1.442695
  %v2334 = vpow.pop %v2333
  %v2335 = vmul.f32 %v1969, 1.442695
  %v2336 = vpow.pop %v2335
  %v2337 = vmul.f32 %v1970, 1.442695
  %v2338 = vpow.pop %v2337
  %v2339 = vmul.f32 %v1971, 1.442695
  %v2340 = vpow.pop %v2339
  %v2341 = vmul.f32 %v1972, 1.442695
  %v2342 = vpow.pop %v2341
  %v2343 = vmul.f32 %v1973, 1.442695
  %v2344 = vpow.pop %v2343
  %v2345 = vmul.f32 %v1974, 1.442695
  %v2346 = vpow.pop %v2345
  %v2347 = vmul.f32 %v1975, 1.442695
  %v2348 = vpow.pop %v2347
  %v2349 = vmul.f32 %v1976, 1.442695
  %v2350 = vpow.pop %v2349
  %v2351 = vmul.f32 %v1977, 1.442695
  %v2352 = vpow.pop %v2351
  %v2353 = vmul.f32 %v1978, 1.442695
  %v2354 = vpow.pop %v2353
  %v2355 = vmul.f32 %v1979, 1.442695
  %v2356 = vpow.pop %v2355
  %v2357 = vmul.f32 %v1980, 1.442695
  %v2358 = vpow.pop %v2357
  %v2359 = vmul.f32 %v1981, 1.442695
  %v2360 = vpow.pop %v2359
  %v2361 = vmul.f32 %v1982, 1.442695
  %v2362 = vpow.pop %v2361
  %v2363 = vmul.f32 %v1983, 1.442695
  %v2364 = vpow.pop %v2363
  %v2365 = vmul.f32 %v1984, 1.442695
  %v2366 = vpow.pop %v2365
  %v2367 = vmul.f32 %v1985, 1.442695
  %v2368 = vpow.pop %v2367
  %v2369 = vmul.f32 %v1986, 1.442695
  %v2370 = vpow.pop %v2369
  %v2371 = vmul.f32 %v1987, 1.442695
  %v2372 = vpow.pop %v2371
  %v2373 = vmul.f32 %v1988, 1.442695
  %v2374 = vpow.pop %v2373
  %v2375 = vmul.f32 %v1989, 1.442695
  %v2376 = vpow.pop %v2375
  %v2377 = vmul.f32 %v1990, 1.442695
  %v2378 = vpow.pop %v2377
  %v2379 = vmul.f32 %v1991, 1.442695
  %v2380 = vpow.pop %v2379
  %v2381 = vmul.f32 %v1992, 1.442695
  %v2382 = vpow.pop %v2381
  %v2383 = vmul.f32 %v1993, 1.442695
  %v2384 = vpow.pop %v2383
  %v2385 = vmul.f32 %v1994, 1.442695
  %v2386 = vpow.pop %v2385
  %v2387 = vmul.f32 %v1995, 1.442695
  %v2388 = vpow.pop %v2387
  %v2389 = vmul.f32 %v1996, 1.442695
  %v2390 = vpow.pop %v2389
  %v2391 = vmul.f32 %v1997, 1.442695
  %v2392 = vpow.pop %v2391
  %v2393 = vmul.f32 %v1998, 1.442695
  %v2394 = vpow.pop %v2393
  %v2395 = vmul.f32 %v1999, 1.442695
  %v2396 = vpow.pop %v2395
  %v2397 = vmul.f32 %v2000, 1.442695
  %v2398 = vpow.pop %v2397
  %v2399 = vmul.f32 %v2001, 1.442695
  %v2400 = vpow.pop %v2399
  %v2401 = vmul.f32 %v2002, 1.442695
  %v2402 = vpow.pop %v2401
  %v2403 = vmul.f32 %v2003, 1.442695
  %v2404 = vpow.pop %v2403
  %v2405 = vmul.f32 %v2004, 1.442695
  %v2406 = vpow.pop %v2405
  %v2407 = vmul.f32 %v2005, 1.442695
  %v2408 = vpow.pop %v2407
  %v2409 = vmul.f32 %v2006, 1.442695
  %v2410 = vpow.pop %v2409
  %v2411 = vmul.f32 %v2007, 1.442695
  %v2412 = vpow.pop %v2411
  %v2413 = vmul.f32 %v2008, 1.442695
  %v2414 = vpow.pop %v2413
  %v2415 = vmul.f32 %v2009, 1.442695
  %v2416 = vpow.pop %v2415
  %v2417 = vmul.f32 %v2010, 1.442695
  %v2418 = vpow.pop %v2417
  %v2419 = vmul.f32 %v2011, 1.442695
  %v2420 = vpow.pop %v2419
  %v2421 = vmul.f32 %v2012, 1.442695
  %v2422 = vpow.pop %v2421
  %v2423 = vmul.f32 %v2013, 1.442695
  %v2424 = vpow.pop %v2423
  %v2425 = vmul.f32 %v2014, 1.442695
  %v2426 = vpow.pop %v2425
  %v2427 = vmul.f32 %v2015, 1.442695
  %v2428 = vpow.pop %v2427
  %v2429 = vmul.f32 %v2016, 1.442695
  %v2430 = vpow.pop %v2429
  %v2431 = vmul.f32 %v2017, 1.442695
  %v2432 = vpow.pop %v2431
  %v2433 = vmul.f32 %v2018, 1.442695
  %v2434 = vpow.pop %v2433
  %v2435 = vmul.f32 %v2019, 1.442695
  %v2436 = vpow.pop %v2435
  %v2437 = vmul.f32 %v2020, 1.442695
  %v2438 = vpow.pop %v2437
  %v2439 = vmul.f32 %v2021, 1.442695
  %v2440 = vpow.pop %v2439
  %v2441 = vmul.f32 %v2022, 1.442695
  %v2442 = vpow.pop %v2441
  %v2443 = vmul.f32 %v2023, 1.442695
  %v2444 = vpow.pop %v2443
  %v2445 = vmul.f32 %v2024, 1.442695
  %v2446 = vpow.pop %v2445
  %v2447 = vmul.f32 %v2025, 1.442695
  %v2448 = vpow.pop %v2447
  %v2449 = vmul.f32 %v2026, 1.442695
  %v2450 = vpow.pop %v2449
  %v2451 = vmul.f32 %v2027, 1.442695
  %v2452 = vpow.pop %v2451
  %v2453 = vmul.f32 %v2028, 1.442695
  %v2454 = vpow.pop %v2453
  %v2455 = vmul.f32 %v2029, 1.442695
  %v2456 = vpow.pop %v2455
  %v2457 = vmul.f32 %v2030, 1.442695
  %v2458 = vpow.pop %v2457
  %v2459 = vmul.f32 %v2031, 1.442695
  %v2460 = vpow.pop %v2459
  %v2461 = vmul.f32 %v2032, 1.442695
  %v2462 = vpow.pop %v2461
  %v2463 = vmul.f32 %v2033, 1.442695
  %v2464 = vpow.pop %v2463
  %v2465 = vmul.f32 %v2034, 1.442695
  %v2466 = vpow.pop %v2465
  %v2467 = vmul.f32 %v2035, 1.442695
  %v2468 = vpow.pop %v2467
  %v2469 = vmul.f32 %v2036, 1.442695
  %v2470 = vpow.pop %v2469
  %v2471 = vmul.f32 %v2037, 1.442695
  %v2472 = vpow.pop %v2471
  %v2473 = vmul.f32 %v2038, 1.442695
  %v2474 = vpow.pop %v2473
  %v2475 = vmul.f32 %v2039, 1.442695
  %v2476 = vpow.pop %v2475
  %v2477 = vmul.f32 %v2040, 1.442695
  %v2478 = vpow.pop %v2477
  %v2479 = vmul.f32 %v2041, 1.442695
  %v2480 = vpow.pop %v2479
  %v2481 = vmul.f32 %v2042, 1.442695
  %v2482 = vpow.pop %v2481
  %v2483 = vmul.f32 %v2043, 1.442695
  %v2484 = vpow.pop %v2483
  %v2485 = vmul.f32 %v2044, 1.442695
  %v2486 = vpow.pop %v2485
  %v2487 = vmul.f32 %v2045, 1.442695
  %v2488 = vpow.pop %v2487
  %v2489 = vmul.f32 %v2046, 1.442695
  %v2490 = vpow.pop %v2489
  %v2491 = vmul.f32 %v2047, 1.442695
  %v2492 = vpow.pop %v2491
  %v2493 = vmul.f32 %v2048, 1.442695
  %v2494 = vpow.pop %v2493
  %v2495 = vmul.f32 %v2049, 1.442695
  %v2496 = vpow.pop %v2495
  %v2497 = vmul.f32 %v2050, 1.442695
  %v2498 = vpow.pop %v2497
  %v2499 = vmul.f32 %v2051, 1.442695
  %v2500 = vpow.pop %v2499
  %v2501 = vmul.f32 %v2052, 1.442695
  %v2502 = vpow.pop %v2501
  %v2503 = vmul.f32 %v2053, 1.442695
  %v2504 = vpow.pop %v2503
  %v2505 = vmul.f32 %v2054, 1.442695
  %v2506 = vpow.pop %v2505
  %v2507 = vmul.f32 %v2055, 1.442695
  %v2508 = vpow.pop %v2507
  %v2509 = vmul.f32 %v2056, 1.442695
  %v2510 = vpow.pop %v2509
  %v2511 = vmul.f32 %v2057, 1.442695
  %v2512 = vpow.pop %v2511
  %v2513 = vmul.f32 %v2058, 1.442695
  %v2514 = vpow.pop %v2513
  %v2515 = vmul.f32 %v2059, 1.442695
  %v2516 = vpow.pop %v2515
  %v2517 = vmul.f32 %v2060, 1.442695
  %v2518 = vpow.pop %v2517
  %v2519 = vmul.f32 %v2061, 1.442695
  %v2520 = vpow.pop %v2519
  %v2521 = vmul.f32 %v2062, 1.442695
  %v2522 = vpow.pop %v2521
  %v2523 = vmul.f32 %v2063, 1.442695
  %v2524 = vpow.pop %v2523
  %v2525 = vmul.f32 %v2064, 1.442695
  %v2526 = vpow.pop %v2525
  %v2527 = vmul.f32 %v2065, 1.442695
  %v2528 = vpow.pop %v2527
  %v2529 = vmul.f32 %v2066, 1.442695
  %v2530 = vpow.pop %v2529
  %v2531 = vmul.f32 %v2067, 1.442695
  %v2532 = vpow.pop %v2531
  %v2533 = vmul.f32 %v2068, 1.442695
  %v2534 = vpow.pop %v2533
  %v2535 = vmul.f32 %v2069, 1.442695
  %v2536 = vpow.pop %v2535
  %v2537 = vmul.f32 %v2070, 1.442695
  %v2538 = vpow.pop %v2537
  %v2539 = vmul.f32 %v2071, 1.442695
  %v2540 = vpow.pop %v2539
  %v2541 = vmul.f32 %v2072, 1.442695
  %v2542 = vpow.pop %v2541
  %v2543 = vmul.f32 %v2073, 1.442695
  %v2544 = vpow.pop %v2543
  %v2545 = vmul.f32 %v2074, 1.442695
  %v2546 = vpow.pop %v2545
  %v2547 = vmul.f32 %v2075, 1.442695
  %v2548 = vpow.pop %v2547
  %v2549 = vmul.f32 %v2076, 1.442695
  %v2550 = vpow.pop %v2549
  %v2551 = vmul.f32 %v2077, 1.442695
  %v2552 = vpow.pop %v2551
  %v2553 = vmul.f32 %v2078, 1.442695
  %v2554 = vpow.pop %v2553
  %v2555 = vmul.f32 %v2079, 1.442695
  %v2556 = vpow.pop %v2555
  %v2557 = vmul.f32 %v2080, 1.442695
  %v2558 = vpow.pop %v2557
  %v2559 = vmul.f32 %v2081, 1.442695
  %v2560 = vpow.pop %v2559
  %v2561 = vmul.f32 %v2082, 1.442695
  %v2562 = vpow.pop %v2561
  %v2563 = vmul.f32 %v2083, 1.442695
  %v2564 = vpow.pop %v2563
  %v2565 = vmul.f32 %v2084, 1.442695
  %v2566 = vpow.pop %v2565
  %v2567 = vmul.f32 %v2085, 1.442695
  %v2568 = vpow.pop %v2567
  %v2569 = vmul.f32 %v2086, 1.442695
  %v2570 = vpow.pop %v2569
  %v2571 = vmul.f32 %v2087, 1.442695
  %v2572 = vpow.pop %v2571
  %v2573 = vmul.f32 %v2088, 1.442695
  %v2574 = vpow.pop %v2573
  %v2575 = vmul.f32 %v2089, 1.442695
  %v2576 = vpow.pop %v2575
  %v2577 = vmul.f32 %v2090, 1.442695
  %v2578 = vpow.pop %v2577
  %v2579 = vmul.f32 %v2091, 1.442695
  %v2580 = vpow.pop %v2579
  %v2581 = vmul.f32 %v2092, 1.442695
  %v2582 = vpow.pop %v2581
  %v2583 = vmul.f32 %v2093, 1.442695
  %v2584 = vpow.pop %v2583
  %v2585 = vmul.f32 %v2094, 1.442695
  %v2586 = vpow.pop %v2585
  %v2587 = vmul.f32 %v2095, 1.442695
  %v2588 = vpow.pop %v2587
  %v2589 = vmul.f32 %v2096, 1.442695
  %v2590 = vpow.pop %v2589
  %v2591 = vmul.f32 %v2097, 1.442695
  %v2592 = vpow.pop %v2591
  %v2593 = vmul.f32 %v2098, 1.442695
  %v2594 = vpow.pop %v2593
  %v2595 = vmul.f32 %v2099, 1.442695
  %v2596 = vpow.pop %v2595
  %v2597 = vmul.f32 %v2100, 1.442695
  %v2598 = vpow.pop %v2597
  %v2599 = vmul.f32 %v2101, 1.442695
  %v2600 = vpow.pop %v2599
  %v2601 = vmul.f32 %v2102, 1.442695
  %v2602 = vpow.pop %v2601
  %v2603 = vmul.f32 %v2103, 1.442695
  %v2604 = vpow.pop %v2603
  %v2605 = vmul.f32 %v2104, 1.442695
  %v2606 = vpow.pop %v2605
  %v2607 = vmul.f32 %v2105, 1.442695
  %v2608 = vpow.pop %v2607
  %v2609 = vmul.f32 %v2106, 1.442695
  %v2610 = vpow.pop %v2609
  %v2611 = vmul.f32 %v2107, 1.442695
  %v2612 = vpow.pop %v2611
  %v2613 = vmul.f32 %v2108, 1.442695
  %v2614 = vpow.pop %v2613
  %v2615 = vmul.f32 %v2109, 1.442695
  %v2616 = vpow.pop %v2615
  %v2617 = vmul.f32 %v2110, 1.442695
  %v2618 = vpow.pop %v2617
  %v2619 = vmul.f32 %v2111, 1.442695
  %v2620 = vpow.pop %v2619
  %v2621 = vmul.f32 %v2112, 1.442695
  %v2622 = vpow.pop %v2621
  %v2623 = vmul.f32 %v2113, 1.442695
  %v2624 = vpow.pop %v2623
  %v2625 = vmul.f32 %v2114, 1.442695
  %v2626 = vpow.pop %v2625
  %v2627 = vadd.f32 %v2116, 1.0
  %v2628 = vadd.f32 %v2118, 1.0
  %v2629 = vadd.f32 %v2120, 1.0
  %v2630 = vadd.f32 %v2122, 1.0
  %v2631 = vadd.f32 %v2124, 1.0
  %v2632 = vadd.f32 %v2126, 1.0
  %v2633 = vadd.f32 %v2128, 1.0
  %v2634 = vadd.f32 %v2130, 1.0
  %v2635 = vadd.f32 %v2132, 1.0
  %v2636 = vadd.f32 %v2134, 1.0
  %v2637 = vadd.f32 %v2136, 1.0
  %v2638 = vadd.f32 %v2138, 1.0
  %v2639 = vadd.f32 %v2140, 1.0
  %v2640 = vadd.f32 %v2142, 1.0
  %v2641 = vadd.f32 %v2144, 1.0
  %v2642 = vadd.f32 %v2146, 1.0
  %v2643 = vadd.f32 %v2148, 1.0
  %v2644 = vadd.f32 %v2150, 1.0
  %v2645 = vadd.f32 %v2152, 1.0
  %v2646 = vadd.f32 %v2154, 1.0
  %v2647 = vadd.f32 %v2156, 1.0
  %v2648 = vadd.f32 %v2158, 1.0
  %v2649 = vadd.f32 %v2160, 1.0
  %v2650 = vadd.f32 %v2162, 1.0
  %v2651 = vadd.f32 %v2164, 1.0
  %v2652 = vadd.f32 %v2166, 1.0
  %v2653 = vadd.f32 %v2168, 1.0
  %v2654 = vadd.f32 %v2170, 1.0
  %v2655 = vadd.f32 %v2172, 1.0
  %v2656 = vadd.f32 %v2174, 1.0
  %v2657 = vadd.f32 %v2176, 1.0
  %v2658 = vadd.f32 %v2178, 1.0
  %v2659 = vadd.f32 %v2180, 1.0
  %v2660 = vadd.f32 %v2182, 1.0
  %v2661 = vadd.f32 %v2184, 1.0
  %v2662 = vadd.f32 %v2186, 1.0
  %v2663 = vadd.f32 %v2188, 1.0
  %v2664 = vadd.f32 %v2190, 1.0
  %v2665 = vadd.f32 %v2192, 1.0
  %v2666 = vadd.f32 %v2194, 1.0
  %v2667 = vadd.f32 %v2196, 1.0
  %v2668 = vadd.f32 %v2198, 1.0
  %v2669 = vadd.f32 %v2200, 1.0
  %v2670 = vadd.f32 %v2202, 1.0
  %v2671 = vadd.f32 %v2204, 1.0
  %v2672 = vadd.f32 %v2206, 1.0
  %v2673 = vadd.f32 %v2208, 1.0
  %v2674 = vadd.f32 %v2210, 1.0
  %v2675 = vadd.f32 %v2212, 1.0
  %v2676 = vadd.f32 %v2214, 1.0
  %v2677 = vadd.f32 %v2216, 1.0
  %v2678 = vadd.f32 %v2218, 1.0
  %v2679 = vadd.f32 %v2220, 1.0
  %v2680 = vadd.f32 %v2222, 1.0
  %v2681 = vadd.f32 %v2224, 1.0
  %v2682 = vadd.f32 %v2226, 1.0
  %v2683 = vadd.f32 %v2228, 1.0
  %v2684 = vadd.f32 %v2230, 1.0
  %v2685 = vadd.f32 %v2232, 1.0
  %v2686 = vadd.f32 %v2234, 1.0
  %v2687 = vadd.f32 %v2236, 1.0
  %v2688 = vadd.f32 %v2238, 1.0
  %v2689 = vadd.f32 %v2240, 1.0
  %v2690 = vadd.f32 %v2242, 1.0
  %v2691 = vadd.f32 %v2244, 1.0
  %v2692 = vadd.f32 %v2246, 1.0
  %v2693 = vadd.f32 %v2248, 1.0
  %v2694 = vadd.f32 %v2250, 1.0
  %v2695 = vadd.f32 %v2252, 1.0
  %v2696 = vadd.f32 %v2254, 1.0
  %v2697 = vadd.f32 %v2256, 1.0
  %v2698 = vadd.f32 %v2258, 1.0
  %v2699 = vadd.f32 %v2260, 1.0
  %v2700 = vadd.f32 %v2262, 1.0
  %v2701 = vadd.f32 %v2264, 1.0
  %v2702 = vadd.f32 %v2266, 1.0
  %v2703 = vadd.f32 %v2268, 1.0
  %v2704 = vadd.f32 %v2270, 1.0
  %v2705 = vadd.f32 %v2272, 1.0
  %v2706 = vadd.f32 %v2274, 1.0
  %v2707 = vadd.f32 %v2276, 1.0
  %v2708 = vadd.f32 %v2278, 1.0
  %v2709 = vadd.f32 %v2280, 1.0
  %v2710 = vadd.f32 %v2282, 1.0
  %v2711 = vadd.f32 %v2284, 1.0
  %v2712 = vadd.f32 %v2286, 1.0
  %v2713 = vadd.f32 %v2288, 1.0
  %v2714 = vadd.f32 %v2290, 1.0
  %v2715 = vadd.f32 %v2292, 1.0
  %v2716 = vadd.f32 %v2294, 1.0
  %v2717 = vadd.f32 %v2296, 1.0
  %v2718 = vadd.f32 %v2298, 1.0
  %v2719 = vadd.f32 %v2300, 1.0
  %v2720 = vadd.f32 %v2302, 1.0
  %v2721 = vadd.f32 %v2304, 1.0
  %v2722 = vadd.f32 %v2306, 1.0
  %v2723 = vadd.f32 %v2308, 1.0
  %v2724 = vadd.f32 %v2310, 1.0
  %v2725 = vadd.f32 %v2312, 1.0
  %v2726 = vadd.f32 %v2314, 1.0
  %v2727 = vadd.f32 %v2316, 1.0
  %v2728 = vadd.f32 %v2318, 1.0
  %v2729 = vadd.f32 %v2320, 1.0
  %v2730 = vadd.f32 %v2322, 1.0
  %v2731 = vadd.f32 %v2324, 1.0
  %v2732 = vadd.f32 %v2326, 1.0
  %v2733 = vadd.f32 %v2328, 1.0
  %v2734 = vadd.f32 %v2330, 1.0
  %v2735 = vadd.f32 %v2332, 1.0
  %v2736 = vadd.f32 %v2334, 1.0
  %v2737 = vadd.f32 %v2336, 1.0
  %v2738 = vadd.f32 %v2338, 1.0
  %v2739 = vadd.f32 %v2340, 1.0
  %v2740 = vadd.f32 %v2342, 1.0
  %v2741 = vadd.f32 %v2344, 1.0
  %v2742 = vadd.f32 %v2346, 1.0
  %v2743 = vadd.f32 %v2348, 1.0
  %v2744 = vadd.f32 %v2350, 1.0
  %v2745 = vadd.f32 %v2352, 1.0
  %v2746 = vadd.f32 %v2354, 1.0
  %v2747 = vadd.f32 %v2356, 1.0
  %v2748 = vadd.f32 %v2358, 1.0
  %v2749 = vadd.f32 %v2360, 1.0
  %v2750 = vadd.f32 %v2362, 1.0
  %v2751 = vadd.f32 %v2364, 1.0
  %v2752 = vadd.f32 %v2366, 1.0
  %v2753 = vadd.f32 %v2368, 1.0
  %v2754 = vadd.f32 %v2370, 1.0
  %v2755 = vadd.f32 %v2372, 1.0
  %v2756 = vadd.f32 %v2374, 1.0
  %v2757 = vadd.f32 %v2376, 1.0
  %v2758 = vadd.f32 %v2378, 1.0
  %v2759 = vadd.f32 %v2380, 1.0
  %v2760 = vadd.f32 %v2382, 1.0
  %v2761 = vadd.f32 %v2384, 1.0
  %v2762 = vadd.f32 %v2386, 1.0
  %v2763 = vadd.f32 %v2388, 1.0
  %v2764 = vadd.f32 %v2390, 1.0
  %v2765 = vadd.f32 %v2392, 1.0
  %v2766 = vadd.f32 %v2394, 1.0
  %v2767 = vadd.f32 %v2396, 1.0
  %v2768 = vadd.f32 %v2398, 1.0
  %v2769 = vadd.f32 %v2400, 1.0
  %v2770 = vadd.f32 %v2402, 1.0
  %v2771 = vadd.f32 %v2404, 1.0
  %v2772 = vadd.f32 %v2406, 1.0
  %v2773 = vadd.f32 %v2408, 1.0
  %v2774 = vadd.f32 %v2410, 1.0
  %v2775 = vadd.f32 %v2412, 1.0
  %v2776 = vadd.f32 %v2414, 1.0
  %v2777 = vadd.f32 %v2416, 1.0
  %v2778 = vadd.f32 %v2418, 1.0
  %v2779 = vadd.f32 %v2420, 1.0
  %v2780 = vadd.f32 %v2422, 1.0
  %v2781 = vadd.f32 %v2424, 1.0
  %v2782 = vadd.f32 %v2426, 1.0
  %v2783 = vadd.f32 %v2428, 1.0
  %v2784 = vadd.f32 %v2430, 1.0
  %v2785 = vadd.f32 %v2432, 1.0
  %v2786 = vadd.f32 %v2434, 1.0
  %v2787 = vadd.f32 %v2436, 1.0
  %v2788 = vadd.f32 %v2438, 1.0
  %v2789 = vadd.f32 %v2440, 1.0
  %v2790 = vadd.f32 %v2442, 1.0
  %v2791 = vadd.f32 %v2444, 1.0
  %v2792 = vadd.f32 %v2446, 1.0
  %v2793 = vadd.f32 %v2448, 1.0
  %v2794 = vadd.f32 %v2450, 1.0
  %v2795 = vadd.f32 %v2452, 1.0
  %v2796 = vadd.f32 %v2454, 1.0
  %v2797 = vadd.f32 %v2456, 1.0
  %v2798 = vadd.f32 %v2458, 1.0
  %v2799 = vadd.f32 %v2460, 1.0
  %v2800 = vadd.f32 %v2462, 1.0
  %v2801 = vadd.f32 %v2464, 1.0
  %v2802 = vadd.f32 %v2466, 1.0
  %v2803 = vadd.f32 %v2468, 1.0
  %v2804 = vadd.f32 %v2470, 1.0
  %v2805 = vadd.f32 %v2472, 1.0
  %v2806 = vadd.f32 %v2474, 1.0
  %v2807 = vadd.f32 %v2476, 1.0
  %v2808 = vadd.f32 %v2478, 1.0
  %v2809 = vadd.f32 %v2480, 1.0
  %v2810 = vadd.f32 %v2482, 1.0
  %v2811 = vadd.f32 %v2484, 1.0
  %v2812 = vadd.f32 %v2486, 1.0
  %v2813 = vadd.f32 %v2488, 1.0
  %v2814 = vadd.f32 %v2490, 1.0
  %v2815 = vadd.f32 %v2492, 1.0
  %v2816 = vadd.f32 %v2494, 1.0
  %v2817 = vadd.f32 %v2496, 1.0
  %v2818 = vadd.f32 %v2498, 1.0
  %v2819 = vadd.f32 %v2500, 1.0
  %v2820 = vadd.f32 %v2502, 1.0
  %v2821 = vadd.f32 %v2504, 1.0
  %v2822 = vadd.f32 %v2506, 1.0
  %v2823 = vadd.f32 %v2508, 1.0
  %v2824 = vadd.f32 %v2510, 1.0
  %v2825 = vadd.f32 %v2512, 1.0
  %v2826 = vadd.f32 %v2514, 1.0
  %v2827 = vadd.f32 %v2516, 1.0
  %v2828 = vadd.f32 %v2518, 1.0
  %v2829 = vadd.f32 %v2520, 1.0
  %v2830 = vadd.f32 %v2522, 1.0
  %v2831 = vadd.f32 %v2524, 1.0
  %v2832 = vadd.f32 %v2526, 1.0
  %v2833 = vadd.f32 %v2528, 1.0
  %v2834 = vadd.f32 %v2530, 1.0
  %v2835 = vadd.f32 %v2532, 1.0
  %v2836 = vadd.f32 %v2534, 1.0
  %v2837 = vadd.f32 %v2536, 1.0
  %v2838 = vadd.f32 %v2538, 1.0
  %v2839 = vadd.f32 %v2540, 1.0
  %v2840 = vadd.f32 %v2542, 1.0
  %v2841 = vadd.f32 %v2544, 1.0
  %v2842 = vadd.f32 %v2546, 1.0
  %v2843 = vadd.f32 %v2548, 1.0
  %v2844 = vadd.f32 %v2550, 1.0
  %v2845 = vadd.f32 %v2552, 1.0
  %v2846 = vadd.f32 %v2554, 1.0
  %v2847 = vadd.f32 %v2556, 1.0
  %v2848 = vadd.f32 %v2558, 1.0
  %v2849 = vadd.f32 %v2560, 1.0
  %v2850 = vadd.f32 %v2562, 1.0
  %v2851 = vadd.f32 %v2564, 1.0
  %v2852 = vadd.f32 %v2566, 1.0
  %v2853 = vadd.f32 %v2568, 1.0
  %v2854 = vadd.f32 %v2570, 1.0
  %v2855 = vadd.f32 %v2572, 1.0
  %v2856 = vadd.f32 %v2574, 1.0
  %v2857 = vadd.f32 %v2576, 1.0
  %v2858 = vadd.f32 %v2578, 1.0
  %v2859 = vadd.f32 %v2580, 1.0
  %v2860 = vadd.f32 %v2582, 1.0
  %v2861 = vadd.f32 %v2584, 1.0
  %v2862 = vadd.f32 %v2586, 1.0
  %v2863 = vadd.f32 %v2588, 1.0
  %v2864 = vadd.f32 %v2590, 1.0
  %v2865 = vadd.f32 %v2592, 1.0
  %v2866 = vadd.f32 %v2594, 1.0
  %v2867 = vadd.f32 %v2596, 1.0
  %v2868 = vadd.f32 %v2598, 1.0
  %v2869 = vadd.f32 %v2600, 1.0
  %v2870 = vadd.f32 %v2602, 1.0
  %v2871 = vadd.f32 %v2604, 1.0
  %v2872 = vadd.f32 %v2606, 1.0
  %v2873 = vadd.f32 %v2608, 1.0
  %v2874 = vadd.f32 %v2610, 1.0
  %v2875 = vadd.f32 %v2612, 1.0
  %v2876 = vadd.f32 %v2614, 1.0
  %v2877 = vadd.f32 %v2616, 1.0
  %v2878 = vadd.f32 %v2618, 1.0
  %v2879 = vadd.f32 %v2620, 1.0
  %v2880 = vadd.f32 %v2622, 1.0
  %v2881 = vadd.f32 %v2624, 1.0
  %v2882 = vadd.f32 %v2626, 1.0
  %v2883 = vrcp.pop %v2627
  %v2884 = vmul.f32 1.0, %v2883
  %v2885 = vrcp.pop %v2628
  %v2886 = vmul.f32 1.0, %v2885
  %v2887 = vrcp.pop %v2629
  %v2888 = vmul.f32 1.0, %v2887
  %v2889 = vrcp.pop %v2630
  %v2890 = vmul.f32 1.0, %v2889
  %v2891 = vrcp.pop %v2631
  %v2892 = vmul.f32 1.0, %v2891
  %v2893 = vrcp.pop %v2632
  %v2894 = vmul.f32 1.0, %v2893
  %v2895 = vrcp.pop %v2633
  %v2896 = vmul.f32 1.0, %v2895
  %v2897 = vrcp.pop %v2634
  %v2898 = vmul.f32 1.0, %v2897
  %v2899 = vrcp.pop %v2635
  %v2900 = vmul.f32 1.0, %v2899
  %v2901 = vrcp.pop %v2636
  %v2902 = vmul.f32 1.0, %v2901
  %v2903 = vrcp.pop %v2637
  %v2904 = vmul.f32 1.0, %v2903
  %v2905 = vrcp.pop %v2638
  %v2906 = vmul.f32 1.0, %v2905
  %v2907 = vrcp.pop %v2639
  %v2908 = vmul.f32 1.0, %v2907
  %v2909 = vrcp.pop %v2640
  %v2910 = vmul.f32 1.0, %v2909
  %v2911 = vrcp.pop %v2641
  %v2912 = vmul.f32 1.0, %v2911
  %v2913 = vrcp.pop %v2642
  %v2914 = vmul.f32 1.0, %v2913
  %v2915 = vrcp.pop %v2643
  %v2916 = vmul.f32 1.0, %v2915
  %v2917 = vrcp.pop %v2644
  %v2918 = vmul.f32 1.0, %v2917
  %v2919 = vrcp.pop %v2645
  %v2920 = vmul.f32 1.0, %v2919
  %v2921 = vrcp.pop %v2646
  %v2922 = vmul.f32 1.0, %v2921
  %v2923 = vrcp.pop %v2647
  %v2924 = vmul.f32 1.0, %v2923
  %v2925 = vrcp.pop %v2648
  %v2926 = vmul.f32 1.0, %v2925
  %v2927 = vrcp.pop %v2649
  %v2928 = vmul.f32 1.0, %v2927
  %v2929 = vrcp.pop %v2650
  %v2930 = vmul.f32 1.0, %v2929
  %v2931 = vrcp.pop %v2651
  %v2932 = vmul.f32 1.0, %v2931
  %v2933 = vrcp.pop %v2652
  %v2934 = vmul.f32 1.0, %v2933
  %v2935 = vrcp.pop %v2653
  %v2936 = vmul.f32 1.0, %v2935
  %v2937 = vrcp.pop %v2654
  %v2938 = vmul.f32 1.0, %v2937
  %v2939 = vrcp.pop %v2655
  %v2940 = vmul.f32 1.0, %v2939
  %v2941 = vrcp.pop %v2656
  %v2942 = vmul.f32 1.0, %v2941
  %v2943 = vrcp.pop %v2657
  %v2944 = vmul.f32 1.0, %v2943
  %v2945 = vrcp.pop %v2658
  %v2946 = vmul.f32 1.0, %v2945
  %v2947 = vrcp.pop %v2659
  %v2948 = vmul.f32 1.0, %v2947
  %v2949 = vrcp.pop %v2660
  %v2950 = vmul.f32 1.0, %v2949
  %v2951 = vrcp.pop %v2661
  %v2952 = vmul.f32 1.0, %v2951
  %v2953 = vrcp.pop %v2662
  %v2954 = vmul.f32 1.0, %v2953
  %v2955 = vrcp.pop %v2663
  %v2956 = vmul.f32 1.0, %v2955
  %v2957 = vrcp.pop %v2664
  %v2958 = vmul.f32 1.0, %v2957
  %v2959 = vrcp.pop %v2665
  %v2960 = vmul.f32 1.0, %v2959
  %v2961 = vrcp.pop %v2666
  %v2962 = vmul.f32 1.0, %v2961
  %v2963 = vrcp.pop %v2667
  %v2964 = vmul.f32 1.0, %v2963
  %v2965 = vrcp.pop %v2668
  %v2966 = vmul.f32 1.0, %v2965
  %v2967 = vrcp.pop %v2669
  %v2968 = vmul.f32 1.0, %v2967
  %v2969 = vrcp.pop %v2670
  %v2970 = vmul.f32 1.0, %v2969
  %v2971 = vrcp.pop %v2671
  %v2972 = vmul.f32 1.0, %v2971
  %v2973 = vrcp.pop %v2672
  %v2974 = vmul.f32 1.0, %v2973
  %v2975 = vrcp.pop %v2673
  %v2976 = vmul.f32 1.0, %v2975
  %v2977 = vrcp.pop %v2674
  %v2978 = vmul.f32 1.0, %v2977
  %v2979 = vrcp.pop %v2675
  %v2980 = vmul.f32 1.0, %v2979
  %v2981 = vrcp.pop %v2676
  %v2982 = vmul.f32 1.0, %v2981
  %v2983 = vrcp.pop %v2677
  %v2984 = vmul.f32 1.0, %v2983
  %v2985 = vrcp.pop %v2678
  %v2986 = vmul.f32 1.0, %v2985
  %v2987 = vrcp.pop %v2679
  %v2988 = vmul.f32 1.0, %v2987
  %v2989 = vrcp.pop %v2680
  %v2990 = vmul.f32 1.0, %v2989
  %v2991 = vrcp.pop %v2681
  %v2992 = vmul.f32 1.0, %v2991
  %v2993 = vrcp.pop %v2682
  %v2994 = vmul.f32 1.0, %v2993
  %v2995 = vrcp.pop %v2683
  %v2996 = vmul.f32 1.0, %v2995
  %v2997 = vrcp.pop %v2684
  %v2998 = vmul.f32 1.0, %v2997
  %v2999 = vrcp.pop %v2685
  %v3000 = vmul.f32 1.0, %v2999
  %v3001 = vrcp.pop %v2686
  %v3002 = vmul.f32 1.0, %v3001
  %v3003 = vrcp.pop %v2687
  %v3004 = vmul.f32 1.0, %v3003
  %v3005 = vrcp.pop %v2688
  %v3006 = vmul.f32 1.0, %v3005
  %v3007 = vrcp.pop %v2689
  %v3008 = vmul.f32 1.0, %v3007
  %v3009 = vrcp.pop %v2690
  %v3010 = vmul.f32 1.0, %v3009
  %v3011 = vrcp.pop %v2691
  %v3012 = vmul.f32 1.0, %v3011
  %v3013 = vrcp.pop %v2692
  %v3014 = vmul.f32 1.0, %v3013
  %v3015 = vrcp.pop %v2693
  %v3016 = vmul.f32 1.0, %v3015
  %v3017 = vrcp.pop %v2694
  %v3018 = vmul.f32 1.0, %v3017
  %v3019 = vrcp.pop %v2695
  %v3020 = vmul.f32 1.0, %v3019
  %v3021 = vrcp.pop %v2696
  %v3022 = vmul.f32 1.0, %v3021
  %v3023 = vrcp.pop %v2697
  %v3024 = vmul.f32 1.0, %v3023
  %v3025 = vrcp.pop %v2698
  %v3026 = vmul.f32 1.0, %v3025
  %v3027 = vrcp.pop %v2699
  %v3028 = vmul.f32 1.0, %v3027
  %v3029 = vrcp.pop %v2700
  %v3030 = vmul.f32 1.0, %v3029
  %v3031 = vrcp.pop %v2701
  %v3032 = vmul.f32 1.0, %v3031
  %v3033 = vrcp.pop %v2702
  %v3034 = vmul.f32 1.0, %v3033
  %v3035 = vrcp.pop %v2703
  %v3036 = vmul.f32 1.0, %v3035
  %v3037 = vrcp.pop %v2704
  %v3038 = vmul.f32 1.0, %v3037
  %v3039 = vrcp.pop %v2705
  %v3040 = vmul.f32 1.0, %v3039
  %v3041 = vrcp.pop %v2706
  %v3042 = vmul.f32 1.0, %v3041
  %v3043 = vrcp.pop %v2707
  %v3044 = vmul.f32 1.0, %v3043
  %v3045 = vrcp.pop %v2708
  %v3046 = vmul.f32 1.0, %v3045
  %v3047 = vrcp.pop %v2709
  %v3048 = vmul.f32 1.0, %v3047
  %v3049 = vrcp.pop %v2710
  %v3050 = vmul.f32 1.0, %v3049
  %v3051 = vrcp.pop %v2711
  %v3052 = vmul.f32 1.0, %v3051
  %v3053 = vrcp.pop %v2712
  %v3054 = vmul.f32 1.0, %v3053
  %v3055 = vrcp.pop %v2713
  %v3056 = vmul.f32 1.0, %v3055
  %v3057 = vrcp.pop %v2714
  %v3058 = vmul.f32 1.0, %v3057
  %v3059 = vrcp.pop %v2715
  %v3060 = vmul.f32 1.0, %v3059
  %v3061 = vrcp.pop %v2716
  %v3062 = vmul.f32 1.0, %v3061
  %v3063 = vrcp.pop %v2717
  %v3064 = vmul.f32 1.0, %v3063
  %v3065 = vrcp.pop %v2718
  %v3066 = vmul.f32 1.0, %v3065
  %v3067 = vrcp.pop %v2719
  %v3068 = vmul.f32 1.0, %v3067
  %v3069 = vrcp.pop %v2720
  %v3070 = vmul.f32 1.0, %v3069
  %v3071 = vrcp.pop %v2721
  %v3072 = vmul.f32 1.0, %v3071
  %v3073 = vrcp.pop %v2722
  %v3074 = vmul.f32 1.0, %v3073
  %v3075 = vrcp.pop %v2723
  %v3076 = vmul.f32 1.0, %v3075
  %v3077 = vrcp.pop %v2724
  %v3078 = vmul.f32 1.0, %v3077
  %v3079 = vrcp.pop %v2725
  %v3080 = vmul.f32 1.0, %v3079
  %v3081 = vrcp.pop %v2726
  %v3082 = vmul.f32 1.0, %v3081
  %v3083 = vrcp.pop %v2727
  %v3084 = vmul.f32 1.0, %v3083
  %v3085 = vrcp.pop %v2728
  %v3086 = vmul.f32 1.0, %v3085
  %v3087 = vrcp.pop %v2729
  %v3088 = vmul.f32 1.0, %v3087
  %v3089 = vrcp.pop %v2730
  %v3090 = vmul.f32 1.0, %v3089
  %v3091 = vrcp.pop %v2731
  %v3092 = vmul.f32 1.0, %v3091
  %v3093 = vrcp.pop %v2732
  %v3094 = vmul.f32 1.0, %v3093
  %v3095 = vrcp.pop %v2733
  %v3096 = vmul.f32 1.0, %v3095
  %v3097 = vrcp.pop %v2734
  %v3098 = vmul.f32 1.0, %v3097
  %v3099 = vrcp.pop %v2735
  %v3100 = vmul.f32 1.0, %v3099
  %v3101 = vrcp.pop %v2736
  %v3102 = vmul.f32 1.0, %v3101
  %v3103 = vrcp.pop %v2737
  %v3104 = vmul.f32 1.0, %v3103
  %v3105 = vrcp.pop %v2738
  %v3106 = vmul.f32 1.0, %v3105
  %v3107 = vrcp.pop %v2739
  %v3108 = vmul.f32 1.0, %v3107
  %v3109 = vrcp.pop %v2740
  %v3110 = vmul.f32 1.0, %v3109
  %v3111 = vrcp.pop %v2741
  %v3112 = vmul.f32 1.0, %v3111
  %v3113 = vrcp.pop %v2742
  %v3114 = vmul.f32 1.0, %v3113
  %v3115 = vrcp.pop %v2743
  %v3116 = vmul.f32 1.0, %v3115
  %v3117 = vrcp.pop %v2744
  %v3118 = vmul.f32 1.0, %v3117
  %v3119 = vrcp.pop %v2745
  %v3120 = vmul.f32 1.0, %v3119
  %v3121 = vrcp.pop %v2746
  %v3122 = vmul.f32 1.0, %v3121
  %v3123 = vrcp.pop %v2747
  %v3124 = vmul.f32 1.0, %v3123
  %v3125 = vrcp.pop %v2748
  %v3126 = vmul.f32 1.0, %v3125
  %v3127 = vrcp.pop %v2749
  %v3128 = vmul.f32 1.0, %v3127
  %v3129 = vrcp.pop %v2750
  %v3130 = vmul.f32 1.0, %v3129
  %v3131 = vrcp.pop %v2751
  %v3132 = vmul.f32 1.0, %v3131
  %v3133 = vrcp.pop %v2752
  %v3134 = vmul.f32 1.0, %v3133
  %v3135 = vrcp.pop %v2753
  %v3136 = vmul.f32 1.0, %v3135
  %v3137 = vrcp.pop %v2754
  %v3138 = vmul.f32 1.0, %v3137
  %v3139 = vrcp.pop %v2755
  %v3140 = vmul.f32 1.0, %v3139
  %v3141 = vrcp.pop %v2756
  %v3142 = vmul.f32 1.0, %v3141
  %v3143 = vrcp.pop %v2757
  %v3144 = vmul.f32 1.0, %v3143
  %v3145 = vrcp.pop %v2758
  %v3146 = vmul.f32 1.0, %v3145
  %v3147 = vrcp.pop %v2759
  %v3148 = vmul.f32 1.0, %v3147
  %v3149 = vrcp.pop %v2760
  %v3150 = vmul.f32 1.0, %v3149
  %v3151 = vrcp.pop %v2761
  %v3152 = vmul.f32 1.0, %v3151
  %v3153 = vrcp.pop %v2762
  %v3154 = vmul.f32 1.0, %v3153
  %v3155 = vrcp.pop %v2763
  %v3156 = vmul.f32 1.0, %v3155
  %v3157 = vrcp.pop %v2764
  %v3158 = vmul.f32 1.0, %v3157
  %v3159 = vrcp.pop %v2765
  %v3160 = vmul.f32 1.0, %v3159
  %v3161 = vrcp.pop %v2766
  %v3162 = vmul.f32 1.0, %v3161
  %v3163 = vrcp.pop %v2767
  %v3164 = vmul.f32 1.0, %v3163
  %v3165 = vrcp.pop %v2768
  %v3166 = vmul.f32 1.0, %v3165
  %v3167 = vrcp.pop %v2769
  %v3168 = vmul.f32 1.0, %v3167
  %v3169 = vrcp.pop %v2770
  %v3170 = vmul.f32 1.0, %v3169
  %v3171 = vrcp.pop %v2771
  %v3172 = vmul.f32 1.0, %v3171
  %v3173 = vrcp.pop %v2772
  %v3174 = vmul.f32 1.0, %v3173
  %v3175 = vrcp.pop %v2773
  %v3176 = vmul.f32 1.0, %v3175
  %v3177 = vrcp.pop %v2774
  %v3178 = vmul.f32 1.0, %v3177
  %v3179 = vrcp.pop %v2775
  %v3180 = vmul.f32 1.0, %v3179
  %v3181 = vrcp.pop %v2776
  %v3182 = vmul.f32 1.0, %v3181
  %v3183 = vrcp.pop %v2777
  %v3184 = vmul.f32 1.0, %v3183
  %v3185 = vrcp.pop %v2778
  %v3186 = vmul.f32 1.0, %v3185
  %v3187 = vrcp.pop %v2779
  %v3188 = vmul.f32 1.0, %v3187
  %v3189 = vrcp.pop %v2780
  %v3190 = vmul.f32 1.0, %v3189
  %v3191 = vrcp.pop %v2781
  %v3192 = vmul.f32 1.0, %v3191
  %v3193 = vrcp.pop %v2782
  %v3194 = vmul.f32 1.0, %v3193
  %v3195 = vrcp.pop %v2783
  %v3196 = vmul.f32 1.0, %v3195
  %v3197 = vrcp.pop %v2784
  %v3198 = vmul.f32 1.0, %v3197
  %v3199 = vrcp.pop %v2785
  %v3200 = vmul.f32 1.0, %v3199
  %v3201 = vrcp.pop %v2786
  %v3202 = vmul.f32 1.0, %v3201
  %v3203 = vrcp.pop %v2787
  %v3204 = vmul.f32 1.0, %v3203
  %v3205 = vrcp.pop %v2788
  %v3206 = vmul.f32 1.0, %v3205
  %v3207 = vrcp.pop %v2789
  %v3208 = vmul.f32 1.0, %v3207
  %v3209 = vrcp.pop %v2790
  %v3210 = vmul.f32 1.0, %v3209
  %v3211 = vrcp.pop %v2791
  %v3212 = vmul.f32 1.0, %v3211
  %v3213 = vrcp.pop %v2792
  %v3214 = vmul.f32 1.0, %v3213
  %v3215 = vrcp.pop %v2793
  %v3216 = vmul.f32 1.0, %v3215
  %v3217 = vrcp.pop %v2794
  %v3218 = vmul.f32 1.0, %v3217
  %v3219 = vrcp.pop %v2795
  %v3220 = vmul.f32 1.0, %v3219
  %v3221 = vrcp.pop %v2796
  %v3222 = vmul.f32 1.0, %v3221
  %v3223 = vrcp.pop %v2797
  %v3224 = vmul.f32 1.0, %v3223
  %v3225 = vrcp.pop %v2798
  %v3226 = vmul.f32 1.0, %v3225
  %v3227 = vrcp.pop %v2799
  %v3228 = vmul.f32 1.0, %v3227
  %v3229 = vrcp.pop %v2800
  %v3230 = vmul.f32 1.0, %v3229
  %v3231 = vrcp.pop %v2801
  %v3232 = vmul.f32 1.0, %v3231
  %v3233 = vrcp.pop %v2802
  %v3234 = vmul.f32 1.0, %v3233
  %v3235 = vrcp.pop %v2803
  %v3236 = vmul.f32 1.0, %v3235
  %v3237 = vrcp.pop %v2804
  %v3238 = vmul.f32 1.0, %v3237
  %v3239 = vrcp.pop %v2805
  %v3240 = vmul.f32 1.0, %v3239
  %v3241 = vrcp.pop %v2806
  %v3242 = vmul.f32 1.0, %v3241
  %v3243 = vrcp.pop %v2807
  %v3244 = vmul.f32 1.0, %v3243
  %v3245 = vrcp.pop %v2808
  %v3246 = vmul.f32 1.0, %v3245
  %v3247 = vrcp.pop %v2809
  %v3248 = vmul.f32 1.0, %v3247
  %v3249 = vrcp.pop %v2810
  %v3250 = vmul.f32 1.0, %v3249
  %v3251 = vrcp.pop %v2811
  %v3252 = vmul.f32 1.0, %v3251
  %v3253 = vrcp.pop %v2812
  %v3254 = vmul.f32 1.0, %v3253
  %v3255 = vrcp.pop %v2813
  %v3256 = vmul.f32 1.0, %v3255
  %v3257 = vrcp.pop %v2814
  %v3258 = vmul.f32 1.0, %v3257
  %v3259 = vrcp.pop %v2815
  %v3260 = vmul.f32 1.0, %v3259
  %v3261 = vrcp.pop %v2816
  %v3262 = vmul.f32 1.0, %v3261
  %v3263 = vrcp.pop %v2817
  %v3264 = vmul.f32 1.0, %v3263
  %v3265 = vrcp.pop %v2818
  %v3266 = vmul.f32 1.0, %v3265
  %v3267 = vrcp.pop %v2819
  %v3268 = vmul.f32 1.0, %v3267
  %v3269 = vrcp.pop %v2820
  %v3270 = vmul.f32 1.0, %v3269
  %v3271 = vrcp.pop %v2821
  %v3272 = vmul.f32 1.0, %v3271
  %v3273 = vrcp.pop %v2822
  %v3274 = vmul.f32 1.0, %v3273
  %v3275 = vrcp.pop %v2823
  %v3276 = vmul.f32 1.0, %v3275
  %v3277 = vrcp.pop %v2824
  %v3278 = vmul.f32 1.0, %v3277
  %v3279 = vrcp.pop %v2825
  %v3280 = vmul.f32 1.0, %v3279
  %v3281 = vrcp.pop %v2826
  %v3282 = vmul.f32 1.0, %v3281
  %v3283 = vrcp.pop %v2827
  %v3284 = vmul.f32 1.0, %v3283
  %v3285 = vrcp.pop %v2828
  %v3286 = vmul.f32 1.0, %v3285
  %v3287 = vrcp.pop %v2829
  %v3288 = vmul.f32 1.0, %v3287
  %v3289 = vrcp.pop %v2830
  %v3290 = vmul.f32 1.0, %v3289
  %v3291 = vrcp.pop %v2831
  %v3292 = vmul.f32 1.0, %v3291
  %v3293 = vrcp.pop %v2832
  %v3294 = vmul.f32 1.0, %v3293
  %v3295 = vrcp.pop %v2833
  %v3296 = vmul.f32 1.0, %v3295
  %v3297 = vrcp.pop %v2834
  %v3298 = vmul.f32 1.0, %v3297
  %v3299 = vrcp.pop %v2835
  %v3300 = vmul.f32 1.0, %v3299
  %v3301 = vrcp.pop %v2836
  %v3302 = vmul.f32 1.0, %v3301
  %v3303 = vrcp.pop %v2837
  %v3304 = vmul.f32 1.0, %v3303
  %v3305 = vrcp.pop %v2838
  %v3306 = vmul.f32 1.0, %v3305
  %v3307 = vrcp.pop %v2839
  %v3308 = vmul.f32 1.0, %v3307
  %v3309 = vrcp.pop %v2840
  %v3310 = vmul.f32 1.0, %v3309
  %v3311 = vrcp.pop %v2841
  %v3312 = vmul.f32 1.0, %v3311
  %v3313 = vrcp.pop %v2842
  %v3314 = vmul.f32 1.0, %v3313
  %v3315 = vrcp.pop %v2843
  %v3316 = vmul.f32 1.0, %v3315
  %v3317 = vrcp.pop %v2844
  %v3318 = vmul.f32 1.0, %v3317
  %v3319 = vrcp.pop %v2845
  %v3320 = vmul.f32 1.0, %v3319
  %v3321 = vrcp.pop %v2846
  %v3322 = vmul.f32 1.0, %v3321
  %v3323 = vrcp.pop %v2847
  %v3324 = vmul.f32 1.0, %v3323
  %v3325 = vrcp.pop %v2848
  %v3326 = vmul.f32 1.0, %v3325
  %v3327 = vrcp.pop %v2849
  %v3328 = vmul.f32 1.0, %v3327
  %v3329 = vrcp.pop %v2850
  %v3330 = vmul.f32 1.0, %v3329
  %v3331 = vrcp.pop %v2851
  %v3332 = vmul.f32 1.0, %v3331
  %v3333 = vrcp.pop %v2852
  %v3334 = vmul.f32 1.0, %v3333
  %v3335 = vrcp.pop %v2853
  %v3336 = vmul.f32 1.0, %v3335
  %v3337 = vrcp.pop %v2854
  %v3338 = vmul.f32 1.0, %v3337
  %v3339 = vrcp.pop %v2855
  %v3340 = vmul.f32 1.0, %v3339
  %v3341 = vrcp.pop %v2856
  %v3342 = vmul.f32 1.0, %v3341
  %v3343 = vrcp.pop %v2857
  %v3344 = vmul.f32 1.0, %v3343
  %v3345 = vrcp.pop %v2858
  %v3346 = vmul.f32 1.0, %v3345
  %v3347 = vrcp.pop %v2859
  %v3348 = vmul.f32 1.0, %v3347
  %v3349 = vrcp.pop %v2860
  %v3350 = vmul.f32 1.0, %v3349
  %v3351 = vrcp.pop %v2861
  %v3352 = vmul.f32 1.0, %v3351
  %v3353 = vrcp.pop %v2862
  %v3354 = vmul.f32 1.0, %v3353
  %v3355 = vrcp.pop %v2863
  %v3356 = vmul.f32 1.0, %v3355
  %v3357 = vrcp.pop %v2864
  %v3358 = vmul.f32 1.0, %v3357
  %v3359 = vrcp.pop %v2865
  %v3360 = vmul.f32 1.0, %v3359
  %v3361 = vrcp.pop %v2866
  %v3362 = vmul.f32 1.0, %v3361
  %v3363 = vrcp.pop %v2867
  %v3364 = vmul.f32 1.0, %v3363
  %v3365 = vrcp.pop %v2868
  %v3366 = vmul.f32 1.0, %v3365
  %v3367 = vrcp.pop %v2869
  %v3368 = vmul.f32 1.0, %v3367
  %v3369 = vrcp.pop %v2870
  %v3370 = vmul.f32 1.0, %v3369
  %v3371 = vrcp.pop %v2871
  %v3372 = vmul.f32 1.0, %v3371
  %v3373 = vrcp.pop %v2872
  %v3374 = vmul.f32 1.0, %v3373
  %v3375 = vrcp.pop %v2873
  %v3376 = vmul.f32 1.0, %v3375
  %v3377 = vrcp.pop %v2874
  %v3378 = vmul.f32 1.0, %v3377
  %v3379 = vrcp.pop %v2875
  %v3380 = vmul.f32 1.0, %v3379
  %v3381 = vrcp.pop %v2876
  %v3382 = vmul.f32 1.0, %v3381
  %v3383 = vrcp.pop %v2877
  %v3384 = vmul.f32 1.0, %v3383
  %v3385 = vrcp.pop %v2878
  %v3386 = vmul.f32 1.0, %v3385
  %v3387 = vrcp.pop %v2879
  %v3388 = vmul.f32 1.0, %v3387
  %v3389 = vrcp.pop %v2880
  %v3390 = vmul.f32 1.0, %v3389
  %v3391 = vrcp.pop %v2881
  %v3392 = vmul.f32 1.0, %v3391
  %v3393 = vrcp.pop %v2882
  %v3394 = vmul.f32 1.0, %v3393
  %v3395 = vld [vmem:[%s1] sm:$0xff]
  %v3396 = vld [vmem:[%s1 + $0x8] sm:$0xff]
  %v3397 = vld [vmem:[%s1 + $0x10] sm:$0xff]
  %v3398 = vld [vmem:[%s1 + $0x18] sm:$0xff]
  %v3399 = vld [vmem:[%s1 + $0x20] sm:$0xff]
  %v3400 = vld [vmem:[%s1 + $0x28] sm:$0xff]
  %v3401 = vld [vmem:[%s1 + $0x30] sm:$0xff]
  %v3402 = vld [vmem:[%s1 + $0x38] sm:$0xff]
  %v3403 = vld [vmem:[%s1 + $0x40] sm:$0xff]
  %v3404 = vld [vmem:[%s1 + $0x48] sm:$0xff]
  %v3405 = vld [vmem:[%s1 + $0x50] sm:$0xff]
  %v3406 = vld [vmem:[%s1 + $0x58] sm:$0xff]
  %v3407 = vld [vmem:[%s1 + $0x60] sm:$0xff]
  %v3408 = vld [vmem:[%s1 + $0x68] sm:$0xff]
  %v3409 = vld [vmem:[%s1 + $0x70] sm:$0xff]
  %v3410 = vld [vmem:[%s1 + $0x78] sm:$0xff]
  %v3411 = vld [vmem:[%s1 + $0x80] sm:$0xff]
  %v3412 = vld [vmem:[%s1 + $0x88] sm:$0xff]
  %v3413 = vld [vmem:[%s1 + $0x90] sm:$0xff]
  %v3414 = vld [vmem:[%s1 + $0x98] sm:$0xff]
  %v3415 = vld [vmem:[%s1 + $0xa0] sm:$0xff]
  %v3416 = vld [vmem:[%s1 + $0xa8] sm:$0xff]
  %v3417 = vld [vmem:[%s1 + $0xb0] sm:$0xff]
  %v3418 = vld [vmem:[%s1 + $0xb8] sm:$0xff]
  %v3419 = vld [vmem:[%s1 + $0xc0] sm:$0xff]
  %v3420 = vld [vmem:[%s1 + $0xc8] sm:$0xff]
  %v3421 = vld [vmem:[%s1 + $0xd0] sm:$0xff]
  %v3422 = vld [vmem:[%s1 + $0xd8] sm:$0xff]
  %v3423 = vld [vmem:[%s1 + $0xe0] sm:$0xff]
  %v3424 = vld [vmem:[%s1 + $0xe8] sm:$0xff]
  %v3425 = vld [vmem:[%s1 + $0xf0] sm:$0xff]
  %v3426 = vld [vmem:[%s1 + $0xf8] sm:$0xff]
  %v3427 = vld [vmem:[%s1 + $0x100] sm:$0xff]
  %v3428 = vld [vmem:[%s1 + $0x108] sm:$0xff]
  %v3429 = vld [vmem:[%s1 + $0x110] sm:$0xff]
  %v3430 = vld [vmem:[%s1 + $0x118] sm:$0xff]
  %v3431 = vld [vmem:[%s1 + $0x120] sm:$0xff]
  %v3432 = vld [vmem:[%s1 + $0x128] sm:$0xff]
  %v3433 = vld [vmem:[%s1 + $0x130] sm:$0xff]
  %v3434 = vld [vmem:[%s1 + $0x138] sm:$0xff]
  %v3435 = vld [vmem:[%s1 + $0x140] sm:$0xff]
  %v3436 = vld [vmem:[%s1 + $0x148] sm:$0xff]
  %v3437 = vld [vmem:[%s1 + $0x150] sm:$0xff]
  %v3438 = vld [vmem:[%s1 + $0x158] sm:$0xff]
  %v3439 = vld [vmem:[%s1 + $0x160] sm:$0xff]
  %v3440 = vld [vmem:[%s1 + $0x168] sm:$0xff]
  %v3441 = vld [vmem:[%s1 + $0x170] sm:$0xff]
  %v3442 = vld [vmem:[%s1 + $0x178] sm:$0xff]
  %v3443 = vld [vmem:[%s1 + $0x180] sm:$0xff]
  %v3444 = vld [vmem:[%s1 + $0x188] sm:$0xff]
  %v3445 = vld [vmem:[%s1 + $0x190] sm:$0xff]
  %v3446 = vld [vmem:[%s1 + $0x198] sm:$0xff]
  %v3447 = vld [vmem:[%s1 + $0x1a0] sm:$0xff]
  %v3448 = vld [vmem:[%s1 + $0x1a8] sm:$0xff]
  %v3449 = vld [vmem:[%s1 + $0x1b0] sm:$0xff]
  %v3450 = vld [vmem:[%s1 + $0x1b8] sm:$0xff]
  %v3451 = vld [vmem:[%s1 + $0x1c0] sm:$0xff]
  %v3452 = vld [vmem:[%s1 + $0x1c8] sm:$0xff]
  %v3453 = vld [vmem:[%s1 + $0x1d0] sm:$0xff]
  %v3454 = vld [vmem:[%s1 + $0x1d8] sm:$0xff]
  %v3455 = vld [vmem:[%s1 + $0x1e0] sm:$0xff]
  %v3456 = vld [vmem:[%s1 + $0x1e8] sm:$0xff]
  %v3457 = vld [vmem:[%s1 + $0x1f0] sm:$0xff]
  %v3458 = vld [vmem:[%s1 + $0x1f8] sm:$0xff]
  %v3459 = vld [vmem:[%s1 + $0x200] sm:$0xff]
  %v3460 = vld [vmem:[%s1 + $0x208] sm:$0xff]
  %v3461 = vld [vmem:[%s1 + $0x210] sm:$0xff]
  %v3462 = vld [vmem:[%s1 + $0x218] sm:$0xff]
  %v3463 = vld [vmem:[%s1 + $0x220] sm:$0xff]
  %v3464 = vld [vmem:[%s1 + $0x228] sm:$0xff]
  %v3465 = vld [vmem:[%s1 + $0x230] sm:$0xff]
  %v3466 = vld [vmem:[%s1 + $0x238] sm:$0xff]
  %v3467 = vld [vmem:[%s1 + $0x240] sm:$0xff]
  %v3468 = vld [vmem:[%s1 + $0x248] sm:$0xff]
  %v3469 = vld [vmem:[%s1 + $0x250] sm:$0xff]
  %v3470 = vld [vmem:[%s1 + $0x258] sm:$0xff]
  %v3471 = vld [vmem:[%s1 + $0x260] sm:$0xff]
  %v3472 = vld [vmem:[%s1 + $0x268] sm:$0xff]
  %v3473 = vld [vmem:[%s1 + $0x270] sm:$0xff]
  %v3474 = vld [vmem:[%s1 + $0x278] sm:$0xff]
  %v3475 = vld [vmem:[%s1 + $0x280] sm:$0xff]
  %v3476 = vld [vmem:[%s1 + $0x288] sm:$0xff]
  %v3477 = vld [vmem:[%s1 + $0x290] sm:$0xff]
  %v3478 = vld [vmem:[%s1 + $0x298] sm:$0xff]
  %v3479 = vld [vmem:[%s1 + $0x2a0] sm:$0xff]
  %v3480 = vld [vmem:[%s1 + $0x2a8] sm:$0xff]
  %v3481 = vld [vmem:[%s1 + $0x2b0] sm:$0xff]
  %v3482 = vld [vmem:[%s1 + $0x2b8] sm:$0xff]
  %v3483 = vld [vmem:[%s1 + $0x2c0] sm:$0xff]
  %v3484 = vld [vmem:[%s1 + $0x2c8] sm:$0xff]
  %v3485 = vld [vmem:[%s1 + $0x2d0] sm:$0xff]
  %v3486 = vld [vmem:[%s1 + $0x2d8] sm:$0xff]
  %v3487 = vld [vmem:[%s1 + $0x2e0] sm:$0xff]
  %v3488 = vld [vmem:[%s1 + $0x2e8] sm:$0xff]
  %v3489 = vld [vmem:[%s1 + $0x2f0] sm:$0xff]
  %v3490 = vld [vmem:[%s1 + $0x2f8] sm:$0xff]
  %v3491 = vld [vmem:[%s1 + $0x300] sm:$0xff]
  %v3492 = vld [vmem:[%s1 + $0x308] sm:$0xff]
  %v3493 = vld [vmem:[%s1 + $0x310] sm:$0xff]
  %v3494 = vld [vmem:[%s1 + $0x318] sm:$0xff]
  %v3495 = vld [vmem:[%s1 + $0x320] sm:$0xff]
  %v3496 = vld [vmem:[%s1 + $0x328] sm:$0xff]
  %v3497 = vld [vmem:[%s1 + $0x330] sm:$0xff]
  %v3498 = vld [vmem:[%s1 + $0x338] sm:$0xff]
  %v3499 = vld [vmem:[%s1 + $0x340] sm:$0xff]
  %v3500 = vld [vmem:[%s1 + $0x348] sm:$0xff]
  %v3501 = vld [vmem:[%s1 + $0x350] sm:$0xff]
  %v3502 = vld [vmem:[%s1 + $0x358] sm:$0xff]
  %v3503 = vld [vmem:[%s1 + $0x360] sm:$0xff]
  %v3504 = vld [vmem:[%s1 + $0x368] sm:$0xff]
  %v3505 = vld [vmem:[%s1 + $0x370] sm:$0xff]
  %v3506 = vld [vmem:[%s1 + $0x378] sm:$0xff]
  %v3507 = vld [vmem:[%s1 + $0x380] sm:$0xff]
  %v3508 = vld [vmem:[%s1 + $0x388] sm:$0xff]
  %v3509 = vld [vmem:[%s1 + $0x390] sm:$0xff]
  %v3510 = vld [vmem:[%s1 + $0x398] sm:$0xff]
  %v3511 = vld [vmem:[%s1 + $0x3a0] sm:$0xff]
  %v3512 = vld [vmem:[%s1 + $0x3a8] sm:$0xff]
  %v3513 = vld [vmem:[%s1 + $0x3b0] sm:$0xff]
  %v3514 = vld [vmem:[%s1 + $0x3b8] sm:$0xff]
  %v3515 = vld [vmem:[%s1 + $0x3c0] sm:$0xff]
  %v3516 = vld [vmem:[%s1 + $0x3c8] sm:$0xff]
  %v3517 = vld [vmem:[%s1 + $0x3d0] sm:$0xff]
  %v3518 = vld [vmem:[%s1 + $0x3d8] sm:$0xff]
  %v3519 = vld [vmem:[%s1 + $0x3e0] sm:$0xff]
  %v3520 = vld [vmem:[%s1 + $0x3e8] sm:$0xff]
  %v3521 = vld [vmem:[%s1 + $0x3f0] sm:$0xff]
  %v3522 = vld [vmem:[%s1 + $0x3f8] sm:$0xff]
  %v3523 = vld [vmem:[%s1 + $0x400] sm:$0xff]
  %v3524 = vld [vmem:[%s1 + $0x408] sm:$0xff]
  %v3525 = vld [vmem:[%s1 + $0x410] sm:$0xff]
  %v3526 = vld [vmem:[%s1 + $0x418] sm:$0xff]
  %v3527 = vld [vmem:[%s1 + $0x420] sm:$0xff]
  %v3528 = vld [vmem:[%s1 + $0x428] sm:$0xff]
  %v3529 = vld [vmem:[%s1 + $0x430] sm:$0xff]
  %v3530 = vld [vmem:[%s1 + $0x438] sm:$0xff]
  %v3531 = vld [vmem:[%s1 + $0x440] sm:$0xff]
  %v3532 = vld [vmem:[%s1 + $0x448] sm:$0xff]
  %v3533 = vld [vmem:[%s1 + $0x450] sm:$0xff]
  %v3534 = vld [vmem:[%s1 + $0x458] sm:$0xff]
  %v3535 = vld [vmem:[%s1 + $0x460] sm:$0xff]
  %v3536 = vld [vmem:[%s1 + $0x468] sm:$0xff]
  %v3537 = vld [vmem:[%s1 + $0x470] sm:$0xff]
  %v3538 = vld [vmem:[%s1 + $0x478] sm:$0xff]
  %v3539 = vld [vmem:[%s1 + $0x480] sm:$0xff]
  %v3540 = vld [vmem:[%s1 + $0x488] sm:$0xff]
  %v3541 = vld [vmem:[%s1 + $0x490] sm:$0xff]
  %v3542 = vld [vmem:[%s1 + $0x498] sm:$0xff]
  %v3543 = vld [vmem:[%s1 + $0x4a0] sm:$0xff]
  %v3544 = vld [vmem:[%s1 + $0x4a8] sm:$0xff]
  %v3545 = vld [vmem:[%s1 + $0x4b0] sm:$0xff]
  %v3546 = vld [vmem:[%s1 + $0x4b8] sm:$0xff]
  %v3547 = vld [vmem:[%s1 + $0x4c0] sm:$0xff]
  %v3548 = vld [vmem:[%s1 + $0x4c8] sm:$0xff]
  %v3549 = vld [vmem:[%s1 + $0x4d0] sm:$0xff]
  %v3550 = vld [vmem:[%s1 + $0x4d8] sm:$0xff]
  %v3551 = vld [vmem:[%s1 + $0x4e0] sm:$0xff]
  %v3552 = vld [vmem:[%s1 + $0x4e8] sm:$0xff]
  %v3553 = vld [vmem:[%s1 + $0x4f0] sm:$0xff]
  %v3554 = vld [vmem:[%s1 + $0x4f8] sm:$0xff]
  %v3555 = vld [vmem:[%s1 + $0x500] sm:$0xff]
  %v3556 = vld [vmem:[%s1 + $0x508] sm:$0xff]
  %v3557 = vld [vmem:[%s1 + $0x510] sm:$0xff]
  %v3558 = vld [vmem:[%s1 + $0x518] sm:$0xff]
  %v3559 = vld [vmem:[%s1 + $0x520] sm:$0xff]
  %v3560 = vld [vmem:[%s1 + $0x528] sm:$0xff]
  %v3561 = vld [vmem:[%s1 + $0x530] sm:$0xff]
  %v3562 = vld [vmem:[%s1 + $0x538] sm:$0xff]
  %v3563 = vld [vmem:[%s1 + $0x540] sm:$0xff]
  %v3564 = vld [vmem:[%s1 + $0x548] sm:$0xff]
  %v3565 = vld [vmem:[%s1 + $0x550] sm:$0xff]
  %v3566 = vld [vmem:[%s1 + $0x558] sm:$0xff]
  %v3567 = vld [vmem:[%s1 + $0x560] sm:$0xff]
  %v3568 = vld [vmem:[%s1 + $0x568] sm:$0xff]
  %v3569 = vld [vmem:[%s1 + $0x570] sm:$0xff]
  %v3570 = vld [vmem:[%s1 + $0x578] sm:$0xff]
  %v3571 = vld [vmem:[%s1 + $0x580] sm:$0xff]
  %v3572 = vld [vmem:[%s1 + $0x588] sm:$0xff]
  %v3573 = vld [vmem:[%s1 + $0x590] sm:$0xff]
  %v3574 = vld [vmem:[%s1 + $0x598] sm:$0xff]
  %v3575 = vld [vmem:[%s1 + $0x5a0] sm:$0xff]
  %v3576 = vld [vmem:[%s1 + $0x5a8] sm:$0xff]
  %v3577 = vld [vmem:[%s1 + $0x5b0] sm:$0xff]
  %v3578 = vld [vmem:[%s1 + $0x5b8] sm:$0xff]
  %v3579 = vld [vmem:[%s1 + $0x5c0] sm:$0xff]
  %v3580 = vld [vmem:[%s1 + $0x5c8] sm:$0xff]
  %v3581 = vld [vmem:[%s1 + $0x5d0] sm:$0xff]
  %v3582 = vld [vmem:[%s1 + $0x5d8] sm:$0xff]
  %v3583 = vld [vmem:[%s1 + $0x5e0] sm:$0xff]
  %v3584 = vld [vmem:[%s1 + $0x5e8] sm:$0xff]
  %v3585 = vld [vmem:[%s1 + $0x5f0] sm:$0xff]
  %v3586 = vld [vmem:[%s1 + $0x5f8] sm:$0xff]
  %v3587 = vld [vmem:[%s1 + $0x600] sm:$0xff]
  %v3588 = vld [vmem:[%s1 + $0x608] sm:$0xff]
  %v3589 = vld [vmem:[%s1 + $0x610] sm:$0xff]
  %v3590 = vld [vmem:[%s1 + $0x618] sm:$0xff]
  %v3591 = vld [vmem:[%s1 + $0x620] sm:$0xff]
  %v3592 = vld [vmem:[%s1 + $0x628] sm:$0xff]
  %v3593 = vld [vmem:[%s1 + $0x630] sm:$0xff]
  %v3594 = vld [vmem:[%s1 + $0x638] sm:$0xff]
  %v3595 = vld [vmem:[%s1 + $0x640] sm:$0xff]
  %v3596 = vld [vmem:[%s1 + $0x648] sm:$0xff]
  %v3597 = vld [vmem:[%s1 + $0x650] sm:$0xff]
  %v3598 = vld [vmem:[%s1 + $0x658] sm:$0xff]
  %v3599 = vld [vmem:[%s1 + $0x660] sm:$0xff]
  %v3600 = vld [vmem:[%s1 + $0x668] sm:$0xff]
  %v3601 = vld [vmem:[%s1 + $0x670] sm:$0xff]
  %v3602 = vld [vmem:[%s1 + $0x678] sm:$0xff]
  %v3603 = vld [vmem:[%s1 + $0x680] sm:$0xff]
  %v3604 = vld [vmem:[%s1 + $0x688] sm:$0xff]
  %v3605 = vld [vmem:[%s1 + $0x690] sm:$0xff]
  %v3606 = vld [vmem:[%s1 + $0x698] sm:$0xff]
  %v3607 = vld [vmem:[%s1 + $0x6a0] sm:$0xff]
  %v3608 = vld [vmem:[%s1 + $0x6a8] sm:$0xff]
  %v3609 = vld [vmem:[%s1 + $0x6b0] sm:$0xff]
  %v3610 = vld [vmem:[%s1 + $0x6b8] sm:$0xff]
  %v3611 = vld [vmem:[%s1 + $0x6c0] sm:$0xff]
  %v3612 = vld [vmem:[%s1 + $0x6c8] sm:$0xff]
  %v3613 = vld [vmem:[%s1 + $0x6d0] sm:$0xff]
  %v3614 = vld [vmem:[%s1 + $0x6d8] sm:$0xff]
  %v3615 = vld [vmem:[%s1 + $0x6e0] sm:$0xff]
  %v3616 = vld [vmem:[%s1 + $0x6e8] sm:$0xff]
  %v3617 = vld [vmem:[%s1 + $0x6f0] sm:$0xff]
  %v3618 = vld [vmem:[%s1 + $0x6f8] sm:$0xff]
  %v3619 = vld [vmem:[%s1 + $0x700] sm:$0xff]
  %v3620 = vld [vmem:[%s1 + $0x708] sm:$0xff]
  %v3621 = vld [vmem:[%s1 + $0x710] sm:$0xff]
  %v3622 = vld [vmem:[%s1 + $0x718] sm:$0xff]
  %v3623 = vld [vmem:[%s1 + $0x720] sm:$0xff]
  %v3624 = vld [vmem:[%s1 + $0x728] sm:$0xff]
  %v3625 = vld [vmem:[%s1 + $0x730] sm:$0xff]
  %v3626 = vld [vmem:[%s1 + $0x738] sm:$0xff]
  %v3627 = vld [vmem:[%s1 + $0x740] sm:$0xff]
  %v3628 = vld [vmem:[%s1 + $0x748] sm:$0xff]
  %v3629 = vld [vmem:[%s1 + $0x750] sm:$0xff]
  %v3630 = vld [vmem:[%s1 + $0x758] sm:$0xff]
  %v3631 = vld [vmem:[%s1 + $0x760] sm:$0xff]
  %v3632 = vld [vmem:[%s1 + $0x768] sm:$0xff]
  %v3633 = vld [vmem:[%s1 + $0x770] sm:$0xff]
  %v3634 = vld [vmem:[%s1 + $0x778] sm:$0xff]
  %v3635 = vld [vmem:[%s1 + $0x780] sm:$0xff]
  %v3636 = vld [vmem:[%s1 + $0x788] sm:$0xff]
  %v3637 = vld [vmem:[%s1 + $0x790] sm:$0xff]
  %v3638 = vld [vmem:[%s1 + $0x798] sm:$0xff]
  %v3639 = vld [vmem:[%s1 + $0x7a0] sm:$0xff]
  %v3640 = vld [vmem:[%s1 + $0x7a8] sm:$0xff]
  %v3641 = vld [vmem:[%s1 + $0x7b0] sm:$0xff]
  %v3642 = vld [vmem:[%s1 + $0x7b8] sm:$0xff]
  %v3643 = vld [vmem:[%s1 + $0x7c0] sm:$0xff]
  %v3644 = vld [vmem:[%s1 + $0x7c8] sm:$0xff]
  %v3645 = vld [vmem:[%s1 + $0x7d0] sm:$0xff]
  %v3646 = vld [vmem:[%s1 + $0x7d8] sm:$0xff]
  %v3647 = vld [vmem:[%s1 + $0x7e0] sm:$0xff]
  %v3648 = vld [vmem:[%s1 + $0x7e8] sm:$0xff]
  %v3649 = vld [vmem:[%s1 + $0x7f0] sm:$0xff]
  %v3650 = vld [vmem:[%s1 + $0x7f8] sm:$0xff]
  %3652 = vset.pattern.permute.xlu0 0
  %3653 = vperm.xlu0 %3652, %v3395
  %v3654 = vpop.permute.xlu0 %3653
  %3657 = vset.pattern.permute.xlu0 0
  %3658 = vperm.xlu0 %3657, %v3396
  %v3659 = vpop.permute.xlu0 %3658
  %3662 = vset.pattern.permute.xlu0 0
  %3663 = vperm.xlu0 %3662, %v3397
  %v3664 = vpop.permute.xlu0 %3663
  %3667 = vset.pattern.permute.xlu0 0
  %3668 = vperm.xlu0 %3667, %v3398
  %v3669 = vpop.permute.xlu0 %3668
  %3672 = vset.pattern.permute.xlu0 0
  %3673 = vperm.xlu0 %3672, %v3399
  %v3674 = vpop.permute.xlu0 %3673
  %3677 = vset.pattern.permute.xlu0 0
  %3678 = vperm.xlu0 %3677, %v3400
  %v3679 = vpop.permute.xlu0 %3678
  %3682 = vset.pattern.permute.xlu0 0
  %3683 = vperm.xlu0 %3682, %v3401
  %v3684 = vpop.permute.xlu0 %3683
  %3687 = vset.pattern.permute.xlu0 0
  %3688 = vperm.xlu0 %3687, %v3402
  %v3689 = vpop.permute.xlu0 %3688
  %3692 = vset.pattern.permute.xlu0 0
  %3693 = vperm.xlu0 %3692, %v3403
  %v3694 = vpop.permute.xlu0 %3693
  %3697 = vset.pattern.permute.xlu0 0
  %3698 = vperm.xlu0 %3697, %v3404
  %v3699 = vpop.permute.xlu0 %3698
  %3702 = vset.pattern.permute.xlu0 0
  %3703 = vperm.xlu0 %3702, %v3405
  %v3704 = vpop.permute.xlu0 %3703
  %3707 = vset.pattern.permute.xlu0 0
  %3708 = vperm.xlu0 %3707, %v3406
  %v3709 = vpop.permute.xlu0 %3708
  %3712 = vset.pattern.permute.xlu0 0
  %3713 = vperm.xlu0 %3712, %v3407
  %v3714 = vpop.permute.xlu0 %3713
  %3717 = vset.pattern.permute.xlu0 0
  %3718 = vperm.xlu0 %3717, %v3408
  %v3719 = vpop.permute.xlu0 %3718
  %3722 = vset.pattern.permute.xlu0 0
  %3723 = vperm.xlu0 %3722, %v3409
  %v3724 = vpop.permute.xlu0 %3723
  %3727 = vset.pattern.permute.xlu0 0
  %3728 = vperm.xlu0 %3727, %v3410
  %v3729 = vpop.permute.xlu0 %3728
  %3732 = vset.pattern.permute.xlu0 0
  %3733 = vperm.xlu0 %3732, %v3411
  %v3734 = vpop.permute.xlu0 %3733
  %3737 = vset.pattern.permute.xlu0 0
  %3738 = vperm.xlu0 %3737, %v3412
  %v3739 = vpop.permute.xlu0 %3738
  %3742 = vset.pattern.permute.xlu0 0
  %3743 = vperm.xlu0 %3742, %v3413
  %v3744 = vpop.permute.xlu0 %3743
  %3747 = vset.pattern.permute.xlu0 0
  %3748 = vperm.xlu0 %3747, %v3414
  %v3749 = vpop.permute.xlu0 %3748
  %3752 = vset.pattern.permute.xlu0 0
  %3753 = vperm.xlu0 %3752, %v3415
  %v3754 = vpop.permute.xlu0 %3753
  %3757 = vset.pattern.permute.xlu0 0
  %3758 = vperm.xlu0 %3757, %v3416
  %v3759 = vpop.permute.xlu0 %3758
  %3762 = vset.pattern.permute.xlu0 0
  %3763 = vperm.xlu0 %3762, %v3417
  %v3764 = vpop.permute.xlu0 %3763
  %3767 = vset.pattern.permute.xlu0 0
  %3768 = vperm.xlu0 %3767, %v3418
  %v3769 = vpop.permute.xlu0 %3768
  %3772 = vset.pattern.permute.xlu0 0
  %3773 = vperm.xlu0 %3772, %v3419
  %v3774 = vpop.permute.xlu0 %3773
  %3777 = vset.pattern.permute.xlu0 0
  %3778 = vperm.xlu0 %3777, %v3420
  %v3779 = vpop.permute.xlu0 %3778
  %3782 = vset.pattern.permute.xlu0 0
  %3783 = vperm.xlu0 %3782, %v3421
  %v3784 = vpop.permute.xlu0 %3783
  %3787 = vset.pattern.permute.xlu0 0
  %3788 = vperm.xlu0 %3787, %v3422
  %v3789 = vpop.permute.xlu0 %3788
  %3792 = vset.pattern.permute.xlu0 0
  %3793 = vperm.xlu0 %3792, %v3423
  %v3794 = vpop.permute.xlu0 %3793
  %3797 = vset.pattern.permute.xlu0 0
  %3798 = vperm.xlu0 %3797, %v3424
  %v3799 = vpop.permute.xlu0 %3798
  %3802 = vset.pattern.permute.xlu0 0
  %3803 = vperm.xlu0 %3802, %v3425
  %v3804 = vpop.permute.xlu0 %3803
  %3807 = vset.pattern.permute.xlu0 0
  %3808 = vperm.xlu0 %3807, %v3426
  %v3809 = vpop.permute.xlu0 %3808
  %3812 = vset.pattern.permute.xlu0 0
  %3813 = vperm.xlu0 %3812, %v3427
  %v3814 = vpop.permute.xlu0 %3813
  %3817 = vset.pattern.permute.xlu0 0
  %3818 = vperm.xlu0 %3817, %v3428
  %v3819 = vpop.permute.xlu0 %3818
  %3822 = vset.pattern.permute.xlu0 0
  %3823 = vperm.xlu0 %3822, %v3429
  %v3824 = vpop.permute.xlu0 %3823
  %3827 = vset.pattern.permute.xlu0 0
  %3828 = vperm.xlu0 %3827, %v3430
  %v3829 = vpop.permute.xlu0 %3828
  %3832 = vset.pattern.permute.xlu0 0
  %3833 = vperm.xlu0 %3832, %v3431
  %v3834 = vpop.permute.xlu0 %3833
  %3837 = vset.pattern.permute.xlu0 0
  %3838 = vperm.xlu0 %3837, %v3432
  %v3839 = vpop.permute.xlu0 %3838
  %3842 = vset.pattern.permute.xlu0 0
  %3843 = vperm.xlu0 %3842, %v3433
  %v3844 = vpop.permute.xlu0 %3843
  %3847 = vset.pattern.permute.xlu0 0
  %3848 = vperm.xlu0 %3847, %v3434
  %v3849 = vpop.permute.xlu0 %3848
  %3852 = vset.pattern.permute.xlu0 0
  %3853 = vperm.xlu0 %3852, %v3435
  %v3854 = vpop.permute.xlu0 %3853
  %3857 = vset.pattern.permute.xlu0 0
  %3858 = vperm.xlu0 %3857, %v3436
  %v3859 = vpop.permute.xlu0 %3858
  %3862 = vset.pattern.permute.xlu0 0
  %3863 = vperm.xlu0 %3862, %v3437
  %v3864 = vpop.permute.xlu0 %3863
  %3867 = vset.pattern.permute.xlu0 0
  %3868 = vperm.xlu0 %3867, %v3438
  %v3869 = vpop.permute.xlu0 %3868
  %3872 = vset.pattern.permute.xlu0 0
  %3873 = vperm.xlu0 %3872, %v3439
  %v3874 = vpop.permute.xlu0 %3873
  %3877 = vset.pattern.permute.xlu0 0
  %3878 = vperm.xlu0 %3877, %v3440
  %v3879 = vpop.permute.xlu0 %3878
  %3882 = vset.pattern.permute.xlu0 0
  %3883 = vperm.xlu0 %3882, %v3441
  %v3884 = vpop.permute.xlu0 %3883
  %3887 = vset.pattern.permute.xlu0 0
  %3888 = vperm.xlu0 %3887, %v3442
  %v3889 = vpop.permute.xlu0 %3888
  %3892 = vset.pattern.permute.xlu0 0
  %3893 = vperm.xlu0 %3892, %v3443
  %v3894 = vpop.permute.xlu0 %3893
  %3897 = vset.pattern.permute.xlu0 0
  %3898 = vperm.xlu0 %3897, %v3444
  %v3899 = vpop.permute.xlu0 %3898
  %3902 = vset.pattern.permute.xlu0 0
  %3903 = vperm.xlu0 %3902, %v3445
  %v3904 = vpop.permute.xlu0 %3903
  %3907 = vset.pattern.permute.xlu0 0
  %3908 = vperm.xlu0 %3907, %v3446
  %v3909 = vpop.permute.xlu0 %3908
  %3912 = vset.pattern.permute.xlu0 0
  %3913 = vperm.xlu0 %3912, %v3447
  %v3914 = vpop.permute.xlu0 %3913
  %3917 = vset.pattern.permute.xlu0 0
  %3918 = vperm.xlu0 %3917, %v3448
  %v3919 = vpop.permute.xlu0 %3918
  %3922 = vset.pattern.permute.xlu0 0
  %3923 = vperm.xlu0 %3922, %v3449
  %v3924 = vpop.permute.xlu0 %3923
  %3927 = vset.pattern.permute.xlu0 0
  %3928 = vperm.xlu0 %3927, %v3450
  %v3929 = vpop.permute.xlu0 %3928
  %3932 = vset.pattern.permute.xlu0 0
  %3933 = vperm.xlu0 %3932, %v3451
  %v3934 = vpop.permute.xlu0 %3933
  %3937 = vset.pattern.permute.xlu0 0
  %3938 = vperm.xlu0 %3937, %v3452
  %v3939 = vpop.permute.xlu0 %3938
  %3942 = vset.pattern.permute.xlu0 0
  %3943 = vperm.xlu0 %3942, %v3453
  %v3944 = vpop.permute.xlu0 %3943
  %3947 = vset.pattern.permute.xlu0 0
  %3948 = vperm.xlu0 %3947, %v3454
  %v3949 = vpop.permute.xlu0 %3948
  %3952 = vset.pattern.permute.xlu0 0
  %3953 = vperm.xlu0 %3952, %v3455
  %v3954 = vpop.permute.xlu0 %3953
  %3957 = vset.pattern.permute.xlu0 0
  %3958 = vperm.xlu0 %3957, %v3456
  %v3959 = vpop.permute.xlu0 %3958
  %3962 = vset.pattern.permute.xlu0 0
  %3963 = vperm.xlu0 %3962, %v3457
  %v3964 = vpop.permute.xlu0 %3963
  %3967 = vset.pattern.permute.xlu0 0
  %3968 = vperm.xlu0 %3967, %v3458
  %v3969 = vpop.permute.xlu0 %3968
  %3972 = vset.pattern.permute.xlu0 0
  %3973 = vperm.xlu0 %3972, %v3459
  %v3974 = vpop.permute.xlu0 %3973
  %3977 = vset.pattern.permute.xlu0 0
  %3978 = vperm.xlu0 %3977, %v3460
  %v3979 = vpop.permute.xlu0 %3978
  %3982 = vset.pattern.permute.xlu0 0
  %3983 = vperm.xlu0 %3982, %v3461
  %v3984 = vpop.permute.xlu0 %3983
  %3987 = vset.pattern.permute.xlu0 0
  %3988 = vperm.xlu0 %3987, %v3462
  %v3989 = vpop.permute.xlu0 %3988
  %3992 = vset.pattern.permute.xlu0 0
  %3993 = vperm.xlu0 %3992, %v3463
  %v3994 = vpop.permute.xlu0 %3993
  %3997 = vset.pattern.permute.xlu0 0
  %3998 = vperm.xlu0 %3997, %v3464
  %v3999 = vpop.permute.xlu0 %3998
  %4002 = vset.pattern.permute.xlu0 0
  %4003 = vperm.xlu0 %4002, %v3465
  %v4004 = vpop.permute.xlu0 %4003
  %4007 = vset.pattern.permute.xlu0 0
  %4008 = vperm.xlu0 %4007, %v3466
  %v4009 = vpop.permute.xlu0 %4008
  %4012 = vset.pattern.permute.xlu0 0
  %4013 = vperm.xlu0 %4012, %v3467
  %v4014 = vpop.permute.xlu0 %4013
  %4017 = vset.pattern.permute.xlu0 0
  %4018 = vperm.xlu0 %4017, %v3468
  %v4019 = vpop.permute.xlu0 %4018
  %4022 = vset.pattern.permute.xlu0 0
  %4023 = vperm.xlu0 %4022, %v3469
  %v4024 = vpop.permute.xlu0 %4023
  %4027 = vset.pattern.permute.xlu0 0
  %4028 = vperm.xlu0 %4027, %v3470
  %v4029 = vpop.permute.xlu0 %4028
  %4032 = vset.pattern.permute.xlu0 0
  %4033 = vperm.xlu0 %4032, %v3471
  %v4034 = vpop.permute.xlu0 %4033
  %4037 = vset.pattern.permute.xlu0 0
  %4038 = vperm.xlu0 %4037, %v3472
  %v4039 = vpop.permute.xlu0 %4038
  %4042 = vset.pattern.permute.xlu0 0
  %4043 = vperm.xlu0 %4042, %v3473
  %v4044 = vpop.permute.xlu0 %4043
  %4047 = vset.pattern.permute.xlu0 0
  %4048 = vperm.xlu0 %4047, %v3474
  %v4049 = vpop.permute.xlu0 %4048
  %4052 = vset.pattern.permute.xlu0 0
  %4053 = vperm.xlu0 %4052, %v3475
  %v4054 = vpop.permute.xlu0 %4053
  %4057 = vset.pattern.permute.xlu0 0
  %4058 = vperm.xlu0 %4057, %v3476
  %v4059 = vpop.permute.xlu0 %4058
  %4062 = vset.pattern.permute.xlu0 0
  %4063 = vperm.xlu0 %4062, %v3477
  %v4064 = vpop.permute.xlu0 %4063
  %4067 = vset.pattern.permute.xlu0 0
  %4068 = vperm.xlu0 %4067, %v3478
  %v4069 = vpop.permute.xlu0 %4068
  %4072 = vset.pattern.permute.xlu0 0
  %4073 = vperm.xlu0 %4072, %v3479
  %v4074 = vpop.permute.xlu0 %4073
  %4077 = vset.pattern.permute.xlu0 0
  %4078 = vperm.xlu0 %4077, %v3480
  %v4079 = vpop.permute.xlu0 %4078
  %4082 = vset.pattern.permute.xlu0 0
  %4083 = vperm.xlu0 %4082, %v3481
  %v4084 = vpop.permute.xlu0 %4083
  %4087 = vset.pattern.permute.xlu0 0
  %4088 = vperm.xlu0 %4087, %v3482
  %v4089 = vpop.permute.xlu0 %4088
  %4092 = vset.pattern.permute.xlu0 0
  %4093 = vperm.xlu0 %4092, %v3483
  %v4094 = vpop.permute.xlu0 %4093
  %4097 = vset.pattern.permute.xlu0 0
  %4098 = vperm.xlu0 %4097, %v3484
  %v4099 = vpop.permute.xlu0 %4098
  %4102 = vset.pattern.permute.xlu0 0
  %4103 = vperm.xlu0 %4102, %v3485
  %v4104 = vpop.permute.xlu0 %4103
  %4107 = vset.pattern.permute.xlu0 0
  %4108 = vperm.xlu0 %4107, %v3486
  %v4109 = vpop.permute.xlu0 %4108
  %4112 = vset.pattern.permute.xlu0 0
  %4113 = vperm.xlu0 %4112, %v3487
  %v4114 = vpop.permute.xlu0 %4113
  %4117 = vset.pattern.permute.xlu0 0
  %4118 = vperm.xlu0 %4117, %v3488
  %v4119 = vpop.permute.xlu0 %4118
  %4122 = vset.pattern.permute.xlu0 0
  %4123 = vperm.xlu0 %4122, %v3489
  %v4124 = vpop.permute.xlu0 %4123
  %4127 = vset.pattern.permute.xlu0 0
  %4128 = vperm.xlu0 %4127, %v3490
  %v4129 = vpop.permute.xlu0 %4128
  %4132 = vset.pattern.permute.xlu0 0
  %4133 = vperm.xlu0 %4132, %v3491
  %v4134 = vpop.permute.xlu0 %4133
  %4137 = vset.pattern.permute.xlu0 0
  %4138 = vperm.xlu0 %4137, %v3492
  %v4139 = vpop.permute.xlu0 %4138
  %4142 = vset.pattern.permute.xlu0 0
  %4143 = vperm.xlu0 %4142, %v3493
  %v4144 = vpop.permute.xlu0 %4143
  %4147 = vset.pattern.permute.xlu0 0
  %4148 = vperm.xlu0 %4147, %v3494
  %v4149 = vpop.permute.xlu0 %4148
  %4152 = vset.pattern.permute.xlu0 0
  %4153 = vperm.xlu0 %4152, %v3495
  %v4154 = vpop.permute.xlu0 %4153
  %4157 = vset.pattern.permute.xlu0 0
  %4158 = vperm.xlu0 %4157, %v3496
  %v4159 = vpop.permute.xlu0 %4158
  %4162 = vset.pattern.permute.xlu0 0
  %4163 = vperm.xlu0 %4162, %v3497
  %v4164 = vpop.permute.xlu0 %4163
  %4167 = vset.pattern.permute.xlu0 0
  %4168 = vperm.xlu0 %4167, %v3498
  %v4169 = vpop.permute.xlu0 %4168
  %4172 = vset.pattern.permute.xlu0 0
  %4173 = vperm.xlu0 %4172, %v3499
  %v4174 = vpop.permute.xlu0 %4173
  %4177 = vset.pattern.permute.xlu0 0
  %4178 = vperm.xlu0 %4177, %v3500
  %v4179 = vpop.permute.xlu0 %4178
  %4182 = vset.pattern.permute.xlu0 0
  %4183 = vperm.xlu0 %4182, %v3501
  %v4184 = vpop.permute.xlu0 %4183
  %4187 = vset.pattern.permute.xlu0 0
  %4188 = vperm.xlu0 %4187, %v3502
  %v4189 = vpop.permute.xlu0 %4188
  %4192 = vset.pattern.permute.xlu0 0
  %4193 = vperm.xlu0 %4192, %v3503
  %v4194 = vpop.permute.xlu0 %4193
  %4197 = vset.pattern.permute.xlu0 0
  %4198 = vperm.xlu0 %4197, %v3504
  %v4199 = vpop.permute.xlu0 %4198
  %4202 = vset.pattern.permute.xlu0 0
  %4203 = vperm.xlu0 %4202, %v3505
  %v4204 = vpop.permute.xlu0 %4203
  %4207 = vset.pattern.permute.xlu0 0
  %4208 = vperm.xlu0 %4207, %v3506
  %v4209 = vpop.permute.xlu0 %4208
  %4212 = vset.pattern.permute.xlu0 0
  %4213 = vperm.xlu0 %4212, %v3507
  %v4214 = vpop.permute.xlu0 %4213
  %4217 = vset.pattern.permute.xlu0 0
  %4218 = vperm.xlu0 %4217, %v3508
  %v4219 = vpop.permute.xlu0 %4218
  %4222 = vset.pattern.permute.xlu0 0
  %4223 = vperm.xlu0 %4222, %v3509
  %v4224 = vpop.permute.xlu0 %4223
  %4227 = vset.pattern.permute.xlu0 0
  %4228 = vperm.xlu0 %4227, %v3510
  %v4229 = vpop.permute.xlu0 %4228
  %4232 = vset.pattern.permute.xlu0 0
  %4233 = vperm.xlu0 %4232, %v3511
  %v4234 = vpop.permute.xlu0 %4233
  %4237 = vset.pattern.permute.xlu0 0
  %4238 = vperm.xlu0 %4237, %v3512
  %v4239 = vpop.permute.xlu0 %4238
  %4242 = vset.pattern.permute.xlu0 0
  %4243 = vperm.xlu0 %4242, %v3513
  %v4244 = vpop.permute.xlu0 %4243
  %4247 = vset.pattern.permute.xlu0 0
  %4248 = vperm.xlu0 %4247, %v3514
  %v4249 = vpop.permute.xlu0 %4248
  %4252 = vset.pattern.permute.xlu0 0
  %4253 = vperm.xlu0 %4252, %v3515
  %v4254 = vpop.permute.xlu0 %4253
  %4257 = vset.pattern.permute.xlu0 0
  %4258 = vperm.xlu0 %4257, %v3516
  %v4259 = vpop.permute.xlu0 %4258
  %4262 = vset.pattern.permute.xlu0 0
  %4263 = vperm.xlu0 %4262, %v3517
  %v4264 = vpop.permute.xlu0 %4263
  %4267 = vset.pattern.permute.xlu0 0
  %4268 = vperm.xlu0 %4267, %v3518
  %v4269 = vpop.permute.xlu0 %4268
  %4272 = vset.pattern.permute.xlu0 0
  %4273 = vperm.xlu0 %4272, %v3519
  %v4274 = vpop.permute.xlu0 %4273
  %4277 = vset.pattern.permute.xlu0 0
  %4278 = vperm.xlu0 %4277, %v3520
  %v4279 = vpop.permute.xlu0 %4278
  %4282 = vset.pattern.permute.xlu0 0
  %4283 = vperm.xlu0 %4282, %v3521
  %v4284 = vpop.permute.xlu0 %4283
  %4287 = vset.pattern.permute.xlu0 0
  %4288 = vperm.xlu0 %4287, %v3522
  %v4289 = vpop.permute.xlu0 %4288
  %4292 = vset.pattern.permute.xlu0 0
  %4293 = vperm.xlu0 %4292, %v3523
  %v4294 = vpop.permute.xlu0 %4293
  %4297 = vset.pattern.permute.xlu0 0
  %4298 = vperm.xlu0 %4297, %v3524
  %v4299 = vpop.permute.xlu0 %4298
  %4302 = vset.pattern.permute.xlu0 0
  %4303 = vperm.xlu0 %4302, %v3525
  %v4304 = vpop.permute.xlu0 %4303
  %4307 = vset.pattern.permute.xlu0 0
  %4308 = vperm.xlu0 %4307, %v3526
  %v4309 = vpop.permute.xlu0 %4308
  %4312 = vset.pattern.permute.xlu0 0
  %4313 = vperm.xlu0 %4312, %v3527
  %v4314 = vpop.permute.xlu0 %4313
  %4317 = vset.pattern.permute.xlu0 0
  %4318 = vperm.xlu0 %4317, %v3528
  %v4319 = vpop.permute.xlu0 %4318
  %4322 = vset.pattern.permute.xlu0 0
  %4323 = vperm.xlu0 %4322, %v3529
  %v4324 = vpop.permute.xlu0 %4323
  %4327 = vset.pattern.permute.xlu0 0
  %4328 = vperm.xlu0 %4327, %v3530
  %v4329 = vpop.permute.xlu0 %4328
  %4332 = vset.pattern.permute.xlu0 0
  %4333 = vperm.xlu0 %4332, %v3531
  %v4334 = vpop.permute.xlu0 %4333
  %4337 = vset.pattern.permute.xlu0 0
  %4338 = vperm.xlu0 %4337, %v3532
  %v4339 = vpop.permute.xlu0 %4338
  %4342 = vset.pattern.permute.xlu0 0
  %4343 = vperm.xlu0 %4342, %v3533
  %v4344 = vpop.permute.xlu0 %4343
  %4347 = vset.pattern.permute.xlu0 0
  %4348 = vperm.xlu0 %4347, %v3534
  %v4349 = vpop.permute.xlu0 %4348
  %4352 = vset.pattern.permute.xlu0 0
  %4353 = vperm.xlu0 %4352, %v3535
  %v4354 = vpop.permute.xlu0 %4353
  %4357 = vset.pattern.permute.xlu0 0
  %4358 = vperm.xlu0 %4357, %v3536
  %v4359 = vpop.permute.xlu0 %4358
  %4362 = vset.pattern.permute.xlu0 0
  %4363 = vperm.xlu0 %4362, %v3537
  %v4364 = vpop.permute.xlu0 %4363
  %4367 = vset.pattern.permute.xlu0 0
  %4368 = vperm.xlu0 %4367, %v3538
  %v4369 = vpop.permute.xlu0 %4368
  %4372 = vset.pattern.permute.xlu0 0
  %4373 = vperm.xlu0 %4372, %v3539
  %v4374 = vpop.permute.xlu0 %4373
  %4377 = vset.pattern.permute.xlu0 0
  %4378 = vperm.xlu0 %4377, %v3540
  %v4379 = vpop.permute.xlu0 %4378
  %4382 = vset.pattern.permute.xlu0 0
  %4383 = vperm.xlu0 %4382, %v3541
  %v4384 = vpop.permute.xlu0 %4383
  %4387 = vset.pattern.permute.xlu0 0
  %4388 = vperm.xlu0 %4387, %v3542
  %v4389 = vpop.permute.xlu0 %4388
  %4392 = vset.pattern.permute.xlu0 0
  %4393 = vperm.xlu0 %4392, %v3543
  %v4394 = vpop.permute.xlu0 %4393
  %4397 = vset.pattern.permute.xlu0 0
  %4398 = vperm.xlu0 %4397, %v3544
  %v4399 = vpop.permute.xlu0 %4398
  %4402 = vset.pattern.permute.xlu0 0
  %4403 = vperm.xlu0 %4402, %v3545
  %v4404 = vpop.permute.xlu0 %4403
  %4407 = vset.pattern.permute.xlu0 0
  %4408 = vperm.xlu0 %4407, %v3546
  %v4409 = vpop.permute.xlu0 %4408
  %4412 = vset.pattern.permute.xlu0 0
  %4413 = vperm.xlu0 %4412, %v3547
  %v4414 = vpop.permute.xlu0 %4413
  %4417 = vset.pattern.permute.xlu0 0
  %4418 = vperm.xlu0 %4417, %v3548
  %v4419 = vpop.permute.xlu0 %4418
  %4422 = vset.pattern.permute.xlu0 0
  %4423 = vperm.xlu0 %4422, %v3549
  %v4424 = vpop.permute.xlu0 %4423
  %4427 = vset.pattern.permute.xlu0 0
  %4428 = vperm.xlu0 %4427, %v3550
  %v4429 = vpop.permute.xlu0 %4428
  %4432 = vset.pattern.permute.xlu0 0
  %4433 = vperm.xlu0 %4432, %v3551
  %v4434 = vpop.permute.xlu0 %4433
  %4437 = vset.pattern.permute.xlu0 0
  %4438 = vperm.xlu0 %4437, %v3552
  %v4439 = vpop.permute.xlu0 %4438
  %4442 = vset.pattern.permute.xlu0 0
  %4443 = vperm.xlu0 %4442, %v3553
  %v4444 = vpop.permute.xlu0 %4443
  %4447 = vset.pattern.permute.xlu0 0
  %4448 = vperm.xlu0 %4447, %v3554
  %v4449 = vpop.permute.xlu0 %4448
  %4452 = vset.pattern.permute.xlu0 0
  %4453 = vperm.xlu0 %4452, %v3555
  %v4454 = vpop.permute.xlu0 %4453
  %4457 = vset.pattern.permute.xlu0 0
  %4458 = vperm.xlu0 %4457, %v3556
  %v4459 = vpop.permute.xlu0 %4458
  %4462 = vset.pattern.permute.xlu0 0
  %4463 = vperm.xlu0 %4462, %v3557
  %v4464 = vpop.permute.xlu0 %4463
  %4467 = vset.pattern.permute.xlu0 0
  %4468 = vperm.xlu0 %4467, %v3558
  %v4469 = vpop.permute.xlu0 %4468
  %4472 = vset.pattern.permute.xlu0 0
  %4473 = vperm.xlu0 %4472, %v3559
  %v4474 = vpop.permute.xlu0 %4473
  %4477 = vset.pattern.permute.xlu0 0
  %4478 = vperm.xlu0 %4477, %v3560
  %v4479 = vpop.permute.xlu0 %4478
  %4482 = vset.pattern.permute.xlu0 0
  %4483 = vperm.xlu0 %4482, %v3561
  %v4484 = vpop.permute.xlu0 %4483
  %4487 = vset.pattern.permute.xlu0 0
  %4488 = vperm.xlu0 %4487, %v3562
  %v4489 = vpop.permute.xlu0 %4488
  %4492 = vset.pattern.permute.xlu0 0
  %4493 = vperm.xlu0 %4492, %v3563
  %v4494 = vpop.permute.xlu0 %4493
  %4497 = vset.pattern.permute.xlu0 0
  %4498 = vperm.xlu0 %4497, %v3564
  %v4499 = vpop.permute.xlu0 %4498
  %4502 = vset.pattern.permute.xlu0 0
  %4503 = vperm.xlu0 %4502, %v3565
  %v4504 = vpop.permute.xlu0 %4503
  %4507 = vset.pattern.permute.xlu0 0
  %4508 = vperm.xlu0 %4507, %v3566
  %v4509 = vpop.permute.xlu0 %4508
  %4512 = vset.pattern.permute.xlu0 0
  %4513 = vperm.xlu0 %4512, %v3567
  %v4514 = vpop.permute.xlu0 %4513
  %4517 = vset.pattern.permute.xlu0 0
  %4518 = vperm.xlu0 %4517, %v3568
  %v4519 = vpop.permute.xlu0 %4518
  %4522 = vset.pattern.permute.xlu0 0
  %4523 = vperm.xlu0 %4522, %v3569
  %v4524 = vpop.permute.xlu0 %4523
  %4527 = vset.pattern.permute.xlu0 0
  %4528 = vperm.xlu0 %4527, %v3570
  %v4529 = vpop.permute.xlu0 %4528
  %4532 = vset.pattern.permute.xlu0 0
  %4533 = vperm.xlu0 %4532, %v3571
  %v4534 = vpop.permute.xlu0 %4533
  %4537 = vset.pattern.permute.xlu0 0
  %4538 = vperm.xlu0 %4537, %v3572
  %v4539 = vpop.permute.xlu0 %4538
  %4542 = vset.pattern.permute.xlu0 0
  %4543 = vperm.xlu0 %4542, %v3573
  %v4544 = vpop.permute.xlu0 %4543
  %4547 = vset.pattern.permute.xlu0 0
  %4548 = vperm.xlu0 %4547, %v3574
  %v4549 = vpop.permute.xlu0 %4548
  %4552 = vset.pattern.permute.xlu0 0
  %4553 = vperm.xlu0 %4552, %v3575
  %v4554 = vpop.permute.xlu0 %4553
  %4557 = vset.pattern.permute.xlu0 0
  %4558 = vperm.xlu0 %4557, %v3576
  %v4559 = vpop.permute.xlu0 %4558
  %4562 = vset.pattern.permute.xlu0 0
  %4563 = vperm.xlu0 %4562, %v3577
  %v4564 = vpop.permute.xlu0 %4563
  %4567 = vset.pattern.permute.xlu0 0
  %4568 = vperm.xlu0 %4567, %v3578
  %v4569 = vpop.permute.xlu0 %4568
  %4572 = vset.pattern.permute.xlu0 0
  %4573 = vperm.xlu0 %4572, %v3579
  %v4574 = vpop.permute.xlu0 %4573
  %4577 = vset.pattern.permute.xlu0 0
  %4578 = vperm.xlu0 %4577, %v3580
  %v4579 = vpop.permute.xlu0 %4578
  %4582 = vset.pattern.permute.xlu0 0
  %4583 = vperm.xlu0 %4582, %v3581
  %v4584 = vpop.permute.xlu0 %4583
  %4587 = vset.pattern.permute.xlu0 0
  %4588 = vperm.xlu0 %4587, %v3582
  %v4589 = vpop.permute.xlu0 %4588
  %4592 = vset.pattern.permute.xlu0 0
  %4593 = vperm.xlu0 %4592, %v3583
  %v4594 = vpop.permute.xlu0 %4593
  %4597 = vset.pattern.permute.xlu0 0
  %4598 = vperm.xlu0 %4597, %v3584
  %v4599 = vpop.permute.xlu0 %4598
  %4602 = vset.pattern.permute.xlu0 0
  %4603 = vperm.xlu0 %4602, %v3585
  %v4604 = vpop.permute.xlu0 %4603
  %4607 = vset.pattern.permute.xlu0 0
  %4608 = vperm.xlu0 %4607, %v3586
  %v4609 = vpop.permute.xlu0 %4608
  %4612 = vset.pattern.permute.xlu0 0
  %4613 = vperm.xlu0 %4612, %v3587
  %v4614 = vpop.permute.xlu0 %4613
  %4617 = vset.pattern.permute.xlu0 0
  %4618 = vperm.xlu0 %4617, %v3588
  %v4619 = vpop.permute.xlu0 %4618
  %4622 = vset.pattern.permute.xlu0 0
  %4623 = vperm.xlu0 %4622, %v3589
  %v4624 = vpop.permute.xlu0 %4623
  %4627 = vset.pattern.permute.xlu0 0
  %4628 = vperm.xlu0 %4627, %v3590
  %v4629 = vpop.permute.xlu0 %4628
  %4632 = vset.pattern.permute.xlu0 0
  %4633 = vperm.xlu0 %4632, %v3591
  %v4634 = vpop.permute.xlu0 %4633
  %4637 = vset.pattern.permute.xlu0 0
  %4638 = vperm.xlu0 %4637, %v3592
  %v4639 = vpop.permute.xlu0 %4638
  %4642 = vset.pattern.permute.xlu0 0
  %4643 = vperm.xlu0 %4642, %v3593
  %v4644 = vpop.permute.xlu0 %4643
  %4647 = vset.pattern.permute.xlu0 0
  %4648 = vperm.xlu0 %4647, %v3594
  %v4649 = vpop.permute.xlu0 %4648
  %4652 = vset.pattern.permute.xlu0 0
  %4653 = vperm.xlu0 %4652, %v3595
  %v4654 = vpop.permute.xlu0 %4653
  %4657 = vset.pattern.permute.xlu0 0
  %4658 = vperm.xlu0 %4657, %v3596
  %v4659 = vpop.permute.xlu0 %4658
  %4662 = vset.pattern.permute.xlu0 0
  %4663 = vperm.xlu0 %4662, %v3597
  %v4664 = vpop.permute.xlu0 %4663
  %4667 = vset.pattern.permute.xlu0 0
  %4668 = vperm.xlu0 %4667, %v3598
  %v4669 = vpop.permute.xlu0 %4668
  %4672 = vset.pattern.permute.xlu0 0
  %4673 = vperm.xlu0 %4672, %v3599
  %v4674 = vpop.permute.xlu0 %4673
  %4677 = vset.pattern.permute.xlu0 0
  %4678 = vperm.xlu0 %4677, %v3600
  %v4679 = vpop.permute.xlu0 %4678
  %4682 = vset.pattern.permute.xlu0 0
  %4683 = vperm.xlu0 %4682, %v3601
  %v4684 = vpop.permute.xlu0 %4683
  %4687 = vset.pattern.permute.xlu0 0
  %4688 = vperm.xlu0 %4687, %v3602
  %v4689 = vpop.permute.xlu0 %4688
  %4692 = vset.pattern.permute.xlu0 0
  %4693 = vperm.xlu0 %4692, %v3603
  %v4694 = vpop.permute.xlu0 %4693
  %4697 = vset.pattern.permute.xlu0 0
  %4698 = vperm.xlu0 %4697, %v3604
  %v4699 = vpop.permute.xlu0 %4698
  %4702 = vset.pattern.permute.xlu0 0
  %4703 = vperm.xlu0 %4702, %v3605
  %v4704 = vpop.permute.xlu0 %4703
  %4707 = vset.pattern.permute.xlu0 0
  %4708 = vperm.xlu0 %4707, %v3606
  %v4709 = vpop.permute.xlu0 %4708
  %4712 = vset.pattern.permute.xlu0 0
  %4713 = vperm.xlu0 %4712, %v3607
  %v4714 = vpop.permute.xlu0 %4713
  %4717 = vset.pattern.permute.xlu0 0
  %4718 = vperm.xlu0 %4717, %v3608
  %v4719 = vpop.permute.xlu0 %4718
  %4722 = vset.pattern.permute.xlu0 0
  %4723 = vperm.xlu0 %4722, %v3609
  %v4724 = vpop.permute.xlu0 %4723
  %4727 = vset.pattern.permute.xlu0 0
  %4728 = vperm.xlu0 %4727, %v3610
  %v4729 = vpop.permute.xlu0 %4728
  %4732 = vset.pattern.permute.xlu0 0
  %4733 = vperm.xlu0 %4732, %v3611
  %v4734 = vpop.permute.xlu0 %4733
  %4737 = vset.pattern.permute.xlu0 0
  %4738 = vperm.xlu0 %4737, %v3612
  %v4739 = vpop.permute.xlu0 %4738
  %4742 = vset.pattern.permute.xlu0 0
  %4743 = vperm.xlu0 %4742, %v3613
  %v4744 = vpop.permute.xlu0 %4743
  %4747 = vset.pattern.permute.xlu0 0
  %4748 = vperm.xlu0 %4747, %v3614
  %v4749 = vpop.permute.xlu0 %4748
  %4752 = vset.pattern.permute.xlu0 0
  %4753 = vperm.xlu0 %4752, %v3615
  %v4754 = vpop.permute.xlu0 %4753
  %4757 = vset.pattern.permute.xlu0 0
  %4758 = vperm.xlu0 %4757, %v3616
  %v4759 = vpop.permute.xlu0 %4758
  %4762 = vset.pattern.permute.xlu0 0
  %4763 = vperm.xlu0 %4762, %v3617
  %v4764 = vpop.permute.xlu0 %4763
  %4767 = vset.pattern.permute.xlu0 0
  %4768 = vperm.xlu0 %4767, %v3618
  %v4769 = vpop.permute.xlu0 %4768
  %4772 = vset.pattern.permute.xlu0 0
  %4773 = vperm.xlu0 %4772, %v3619
  %v4774 = vpop.permute.xlu0 %4773
  %4777 = vset.pattern.permute.xlu0 0
  %4778 = vperm.xlu0 %4777, %v3620
  %v4779 = vpop.permute.xlu0 %4778
  %4782 = vset.pattern.permute.xlu0 0
  %4783 = vperm.xlu0 %4782, %v3621
  %v4784 = vpop.permute.xlu0 %4783
  %4787 = vset.pattern.permute.xlu0 0
  %4788 = vperm.xlu0 %4787, %v3622
  %v4789 = vpop.permute.xlu0 %4788
  %4792 = vset.pattern.permute.xlu0 0
  %4793 = vperm.xlu0 %4792, %v3623
  %v4794 = vpop.permute.xlu0 %4793
  %4797 = vset.pattern.permute.xlu0 0
  %4798 = vperm.xlu0 %4797, %v3624
  %v4799 = vpop.permute.xlu0 %4798
  %4802 = vset.pattern.permute.xlu0 0
  %4803 = vperm.xlu0 %4802, %v3625
  %v4804 = vpop.permute.xlu0 %4803
  %4807 = vset.pattern.permute.xlu0 0
  %4808 = vperm.xlu0 %4807, %v3626
  %v4809 = vpop.permute.xlu0 %4808
  %4812 = vset.pattern.permute.xlu0 0
  %4813 = vperm.xlu0 %4812, %v3627
  %v4814 = vpop.permute.xlu0 %4813
  %4817 = vset.pattern.permute.xlu0 0
  %4818 = vperm.xlu0 %4817, %v3628
  %v4819 = vpop.permute.xlu0 %4818
  %4822 = vset.pattern.permute.xlu0 0
  %4823 = vperm.xlu0 %4822, %v3629
  %v4824 = vpop.permute.xlu0 %4823
  %4827 = vset.pattern.permute.xlu0 0
  %4828 = vperm.xlu0 %4827, %v3630
  %v4829 = vpop.permute.xlu0 %4828
  %4832 = vset.pattern.permute.xlu0 0
  %4833 = vperm.xlu0 %4832, %v3631
  %v4834 = vpop.permute.xlu0 %4833
  %4837 = vset.pattern.permute.xlu0 0
  %4838 = vperm.xlu0 %4837, %v3632
  %v4839 = vpop.permute.xlu0 %4838
  %4842 = vset.pattern.permute.xlu0 0
  %4843 = vperm.xlu0 %4842, %v3633
  %v4844 = vpop.permute.xlu0 %4843
  %4847 = vset.pattern.permute.xlu0 0
  %4848 = vperm.xlu0 %4847, %v3634
  %v4849 = vpop.permute.xlu0 %4848
  %4852 = vset.pattern.permute.xlu0 0
  %4853 = vperm.xlu0 %4852, %v3635
  %v4854 = vpop.permute.xlu0 %4853
  %4857 = vset.pattern.permute.xlu0 0
  %4858 = vperm.xlu0 %4857, %v3636
  %v4859 = vpop.permute.xlu0 %4858
  %4862 = vset.pattern.permute.xlu0 0
  %4863 = vperm.xlu0 %4862, %v3637
  %v4864 = vpop.permute.xlu0 %4863
  %4867 = vset.pattern.permute.xlu0 0
  %4868 = vperm.xlu0 %4867, %v3638
  %v4869 = vpop.permute.xlu0 %4868
  %4872 = vset.pattern.permute.xlu0 0
  %4873 = vperm.xlu0 %4872, %v3639
  %v4874 = vpop.permute.xlu0 %4873
  %4877 = vset.pattern.permute.xlu0 0
  %4878 = vperm.xlu0 %4877, %v3640
  %v4879 = vpop.permute.xlu0 %4878
  %4882 = vset.pattern.permute.xlu0 0
  %4883 = vperm.xlu0 %4882, %v3641
  %v4884 = vpop.permute.xlu0 %4883
  %4887 = vset.pattern.permute.xlu0 0
  %4888 = vperm.xlu0 %4887, %v3642
  %v4889 = vpop.permute.xlu0 %4888
  %4892 = vset.pattern.permute.xlu0 0
  %4893 = vperm.xlu0 %4892, %v3643
  %v4894 = vpop.permute.xlu0 %4893
  %4897 = vset.pattern.permute.xlu0 0
  %4898 = vperm.xlu0 %4897, %v3644
  %v4899 = vpop.permute.xlu0 %4898
  %4902 = vset.pattern.permute.xlu0 0
  %4903 = vperm.xlu0 %4902, %v3645
  %v4904 = vpop.permute.xlu0 %4903
  %4907 = vset.pattern.permute.xlu0 0
  %4908 = vperm.xlu0 %4907, %v3646
  %v4909 = vpop.permute.xlu0 %4908
  %4912 = vset.pattern.permute.xlu0 0
  %4913 = vperm.xlu0 %4912, %v3647
  %v4914 = vpop.permute.xlu0 %4913
  %4917 = vset.pattern.permute.xlu0 0
  %4918 = vperm.xlu0 %4917, %v3648
  %v4919 = vpop.permute.xlu0 %4918
  %4922 = vset.pattern.permute.xlu0 0
  %4923 = vperm.xlu0 %4922, %v3649
  %v4924 = vpop.permute.xlu0 %4923
  %4927 = vset.pattern.permute.xlu0 0
  %4928 = vperm.xlu0 %4927, %v3650
  %v4929 = vpop.permute.xlu0 %4928
  %v4931 = vmul.f32 %v2884, %v3654
  %v4932 = vmul.f32 %v2886, %v3659
  %v4933 = vmul.f32 %v2888, %v3664
  %v4934 = vmul.f32 %v2890, %v3669
  %v4935 = vmul.f32 %v2892, %v3674
  %v4936 = vmul.f32 %v2894, %v3679
  %v4937 = vmul.f32 %v2896, %v3684
  %v4938 = vmul.f32 %v2898, %v3689
  %v4939 = vmul.f32 %v2900, %v3694
  %v4940 = vmul.f32 %v2902, %v3699
  %v4941 = vmul.f32 %v2904, %v3704
  %v4942 = vmul.f32 %v2906, %v3709
  %v4943 = vmul.f32 %v2908, %v3714
  %v4944 = vmul.f32 %v2910, %v3719
  %v4945 = vmul.f32 %v2912, %v3724
  %v4946 = vmul.f32 %v2914, %v3729
  %v4947 = vmul.f32 %v2916, %v3734
  %v4948 = vmul.f32 %v2918, %v3739
  %v4949 = vmul.f32 %v2920, %v3744
  %v4950 = vmul.f32 %v2922, %v3749
  %v4951 = vmul.f32 %v2924, %v3754
  %v4952 = vmul.f32 %v2926, %v3759
  %v4953 = vmul.f32 %v2928, %v3764
  %v4954 = vmul.f32 %v2930, %v3769
  %v4955 = vmul.f32 %v2932, %v3774
  %v4956 = vmul.f32 %v2934, %v3779
  %v4957 = vmul.f32 %v2936, %v3784
  %v4958 = vmul.f32 %v2938, %v3789
  %v4959 = vmul.f32 %v2940, %v3794
  %v4960 = vmul.f32 %v2942, %v3799
  %v4961 = vmul.f32 %v2944, %v3804
  %v4962 = vmul.f32 %v2946, %v3809
  %v4963 = vmul.f32 %v2948, %v3814
  %v4964 = vmul.f32 %v2950, %v3819
  %v4965 = vmul.f32 %v2952, %v3824
  %v4966 = vmul.f32 %v2954, %v3829
  %v4967 = vmul.f32 %v2956, %v3834
  %v4968 = vmul.f32 %v2958, %v3839
  %v4969 = vmul.f32 %v2960, %v3844
  %v4970 = vmul.f32 %v2962, %v3849
  %v4971 = vmul.f32 %v2964, %v3854
  %v4972 = vmul.f32 %v2966, %v3859
  %v4973 = vmul.f32 %v2968, %v3864
  %v4974 = vmul.f32 %v2970, %v3869
  %v4975 = vmul.f32 %v2972, %v3874
  %v4976 = vmul.f32 %v2974, %v3879
  %v4977 = vmul.f32 %v2976, %v3884
  %v4978 = vmul.f32 %v2978, %v3889
  %v4979 = vmul.f32 %v2980, %v3894
  %v4980 = vmul.f32 %v2982, %v3899
  %v4981 = vmul.f32 %v2984, %v3904
  %v4982 = vmul.f32 %v2986, %v3909
  %v4983 = vmul.f32 %v2988, %v3914
  %v4984 = vmul.f32 %v2990, %v3919
  %v4985 = vmul.f32 %v2992, %v3924
  %v4986 = vmul.f32 %v2994, %v3929
  %v4987 = vmul.f32 %v2996, %v3934
  %v4988 = vmul.f32 %v2998, %v3939
  %v4989 = vmul.f32 %v3000, %v3944
  %v4990 = vmul.f32 %v3002, %v3949
  %v4991 = vmul.f32 %v3004, %v3954
  %v4992 = vmul.f32 %v3006, %v3959
  %v4993 = vmul.f32 %v3008, %v3964
  %v4994 = vmul.f32 %v3010, %v3969
  %v4995 = vmul.f32 %v3012, %v3974
  %v4996 = vmul.f32 %v3014, %v3979
  %v4997 = vmul.f32 %v3016, %v3984
  %v4998 = vmul.f32 %v3018, %v3989
  %v4999 = vmul.f32 %v3020, %v3994
  %v5000 = vmul.f32 %v3022, %v3999
  %v5001 = vmul.f32 %v3024, %v4004
  %v5002 = vmul.f32 %v3026, %v4009
  %v5003 = vmul.f32 %v3028, %v4014
  %v5004 = vmul.f32 %v3030, %v4019
  %v5005 = vmul.f32 %v3032, %v4024
  %v5006 = vmul.f32 %v3034, %v4029
  %v5007 = vmul.f32 %v3036, %v4034
  %v5008 = vmul.f32 %v3038, %v4039
  %v5009 = vmul.f32 %v3040, %v4044
  %v5010 = vmul.f32 %v3042, %v4049
  %v5011 = vmul.f32 %v3044, %v4054
  %v5012 = vmul.f32 %v3046, %v4059
  %v5013 = vmul.f32 %v3048, %v4064
  %v5014 = vmul.f32 %v3050, %v4069
  %v5015 = vmul.f32 %v3052, %v4074
  %v5016 = vmul.f32 %v3054, %v4079
  %v5017 = vmul.f32 %v3056, %v4084
  %v5018 = vmul.f32 %v3058, %v4089
  %v5019 = vmul.f32 %v3060, %v4094
  %v5020 = vmul.f32 %v3062, %v4099
  %v5021 = vmul.f32 %v3064, %v4104
  %v5022 = vmul.f32 %v3066, %v4109
  %v5023 = vmul.f32 %v3068, %v4114
  %v5024 = vmul.f32 %v3070, %v4119
  %v5025 = vmul.f32 %v3072, %v4124
  %v5026 = vmul.f32 %v3074, %v4129
  %v5027 = vmul.f32 %v3076, %v4134
  %v5028 = vmul.f32 %v3078, %v4139
  %v5029 = vmul.f32 %v3080, %v4144
  %v5030 = vmul.f32 %v3082, %v4149
  %v5031 = vmul.f32 %v3084, %v4154
  %v5032 = vmul.f32 %v3086, %v4159
  %v5033 = vmul.f32 %v3088, %v4164
  %v5034 = vmul.f32 %v3090, %v4169
  %v5035 = vmul.f32 %v3092, %v4174
  %v5036 = vmul.f32 %v3094, %v4179
  %v5037 = vmul.f32 %v3096, %v4184
  %v5038 = vmul.f32 %v3098, %v4189
  %v5039 = vmul.f32 %v3100, %v4194
  %v5040 = vmul.f32 %v3102, %v4199
  %v5041 = vmul.f32 %v3104, %v4204
  %v5042 = vmul.f32 %v3106, %v4209
  %v5043 = vmul.f32 %v3108, %v4214
  %v5044 = vmul.f32 %v3110, %v4219
  %v5045 = vmul.f32 %v3112, %v4224
  %v5046 = vmul.f32 %v3114, %v4229
  %v5047 = vmul.f32 %v3116, %v4234
  %v5048 = vmul.f32 %v3118, %v4239
  %v5049 = vmul.f32 %v3120, %v4244
  %v5050 = vmul.f32 %v3122, %v4249
  %v5051 = vmul.f32 %v3124, %v4254
  %v5052 = vmul.f32 %v3126, %v4259
  %v5053 = vmul.f32 %v3128, %v4264
  %v5054 = vmul.f32 %v3130, %v4269
  %v5055 = vmul.f32 %v3132, %v4274
  %v5056 = vmul.f32 %v3134, %v4279
  %v5057 = vmul.f32 %v3136, %v4284
  %v5058 = vmul.f32 %v3138, %v4289
  %v5059 = vmul.f32 %v3140, %v4294
  %v5060 = vmul.f32 %v3142, %v4299
  %v5061 = vmul.f32 %v3144, %v4304
  %v5062 = vmul.f32 %v3146, %v4309
  %v5063 = vmul.f32 %v3148, %v4314
  %v5064 = vmul.f32 %v3150, %v4319
  %v5065 = vmul.f32 %v3152, %v4324
  %v5066 = vmul.f32 %v3154, %v4329
  %v5067 = vmul.f32 %v3156, %v4334
  %v5068 = vmul.f32 %v3158, %v4339
  %v5069 = vmul.f32 %v3160, %v4344
  %v5070 = vmul.f32 %v3162, %v4349
  %v5071 = vmul.f32 %v3164, %v4354
  %v5072 = vmul.f32 %v3166, %v4359
  %v5073 = vmul.f32 %v3168, %v4364
  %v5074 = vmul.f32 %v3170, %v4369
  %v5075 = vmul.f32 %v3172, %v4374
  %v5076 = vmul.f32 %v3174, %v4379
  %v5077 = vmul.f32 %v3176, %v4384
  %v5078 = vmul.f32 %v3178, %v4389
  %v5079 = vmul.f32 %v3180, %v4394
  %v5080 = vmul.f32 %v3182, %v4399
  %v5081 = vmul.f32 %v3184, %v4404
  %v5082 = vmul.f32 %v3186, %v4409
  %v5083 = vmul.f32 %v3188, %v4414
  %v5084 = vmul.f32 %v3190, %v4419
  %v5085 = vmul.f32 %v3192, %v4424
  %v5086 = vmul.f32 %v3194, %v4429
  %v5087 = vmul.f32 %v3196, %v4434
  %v5088 = vmul.f32 %v3198, %v4439
  %v5089 = vmul.f32 %v3200, %v4444
  %v5090 = vmul.f32 %v3202, %v4449
  %v5091 = vmul.f32 %v3204, %v4454
  %v5092 = vmul.f32 %v3206, %v4459
  %v5093 = vmul.f32 %v3208, %v4464
  %v5094 = vmul.f32 %v3210, %v4469
  %v5095 = vmul.f32 %v3212, %v4474
  %v5096 = vmul.f32 %v3214, %v4479
  %v5097 = vmul.f32 %v3216, %v4484
  %v5098 = vmul.f32 %v3218, %v4489
  %v5099 = vmul.f32 %v3220, %v4494
  %v5100 = vmul.f32 %v3222, %v4499
  %v5101 = vmul.f32 %v3224, %v4504
  %v5102 = vmul.f32 %v3226, %v4509
  %v5103 = vmul.f32 %v3228, %v4514
  %v5104 = vmul.f32 %v3230, %v4519
  %v5105 = vmul.f32 %v3232, %v4524
  %v5106 = vmul.f32 %v3234, %v4529
  %v5107 = vmul.f32 %v3236, %v4534
  %v5108 = vmul.f32 %v3238, %v4539
  %v5109 = vmul.f32 %v3240, %v4544
  %v5110 = vmul.f32 %v3242, %v4549
  %v5111 = vmul.f32 %v3244, %v4554
  %v5112 = vmul.f32 %v3246, %v4559
  %v5113 = vmul.f32 %v3248, %v4564
  %v5114 = vmul.f32 %v3250, %v4569
  %v5115 = vmul.f32 %v3252, %v4574
  %v5116 = vmul.f32 %v3254, %v4579
  %v5117 = vmul.f32 %v3256, %v4584
  %v5118 = vmul.f32 %v3258, %v4589
  %v5119 = vmul.f32 %v3260, %v4594
  %v5120 = vmul.f32 %v3262, %v4599
  %v5121 = vmul.f32 %v3264, %v4604
  %v5122 = vmul.f32 %v3266, %v4609
  %v5123 = vmul.f32 %v3268, %v4614
  %v5124 = vmul.f32 %v3270, %v4619
  %v5125 = vmul.f32 %v3272, %v4624
  %v5126 = vmul.f32 %v3274, %v4629
  %v5127 = vmul.f32 %v3276, %v4634
  %v5128 = vmul.f32 %v3278, %v4639
  %v5129 = vmul.f32 %v3280, %v4644
  %v5130 = vmul.f32 %v3282, %v4649
  %v5131 = vmul.f32 %v3284, %v4654
  %v5132 = vmul.f32 %v3286, %v4659
  %v5133 = vmul.f32 %v3288, %v4664
  %v5134 = vmul.f32 %v3290, %v4669
  %v5135 = vmul.f32 %v3292, %v4674
  %v5136 = vmul.f32 %v3294, %v4679
  %v5137 = vmul.f32 %v3296, %v4684
  %v5138 = vmul.f32 %v3298, %v4689
  %v5139 = vmul.f32 %v3300, %v4694
  %v5140 = vmul.f32 %v3302, %v4699
  %v5141 = vmul.f32 %v3304, %v4704
  %v5142 = vmul.f32 %v3306, %v4709
  %v5143 = vmul.f32 %v3308, %v4714
  %v5144 = vmul.f32 %v3310, %v4719
  %v5145 = vmul.f32 %v3312, %v4724
  %v5146 = vmul.f32 %v3314, %v4729
  %v5147 = vmul.f32 %v3316, %v4734
  %v5148 = vmul.f32 %v3318, %v4739
  %v5149 = vmul.f32 %v3320, %v4744
  %v5150 = vmul.f32 %v3322, %v4749
  %v5151 = vmul.f32 %v3324, %v4754
  %v5152 = vmul.f32 %v3326, %v4759
  %v5153 = vmul.f32 %v3328, %v4764
  %v5154 = vmul.f32 %v3330, %v4769
  %v5155 = vmul.f32 %v3332, %v4774
  %v5156 = vmul.f32 %v3334, %v4779
  %v5157 = vmul.f32 %v3336, %v4784
  %v5158 = vmul.f32 %v3338, %v4789
  %v5159 = vmul.f32 %v3340, %v4794
  %v5160 = vmul.f32 %v3342, %v4799
  %v5161 = vmul.f32 %v3344, %v4804
  %v5162 = vmul.f32 %v3346, %v4809
  %v5163 = vmul.f32 %v3348, %v4814
  %v5164 = vmul.f32 %v3350, %v4819
  %v5165 = vmul.f32 %v3352, %v4824
  %v5166 = vmul.f32 %v3354, %v4829
  %v5167 = vmul.f32 %v3356, %v4834
  %v5168 = vmul.f32 %v3358, %v4839
  %v5169 = vmul.f32 %v3360, %v4844
  %v5170 = vmul.f32 %v3362, %v4849
  %v5171 = vmul.f32 %v3364, %v4854
  %v5172 = vmul.f32 %v3366, %v4859
  %v5173 = vmul.f32 %v3368, %v4864
  %v5174 = vmul.f32 %v3370, %v4869
  %v5175 = vmul.f32 %v3372, %v4874
  %v5176 = vmul.f32 %v3374, %v4879
  %v5177 = vmul.f32 %v3376, %v4884
  %v5178 = vmul.f32 %v3378, %v4889
  %v5179 = vmul.f32 %v3380, %v4894
  %v5180 = vmul.f32 %v3382, %v4899
  %v5181 = vmul.f32 %v3384, %v4904
  %v5182 = vmul.f32 %v3386, %v4909
  %v5183 = vmul.f32 %v3388, %v4914
  %v5184 = vmul.f32 %v3390, %v4919
  %v5185 = vmul.f32 %v3392, %v4924
  %v5186 = vmul.f32 %v3394, %v4929
  %5187 = vst [vmem:[%s4] sm:$0xff] %v4931
  %5188 = vst [vmem:[%s4 + $0x8] sm:$0xff] %v4932
  %5189 = vst [vmem:[%s4 + $0x10] sm:$0xff] %v4933
  %5190 = vst [vmem:[%s4 + $0x18] sm:$0xff] %v4934
  %5191 = vst [vmem:[%s4 + $0x20] sm:$0xff] %v4935
  %5192 = vst [vmem:[%s4 + $0x28] sm:$0xff] %v4936
  %5193 = vst [vmem:[%s4 + $0x30] sm:$0xff] %v4937
  %5194 = vst [vmem:[%s4 + $0x38] sm:$0xff] %v4938
  %5195 = vst [vmem:[%s4 + $0x40] sm:$0xff] %v4939
  %5196 = vst [vmem:[%s4 + $0x48] sm:$0xff] %v4940
  %5197 = vst [vmem:[%s4 + $0x50] sm:$0xff] %v4941
  %5198 = vst [vmem:[%s4 + $0x58] sm:$0xff] %v4942
  %5199 = vst [vmem:[%s4 + $0x60] sm:$0xff] %v4943
  %5200 = vst [vmem:[%s4 + $0x68] sm:$0xff] %v4944
  %5201 = vst [vmem:[%s4 + $0x70] sm:$0xff] %v4945
  %5202 = vst [vmem:[%s4 + $0x78] sm:$0xff] %v4946
  %5203 = vst [vmem:[%s4 + $0x80] sm:$0xff] %v4947
  %5204 = vst [vmem:[%s4 + $0x88] sm:$0xff] %v4948
  %5205 = vst [vmem:[%s4 + $0x90] sm:$0xff] %v4949
  %5206 = vst [vmem:[%s4 + $0x98] sm:$0xff] %v4950
  %5207 = vst [vmem:[%s4 + $0xa0] sm:$0xff] %v4951
  %5208 = vst [vmem:[%s4 + $0xa8] sm:$0xff] %v4952
  %5209 = vst [vmem:[%s4 + $0xb0] sm:$0xff] %v4953
  %5210 = vst [vmem:[%s4 + $0xb8] sm:$0xff] %v4954
  %5211 = vst [vmem:[%s4 + $0xc0] sm:$0xff] %v4955
  %5212 = vst [vmem:[%s4 + $0xc8] sm:$0xff] %v4956
  %5213 = vst [vmem:[%s4 + $0xd0] sm:$0xff] %v4957
  %5214 = vst [vmem:[%s4 + $0xd8] sm:$0xff] %v4958
  %5215 = vst [vmem:[%s4 + $0xe0] sm:$0xff] %v4959
  %5216 = vst [vmem:[%s4 + $0xe8] sm:$0xff] %v4960
  %5217 = vst [vmem:[%s4 + $0xf0] sm:$0xff] %v4961
  %5218 = vst [vmem:[%s4 + $0xf8] sm:$0xff] %v4962
  %5219 = vst [vmem:[%s4 + $0x100] sm:$0xff] %v4963
  %5220 = vst [vmem:[%s4 + $0x108] sm:$0xff] %v4964
  %5221 = vst [vmem:[%s4 + $0x110] sm:$0xff] %v4965
  %5222 = vst [vmem:[%s4 + $0x118] sm:$0xff] %v4966
  %5223 = vst [vmem:[%s4 + $0x120] sm:$0xff] %v4967
  %5224 = vst [vmem:[%s4 + $0x128] sm:$0xff] %v4968
  %5225 = vst [vmem:[%s4 + $0x130] sm:$0xff] %v4969
  %5226 = vst [vmem:[%s4 + $0x138] sm:$0xff] %v4970
  %5227 = vst [vmem:[%s4 + $0x140] sm:$0xff] %v4971
  %5228 = vst [vmem:[%s4 + $0x148] sm:$0xff] %v4972
  %5229 = vst [vmem:[%s4 + $0x150] sm:$0xff] %v4973
  %5230 = vst [vmem:[%s4 + $0x158] sm:$0xff] %v4974
  %5231 = vst [vmem:[%s4 + $0x160] sm:$0xff] %v4975
  %5232 = vst [vmem:[%s4 + $0x168] sm:$0xff] %v4976
  %5233 = vst [vmem:[%s4 + $0x170] sm:$0xff] %v4977
  %5234 = vst [vmem:[%s4 + $0x178] sm:$0xff] %v4978
  %5235 = vst [vmem:[%s4 + $0x180] sm:$0xff] %v4979
  %5236 = vst [vmem:[%s4 + $0x188] sm:$0xff] %v4980
  %5237 = vst [vmem:[%s4 + $0x190] sm:$0xff] %v4981
  %5238 = vst [vmem:[%s4 + $0x198] sm:$0xff] %v4982
  %5239 = vst [vmem:[%s4 + $0x1a0] sm:$0xff] %v4983
  %5240 = vst [vmem:[%s4 + $0x1a8] sm:$0xff] %v4984
  %5241 = vst [vmem:[%s4 + $0x1b0] sm:$0xff] %v4985
  %5242 = vst [vmem:[%s4 + $0x1b8] sm:$0xff] %v4986
  %5243 = vst [vmem:[%s4 + $0x1c0] sm:$0xff] %v4987
  %5244 = vst [vmem:[%s4 + $0x1c8] sm:$0xff] %v4988
  %5245 = vst [vmem:[%s4 + $0x1d0] sm:$0xff] %v4989
  %5246 = vst [vmem:[%s4 + $0x1d8] sm:$0xff] %v4990
  %5247 = vst [vmem:[%s4 + $0x1e0] sm:$0xff] %v4991
  %5248 = vst [vmem:[%s4 + $0x1e8] sm:$0xff] %v4992
  %5249 = vst [vmem:[%s4 + $0x1f0] sm:$0xff] %v4993
  %5250 = vst [vmem:[%s4 + $0x1f8] sm:$0xff] %v4994
  %5251 = vst [vmem:[%s4 + $0x200] sm:$0xff] %v4995
  %5252 = vst [vmem:[%s4 + $0x208] sm:$0xff] %v4996
  %5253 = vst [vmem:[%s4 + $0x210] sm:$0xff] %v4997
  %5254 = vst [vmem:[%s4 + $0x218] sm:$0xff] %v4998
  %5255 = vst [vmem:[%s4 + $0x220] sm:$0xff] %v4999
  %5256 = vst [vmem:[%s4 + $0x228] sm:$0xff] %v5000
  %5257 = vst [vmem:[%s4 + $0x230] sm:$0xff] %v5001
  %5258 = vst [vmem:[%s4 + $0x238] sm:$0xff] %v5002
  %5259 = vst [vmem:[%s4 + $0x240] sm:$0xff] %v5003
  %5260 = vst [vmem:[%s4 + $0x248] sm:$0xff] %v5004
  %5261 = vst [vmem:[%s4 + $0x250] sm:$0xff] %v5005
  %5262 = vst [vmem:[%s4 + $0x258] sm:$0xff] %v5006
  %5263 = vst [vmem:[%s4 + $0x260] sm:$0xff] %v5007
  %5264 = vst [vmem:[%s4 + $0x268] sm:$0xff] %v5008
  %5265 = vst [vmem:[%s4 + $0x270] sm:$0xff] %v5009
  %5266 = vst [vmem:[%s4 + $0x278] sm:$0xff] %v5010
  %5267 = vst [vmem:[%s4 + $0x280] sm:$0xff] %v5011
  %5268 = vst [vmem:[%s4 + $0x288] sm:$0xff] %v5012
  %5269 = vst [vmem:[%s4 + $0x290] sm:$0xff] %v5013
  %5270 = vst [vmem:[%s4 + $0x298] sm:$0xff] %v5014
  %5271 = vst [vmem:[%s4 + $0x2a0] sm:$0xff] %v5015
  %5272 = vst [vmem:[%s4 + $0x2a8] sm:$0xff] %v5016
  %5273 = vst [vmem:[%s4 + $0x2b0] sm:$0xff] %v5017
  %5274 = vst [vmem:[%s4 + $0x2b8] sm:$0xff] %v5018
  %5275 = vst [vmem:[%s4 + $0x2c0] sm:$0xff] %v5019
  %5276 = vst [vmem:[%s4 + $0x2c8] sm:$0xff] %v5020
  %5277 = vst [vmem:[%s4 + $0x2d0] sm:$0xff] %v5021
  %5278 = vst [vmem:[%s4 + $0x2d8] sm:$0xff] %v5022
  %5279 = vst [vmem:[%s4 + $0x2e0] sm:$0xff] %v5023
  %5280 = vst [vmem:[%s4 + $0x2e8] sm:$0xff] %v5024
  %5281 = vst [vmem:[%s4 + $0x2f0] sm:$0xff] %v5025
  %5282 = vst [vmem:[%s4 + $0x2f8] sm:$0xff] %v5026
  %5283 = vst [vmem:[%s4 + $0x300] sm:$0xff] %v5027
  %5284 = vst [vmem:[%s4 + $0x308] sm:$0xff] %v5028
  %5285 = vst [vmem:[%s4 + $0x310] sm:$0xff] %v5029
  %5286 = vst [vmem:[%s4 + $0x318] sm:$0xff] %v5030
  %5287 = vst [vmem:[%s4 + $0x320] sm:$0xff] %v5031
  %5288 = vst [vmem:[%s4 + $0x328] sm:$0xff] %v5032
  %5289 = vst [vmem:[%s4 + $0x330] sm:$0xff] %v5033
  %5290 = vst [vmem:[%s4 + $0x338] sm:$0xff] %v5034
  %5291 = vst [vmem:[%s4 + $0x340] sm:$0xff] %v5035
  %5292 = vst [vmem:[%s4 + $0x348] sm:$0xff] %v5036
  %5293 = vst [vmem:[%s4 + $0x350] sm:$0xff] %v5037
  %5294 = vst [vmem:[%s4 + $0x358] sm:$0xff] %v5038
  %5295 = vst [vmem:[%s4 + $0x360] sm:$0xff] %v5039
  %5296 = vst [vmem:[%s4 + $0x368] sm:$0xff] %v5040
  %5297 = vst [vmem:[%s4 + $0x370] sm:$0xff] %v5041
  %5298 = vst [vmem:[%s4 + $0x378] sm:$0xff] %v5042
  %5299 = vst [vmem:[%s4 + $0x380] sm:$0xff] %v5043
  %5300 = vst [vmem:[%s4 + $0x388] sm:$0xff] %v5044
  %5301 = vst [vmem:[%s4 + $0x390] sm:$0xff] %v5045
  %5302 = vst [vmem:[%s4 + $0x398] sm:$0xff] %v5046
  %5303 = vst [vmem:[%s4 + $0x3a0] sm:$0xff] %v5047
  %5304 = vst [vmem:[%s4 + $0x3a8] sm:$0xff] %v5048
  %5305 = vst [vmem:[%s4 + $0x3b0] sm:$0xff] %v5049
  %5306 = vst [vmem:[%s4 + $0x3b8] sm:$0xff] %v5050
  %5307 = vst [vmem:[%s4 + $0x3c0] sm:$0xff] %v5051
  %5308 = vst [vmem:[%s4 + $0x3c8] sm:$0xff] %v5052
  %5309 = vst [vmem:[%s4 + $0x3d0] sm:$0xff] %v5053
  %5310 = vst [vmem:[%s4 + $0x3d8] sm:$0xff] %v5054
  %5311 = vst [vmem:[%s4 + $0x3e0] sm:$0xff] %v5055
  %5312 = vst [vmem:[%s4 + $0x3e8] sm:$0xff] %v5056
  %5313 = vst [vmem:[%s4 + $0x3f0] sm:$0xff] %v5057
  %5314 = vst [vmem:[%s4 + $0x3f8] sm:$0xff] %v5058
  %5315 = vst [vmem:[%s4 + $0x400] sm:$0xff] %v5059
  %5316 = vst [vmem:[%s4 + $0x408] sm:$0xff] %v5060
  %5317 = vst [vmem:[%s4 + $0x410] sm:$0xff] %v5061
  %5318 = vst [vmem:[%s4 + $0x418] sm:$0xff] %v5062
  %5319 = vst [vmem:[%s4 + $0x420] sm:$0xff] %v5063
  %5320 = vst [vmem:[%s4 + $0x428] sm:$0xff] %v5064
  %5321 = vst [vmem:[%s4 + $0x430] sm:$0xff] %v5065
  %5322 = vst [vmem:[%s4 + $0x438] sm:$0xff] %v5066
  %5323 = vst [vmem:[%s4 + $0x440] sm:$0xff] %v5067
  %5324 = vst [vmem:[%s4 + $0x448] sm:$0xff] %v5068
  %5325 = vst [vmem:[%s4 + $0x450] sm:$0xff] %v5069
  %5326 = vst [vmem:[%s4 + $0x458] sm:$0xff] %v5070
  %5327 = vst [vmem:[%s4 + $0x460] sm:$0xff] %v5071
  %5328 = vst [vmem:[%s4 + $0x468] sm:$0xff] %v5072
  %5329 = vst [vmem:[%s4 + $0x470] sm:$0xff] %v5073
  %5330 = vst [vmem:[%s4 + $0x478] sm:$0xff] %v5074
  %5331 = vst [vmem:[%s4 + $0x480] sm:$0xff] %v5075
  %5332 = vst [vmem:[%s4 + $0x488] sm:$0xff] %v5076
  %5333 = vst [vmem:[%s4 + $0x490] sm:$0xff] %v5077
  %5334 = vst [vmem:[%s4 + $0x498] sm:$0xff] %v5078
  %5335 = vst [vmem:[%s4 + $0x4a0] sm:$0xff] %v5079
  %5336 = vst [vmem:[%s4 + $0x4a8] sm:$0xff] %v5080
  %5337 = vst [vmem:[%s4 + $0x4b0] sm:$0xff] %v5081
  %5338 = vst [vmem:[%s4 + $0x4b8] sm:$0xff] %v5082
  %5339 = vst [vmem:[%s4 + $0x4c0] sm:$0xff] %v5083
  %5340 = vst [vmem:[%s4 + $0x4c8] sm:$0xff] %v5084
  %5341 = vst [vmem:[%s4 + $0x4d0] sm:$0xff] %v5085
  %5342 = vst [vmem:[%s4 + $0x4d8] sm:$0xff] %v5086
  %5343 = vst [vmem:[%s4 + $0x4e0] sm:$0xff] %v5087
  %5344 = vst [vmem:[%s4 + $0x4e8] sm:$0xff] %v5088
  %5345 = vst [vmem:[%s4 + $0x4f0] sm:$0xff] %v5089
  %5346 = vst [vmem:[%s4 + $0x4f8] sm:$0xff] %v5090
  %5347 = vst [vmem:[%s4 + $0x500] sm:$0xff] %v5091
  %5348 = vst [vmem:[%s4 + $0x508] sm:$0xff] %v5092
  %5349 = vst [vmem:[%s4 + $0x510] sm:$0xff] %v5093
  %5350 = vst [vmem:[%s4 + $0x518] sm:$0xff] %v5094
  %5351 = vst [vmem:[%s4 + $0x520] sm:$0xff] %v5095
  %5352 = vst [vmem:[%s4 + $0x528] sm:$0xff] %v5096
  %5353 = vst [vmem:[%s4 + $0x530] sm:$0xff] %v5097
  %5354 = vst [vmem:[%s4 + $0x538] sm:$0xff] %v5098
  %5355 = vst [vmem:[%s4 + $0x540] sm:$0xff] %v5099
  %5356 = vst [vmem:[%s4 + $0x548] sm:$0xff] %v5100
  %5357 = vst [vmem:[%s4 + $0x550] sm:$0xff] %v5101
  %5358 = vst [vmem:[%s4 + $0x558] sm:$0xff] %v5102
  %5359 = vst [vmem:[%s4 + $0x560] sm:$0xff] %v5103
  %5360 = vst [vmem:[%s4 + $0x568] sm:$0xff] %v5104
  %5361 = vst [vmem:[%s4 + $0x570] sm:$0xff] %v5105
  %5362 = vst [vmem:[%s4 + $0x578] sm:$0xff] %v5106
  %5363 = vst [vmem:[%s4 + $0x580] sm:$0xff] %v5107
  %5364 = vst [vmem:[%s4 + $0x588] sm:$0xff] %v5108
  %5365 = vst [vmem:[%s4 + $0x590] sm:$0xff] %v5109
  %5366 = vst [vmem:[%s4 + $0x598] sm:$0xff] %v5110
  %5367 = vst [vmem:[%s4 + $0x5a0] sm:$0xff] %v5111
  %5368 = vst [vmem:[%s4 + $0x5a8] sm:$0xff] %v5112
  %5369 = vst [vmem:[%s4 + $0x5b0] sm:$0xff] %v5113
  %5370 = vst [vmem:[%s4 + $0x5b8] sm:$0xff] %v5114
  %5371 = vst [vmem:[%s4 + $0x5c0] sm:$0xff] %v5115
  %5372 = vst [vmem:[%s4 + $0x5c8] sm:$0xff] %v5116
  %5373 = vst [vmem:[%s4 + $0x5d0] sm:$0xff] %v5117
  %5374 = vst [vmem:[%s4 + $0x5d8] sm:$0xff] %v5118
  %5375 = vst [vmem:[%s4 + $0x5e0] sm:$0xff] %v5119
  %5376 = vst [vmem:[%s4 + $0x5e8] sm:$0xff] %v5120
  %5377 = vst [vmem:[%s4 + $0x5f0] sm:$0xff] %v5121
  %5378 = vst [vmem:[%s4 + $0x5f8] sm:$0xff] %v5122
  %5379 = vst [vmem:[%s4 + $0x600] sm:$0xff] %v5123
  %5380 = vst [vmem:[%s4 + $0x608] sm:$0xff] %v5124
  %5381 = vst [vmem:[%s4 + $0x610] sm:$0xff] %v5125
  %5382 = vst [vmem:[%s4 + $0x618] sm:$0xff] %v5126
  %5383 = vst [vmem:[%s4 + $0x620] sm:$0xff] %v5127
  %5384 = vst [vmem:[%s4 + $0x628] sm:$0xff] %v5128
  %5385 = vst [vmem:[%s4 + $0x630] sm:$0xff] %v5129
  %5386 = vst [vmem:[%s4 + $0x638] sm:$0xff] %v5130
  %5387 = vst [vmem:[%s4 + $0x640] sm:$0xff] %v5131
  %5388 = vst [vmem:[%s4 + $0x648] sm:$0xff] %v5132
  %5389 = vst [vmem:[%s4 + $0x650] sm:$0xff] %v5133
  %5390 = vst [vmem:[%s4 + $0x658] sm:$0xff] %v5134
  %5391 = vst [vmem:[%s4 + $0x660] sm:$0xff] %v5135
  %5392 = vst [vmem:[%s4 + $0x668] sm:$0xff] %v5136
  %5393 = vst [vmem:[%s4 + $0x670] sm:$0xff] %v5137
  %5394 = vst [vmem:[%s4 + $0x678] sm:$0xff] %v5138
  %5395 = vst [vmem:[%s4 + $0x680] sm:$0xff] %v5139
  %5396 = vst [vmem:[%s4 + $0x688] sm:$0xff] %v5140
  %5397 = vst [vmem:[%s4 + $0x690] sm:$0xff] %v5141
  %5398 = vst [vmem:[%s4 + $0x698] sm:$0xff] %v5142
  %5399 = vst [vmem:[%s4 + $0x6a0] sm:$0xff] %v5143
  %5400 = vst [vmem:[%s4 + $0x6a8] sm:$0xff] %v5144
  %5401 = vst [vmem:[%s4 + $0x6b0] sm:$0xff] %v5145
  %5402 = vst [vmem:[%s4 + $0x6b8] sm:$0xff] %v5146
  %5403 = vst [vmem:[%s4 + $0x6c0] sm:$0xff] %v5147
  %5404 = vst [vmem:[%s4 + $0x6c8] sm:$0xff] %v5148
  %5405 = vst [vmem:[%s4 + $0x6d0] sm:$0xff] %v5149
  %5406 = vst [vmem:[%s4 + $0x6d8] sm:$0xff] %v5150
  %5407 = vst [vmem:[%s4 + $0x6e0] sm:$0xff] %v5151
  %5408 = vst [vmem:[%s4 + $0x6e8] sm:$0xff] %v5152
  %5409 = vst [vmem:[%s4 + $0x6f0] sm:$0xff] %v5153
  %5410 = vst [vmem:[%s4 + $0x6f8] sm:$0xff] %v5154
  %5411 = vst [vmem:[%s4 + $0x700] sm:$0xff] %v5155
  %5412 = vst [vmem:[%s4 + $0x708] sm:$0xff] %v5156
  %5413 = vst [vmem:[%s4 + $0x710] sm:$0xff] %v5157
  %5414 = vst [vmem:[%s4 + $0x718] sm:$0xff] %v5158
  %5415 = vst [vmem:[%s4 + $0x720] sm:$0xff] %v5159
  %5416 = vst [vmem:[%s4 + $0x728] sm:$0xff] %v5160
  %5417 = vst [vmem:[%s4 + $0x730] sm:$0xff] %v5161
  %5418 = vst [vmem:[%s4 + $0x738] sm:$0xff] %v5162
  %5419 = vst [vmem:[%s4 + $0x740] sm:$0xff] %v5163
  %5420 = vst [vmem:[%s4 + $0x748] sm:$0xff] %v5164
  %5421 = vst [vmem:[%s4 + $0x750] sm:$0xff] %v5165
  %5422 = vst [vmem:[%s4 + $0x758] sm:$0xff] %v5166
  %5423 = vst [vmem:[%s4 + $0x760] sm:$0xff] %v5167
  %5424 = vst [vmem:[%s4 + $0x768] sm:$0xff] %v5168
  %5425 = vst [vmem:[%s4 + $0x770] sm:$0xff] %v5169
  %5426 = vst [vmem:[%s4 + $0x778] sm:$0xff] %v5170
  %5427 = vst [vmem:[%s4 + $0x780] sm:$0xff] %v5171
  %5428 = vst [vmem:[%s4 + $0x788] sm:$0xff] %v5172
  %5429 = vst [vmem:[%s4 + $0x790] sm:$0xff] %v5173
  %5430 = vst [vmem:[%s4 + $0x798] sm:$0xff] %v5174
  %5431 = vst [vmem:[%s4 + $0x7a0] sm:$0xff] %v5175
  %5432 = vst [vmem:[%s4 + $0x7a8] sm:$0xff] %v5176
  %5433 = vst [vmem:[%s4 + $0x7b0] sm:$0xff] %v5177
  %5434 = vst [vmem:[%s4 + $0x7b8] sm:$0xff] %v5178
  %5435 = vst [vmem:[%s4 + $0x7c0] sm:$0xff] %v5179
  %5436 = vst [vmem:[%s4 + $0x7c8] sm:$0xff] %v5180
  %5437 = vst [vmem:[%s4 + $0x7d0] sm:$0xff] %v5181
  %5438 = vst [vmem:[%s4 + $0x7d8] sm:$0xff] %v5182
  %5439 = vst [vmem:[%s4 + $0x7e0] sm:$0xff] %v5183
  %5440 = vst [vmem:[%s4 + $0x7e8] sm:$0xff] %v5184
  %5441 = vst [vmem:[%s4 + $0x7f0] sm:$0xff] %v5185
  %5442 = vst [vmem:[%s4 + $0x7f8] sm:$0xff] %v5186
  // Predicated region
  $region18: #{flow_diffusion_forward.10} parent=0 // pred_check
    _
  $region19: #{flow_diffusion_forward.10} parent=0 // pred_check_branch
    %5444 = sbr.rel (0) target = $region21
  $region20: #{flow_diffusion_forward.10} parent=0 // pred_region
    _
  $region21: #{flow_diffusion_forward.10} parent=0 // pred_fallthru
    _
  // Predicated region
  $region22: #{flow_diffusion_forward.10} parent=0 // pred_check
    _
  $region23: #{flow_diffusion_forward.10} parent=0 // pred_check_branch
    %5446 = sbr.rel (0) target = $region25
  $region24: #{flow_diffusion_forward.10} parent=0 // pred_region
    _
  $region25: #{flow_diffusion_forward.10} parent=0 // pred_fallthru
    _

</llo_original>
